<compile_context>
chip_gen: v5e
topology: v5e:2x2
jax: 0.10.0
libtpu: 0.0.40
codegen_flags: <defaults>
</compile_context>

<pallas_src>
import functools
import math

import jax
import jax.numpy as jnp
from jax import lax
from jax.experimental import pallas as pl
from jax.experimental.pallas import tpu as pltpu

DIM = 768   # config['dim'] -> ViT / BERT hidden size (pooler output width)
EMB = 512   # FFN output dim == CrossAttention dim
HID = 1024  # FusionFFN hidden_dim
OUT = 512   # FusionFFN output_dim
INV_SCALE = 1.0 / math.sqrt(EMB)


# ----------------------------- fused Pallas kernel ---------------------------

def _fused_kernel(x_ref, ffn_w_ref, ffn_b_ref,
                  wq_ref, bq_ref, wk_ref, bk_ref, wv_ref, bv_ref,
                  w1a_ref, w1b_ref, b1_ref, w2_ref, b2_ref,
                  o_ref, *, n_valid):
    bp = o_ref.shape[0]                     # padded batch (multiple of 16)
    bf16, f32 = jnp.bfloat16, jnp.float32

    def mm(a, w_ref_):                      # bf16 x bf16 -> f32 accumulate
        return jnp.dot(a, w_ref_[...], preferred_element_type=f32)

    x = x_ref[...]                                          # (2*Bp, 768) bf16

    # shared FFN(768 -> 512) applied once to [vit ; bert] stacked on rows
    r = mm(x, ffn_w_ref) + ffn_b_ref[...]                   # (2*Bp, 512) f32
    r_bf = r.astype(bf16)

    # shared CrossAttention projections, computed once for the stacked rows
    q = (mm(r_bf, wq_ref) + bq_ref[...]) * f32(INV_SCALE)   # (qW+b)/sqrt(d)
    k = mm(r_bf, wk_ref) + bk_ref[...]
    v = mm(r_bf, wv_ref) + bv_ref[...]

    q_vit, q_bert = q[:bp].astype(bf16), q[bp:].astype(bf16)
    k_vit, k_bert = k[:bp].astype(bf16), k[bp:].astype(bf16)
    v_vit, v_bert = v[:bp].astype(bf16), v[bp:].astype(bf16)

    # key-column mask: softmax runs over the (padded) batch axis
    col_is_valid = lax.broadcasted_iota(jnp.int32, (bp, bp), 1) < n_valid
    neg_big = f32(-1e30)

    def attend(q_b, k_b, v_b):
        # contract last (feature) dims directly -> no explicit k transpose
        s = lax.dot_general(q_b, k_b, (((1,), (1,)), ((), ())),
                            preferred_element_type=f32)     # (Bp, Bp)
        s = jnp.where(col_is_valid, s, neg_big)
        s = s - jnp.max(s, axis=-1, keepdims=True)          # stable softmax
        p = jnp.exp(s)
        p = p * pl.reciprocal(jnp.sum(p, axis=-1, keepdims=True), approx=True)
        return jnp.dot(p.astype(bf16), v_b, preferred_element_type=f32)

    # vit_att = CA(queries=bert_r, keys/values=vit_r);  bert_att vice versa
    vit_att = attend(q_bert, k_vit, v_vit)                  # (Bp, 512)
    bert_att = attend(q_vit, k_bert, v_bert)                # (Bp, 512)

    # FusionFFN: concat(a, b) @ W1 + b1 == a @ W1[:512] + b @ W1[512:] + b1
    h = (mm(vit_att.astype(bf16), w1a_ref)
         + mm(bert_att.astype(bf16), w1b_ref)
         + b1_ref[...])
    h = jnp.maximum(h, 0.0)                                 # ReLU
    o_ref[...] = mm(h.astype(bf16), w2_ref) + b2_ref[...]


# ----------------------------- pallas_call wrapper ---------------------------

def _full_spec(shape):
    # whole-array block; grid=(1,) so index_map takes one (ignored) index
    return pl.BlockSpec(shape, lambda i: (0,) * len(shape))


def base_model_forward(vit_features, bert_features, params):
    # TODO(synk): pretrained ViTModel / BertModel (+ tokenizer, vocab json) are
    # external checkpoints with no Pallas equivalent; vit_features /
    # bert_features here stand in for the two pooler outputs.
    B = vit_features.shape[0]
    bp = ((B + 15) // 16) * 16              # pad batch to a bf16 sublane tile
    pad = bp - B

    vit_p = jnp.pad(vit_features, ((0, pad), (0, 0)))
    bert_p = jnp.pad(bert_features, ((0, pad), (0, 0)))
    x = jnp.concatenate([vit_p, bert_p], axis=0).astype(jnp.bfloat16)

    p = params
    kernel = functools.partial(_fused_kernel, n_valid=B)
    fused = pl.pallas_call(
        kernel,
        grid=(1,),
        out_shape=jax.ShapeDtypeStruct((bp, OUT), jnp.float32),
        in_specs=[
            _full_spec((2 * bp, DIM)),                                   # x
            _full_spec((DIM, EMB)), _full_spec((1, EMB)),                # FFN
            _full_spec((EMB, EMB)), _full_spec((1, EMB)),                # Wq/bq
            _full_spec((EMB, EMB)), _full_spec((1, EMB)),                # Wk/bk
            _full_spec((EMB, EMB)), _full_spec((1, EMB)),                # Wv/bv
            _full_spec((EMB, HID)), _full_spec((EMB, HID)),              # W1 split
            _full_spec((1, HID)),
            _full_spec((HID, OUT)), _full_spec((1, OUT)),                # W2/b2
        ],
        out_specs=_full_spec((bp, OUT)),
        compiler_params=pltpu.CompilerParams(
            dimension_semantics=("arbitrary",),
            vmem_limit_bytes=32 * 1024 * 1024),
    )(x,
      p["ffn_w"], p["ffn_b"],
      p["ca_wq"], p["ca_bq"], p["ca_wk"], p["ca_bk"], p["ca_wv"], p["ca_bv"],
      p["fu_w1a"], p["fu_w1b"], p["fu_b1"], p["fu_w2"], p["fu_b2"])

    # PyTorch output carries the unsqueeze(0) bmm-batch dim -> (1, B, 512)
    return fused[:B][None]


# ----------------------------- params / reference ----------------------------

def init_params(key):
    """nn.Linear-style U(-1/sqrt(fan_in), +1/sqrt(fan_in)); weights in bf16."""
    ks = jax.random.split(key, 12)

    def lin(kw, kb, fan_in, fan_out):
        bound = 1.0 / math.sqrt(fan_in)
        w = jax.random.uniform(kw, (fan_in, fan_out), jnp.float32, -bound, bound)
        b = jax.random.uniform(kb, (1, fan_out), jnp.float32, -bound, bound)
        return w.astype(jnp.bfloat16), b            # bf16 weight, f32 bias

    p = {}
    p["ffn_w"], p["ffn_b"] = lin(ks[0], ks[1], DIM, EMB)       # shared FFN 768->512
    p["ca_wq"], p["ca_bq"] = lin(ks[2], ks[3], EMB, EMB)       # shared CrossAttention
    p["ca_wk"], p["ca_bk"] = lin(ks[4], ks[5], EMB, EMB)
    p["ca_wv"], p["ca_bv"] = lin(ks[6], ks[7], EMB, EMB)
    w1, p["fu_b1"] = lin(ks[8], ks[9], 2 * EMB, HID)           # FusionFFN fc1
    p["fu_w1a"], p["fu_w1b"] = w1[:EMB], w1[EMB:]
    p["fu_w2"], p["fu_b2"] = lin(ks[10], ks[11], HID, OUT)     # FusionFFN fc2
    return p


def reference_forward(vit_features, bert_features, params):
    """Pure-JAX reference with the same bf16-weight / f32-accumulate math."""
    bf16, f32 = jnp.bfloat16, jnp.float32
    p = params

    def mm(a, w):
        return jnp.dot(a.astype(bf16), w, preferred_element_type=f32)

    vit_r = mm(vit_features, p["ffn_w"]) + p["ffn_b"]
    bert_r = mm(bert_features, p["ffn_w"]) + p["ffn_b"]

    def cross_attention(queries, keys_values):
        q = (mm(queries, p["ca_wq"]) + p["ca_bq"]) * INV_SCALE
        k = mm(keys_values, p["ca_wk"]) + p["ca_bk"]
        v = mm(keys_values, p["ca_wv"]) + p["ca_bv"]
        s = jnp.dot(q.astype(bf16), k.astype(bf16).T, preferred_element_type=f32)
        pr = jax.nn.softmax(s, axis=-1)
        return jnp.dot(pr.astype(bf16), v.astype(bf16), preferred_element_type=f32)

    vit_att = cross_attention(bert_r, vit_r)
    bert_att = cross_attention(vit_r, bert_r)

    h = mm(vit_att, p["fu_w1a"]) + mm(bert_att, p["fu_w1b"]) + p["fu_b1"]
    h = jnp.maximum(h, 0.0)
    out = mm(h, p["fu_w2"]) + p["fu_b2"]
    return out[None]


# ----------------------------------- main ------------------------------------

if __name__ == "__main__":
    B = 2
    key = jax.random.PRNGKey(0)
    k_vit, k_bert, k_param = jax.random.split(key, 3)

    # deterministic stand-ins for ViT / BERT pooler outputs
    vit_features = jax.random.normal(k_vit, (B, DIM), jnp.float32)
    bert_features = jax.random.normal(k_bert, (B, DIM), jnp.float32)

    params = init_params(k_param)

    out = base_model_forward(vit_features, bert_features, params)
    out = jax.block_until_ready(out)

    assert out.shape == (1, B, OUT), out.shape
    assert bool(jnp.all(jnp.isfinite(out)))

    ref = reference_forward(vit_features, bert_features, params)
    max_err = float(jnp.max(jnp.abs(out - ref)))
    assert bool(jnp.allclose(out, ref, rtol=5e-2, atol=5e-2)), max_err

    print("KERNEL_OK")
</pallas_src>

<mosaic_0001>
module attributes {stable_mosaic.version = 11 : i64} {
  func.func @_fused_kernel(%arg0: i32, %arg1: memref<32x768xbf16, #tpu.memory_space<vmem>>, %arg2: memref<768x512xbf16, #tpu.memory_space<vmem>>, %arg3: memref<1x512xf32, #tpu.memory_space<vmem>>, %arg4: memref<512x512xbf16, #tpu.memory_space<vmem>>, %arg5: memref<1x512xf32, #tpu.memory_space<vmem>>, %arg6: memref<512x512xbf16, #tpu.memory_space<vmem>>, %arg7: memref<1x512xf32, #tpu.memory_space<vmem>>, %arg8: memref<512x512xbf16, #tpu.memory_space<vmem>>, %arg9: memref<1x512xf32, #tpu.memory_space<vmem>>, %arg10: memref<512x1024xbf16, #tpu.memory_space<vmem>>, %arg11: memref<512x1024xbf16, #tpu.memory_space<vmem>>, %arg12: memref<1x1024xf32, #tpu.memory_space<vmem>>, %arg13: memref<1024x512xbf16, #tpu.memory_space<vmem>>, %arg14: memref<1x512xf32, #tpu.memory_space<vmem>>, %arg15: memref<16x512xf32, #tpu.memory_space<vmem>>) attributes {dimension_semantics = [#tpu.dimension_semantics<arbitrary>], iteration_bounds = array<i64: 1>, scalar_prefetch = 0 : i64, scratch_operands = 0 : i64, tpu.core_type = #tpu.core_type<tc>, window_params = [{pipeline_mode = #tpu.pipeline_mode<synchronous>, transform_indices = @transform_0, window_bounds = array<i64: 32, 768>}, {pipeline_mode = #tpu.pipeline_mode<synchronous>, transform_indices = @transform_1, window_bounds = array<i64: 768, 512>}, {pipeline_mode = #tpu.pipeline_mode<synchronous>, transform_indices = @transform_2, window_bounds = array<i64: 1, 512>}, {pipeline_mode = #tpu.pipeline_mode<synchronous>, transform_indices = @transform_3, window_bounds = array<i64: 512, 512>}, {pipeline_mode = #tpu.pipeline_mode<synchronous>, transform_indices = @transform_4, window_bounds = array<i64: 1, 512>}, {pipeline_mode = #tpu.pipeline_mode<synchronous>, transform_indices = @transform_5, window_bounds = array<i64: 512, 512>}, {pipeline_mode = #tpu.pipeline_mode<synchronous>, transform_indices = @transform_6, window_bounds = array<i64: 1, 512>}, {pipeline_mode = #tpu.pipeline_mode<synchronous>, transform_indices = @transform_7, window_bounds = array<i64: 512, 512>}, {pipeline_mode = #tpu.pipeline_mode<synchronous>, transform_indices = @transform_8, window_bounds = array<i64: 1, 512>}, {pipeline_mode = #tpu.pipeline_mode<synchronous>, transform_indices = @transform_9, window_bounds = array<i64: 512, 1024>}, {pipeline_mode = #tpu.pipeline_mode<synchronous>, transform_indices = @transform_10, window_bounds = array<i64: 512, 1024>}, {pipeline_mode = #tpu.pipeline_mode<synchronous>, transform_indices = @transform_11, window_bounds = array<i64: 1, 1024>}, {pipeline_mode = #tpu.pipeline_mode<synchronous>, transform_indices = @transform_12, window_bounds = array<i64: 1024, 512>}, {pipeline_mode = #tpu.pipeline_mode<synchronous>, transform_indices = @transform_13, window_bounds = array<i64: 1, 512>}, {pipeline_mode = #tpu.pipeline_mode<synchronous>, transform_indices = @transform_14, window_bounds = array<i64: 16, 512>}]} {
    %c0 = arith.constant 0 : index
    %c0_0 = arith.constant 0 : index
    %0 = vector.load %arg1[%c0, %c0_0] : memref<32x768xbf16, #tpu.memory_space<vmem>>, vector<32x768xbf16>
    %c0_1 = arith.constant 0 : index
    %c0_2 = arith.constant 0 : index
    %1 = vector.load %arg2[%c0_1, %c0_2] : memref<768x512xbf16, #tpu.memory_space<vmem>>, vector<768x512xbf16>
    %cst = arith.constant dense<0.000000e+00> : vector<32x512xf32>
    %2 = tpu.matmul %0, %1, %cst {dimension_numbers = #tpu.dot_dimension_numbers<[1], [0], [0], [1], [0, 0, 1, 1], [], []>} : vector<32x768xbf16>, vector<768x512xbf16>, vector<32x512xf32> -> vector<32x512xf32>
    %c0_3 = arith.constant 0 : index
    %c0_4 = arith.constant 0 : index
    %3 = vector.load %arg3[%c0_3, %c0_4] : memref<1x512xf32, #tpu.memory_space<vmem>>, vector<1x512xf32>
    %4 = vector.broadcast %3 : vector<1x512xf32> to vector<32x512xf32>
    %5 = arith.addf %2, %4 : vector<32x512xf32>
    %6 = arith.truncf %5 : vector<32x512xf32> to vector<32x512xbf16>
    %c0_5 = arith.constant 0 : index
    %c0_6 = arith.constant 0 : index
    %7 = vector.load %arg4[%c0_5, %c0_6] : memref<512x512xbf16, #tpu.memory_space<vmem>>, vector<512x512xbf16>
    %cst_7 = arith.constant dense<0.000000e+00> : vector<32x512xf32>
    %8 = tpu.matmul %6, %7, %cst_7 {dimension_numbers = #tpu.dot_dimension_numbers<[1], [0], [0], [1], [0, 0, 1, 1], [], []>} : vector<32x512xbf16>, vector<512x512xbf16>, vector<32x512xf32> -> vector<32x512xf32>
    %c0_8 = arith.constant 0 : index
    %c0_9 = arith.constant 0 : index
    %9 = vector.load %arg5[%c0_8, %c0_9] : memref<1x512xf32, #tpu.memory_space<vmem>>, vector<1x512xf32>
    %10 = vector.broadcast %9 : vector<1x512xf32> to vector<32x512xf32>
    %11 = arith.addf %8, %10 : vector<32x512xf32>
    %cst_10 = arith.constant 0.0441941731 : f32
    %12 = vector.broadcast %cst_10 : f32 to vector<32x512xf32>
    %13 = arith.mulf %11, %12 : vector<32x512xf32>
    %c0_11 = arith.constant 0 : index
    %c0_12 = arith.constant 0 : index
    %14 = vector.load %arg6[%c0_11, %c0_12] : memref<512x512xbf16, #tpu.memory_space<vmem>>, vector<512x512xbf16>
    %cst_13 = arith.constant dense<0.000000e+00> : vector<32x512xf32>
    %15 = tpu.matmul %6, %14, %cst_13 {dimension_numbers = #tpu.dot_dimension_numbers<[1], [0], [0], [1], [0, 0, 1, 1], [], []>} : vector<32x512xbf16>, vector<512x512xbf16>, vector<32x512xf32> -> vector<32x512xf32>
    %c0_14 = arith.constant 0 : index
    %c0_15 = arith.constant 0 : index
    %16 = vector.load %arg7[%c0_14, %c0_15] : memref<1x512xf32, #tpu.memory_space<vmem>>, vector<1x512xf32>
    %17 = vector.broadcast %16 : vector<1x512xf32> to vector<32x512xf32>
    %18 = arith.addf %15, %17 : vector<32x512xf32>
    %c0_16 = arith.constant 0 : index
    %c0_17 = arith.constant 0 : index
    %19 = vector.load %arg8[%c0_16, %c0_17] : memref<512x512xbf16, #tpu.memory_space<vmem>>, vector<512x512xbf16>
    %cst_18 = arith.constant dense<0.000000e+00> : vector<32x512xf32>
    %20 = tpu.matmul %6, %19, %cst_18 {dimension_numbers = #tpu.dot_dimension_numbers<[1], [0], [0], [1], [0, 0, 1, 1], [], []>} : vector<32x512xbf16>, vector<512x512xbf16>, vector<32x512xf32> -> vector<32x512xf32>
    %c0_19 = arith.constant 0 : index
    %c0_20 = arith.constant 0 : index
    %21 = vector.load %arg9[%c0_19, %c0_20] : memref<1x512xf32, #tpu.memory_space<vmem>>, vector<1x512xf32>
    %22 = vector.broadcast %21 : vector<1x512xf32> to vector<32x512xf32>
    %23 = arith.addf %20, %22 : vector<32x512xf32>
    %24 = vector.extract_strided_slice %13 {offsets = [0, 0], sizes = [16, 512], strides = [1, 1]} : vector<32x512xf32> to vector<16x512xf32>
    %25 = arith.truncf %24 : vector<16x512xf32> to vector<16x512xbf16>
    %26 = vector.extract_strided_slice %13 {offsets = [16, 0], sizes = [16, 512], strides = [1, 1]} : vector<32x512xf32> to vector<16x512xf32>
    %27 = arith.truncf %26 : vector<16x512xf32> to vector<16x512xbf16>
    %28 = vector.extract_strided_slice %18 {offsets = [0, 0], sizes = [16, 512], strides = [1, 1]} : vector<32x512xf32> to vector<16x512xf32>
    %29 = arith.truncf %28 : vector<16x512xf32> to vector<16x512xbf16>
    %30 = vector.extract_strided_slice %18 {offsets = [16, 0], sizes = [16, 512], strides = [1, 1]} : vector<32x512xf32> to vector<16x512xf32>
    %31 = arith.truncf %30 : vector<16x512xf32> to vector<16x512xbf16>
    %32 = vector.extract_strided_slice %23 {offsets = [0, 0], sizes = [16, 512], strides = [1, 1]} : vector<32x512xf32> to vector<16x512xf32>
    %33 = arith.truncf %32 : vector<16x512xf32> to vector<16x512xbf16>
    %34 = vector.extract_strided_slice %23 {offsets = [16, 0], sizes = [16, 512], strides = [1, 1]} : vector<32x512xf32> to vector<16x512xf32>
    %35 = arith.truncf %34 : vector<16x512xf32> to vector<16x512xbf16>
    %36 = tpu.iota {dimensions = array<i32: 1>} : vector<16x16xi32>
    %c2_i32 = arith.constant 2 : i32
    %37 = vector.broadcast %c2_i32 : i32 to vector<16x16xi32>
    %38 = arith.cmpi slt, %36, %37 : vector<16x16xi32>
    %cst_21 = arith.constant dense<0.000000e+00> : vector<16x16xf32>
    %39 = tpu.matmul %27, %29, %cst_21 {dimension_numbers = #tpu.dot_dimension_numbers<[1], [1], [0], [0], [0, 0, 1, 0], [], []>} : vector<16x512xbf16>, vector<16x512xbf16>, vector<16x16xf32> -> vector<16x16xf32>
    %cst_22 = arith.constant -1.000000e+30 : f32
    %40 = vector.broadcast %cst_22 : f32 to vector<16x16xf32>
    %41 = arith.select %38, %39, %40 : vector<16x16xi1>, vector<16x16xf32>
    %cst_23 = arith.constant dense<0xFF800000> : vector<16xf32>
    %42 = vector.multi_reduction <maximumf>, %41, %cst_23 [1] : vector<16x16xf32> to vector<16xf32>
    %43 = vector.shape_cast %42 : vector<16xf32> to vector<16x1xf32>
    %44 = vector.broadcast %43 : vector<16x1xf32> to vector<16x16xf32>
    %45 = arith.subf %41, %44 : vector<16x16xf32>
    %46 = math.exp %45 : vector<16x16xf32>
    %cst_24 = arith.constant dense<0.000000e+00> : vector<16xf32>
    %47 = vector.multi_reduction <add>, %46, %cst_24 [1] : vector<16x16xf32> to vector<16xf32>
    %48 = vector.shape_cast %47 : vector<16xf32> to vector<16x1xf32>
    %49 = tpu.reciprocal %48 {approx = true} : vector<16x1xf32> -> vector<16x1xf32>
    %50 = vector.broadcast %49 : vector<16x1xf32> to vector<16x16xf32>
    %51 = arith.mulf %46, %50 : vector<16x16xf32>
    %52 = arith.truncf %51 : vector<16x16xf32> to vector<16x16xbf16>
    %cst_25 = arith.constant dense<0.000000e+00> : vector<16x512xf32>
    %53 = tpu.matmul %52, %33, %cst_25 {dimension_numbers = #tpu.dot_dimension_numbers<[1], [0], [0], [1], [0, 0, 1, 1], [], []>} : vector<16x16xbf16>, vector<16x512xbf16>, vector<16x512xf32> -> vector<16x512xf32>
    %cst_26 = arith.constant dense<0.000000e+00> : vector<16x16xf32>
    %54 = tpu.matmul %25, %31, %cst_26 {dimension_numbers = #tpu.dot_dimension_numbers<[1], [1], [0], [0], [0, 0, 1, 0], [], []>} : vector<16x512xbf16>, vector<16x512xbf16>, vector<16x16xf32> -> vector<16x16xf32>
    %cst_27 = arith.constant -1.000000e+30 : f32
    %55 = vector.broadcast %cst_27 : f32 to vector<16x16xf32>
    %56 = arith.select %38, %54, %55 : vector<16x16xi1>, vector<16x16xf32>
    %cst_28 = arith.constant dense<0xFF800000> : vector<16xf32>
    %57 = vector.multi_reduction <maximumf>, %56, %cst_28 [1] : vector<16x16xf32> to vector<16xf32>
    %58 = vector.shape_cast %57 : vector<16xf32> to vector<16x1xf32>
    %59 = vector.broadcast %58 : vector<16x1xf32> to vector<16x16xf32>
    %60 = arith.subf %56, %59 : vector<16x16xf32>
    %61 = math.exp %60 : vector<16x16xf32>
    %cst_29 = arith.constant dense<0.000000e+00> : vector<16xf32>
    %62 = vector.multi_reduction <add>, %61, %cst_29 [1] : vector<16x16xf32> to vector<16xf32>
    %63 = vector.shape_cast %62 : vector<16xf32> to vector<16x1xf32>
    %64 = tpu.reciprocal %63 {approx = true} : vector<16x1xf32> -> vector<16x1xf32>
    %65 = vector.broadcast %64 : vector<16x1xf32> to vector<16x16xf32>
    %66 = arith.mulf %61, %65 : vector<16x16xf32>
    %67 = arith.truncf %66 : vector<16x16xf32> to vector<16x16xbf16>
    %cst_30 = arith.constant dense<0.000000e+00> : vector<16x512xf32>
    %68 = tpu.matmul %67, %35, %cst_30 {dimension_numbers = #tpu.dot_dimension_numbers<[1], [0], [0], [1], [0, 0, 1, 1], [], []>} : vector<16x16xbf16>, vector<16x512xbf16>, vector<16x512xf32> -> vector<16x512xf32>
    %69 = arith.truncf %53 : vector<16x512xf32> to vector<16x512xbf16>
    %c0_31 = arith.constant 0 : index
    %c0_32 = arith.constant 0 : index
    %70 = vector.load %arg10[%c0_31, %c0_32] : memref<512x1024xbf16, #tpu.memory_space<vmem>>, vector<512x1024xbf16>
    %cst_33 = arith.constant dense<0.000000e+00> : vector<16x1024xf32>
    %71 = tpu.matmul %69, %70, %cst_33 {dimension_numbers = #tpu.dot_dimension_numbers<[1], [0], [0], [1], [0, 0, 1, 1], [], []>} : vector<16x512xbf16>, vector<512x1024xbf16>, vector<16x1024xf32> -> vector<16x1024xf32>
    %72 = arith.truncf %68 : vector<16x512xf32> to vector<16x512xbf16>
    %c0_34 = arith.constant 0 : index
    %c0_35 = arith.constant 0 : index
    %73 = vector.load %arg11[%c0_34, %c0_35] : memref<512x1024xbf16, #tpu.memory_space<vmem>>, vector<512x1024xbf16>
    %cst_36 = arith.constant dense<0.000000e+00> : vector<16x1024xf32>
    %74 = tpu.matmul %72, %73, %cst_36 {dimension_numbers = #tpu.dot_dimension_numbers<[1], [0], [0], [1], [0, 0, 1, 1], [], []>} : vector<16x512xbf16>, vector<512x1024xbf16>, vector<16x1024xf32> -> vector<16x1024xf32>
    %75 = arith.addf %71, %74 : vector<16x1024xf32>
    %c0_37 = arith.constant 0 : index
    %c0_38 = arith.constant 0 : index
    %76 = vector.load %arg12[%c0_37, %c0_38] : memref<1x1024xf32, #tpu.memory_space<vmem>>, vector<1x1024xf32>
    %77 = vector.broadcast %76 : vector<1x1024xf32> to vector<16x1024xf32>
    %78 = arith.addf %75, %77 : vector<16x1024xf32>
    %cst_39 = arith.constant 0.000000e+00 : f32
    %79 = vector.broadcast %cst_39 : f32 to vector<16x1024xf32>
    %80 = arith.maximumf %78, %79 : vector<16x1024xf32>
    %81 = arith.truncf %80 : vector<16x1024xf32> to vector<16x1024xbf16>
    %c0_40 = arith.constant 0 : index
    %c0_41 = arith.constant 0 : index
    %82 = vector.load %arg13[%c0_40, %c0_41] : memref<1024x512xbf16, #tpu.memory_space<vmem>>, vector<1024x512xbf16>
    %cst_42 = arith.constant dense<0.000000e+00> : vector<16x512xf32>
    %83 = tpu.matmul %81, %82, %cst_42 {dimension_numbers = #tpu.dot_dimension_numbers<[1], [0], [0], [1], [0, 0, 1, 1], [], []>} : vector<16x1024xbf16>, vector<1024x512xbf16>, vector<16x512xf32> -> vector<16x512xf32>
    %c0_43 = arith.constant 0 : index
    %c0_44 = arith.constant 0 : index
    %84 = vector.load %arg14[%c0_43, %c0_44] : memref<1x512xf32, #tpu.memory_space<vmem>>, vector<1x512xf32>
    %85 = vector.broadcast %84 : vector<1x512xf32> to vector<16x512xf32>
    %86 = arith.addf %83, %85 : vector<16x512xf32>
    %c0_45 = arith.constant 0 : index
    %c0_46 = arith.constant 0 : index
    %87 = vector.load %arg15[%c0_45, %c0_46] : memref<16x512xf32, #tpu.memory_space<vmem>>, vector<16x512xf32>
    tpu.vector_store %arg15[%c0_45, %c0_46], %86 {strides = array<i32>} : memref<16x512xf32, #tpu.memory_space<vmem>>, vector<16x512xf32>,
    return
  }
  func.func @transform_0(%arg0: i32) -> (i32, i32) {
    %c0_i32 = arith.constant 0 : i32
    %c0_i32_0 = arith.constant 0 : i32
    %c0_i32_1 = arith.constant 0 : i32
    return %c0_i32, %c0_i32_0 : i32, i32
  }
  func.func @transform_1(%arg0: i32) -> (i32, i32) {
    %c0_i32 = arith.constant 0 : i32
    %c0_i32_0 = arith.constant 0 : i32
    %c0_i32_1 = arith.constant 0 : i32
    return %c0_i32, %c0_i32_0 : i32, i32
  }
  func.func @transform_2(%arg0: i32) -> (i32, i32) {
    %c0_i32 = arith.constant 0 : i32
    %c0_i32_0 = arith.constant 0 : i32
    %c0_i32_1 = arith.constant 0 : i32
    return %c0_i32, %c0_i32_0 : i32, i32
  }
  func.func @transform_3(%arg0: i32) -> (i32, i32) {
    %c0_i32 = arith.constant 0 : i32
    %c0_i32_0 = arith.constant 0 : i32
    %c0_i32_1 = arith.constant 0 : i32
    return %c0_i32, %c0_i32_0 : i32, i32
  }
  func.func @transform_4(%arg0: i32) -> (i32, i32) {
    %c0_i32 = arith.constant 0 : i32
    %c0_i32_0 = arith.constant 0 : i32
    %c0_i32_1 = arith.constant 0 : i32
    return %c0_i32, %c0_i32_0 : i32, i32
  }
  func.func @transform_5(%arg0: i32) -> (i32, i32) {
    %c0_i32 = arith.constant 0 : i32
    %c0_i32_0 = arith.constant 0 : i32
    %c0_i32_1 = arith.constant 0 : i32
    return %c0_i32, %c0_i32_0 : i32, i32
  }
  func.func @transform_6(%arg0: i32) -> (i32, i32) {
    %c0_i32 = arith.constant 0 : i32
    %c0_i32_0 = arith.constant 0 : i32
    %c0_i32_1 = arith.constant 0 : i32
    return %c0_i32, %c0_i32_0 : i32, i32
  }
  func.func @transform_7(%arg0: i32) -> (i32, i32) {
    %c0_i32 = arith.constant 0 : i32
    %c0_i32_0 = arith.constant 0 : i32
    %c0_i32_1 = arith.constant 0 : i32
    return %c0_i32, %c0_i32_0 : i32, i32
  }
  func.func @transform_8(%arg0: i32) -> (i32, i32) {
    %c0_i32 = arith.constant 0 : i32
    %c0_i32_0 = arith.constant 0 : i32
    %c0_i32_1 = arith.constant 0 : i32
    return %c0_i32, %c0_i32_0 : i32, i32
  }
  func.func @transform_9(%arg0: i32) -> (i32, i32) {
    %c0_i32 = arith.constant 0 : i32
    %c0_i32_0 = arith.constant 0 : i32
    %c0_i32_1 = arith.constant 0 : i32
    return %c0_i32, %c0_i32_0 : i32, i32
  }
  func.func @transform_10(%arg0: i32) -> (i32, i32) {
    %c0_i32 = arith.constant 0 : i32
    %c0_i32_0 = arith.constant 0 : i32
    %c0_i32_1 = arith.constant 0 : i32
    return %c0_i32, %c0_i32_0 : i32, i32
  }
  func.func @transform_11(%arg0: i32) -> (i32, i32) {
    %c0_i32 = arith.constant 0 : i32
    %c0_i32_0 = arith.constant 0 : i32
    %c0_i32_1 = arith.constant 0 : i32
    return %c0_i32, %c0_i32_0 : i32, i32
  }
  func.func @transform_12(%arg0: i32) -> (i32, i32) {
    %c0_i32 = arith.constant 0 : i32
    %c0_i32_0 = arith.constant 0 : i32
    %c0_i32_1 = arith.constant 0 : i32
    return %c0_i32, %c0_i32_0 : i32, i32
  }
  func.func @transform_13(%arg0: i32) -> (i32, i32) {
    %c0_i32 = arith.constant 0 : i32
    %c0_i32_0 = arith.constant 0 : i32
    %c0_i32_1 = arith.constant 0 : i32
    return %c0_i32, %c0_i32_0 : i32, i32
  }
  func.func @transform_14(%arg0: i32) -> (i32, i32) {
    %c0_i32 = arith.constant 0 : i32
    %c0_i32_0 = arith.constant 0 : i32
    %c0_i32_1 = arith.constant 0 : i32
    return %c0_i32, %c0_i32_0 : i32, i32
  }
}

</mosaic_0001>

<llo_original>
// kernel: tpu_custom_call.1
$region0: #{tpu_custom_call.1}
  #allocation0 [shape = 'u32[]', space=smem, size = 0x4, offset = 0x4, fixed_abs, tag = 'smem constant byte address 0x4 - core index']
  #allocation1 [shape = 'u32[72,128]{1,0:T(1,128)}', space=vmem, size = 0x9000, scoped, tag = 'internal scratch']
  %s0 = inlined_call_operand.hbm [shape: bf16[32,768], index: 0, kind: input, shape index: {}]
  %s1 = inlined_call_operand.hbm [shape: bf16[768,512], index: 1, kind: input, shape index: {}]
  %s2 = inlined_call_operand.hbm [shape: f32[1,512], index: 2, kind: input, shape index: {}]
  %s3 = inlined_call_operand.hbm [shape: bf16[512,512], index: 3, kind: input, shape index: {}]
  %s4 = inlined_call_operand.hbm [shape: f32[1,512], index: 4, kind: input, shape index: {}]
  %s5 = inlined_call_operand.hbm [shape: bf16[512,512], index: 5, kind: input, shape index: {}]
  %s6 = inlined_call_operand.hbm [shape: f32[1,512], index: 6, kind: input, shape index: {}]
  %s7 = inlined_call_operand.hbm [shape: bf16[512,512], index: 7, kind: input, shape index: {}]
  %s8 = inlined_call_operand.hbm [shape: f32[1,512], index: 8, kind: input, shape index: {}]
  %s9 = inlined_call_operand.hbm [shape: bf16[512,1024], index: 9, kind: input, shape index: {}]
  %s10 = inlined_call_operand.hbm [shape: bf16[512,1024], index: 10, kind: input, shape index: {}]
  %s11 = inlined_call_operand.vmem [shape: f32[1,1024], index: 11, kind: input, shape index: {}]
  %s12 = inlined_call_operand.hbm [shape: bf16[1024,512], index: 12, kind: input, shape index: {}]
  %s13 = inlined_call_operand.vmem [shape: f32[1,512], index: 13, kind: input, shape index: {}]
  %s14 = inlined_call_operand.hbm [shape: f32[16,512], index: 14, kind: output, shape index: {}]
  %s15 = sld [smem:[#allocation0]]
  $region114: #{tpu_custom_call.1} parent=0
    _
  %s17 = ssub.s32 1, %s15
  %s18 = scalar_select 0, %s17, %s15
  $region1: #{tpu_custom_call.1} parent=0
    #allocation2 [shape = 'u8[49152]{0}', space=vmem, size = 0xc000, scoped, tag = 'input window, operand 0, single buffered']
    #allocation3 [shape = 's32[1]{0}', space=sflag, size = 0x4, scoped, tag = 'scoped memory for tpu_custom_call.1']
    #allocation4 [shape = 's32[1]{0}', space=sflag, size = 0x4, scoped, tag = 'scoped memory for tpu_custom_call.1']
    #allocation5 [shape = 'u8[786432]{0}', space=vmem, size = 0xc0000, scoped, tag = 'input window, operand 1, single buffered']
    #allocation6 [shape = 's32[1]{0}', space=sflag, size = 0x4, scoped, tag = 'scoped memory for tpu_custom_call.1']
    #allocation7 [shape = 'u8[2048]{0}', space=vmem, size = 0x800, scoped, tag = 'input window, operand 2, single buffered']
    #allocation8 [shape = 'u8[524288]{0}', space=vmem, size = 0x80000, scoped, tag = 'input window, operand 3, single buffered']
    #allocation9 [shape = 's32[1]{0}', space=sflag, size = 0x4, scoped, tag = 'scoped memory for tpu_custom_call.1']
    #allocation10 [shape = 'u8[2048]{0}', space=vmem, size = 0x800, scoped, tag = 'input window, operand 4, single buffered']
    #allocation11 [shape = 'u8[524288]{0}', space=vmem, size = 0x80000, scoped, tag = 'input window, operand 5, single buffered']
    #allocation12 [shape = 's32[1]{0}', space=sflag, size = 0x4, scoped, tag = 'scoped memory for tpu_custom_call.1']
    #allocation13 [shape = 'u8[2048]{0}', space=vmem, size = 0x800, scoped, tag = 'input window, operand 6, single buffered']
    #allocation14 [shape = 'u8[524288]{0}', space=vmem, size = 0x80000, scoped, tag = 'input window, operand 7, single buffered']
    #allocation15 [shape = 's32[1]{0}', space=sflag, size = 0x4, scoped, tag = 'scoped memory for tpu_custom_call.1']
    #allocation16 [shape = 'u8[2048]{0}', space=vmem, size = 0x800, scoped, tag = 'input window, operand 8, single buffered']
    #allocation17 [shape = 'u8[1048576]{0}', space=vmem, size = 0x100000, scoped, tag = 'input window, operand 9, single buffered']
    #allocation18 [shape = 's32[1]{0}', space=sflag, size = 0x4, scoped, tag = 'scoped memory for tpu_custom_call.1']
    #allocation19 [shape = 'u8[1048576]{0}', space=vmem, size = 0x100000, scoped, tag = 'input window, operand 10, single buffered']
    #allocation20 [shape = 'u8[1048576]{0}', space=vmem, size = 0x100000, scoped, tag = 'input window, operand 12, single buffered']
    #allocation21 [shape = 's32[1]{0}', space=sflag, size = 0x4, scoped, tag = 'scoped memory for tpu_custom_call.1']
    #allocation22 [shape = 'u8[32768]{0}', space=vmem, size = 0x8000, scoped, tag = 'output window, operand 0, single buffered']
    %19 = vsyncpa [#allocation3], 0
    %20 = vsyncpa [#allocation6], 0
    %21 = vsyncpa [#allocation9], 0
    %22 = vsyncpa [#allocation12], 0
    %23 = vsyncpa [#allocation15], 0
    %24 = vsyncpa [#allocation18], 0
    %25 = vsyncpa [#allocation21], 0
    %26 = vsyncpa [#allocation4], 0
    // Predicated region
    $region2: #{tpu_custom_call.1} parent=1 // pred_check
      _
    $region3: #{tpu_custom_call.1} parent=1 // pred_check_branch
      %28 = sbr.rel (0) target = $region5
    $region4: #{tpu_custom_call.1} parent=1 // pred_region
      %30 = vsyncadd [#allocation3], 0
      %s31 = sshll.u32 %s0, 4
      %s32 = int_to_ptr.hbm [resolvable:$true] %s31
      %s33 = sshll.u32 [#allocation2], 4
      %s34 = int_to_ptr.vmem [resolvable:$true] %s33
      %39 = dma.hbm_to_vmem [thread:$0]  %s32, 1536, %s34, [#allocation3], 384, 384, 24
    $region5: #{tpu_custom_call.1} parent=1 // pred_fallthru
      _
    // Predicated region
    $region6: #{tpu_custom_call.1} parent=1 // pred_check
      _
    $region7: #{tpu_custom_call.1} parent=1 // pred_check_branch
      %41 = sbr.rel (0) target = $region9
    $region8: #{tpu_custom_call.1} parent=1 // pred_region
      %43 = vsyncadd [#allocation6], 0
      %s44 = sshll.u32 %s1, 4
      %s45 = int_to_ptr.hbm [resolvable:$true] %s44
      %s46 = sshll.u32 [#allocation5], 4
      %s47 = int_to_ptr.vmem [resolvable:$true] %s46
      %52 = dma.hbm_to_vmem [thread:$0]  %s45, 24576, %s47, [#allocation6], 256, 256, 16
    $region9: #{tpu_custom_call.1} parent=1 // pred_fallthru
      _
    // Predicated region
    $region10: #{tpu_custom_call.1} parent=1 // pred_check
      _
    $region11: #{tpu_custom_call.1} parent=1 // pred_check_branch
      %54 = sbr.rel (0) target = $region13
    $region12: #{tpu_custom_call.1} parent=1 // pred_region
      %56 = vsyncadd [#allocation6], 0
      %s58 = sshll.u32 %s2, 4
      %s59 = int_to_ptr.hbm [resolvable:$true] %s58
      %s60 = sshll.u32 [#allocation7], 4
      %s61 = int_to_ptr.vmem [resolvable:$true] %s60
      %63 = dma.hbm_to_vmem [thread:$0]  %s59, 64, %s61, [#allocation6]
    $region13: #{tpu_custom_call.1} parent=1 // pred_fallthru
      _
    // Predicated region
    $region14: #{tpu_custom_call.1} parent=1 // pred_check
      _
    $region15: #{tpu_custom_call.1} parent=1 // pred_check_branch
      %65 = sbr.rel (0) target = $region17
    $region16: #{tpu_custom_call.1} parent=1 // pred_region
      %67 = vsyncadd [#allocation9], 0
      %s68 = sshll.u32 %s3, 4
      %s69 = int_to_ptr.hbm [resolvable:$true] %s68
      %s70 = sshll.u32 [#allocation8], 4
      %s71 = int_to_ptr.vmem [resolvable:$true] %s70
      %76 = dma.hbm_to_vmem [thread:$0]  %s69, 16384, %s71, [#allocation9], 256, 256, 16
    $region17: #{tpu_custom_call.1} parent=1 // pred_fallthru
      _
    // Predicated region
    $region18: #{tpu_custom_call.1} parent=1 // pred_check
      _
    $region19: #{tpu_custom_call.1} parent=1 // pred_check_branch
      %78 = sbr.rel (0) target = $region21
    $region20: #{tpu_custom_call.1} parent=1 // pred_region
      %80 = vsyncadd [#allocation9], 0
      %s82 = sshll.u32 %s4, 4
      %s83 = int_to_ptr.hbm [resolvable:$true] %s82
      %s84 = sshll.u32 [#allocation10], 4
      %s85 = int_to_ptr.vmem [resolvable:$true] %s84
      %87 = dma.hbm_to_vmem [thread:$0]  %s83, 64, %s85, [#allocation9]
    $region21: #{tpu_custom_call.1} parent=1 // pred_fallthru
      _
    // Predicated region
    $region22: #{tpu_custom_call.1} parent=1 // pred_check
      _
    $region23: #{tpu_custom_call.1} parent=1 // pred_check_branch
      %89 = sbr.rel (0) target = $region25
    $region24: #{tpu_custom_call.1} parent=1 // pred_region
      %91 = vsyncadd [#allocation12], 0
      %s92 = sshll.u32 %s5, 4
      %s93 = int_to_ptr.hbm [resolvable:$true] %s92
      %s94 = sshll.u32 [#allocation11], 4
      %s95 = int_to_ptr.vmem [resolvable:$true] %s94
      %100 = dma.hbm_to_vmem [thread:$0]  %s93, 16384, %s95, [#allocation12], 256, 256, 16
    $region25: #{tpu_custom_call.1} parent=1 // pred_fallthru
      _
    // Predicated region
    $region26: #{tpu_custom_call.1} parent=1 // pred_check
      _
    $region27: #{tpu_custom_call.1} parent=1 // pred_check_branch
      %102 = sbr.rel (0) target = $region29
    $region28: #{tpu_custom_call.1} parent=1 // pred_region
      %104 = vsyncadd [#allocation12], 0
      %s106 = sshll.u32 %s6, 4
      %s107 = int_to_ptr.hbm [resolvable:$true] %s106
      %s108 = sshll.u32 [#allocation13], 4
      %s109 = int_to_ptr.vmem [resolvable:$true] %s108
      %111 = dma.hbm_to_vmem [thread:$0]  %s107, 64, %s109, [#allocation12]
    $region29: #{tpu_custom_call.1} parent=1 // pred_fallthru
      _
    // Predicated region
    $region30: #{tpu_custom_call.1} parent=1 // pred_check
      _
    $region31: #{tpu_custom_call.1} parent=1 // pred_check_branch
      %113 = sbr.rel (0) target = $region33
    $region32: #{tpu_custom_call.1} parent=1 // pred_region
      %115 = vsyncadd [#allocation15], 0
      %s116 = sshll.u32 %s7, 4
      %s117 = int_to_ptr.hbm [resolvable:$true] %s116
      %s118 = sshll.u32 [#allocation14], 4
      %s119 = int_to_ptr.vmem [resolvable:$true] %s118
      %124 = dma.hbm_to_vmem [thread:$0]  %s117, 16384, %s119, [#allocation15], 256, 256, 16
    $region33: #{tpu_custom_call.1} parent=1 // pred_fallthru
      _
    // Predicated region
    $region34: #{tpu_custom_call.1} parent=1 // pred_check
      _
    $region35: #{tpu_custom_call.1} parent=1 // pred_check_branch
      %126 = sbr.rel (0) target = $region37
    $region36: #{tpu_custom_call.1} parent=1 // pred_region
      %128 = vsyncadd [#allocation15], 0
      %s130 = sshll.u32 %s8, 4
      %s131 = int_to_ptr.hbm [resolvable:$true] %s130
      %s132 = sshll.u32 [#allocation16], 4
      %s133 = int_to_ptr.vmem [resolvable:$true] %s132
      %135 = dma.hbm_to_vmem [thread:$0]  %s131, 64, %s133, [#allocation15]
    $region37: #{tpu_custom_call.1} parent=1 // pred_fallthru
      _
    // Predicated region
    $region38: #{tpu_custom_call.1} parent=1 // pred_check
      _
    $region39: #{tpu_custom_call.1} parent=1 // pred_check_branch
      %137 = sbr.rel (0) target = $region41
    $region40: #{tpu_custom_call.1} parent=1 // pred_region
      %139 = vsyncadd [#allocation18], 0
      %s140 = sshll.u32 %s9, 4
      %s141 = int_to_ptr.hbm [resolvable:$true] %s140
      %s142 = sshll.u32 [#allocation17], 4
      %s143 = int_to_ptr.vmem [resolvable:$true] %s142
      %148 = dma.hbm_to_vmem [thread:$0]  %s141, 32768, %s143, [#allocation18], 512, 512, 32
    $region41: #{tpu_custom_call.1} parent=1 // pred_fallthru
      _
    // Predicated region
    $region42: #{tpu_custom_call.1} parent=1 // pred_check
      _
    $region43: #{tpu_custom_call.1} parent=1 // pred_check_branch
      %150 = sbr.rel (0) target = $region45
    $region44: #{tpu_custom_call.1} parent=1 // pred_region
      %152 = vsyncadd [#allocation18], 0
      %s153 = sshll.u32 %s10, 4
      %s154 = int_to_ptr.hbm [resolvable:$true] %s153
      %s155 = sshll.u32 [#allocation19], 4
      %s156 = int_to_ptr.vmem [resolvable:$true] %s155
      %161 = dma.hbm_to_vmem [thread:$0]  %s154, 32768, %s156, [#allocation18], 512, 512, 32
    $region45: #{tpu_custom_call.1} parent=1 // pred_fallthru
      _
    // Predicated region
    $region46: #{tpu_custom_call.1} parent=1 // pred_check
      _
    $region47: #{tpu_custom_call.1} parent=1 // pred_check_branch
      %163 = sbr.rel (0) target = $region49
    $region48: #{tpu_custom_call.1} parent=1 // pred_region
      _
    $region49: #{tpu_custom_call.1} parent=1 // pred_fallthru
      _
    // Predicated region
    $region50: #{tpu_custom_call.1} parent=1 // pred_check
      _
    $region51: #{tpu_custom_call.1} parent=1 // pred_check_branch
      %165 = sbr.rel (0) target = $region53
    $region52: #{tpu_custom_call.1} parent=1 // pred_region
      %167 = vsyncadd [#allocation21], 0
      %s168 = sshll.u32 %s12, 4
      %s169 = int_to_ptr.hbm [resolvable:$true] %s168
      %s170 = sshll.u32 [#allocation20], 4
      %s171 = int_to_ptr.vmem [resolvable:$true] %s170
      %176 = dma.hbm_to_vmem [thread:$0]  %s169, 32768, %s171, [#allocation21], 256, 256, 16
    $region53: #{tpu_custom_call.1} parent=1 // pred_fallthru
      _
    // Predicated region
    $region54: #{tpu_custom_call.1} parent=1 // pred_check
      _
    $region55: #{tpu_custom_call.1} parent=1 // pred_check_branch
      %178 = sbr.rel (0) target = $region57
    $region56: #{tpu_custom_call.1} parent=1 // pred_region
      _
    $region57: #{tpu_custom_call.1} parent=1 // pred_fallthru
      _
    // Predicated region
    $region58: #{tpu_custom_call.1} parent=1 // pred_check
      _
    $region59: #{tpu_custom_call.1} parent=1 // pred_check_branch
      %180 = sbr.rel (0) target = $region61
    $region60: #{tpu_custom_call.1} parent=1 // pred_region
      %182 = dma.done [#allocation3], 1536
    $region61: #{tpu_custom_call.1} parent=1 // pred_fallthru
      _
    // Predicated region
    $region62: #{tpu_custom_call.1} parent=1 // pred_check
      _
    $region63: #{tpu_custom_call.1} parent=1 // pred_check_branch
      %184 = sbr.rel (0) target = $region65
    $region64: #{tpu_custom_call.1} parent=1 // pred_region
      %186 = dma.done [#allocation6], 24576
    $region65: #{tpu_custom_call.1} parent=1 // pred_fallthru
      _
    // Predicated region
    $region66: #{tpu_custom_call.1} parent=1 // pred_check
      _
    $region67: #{tpu_custom_call.1} parent=1 // pred_check_branch
      %188 = sbr.rel (0) target = $region69
    $region68: #{tpu_custom_call.1} parent=1 // pred_region
      %190 = dma.done [#allocation6], 64
    $region69: #{tpu_custom_call.1} parent=1 // pred_fallthru
      _
    // Predicated region
    $region70: #{tpu_custom_call.1} parent=1 // pred_check
      _
    $region71: #{tpu_custom_call.1} parent=1 // pred_check_branch
      %192 = sbr.rel (0) target = $region73
    $region72: #{tpu_custom_call.1} parent=1 // pred_region
      %194 = dma.done [#allocation9], 16384
    $region73: #{tpu_custom_call.1} parent=1 // pred_fallthru
      _
    // Predicated region
    $region74: #{tpu_custom_call.1} parent=1 // pred_check
      _
    $region75: #{tpu_custom_call.1} parent=1 // pred_check_branch
      %196 = sbr.rel (0) target = $region77
    $region76: #{tpu_custom_call.1} parent=1 // pred_region
      %198 = dma.done [#allocation9], 64
    $region77: #{tpu_custom_call.1} parent=1 // pred_fallthru
      _
    // Predicated region
    $region78: #{tpu_custom_call.1} parent=1 // pred_check
      _
    $region79: #{tpu_custom_call.1} parent=1 // pred_check_branch
      %200 = sbr.rel (0) target = $region81
    $region80: #{tpu_custom_call.1} parent=1 // pred_region
      %202 = dma.done [#allocation12], 16384
    $region81: #{tpu_custom_call.1} parent=1 // pred_fallthru
      _
    // Predicated region
    $region82: #{tpu_custom_call.1} parent=1 // pred_check
      _
    $region83: #{tpu_custom_call.1} parent=1 // pred_check_branch
      %204 = sbr.rel (0) target = $region85
    $region84: #{tpu_custom_call.1} parent=1 // pred_region
      %206 = dma.done [#allocation12], 64
    $region85: #{tpu_custom_call.1} parent=1 // pred_fallthru
      _
    // Predicated region
    $region86: #{tpu_custom_call.1} parent=1 // pred_check
      _
    $region87: #{tpu_custom_call.1} parent=1 // pred_check_branch
      %208 = sbr.rel (0) target = $region89
    $region88: #{tpu_custom_call.1} parent=1 // pred_region
      %210 = dma.done [#allocation15], 16384
    $region89: #{tpu_custom_call.1} parent=1 // pred_fallthru
      _
    // Predicated region
    $region90: #{tpu_custom_call.1} parent=1 // pred_check
      _
    $region91: #{tpu_custom_call.1} parent=1 // pred_check_branch
      %212 = sbr.rel (0) target = $region93
    $region92: #{tpu_custom_call.1} parent=1 // pred_region
      %214 = dma.done [#allocation15], 64
    $region93: #{tpu_custom_call.1} parent=1 // pred_fallthru
      _
    // Predicated region
    $region94: #{tpu_custom_call.1} parent=1 // pred_check
      _
    $region95: #{tpu_custom_call.1} parent=1 // pred_check_branch
      %216 = sbr.rel (0) target = $region97
    $region96: #{tpu_custom_call.1} parent=1 // pred_region
      %218 = dma.done [#allocation18], 32768
    $region97: #{tpu_custom_call.1} parent=1 // pred_fallthru
      _
    // Predicated region
    $region98: #{tpu_custom_call.1} parent=1 // pred_check
      _
    $region99: #{tpu_custom_call.1} parent=1 // pred_check_branch
      %220 = sbr.rel (0) target = $region101
    $region100: #{tpu_custom_call.1} parent=1 // pred_region
      %222 = dma.done [#allocation18], 32768
    $region101: #{tpu_custom_call.1} parent=1 // pred_fallthru
      _
    // Predicated region
    $region102: #{tpu_custom_call.1} parent=1 // pred_check
      _
    $region103: #{tpu_custom_call.1} parent=1 // pred_check_branch
      %224 = sbr.rel (0) target = $region105
    $region104: #{tpu_custom_call.1} parent=1 // pred_region
      %226 = dma.done [#allocation21], 32768
    $region105: #{tpu_custom_call.1} parent=1 // pred_fallthru
      _
    %v228 = vld [vmem:[#allocation2] sm:$0xff]
    %v229 = vld [vmem:[#allocation2 + $0x8] sm:$0xff]
    %v230 = vld [vmem:[#allocation2 + $0x10] sm:$0xff]
    %v231 = vld [vmem:[#allocation2 + $0x18] sm:$0xff]
    %v232 = vld [vmem:[#allocation2 + $0x20] sm:$0xff]
    %v233 = vld [vmem:[#allocation2 + $0x28] sm:$0xff]
    %v234 = vld [vmem:[#allocation2 + $0x30] sm:$0xff]
    %v235 = vld [vmem:[#allocation2 + $0x38] sm:$0xff]
    %v236 = vld [vmem:[#allocation2 + $0x40] sm:$0xff]
    %v237 = vld [vmem:[#allocation2 + $0x48] sm:$0xff]
    %v238 = vld [vmem:[#allocation2 + $0x50] sm:$0xff]
    %v239 = vld [vmem:[#allocation2 + $0x58] sm:$0xff]
    %v240 = vld [vmem:[#allocation5] sm:$0xff]
    %v241 = vld [vmem:[#allocation5 + $0x8] sm:$0xff]
    %v242 = vld [vmem:[#allocation5 + $0x10] sm:$0xff]
    %v243 = vld [vmem:[#allocation5 + $0x18] sm:$0xff]
    %v244 = vld [vmem:[#allocation5 + $0x20] sm:$0xff]
    %v245 = vld [vmem:[#allocation5 + $0x28] sm:$0xff]
    %v246 = vld [vmem:[#allocation5 + $0x30] sm:$0xff]
    %v247 = vld [vmem:[#allocation5 + $0x38] sm:$0xff]
    %v248 = vld [vmem:[#allocation5 + $0x40] sm:$0xff]
    %v249 = vld [vmem:[#allocation5 + $0x48] sm:$0xff]
    %v250 = vld [vmem:[#allocation5 + $0x50] sm:$0xff]
    %v251 = vld [vmem:[#allocation5 + $0x58] sm:$0xff]
    %v252 = vld [vmem:[#allocation5 + $0x60] sm:$0xff]
    %v253 = vld [vmem:[#allocation5 + $0x68] sm:$0xff]
    %v254 = vld [vmem:[#allocation5 + $0x70] sm:$0xff]
    %v255 = vld [vmem:[#allocation5 + $0x78] sm:$0xff]
    %v256 = vld [vmem:[#allocation5 + $0x80] sm:$0xff]
    %v257 = vld [vmem:[#allocation5 + $0x88] sm:$0xff]
    %v258 = vld [vmem:[#allocation5 + $0x90] sm:$0xff]
    %v259 = vld [vmem:[#allocation5 + $0x98] sm:$0xff]
    %v260 = vld [vmem:[#allocation5 + $0xa0] sm:$0xff]
    %v261 = vld [vmem:[#allocation5 + $0xa8] sm:$0xff]
    %v262 = vld [vmem:[#allocation5 + $0xb0] sm:$0xff]
    %v263 = vld [vmem:[#allocation5 + $0xb8] sm:$0xff]
    %v264 = vld [vmem:[#allocation5 + $0xc0] sm:$0xff]
    %v265 = vld [vmem:[#allocation5 + $0xc8] sm:$0xff]
    %v266 = vld [vmem:[#allocation5 + $0xd0] sm:$0xff]
    %v267 = vld [vmem:[#allocation5 + $0xd8] sm:$0xff]
    %v268 = vld [vmem:[#allocation5 + $0xe0] sm:$0xff]
    %v269 = vld [vmem:[#allocation5 + $0xe8] sm:$0xff]
    %v270 = vld [vmem:[#allocation5 + $0xf0] sm:$0xff]
    %v271 = vld [vmem:[#allocation5 + $0xf8] sm:$0xff]
    %v272 = vld [vmem:[#allocation5 + $0x100] sm:$0xff]
    %v273 = vld [vmem:[#allocation5 + $0x108] sm:$0xff]
    %v274 = vld [vmem:[#allocation5 + $0x110] sm:$0xff]
    %v275 = vld [vmem:[#allocation5 + $0x118] sm:$0xff]
    %v276 = vld [vmem:[#allocation5 + $0x120] sm:$0xff]
    %v277 = vld [vmem:[#allocation5 + $0x128] sm:$0xff]
    %v278 = vld [vmem:[#allocation5 + $0x130] sm:$0xff]
    %v279 = vld [vmem:[#allocation5 + $0x138] sm:$0xff]
    %v280 = vld [vmem:[#allocation5 + $0x140] sm:$0xff]
    %v281 = vld [vmem:[#allocation5 + $0x148] sm:$0xff]
    %v282 = vld [vmem:[#allocation5 + $0x150] sm:$0xff]
    %v283 = vld [vmem:[#allocation5 + $0x158] sm:$0xff]
    %v284 = vld [vmem:[#allocation5 + $0x160] sm:$0xff]
    %v285 = vld [vmem:[#allocation5 + $0x168] sm:$0xff]
    %v286 = vld [vmem:[#allocation5 + $0x170] sm:$0xff]
    %v287 = vld [vmem:[#allocation5 + $0x178] sm:$0xff]
    %v288 = vld [vmem:[#allocation5 + $0x180] sm:$0xff]
    %v289 = vld [vmem:[#allocation5 + $0x188] sm:$0xff]
    %v290 = vld [vmem:[#allocation5 + $0x190] sm:$0xff]
    %v291 = vld [vmem:[#allocation5 + $0x198] sm:$0xff]
    %v292 = vld [vmem:[#allocation5 + $0x1a0] sm:$0xff]
    %v293 = vld [vmem:[#allocation5 + $0x1a8] sm:$0xff]
    %v294 = vld [vmem:[#allocation5 + $0x1b0] sm:$0xff]
    %v295 = vld [vmem:[#allocation5 + $0x1b8] sm:$0xff]
    %v296 = vld [vmem:[#allocation5 + $0x1c0] sm:$0xff]
    %v297 = vld [vmem:[#allocation5 + $0x1c8] sm:$0xff]
    %v298 = vld [vmem:[#allocation5 + $0x1d0] sm:$0xff]
    %v299 = vld [vmem:[#allocation5 + $0x1d8] sm:$0xff]
    %v300 = vld [vmem:[#allocation5 + $0x1e0] sm:$0xff]
    %v301 = vld [vmem:[#allocation5 + $0x1e8] sm:$0xff]
    %v302 = vld [vmem:[#allocation5 + $0x1f0] sm:$0xff]
    %v303 = vld [vmem:[#allocation5 + $0x1f8] sm:$0xff]
    %v304 = vld [vmem:[#allocation5 + $0x200] sm:$0xff]
    %v305 = vld [vmem:[#allocation5 + $0x208] sm:$0xff]
    %v306 = vld [vmem:[#allocation5 + $0x210] sm:$0xff]
    %v307 = vld [vmem:[#allocation5 + $0x218] sm:$0xff]
    %v308 = vld [vmem:[#allocation5 + $0x220] sm:$0xff]
    %v309 = vld [vmem:[#allocation5 + $0x228] sm:$0xff]
    %v310 = vld [vmem:[#allocation5 + $0x230] sm:$0xff]
    %v311 = vld [vmem:[#allocation5 + $0x238] sm:$0xff]
    %v312 = vld [vmem:[#allocation5 + $0x240] sm:$0xff]
    %v313 = vld [vmem:[#allocation5 + $0x248] sm:$0xff]
    %v314 = vld [vmem:[#allocation5 + $0x250] sm:$0xff]
    %v315 = vld [vmem:[#allocation5 + $0x258] sm:$0xff]
    %v316 = vld [vmem:[#allocation5 + $0x260] sm:$0xff]
    %v317 = vld [vmem:[#allocation5 + $0x268] sm:$0xff]
    %v318 = vld [vmem:[#allocation5 + $0x270] sm:$0xff]
    %v319 = vld [vmem:[#allocation5 + $0x278] sm:$0xff]
    %v320 = vld [vmem:[#allocation5 + $0x280] sm:$0xff]
    %v321 = vld [vmem:[#allocation5 + $0x288] sm:$0xff]
    %v322 = vld [vmem:[#allocation5 + $0x290] sm:$0xff]
    %v323 = vld [vmem:[#allocation5 + $0x298] sm:$0xff]
    %v324 = vld [vmem:[#allocation5 + $0x2a0] sm:$0xff]
    %v325 = vld [vmem:[#allocation5 + $0x2a8] sm:$0xff]
    %v326 = vld [vmem:[#allocation5 + $0x2b0] sm:$0xff]
    %v327 = vld [vmem:[#allocation5 + $0x2b8] sm:$0xff]
    %v328 = vld [vmem:[#allocation5 + $0x2c0] sm:$0xff]
    %v329 = vld [vmem:[#allocation5 + $0x2c8] sm:$0xff]
    %v330 = vld [vmem:[#allocation5 + $0x2d0] sm:$0xff]
    %v331 = vld [vmem:[#allocation5 + $0x2d8] sm:$0xff]
    %v332 = vld [vmem:[#allocation5 + $0x2e0] sm:$0xff]
    %v333 = vld [vmem:[#allocation5 + $0x2e8] sm:$0xff]
    %v334 = vld [vmem:[#allocation5 + $0x2f0] sm:$0xff]
    %v335 = vld [vmem:[#allocation5 + $0x2f8] sm:$0xff]
    %v336 = vld [vmem:[#allocation5 + $0x300] sm:$0xff]
    %v337 = vld [vmem:[#allocation5 + $0x308] sm:$0xff]
    %v338 = vld [vmem:[#allocation5 + $0x310] sm:$0xff]
    %v339 = vld [vmem:[#allocation5 + $0x318] sm:$0xff]
    %v340 = vld [vmem:[#allocation5 + $0x320] sm:$0xff]
    %v341 = vld [vmem:[#allocation5 + $0x328] sm:$0xff]
    %v342 = vld [vmem:[#allocation5 + $0x330] sm:$0xff]
    %v343 = vld [vmem:[#allocation5 + $0x338] sm:$0xff]
    %v344 = vld [vmem:[#allocation5 + $0x340] sm:$0xff]
    %v345 = vld [vmem:[#allocation5 + $0x348] sm:$0xff]
    %v346 = vld [vmem:[#allocation5 + $0x350] sm:$0xff]
    %v347 = vld [vmem:[#allocation5 + $0x358] sm:$0xff]
    %v348 = vld [vmem:[#allocation5 + $0x360] sm:$0xff]
    %v349 = vld [vmem:[#allocation5 + $0x368] sm:$0xff]
    %v350 = vld [vmem:[#allocation5 + $0x370] sm:$0xff]
    %v351 = vld [vmem:[#allocation5 + $0x378] sm:$0xff]
    %v352 = vld [vmem:[#allocation5 + $0x380] sm:$0xff]
    %v353 = vld [vmem:[#allocation5 + $0x388] sm:$0xff]
    %v354 = vld [vmem:[#allocation5 + $0x390] sm:$0xff]
    %v355 = vld [vmem:[#allocation5 + $0x398] sm:$0xff]
    %v356 = vld [vmem:[#allocation5 + $0x3a0] sm:$0xff]
    %v357 = vld [vmem:[#allocation5 + $0x3a8] sm:$0xff]
    %v358 = vld [vmem:[#allocation5 + $0x3b0] sm:$0xff]
    %v359 = vld [vmem:[#allocation5 + $0x3b8] sm:$0xff]
    %v360 = vld [vmem:[#allocation5 + $0x3c0] sm:$0xff]
    %v361 = vld [vmem:[#allocation5 + $0x3c8] sm:$0xff]
    %v362 = vld [vmem:[#allocation5 + $0x3d0] sm:$0xff]
    %v363 = vld [vmem:[#allocation5 + $0x3d8] sm:$0xff]
    %v364 = vld [vmem:[#allocation5 + $0x3e0] sm:$0xff]
    %v365 = vld [vmem:[#allocation5 + $0x3e8] sm:$0xff]
    %v366 = vld [vmem:[#allocation5 + $0x3f0] sm:$0xff]
    %v367 = vld [vmem:[#allocation5 + $0x3f8] sm:$0xff]
    %v368 = vld [vmem:[#allocation5 + $0x400] sm:$0xff]
    %v369 = vld [vmem:[#allocation5 + $0x408] sm:$0xff]
    %v370 = vld [vmem:[#allocation5 + $0x410] sm:$0xff]
    %v371 = vld [vmem:[#allocation5 + $0x418] sm:$0xff]
    %v372 = vld [vmem:[#allocation5 + $0x420] sm:$0xff]
    %v373 = vld [vmem:[#allocation5 + $0x428] sm:$0xff]
    %v374 = vld [vmem:[#allocation5 + $0x430] sm:$0xff]
    %v375 = vld [vmem:[#allocation5 + $0x438] sm:$0xff]
    %v376 = vld [vmem:[#allocation5 + $0x440] sm:$0xff]
    %v377 = vld [vmem:[#allocation5 + $0x448] sm:$0xff]
    %v378 = vld [vmem:[#allocation5 + $0x450] sm:$0xff]
    %v379 = vld [vmem:[#allocation5 + $0x458] sm:$0xff]
    %v380 = vld [vmem:[#allocation5 + $0x460] sm:$0xff]
    %v381 = vld [vmem:[#allocation5 + $0x468] sm:$0xff]
    %v382 = vld [vmem:[#allocation5 + $0x470] sm:$0xff]
    %v383 = vld [vmem:[#allocation5 + $0x478] sm:$0xff]
    %v384 = vld [vmem:[#allocation5 + $0x480] sm:$0xff]
    %v385 = vld [vmem:[#allocation5 + $0x488] sm:$0xff]
    %v386 = vld [vmem:[#allocation5 + $0x490] sm:$0xff]
    %v387 = vld [vmem:[#allocation5 + $0x498] sm:$0xff]
    %v388 = vld [vmem:[#allocation5 + $0x4a0] sm:$0xff]
    %v389 = vld [vmem:[#allocation5 + $0x4a8] sm:$0xff]
    %v390 = vld [vmem:[#allocation5 + $0x4b0] sm:$0xff]
    %v391 = vld [vmem:[#allocation5 + $0x4b8] sm:$0xff]
    %v392 = vld [vmem:[#allocation5 + $0x4c0] sm:$0xff]
    %v393 = vld [vmem:[#allocation5 + $0x4c8] sm:$0xff]
    %v394 = vld [vmem:[#allocation5 + $0x4d0] sm:$0xff]
    %v395 = vld [vmem:[#allocation5 + $0x4d8] sm:$0xff]
    %v396 = vld [vmem:[#allocation5 + $0x4e0] sm:$0xff]
    %v397 = vld [vmem:[#allocation5 + $0x4e8] sm:$0xff]
    %v398 = vld [vmem:[#allocation5 + $0x4f0] sm:$0xff]
    %v399 = vld [vmem:[#allocation5 + $0x4f8] sm:$0xff]
    %v400 = vld [vmem:[#allocation5 + $0x500] sm:$0xff]
    %v401 = vld [vmem:[#allocation5 + $0x508] sm:$0xff]
    %v402 = vld [vmem:[#allocation5 + $0x510] sm:$0xff]
    %v403 = vld [vmem:[#allocation5 + $0x518] sm:$0xff]
    %v404 = vld [vmem:[#allocation5 + $0x520] sm:$0xff]
    %v405 = vld [vmem:[#allocation5 + $0x528] sm:$0xff]
    %v406 = vld [vmem:[#allocation5 + $0x530] sm:$0xff]
    %v407 = vld [vmem:[#allocation5 + $0x538] sm:$0xff]
    %v408 = vld [vmem:[#allocation5 + $0x540] sm:$0xff]
    %v409 = vld [vmem:[#allocation5 + $0x548] sm:$0xff]
    %v410 = vld [vmem:[#allocation5 + $0x550] sm:$0xff]
    %v411 = vld [vmem:[#allocation5 + $0x558] sm:$0xff]
    %v412 = vld [vmem:[#allocation5 + $0x560] sm:$0xff]
    %v413 = vld [vmem:[#allocation5 + $0x568] sm:$0xff]
    %v414 = vld [vmem:[#allocation5 + $0x570] sm:$0xff]
    %v415 = vld [vmem:[#allocation5 + $0x578] sm:$0xff]
    %v416 = vld [vmem:[#allocation5 + $0x580] sm:$0xff]
    %v417 = vld [vmem:[#allocation5 + $0x588] sm:$0xff]
    %v418 = vld [vmem:[#allocation5 + $0x590] sm:$0xff]
    %v419 = vld [vmem:[#allocation5 + $0x598] sm:$0xff]
    %v420 = vld [vmem:[#allocation5 + $0x5a0] sm:$0xff]
    %v421 = vld [vmem:[#allocation5 + $0x5a8] sm:$0xff]
    %v422 = vld [vmem:[#allocation5 + $0x5b0] sm:$0xff]
    %v423 = vld [vmem:[#allocation5 + $0x5b8] sm:$0xff]
    %v424 = vld [vmem:[#allocation5 + $0x5c0] sm:$0xff]
    %v425 = vld [vmem:[#allocation5 + $0x5c8] sm:$0xff]
    %v426 = vld [vmem:[#allocation5 + $0x5d0] sm:$0xff]
    %v427 = vld [vmem:[#allocation5 + $0x5d8] sm:$0xff]
    %v428 = vld [vmem:[#allocation5 + $0x5e0] sm:$0xff]
    %v429 = vld [vmem:[#allocation5 + $0x5e8] sm:$0xff]
    %v430 = vld [vmem:[#allocation5 + $0x5f0] sm:$0xff]
    %v431 = vld [vmem:[#allocation5 + $0x5f8] sm:$0xff]
    %v432 = vld [vmem:[#allocation7] sm:$0xf]
    %v434 = vperm.slane %v432, 0
    %v435 = vperm.slane %v432, 1
    %v436 = vperm.slane %v432, 2
    %v437 = vperm.slane %v432, 3
    %v454 = vunpack.c.l.b16 %v228
    %v455 = vunpack.c.h.b16 %v228
    %v456 = vunpack.c.l.b16 %v229
    %v457 = vunpack.c.h.b16 %v229
    %v458 = vunpack.c.l.b16 %v230
    %v459 = vunpack.c.h.b16 %v230
    %v460 = vunpack.c.l.b16 %v231
    %v461 = vunpack.c.h.b16 %v231
    %v462 = vunpack.c.l.b16 %v232
    %v463 = vunpack.c.h.b16 %v232
    %v464 = vunpack.c.l.b16 %v233
    %v465 = vunpack.c.h.b16 %v233
    %v466 = vunpack.c.l.b16 %v234
    %v467 = vunpack.c.h.b16 %v234
    %v468 = vunpack.c.l.b16 %v235
    %v469 = vunpack.c.h.b16 %v235
    %v470 = vunpack.c.l.b16 %v236
    %v471 = vunpack.c.h.b16 %v236
    %v472 = vunpack.c.l.b16 %v237
    %v473 = vunpack.c.h.b16 %v237
    %v474 = vunpack.c.l.b16 %v238
    %v475 = vunpack.c.h.b16 %v238
    %v476 = vunpack.c.l.b16 %v239
    %v477 = vunpack.c.h.b16 %v239
    %v478 = vpack.c.b16 %v460, %v454
    %v479 = vpack.c.b16 %v461, %v455
    %v480 = vpack.c.b16 %v462, %v456
    %v481 = vpack.c.b16 %v463, %v457
    %v482 = vpack.c.b16 %v464, %v458
    %v483 = vpack.c.b16 %v465, %v459
    %v484 = vpack.c.b16 %v472, %v466
    %v485 = vpack.c.b16 %v473, %v467
    %v486 = vpack.c.b16 %v474, %v468
    %v487 = vpack.c.b16 %v475, %v469
    %v488 = vpack.c.b16 %v476, %v470
    %v489 = vpack.c.b16 %v477, %v471
    %v694 = vunpack.c.l.b16 %v240
    %v695 = vunpack.c.h.b16 %v240
    %v696 = vunpack.c.l.b16 %v241
    %v697 = vunpack.c.h.b16 %v241
    %v698 = vunpack.c.l.b16 %v242
    %v699 = vunpack.c.h.b16 %v242
    %v700 = vunpack.c.l.b16 %v243
    %v701 = vunpack.c.h.b16 %v243
    %v702 = vunpack.c.l.b16 %v244
    %v703 = vunpack.c.h.b16 %v244
    %v704 = vunpack.c.l.b16 %v245
    %v705 = vunpack.c.h.b16 %v245
    %v706 = vunpack.c.l.b16 %v246
    %v707 = vunpack.c.h.b16 %v246
    %v708 = vunpack.c.l.b16 %v247
    %v709 = vunpack.c.h.b16 %v247
    %v710 = vunpack.c.l.b16 %v248
    %v711 = vunpack.c.h.b16 %v248
    %v712 = vunpack.c.l.b16 %v249
    %v713 = vunpack.c.h.b16 %v249
    %v714 = vunpack.c.l.b16 %v250
    %v715 = vunpack.c.h.b16 %v250
    %v716 = vunpack.c.l.b16 %v251
    %v717 = vunpack.c.h.b16 %v251
    %v718 = vunpack.c.l.b16 %v252
    %v719 = vunpack.c.h.b16 %v252
    %v720 = vunpack.c.l.b16 %v253
    %v721 = vunpack.c.h.b16 %v253
    %v722 = vunpack.c.l.b16 %v254
    %v723 = vunpack.c.h.b16 %v254
    %v724 = vunpack.c.l.b16 %v255
    %v725 = vunpack.c.h.b16 %v255
    %v726 = vunpack.c.l.b16 %v256
    %v727 = vunpack.c.h.b16 %v256
    %v728 = vunpack.c.l.b16 %v257
    %v729 = vunpack.c.h.b16 %v257
    %v730 = vunpack.c.l.b16 %v258
    %v731 = vunpack.c.h.b16 %v258
    %v732 = vunpack.c.l.b16 %v259
    %v733 = vunpack.c.h.b16 %v259
    %v734 = vunpack.c.l.b16 %v260
    %v735 = vunpack.c.h.b16 %v260
    %v736 = vunpack.c.l.b16 %v261
    %v737 = vunpack.c.h.b16 %v261
    %v738 = vunpack.c.l.b16 %v262
    %v739 = vunpack.c.h.b16 %v262
    %v740 = vunpack.c.l.b16 %v263
    %v741 = vunpack.c.h.b16 %v263
    %v742 = vunpack.c.l.b16 %v264
    %v743 = vunpack.c.h.b16 %v264
    %v744 = vunpack.c.l.b16 %v265
    %v745 = vunpack.c.h.b16 %v265
    %v746 = vunpack.c.l.b16 %v266
    %v747 = vunpack.c.h.b16 %v266
    %v748 = vunpack.c.l.b16 %v267
    %v749 = vunpack.c.h.b16 %v267
    %v750 = vunpack.c.l.b16 %v268
    %v751 = vunpack.c.h.b16 %v268
    %v752 = vunpack.c.l.b16 %v269
    %v753 = vunpack.c.h.b16 %v269
    %v754 = vunpack.c.l.b16 %v270
    %v755 = vunpack.c.h.b16 %v270
    %v756 = vunpack.c.l.b16 %v271
    %v757 = vunpack.c.h.b16 %v271
    %v758 = vunpack.c.l.b16 %v272
    %v759 = vunpack.c.h.b16 %v272
    %v760 = vunpack.c.l.b16 %v273
    %v761 = vunpack.c.h.b16 %v273
    %v762 = vunpack.c.l.b16 %v274
    %v763 = vunpack.c.h.b16 %v274
    %v764 = vunpack.c.l.b16 %v275
    %v765 = vunpack.c.h.b16 %v275
    %v766 = vunpack.c.l.b16 %v276
    %v767 = vunpack.c.h.b16 %v276
    %v768 = vunpack.c.l.b16 %v277
    %v769 = vunpack.c.h.b16 %v277
    %v770 = vunpack.c.l.b16 %v278
    %v771 = vunpack.c.h.b16 %v278
    %v772 = vunpack.c.l.b16 %v279
    %v773 = vunpack.c.h.b16 %v279
    %v774 = vunpack.c.l.b16 %v280
    %v775 = vunpack.c.h.b16 %v280
    %v776 = vunpack.c.l.b16 %v281
    %v777 = vunpack.c.h.b16 %v281
    %v778 = vunpack.c.l.b16 %v282
    %v779 = vunpack.c.h.b16 %v282
    %v780 = vunpack.c.l.b16 %v283
    %v781 = vunpack.c.h.b16 %v283
    %v782 = vunpack.c.l.b16 %v284
    %v783 = vunpack.c.h.b16 %v284
    %v784 = vunpack.c.l.b16 %v285
    %v785 = vunpack.c.h.b16 %v285
    %v786 = vunpack.c.l.b16 %v286
    %v787 = vunpack.c.h.b16 %v286
    %v788 = vunpack.c.l.b16 %v287
    %v789 = vunpack.c.h.b16 %v287
    %v790 = vunpack.c.l.b16 %v288
    %v791 = vunpack.c.h.b16 %v288
    %v792 = vunpack.c.l.b16 %v289
    %v793 = vunpack.c.h.b16 %v289
    %v794 = vunpack.c.l.b16 %v290
    %v795 = vunpack.c.h.b16 %v290
    %v796 = vunpack.c.l.b16 %v291
    %v797 = vunpack.c.h.b16 %v291
    %v798 = vunpack.c.l.b16 %v292
    %v799 = vunpack.c.h.b16 %v292
    %v800 = vunpack.c.l.b16 %v293
    %v801 = vunpack.c.h.b16 %v293
    %v802 = vunpack.c.l.b16 %v294
    %v803 = vunpack.c.h.b16 %v294
    %v804 = vunpack.c.l.b16 %v295
    %v805 = vunpack.c.h.b16 %v295
    %v806 = vunpack.c.l.b16 %v296
    %v807 = vunpack.c.h.b16 %v296
    %v808 = vunpack.c.l.b16 %v297
    %v809 = vunpack.c.h.b16 %v297
    %v810 = vunpack.c.l.b16 %v298
    %v811 = vunpack.c.h.b16 %v298
    %v812 = vunpack.c.l.b16 %v299
    %v813 = vunpack.c.h.b16 %v299
    %v814 = vunpack.c.l.b16 %v300
    %v815 = vunpack.c.h.b16 %v300
    %v816 = vunpack.c.l.b16 %v301
    %v817 = vunpack.c.h.b16 %v301
    %v818 = vunpack.c.l.b16 %v302
    %v819 = vunpack.c.h.b16 %v302
    %v820 = vunpack.c.l.b16 %v303
    %v821 = vunpack.c.h.b16 %v303
    %v822 = vunpack.c.l.b16 %v304
    %v823 = vunpack.c.h.b16 %v304
    %v824 = vunpack.c.l.b16 %v305
    %v825 = vunpack.c.h.b16 %v305
    %v826 = vunpack.c.l.b16 %v306
    %v827 = vunpack.c.h.b16 %v306
    %v828 = vunpack.c.l.b16 %v307
    %v829 = vunpack.c.h.b16 %v307
    %v830 = vunpack.c.l.b16 %v308
    %v831 = vunpack.c.h.b16 %v308
    %v832 = vunpack.c.l.b16 %v309
    %v833 = vunpack.c.h.b16 %v309
    %v834 = vunpack.c.l.b16 %v310
    %v835 = vunpack.c.h.b16 %v310
    %v836 = vunpack.c.l.b16 %v311
    %v837 = vunpack.c.h.b16 %v311
    %v838 = vunpack.c.l.b16 %v312
    %v839 = vunpack.c.h.b16 %v312
    %v840 = vunpack.c.l.b16 %v313
    %v841 = vunpack.c.h.b16 %v313
    %v842 = vunpack.c.l.b16 %v314
    %v843 = vunpack.c.h.b16 %v314
    %v844 = vunpack.c.l.b16 %v315
    %v845 = vunpack.c.h.b16 %v315
    %v846 = vunpack.c.l.b16 %v316
    %v847 = vunpack.c.h.b16 %v316
    %v848 = vunpack.c.l.b16 %v317
    %v849 = vunpack.c.h.b16 %v317
    %v850 = vunpack.c.l.b16 %v318
    %v851 = vunpack.c.h.b16 %v318
    %v852 = vunpack.c.l.b16 %v319
    %v853 = vunpack.c.h.b16 %v319
    %v854 = vunpack.c.l.b16 %v320
    %v855 = vunpack.c.h.b16 %v320
    %v856 = vunpack.c.l.b16 %v321
    %v857 = vunpack.c.h.b16 %v321
    %v858 = vunpack.c.l.b16 %v322
    %v859 = vunpack.c.h.b16 %v322
    %v860 = vunpack.c.l.b16 %v323
    %v861 = vunpack.c.h.b16 %v323
    %v862 = vunpack.c.l.b16 %v324
    %v863 = vunpack.c.h.b16 %v324
    %v864 = vunpack.c.l.b16 %v325
    %v865 = vunpack.c.h.b16 %v325
    %v866 = vunpack.c.l.b16 %v326
    %v867 = vunpack.c.h.b16 %v326
    %v868 = vunpack.c.l.b16 %v327
    %v869 = vunpack.c.h.b16 %v327
    %v870 = vunpack.c.l.b16 %v328
    %v871 = vunpack.c.h.b16 %v328
    %v872 = vunpack.c.l.b16 %v329
    %v873 = vunpack.c.h.b16 %v329
    %v874 = vunpack.c.l.b16 %v330
    %v875 = vunpack.c.h.b16 %v330
    %v876 = vunpack.c.l.b16 %v331
    %v877 = vunpack.c.h.b16 %v331
    %v878 = vunpack.c.l.b16 %v332
    %v879 = vunpack.c.h.b16 %v332
    %v880 = vunpack.c.l.b16 %v333
    %v881 = vunpack.c.h.b16 %v333
    %v882 = vunpack.c.l.b16 %v334
    %v883 = vunpack.c.h.b16 %v334
    %v884 = vunpack.c.l.b16 %v335
    %v885 = vunpack.c.h.b16 %v335
    %v886 = vunpack.c.l.b16 %v336
    %v887 = vunpack.c.h.b16 %v336
    %v888 = vunpack.c.l.b16 %v337
    %v889 = vunpack.c.h.b16 %v337
    %v890 = vunpack.c.l.b16 %v338
    %v891 = vunpack.c.h.b16 %v338
    %v892 = vunpack.c.l.b16 %v339
    %v893 = vunpack.c.h.b16 %v339
    %v894 = vunpack.c.l.b16 %v340
    %v895 = vunpack.c.h.b16 %v340
    %v896 = vunpack.c.l.b16 %v341
    %v897 = vunpack.c.h.b16 %v341
    %v898 = vunpack.c.l.b16 %v342
    %v899 = vunpack.c.h.b16 %v342
    %v900 = vunpack.c.l.b16 %v343
    %v901 = vunpack.c.h.b16 %v343
    %v902 = vunpack.c.l.b16 %v344
    %v903 = vunpack.c.h.b16 %v344
    %v904 = vunpack.c.l.b16 %v345
    %v905 = vunpack.c.h.b16 %v345
    %v906 = vunpack.c.l.b16 %v346
    %v907 = vunpack.c.h.b16 %v346
    %v908 = vunpack.c.l.b16 %v347
    %v909 = vunpack.c.h.b16 %v347
    %v910 = vunpack.c.l.b16 %v348
    %v911 = vunpack.c.h.b16 %v348
    %v912 = vunpack.c.l.b16 %v349
    %v913 = vunpack.c.h.b16 %v349
    %v914 = vunpack.c.l.b16 %v350
    %v915 = vunpack.c.h.b16 %v350
    %v916 = vunpack.c.l.b16 %v351
    %v917 = vunpack.c.h.b16 %v351
    %v918 = vunpack.c.l.b16 %v352
    %v919 = vunpack.c.h.b16 %v352
    %v920 = vunpack.c.l.b16 %v353
    %v921 = vunpack.c.h.b16 %v353
    %v922 = vunpack.c.l.b16 %v354
    %v923 = vunpack.c.h.b16 %v354
    %v924 = vunpack.c.l.b16 %v355
    %v925 = vunpack.c.h.b16 %v355
    %v926 = vunpack.c.l.b16 %v356
    %v927 = vunpack.c.h.b16 %v356
    %v928 = vunpack.c.l.b16 %v357
    %v929 = vunpack.c.h.b16 %v357
    %v930 = vunpack.c.l.b16 %v358
    %v931 = vunpack.c.h.b16 %v358
    %v932 = vunpack.c.l.b16 %v359
    %v933 = vunpack.c.h.b16 %v359
    %v934 = vunpack.c.l.b16 %v360
    %v935 = vunpack.c.h.b16 %v360
    %v936 = vunpack.c.l.b16 %v361
    %v937 = vunpack.c.h.b16 %v361
    %v938 = vunpack.c.l.b16 %v362
    %v939 = vunpack.c.h.b16 %v362
    %v940 = vunpack.c.l.b16 %v363
    %v941 = vunpack.c.h.b16 %v363
    %v942 = vunpack.c.l.b16 %v364
    %v943 = vunpack.c.h.b16 %v364
    %v944 = vunpack.c.l.b16 %v365
    %v945 = vunpack.c.h.b16 %v365
    %v946 = vunpack.c.l.b16 %v366
    %v947 = vunpack.c.h.b16 %v366
    %v948 = vunpack.c.l.b16 %v367
    %v949 = vunpack.c.h.b16 %v367
    %v950 = vunpack.c.l.b16 %v368
    %v951 = vunpack.c.h.b16 %v368
    %v952 = vunpack.c.l.b16 %v369
    %v953 = vunpack.c.h.b16 %v369
    %v954 = vunpack.c.l.b16 %v370
    %v955 = vunpack.c.h.b16 %v370
    %v956 = vunpack.c.l.b16 %v371
    %v957 = vunpack.c.h.b16 %v371
    %v958 = vunpack.c.l.b16 %v372
    %v959 = vunpack.c.h.b16 %v372
    %v960 = vunpack.c.l.b16 %v373
    %v961 = vunpack.c.h.b16 %v373
    %v962 = vunpack.c.l.b16 %v374
    %v963 = vunpack.c.h.b16 %v374
    %v964 = vunpack.c.l.b16 %v375
    %v965 = vunpack.c.h.b16 %v375
    %v966 = vunpack.c.l.b16 %v376
    %v967 = vunpack.c.h.b16 %v376
    %v968 = vunpack.c.l.b16 %v377
    %v969 = vunpack.c.h.b16 %v377
    %v970 = vunpack.c.l.b16 %v378
    %v971 = vunpack.c.h.b16 %v378
    %v972 = vunpack.c.l.b16 %v379
    %v973 = vunpack.c.h.b16 %v379
    %v974 = vunpack.c.l.b16 %v380
    %v975 = vunpack.c.h.b16 %v380
    %v976 = vunpack.c.l.b16 %v381
    %v977 = vunpack.c.h.b16 %v381
    %v978 = vunpack.c.l.b16 %v382
    %v979 = vunpack.c.h.b16 %v382
    %v980 = vunpack.c.l.b16 %v383
    %v981 = vunpack.c.h.b16 %v383
    %v982 = vunpack.c.l.b16 %v384
    %v983 = vunpack.c.h.b16 %v384
    %v984 = vunpack.c.l.b16 %v385
    %v985 = vunpack.c.h.b16 %v385
    %v986 = vunpack.c.l.b16 %v386
    %v987 = vunpack.c.h.b16 %v386
    %v988 = vunpack.c.l.b16 %v387
    %v989 = vunpack.c.h.b16 %v387
    %v990 = vunpack.c.l.b16 %v388
    %v991 = vunpack.c.h.b16 %v388
    %v992 = vunpack.c.l.b16 %v389
    %v993 = vunpack.c.h.b16 %v389
    %v994 = vunpack.c.l.b16 %v390
    %v995 = vunpack.c.h.b16 %v390
    %v996 = vunpack.c.l.b16 %v391
    %v997 = vunpack.c.h.b16 %v391
    %v998 = vunpack.c.l.b16 %v392
    %v999 = vunpack.c.h.b16 %v392
    %v1000 = vunpack.c.l.b16 %v393
    %v1001 = vunpack.c.h.b16 %v393
    %v1002 = vunpack.c.l.b16 %v394
    %v1003 = vunpack.c.h.b16 %v394
    %v1004 = vunpack.c.l.b16 %v395
    %v1005 = vunpack.c.h.b16 %v395
    %v1006 = vunpack.c.l.b16 %v396
    %v1007 = vunpack.c.h.b16 %v396
    %v1008 = vunpack.c.l.b16 %v397
    %v1009 = vunpack.c.h.b16 %v397
    %v1010 = vunpack.c.l.b16 %v398
    %v1011 = vunpack.c.h.b16 %v398
    %v1012 = vunpack.c.l.b16 %v399
    %v1013 = vunpack.c.h.b16 %v399
    %v1014 = vunpack.c.l.b16 %v400
    %v1015 = vunpack.c.h.b16 %v400
    %v1016 = vunpack.c.l.b16 %v401
    %v1017 = vunpack.c.h.b16 %v401
    %v1018 = vunpack.c.l.b16 %v402
    %v1019 = vunpack.c.h.b16 %v402
    %v1020 = vunpack.c.l.b16 %v403
    %v1021 = vunpack.c.h.b16 %v403
    %v1022 = vunpack.c.l.b16 %v404
    %v1023 = vunpack.c.h.b16 %v404
    %v1024 = vunpack.c.l.b16 %v405
    %v1025 = vunpack.c.h.b16 %v405
    %v1026 = vunpack.c.l.b16 %v406
    %v1027 = vunpack.c.h.b16 %v406
    %v1028 = vunpack.c.l.b16 %v407
    %v1029 = vunpack.c.h.b16 %v407
    %v1030 = vunpack.c.l.b16 %v408
    %v1031 = vunpack.c.h.b16 %v408
    %v1032 = vunpack.c.l.b16 %v409
    %v1033 = vunpack.c.h.b16 %v409
    %v1034 = vunpack.c.l.b16 %v410
    %v1035 = vunpack.c.h.b16 %v410
    %v1036 = vunpack.c.l.b16 %v411
    %v1037 = vunpack.c.h.b16 %v411
    %v1038 = vunpack.c.l.b16 %v412
    %v1039 = vunpack.c.h.b16 %v412
    %v1040 = vunpack.c.l.b16 %v413
    %v1041 = vunpack.c.h.b16 %v413
    %v1042 = vunpack.c.l.b16 %v414
    %v1043 = vunpack.c.h.b16 %v414
    %v1044 = vunpack.c.l.b16 %v415
    %v1045 = vunpack.c.h.b16 %v415
    %v1046 = vunpack.c.l.b16 %v416
    %v1047 = vunpack.c.h.b16 %v416
    %v1048 = vunpack.c.l.b16 %v417
    %v1049 = vunpack.c.h.b16 %v417
    %v1050 = vunpack.c.l.b16 %v418
    %v1051 = vunpack.c.h.b16 %v418
    %v1052 = vunpack.c.l.b16 %v419
    %v1053 = vunpack.c.h.b16 %v419
    %v1054 = vunpack.c.l.b16 %v420
    %v1055 = vunpack.c.h.b16 %v420
    %v1056 = vunpack.c.l.b16 %v421
    %v1057 = vunpack.c.h.b16 %v421
    %v1058 = vunpack.c.l.b16 %v422
    %v1059 = vunpack.c.h.b16 %v422
    %v1060 = vunpack.c.l.b16 %v423
    %v1061 = vunpack.c.h.b16 %v423
    %v1062 = vunpack.c.l.b16 %v424
    %v1063 = vunpack.c.h.b16 %v424
    %v1064 = vunpack.c.l.b16 %v425
    %v1065 = vunpack.c.h.b16 %v425
    %v1066 = vunpack.c.l.b16 %v426
    %v1067 = vunpack.c.h.b16 %v426
    %v1068 = vunpack.c.l.b16 %v427
    %v1069 = vunpack.c.h.b16 %v427
    %v1070 = vunpack.c.l.b16 %v428
    %v1071 = vunpack.c.h.b16 %v428
    %v1072 = vunpack.c.l.b16 %v429
    %v1073 = vunpack.c.h.b16 %v429
    %v1074 = vunpack.c.l.b16 %v430
    %v1075 = vunpack.c.h.b16 %v430
    %v1076 = vunpack.c.l.b16 %v431
    %v1077 = vunpack.c.h.b16 %v431
    %v1078 = vpack.c.b16 %v698, %v694
    %v1079 = vpack.c.b16 %v699, %v695
    %v1080 = vpack.c.b16 %v700, %v696
    %v1081 = vpack.c.b16 %v701, %v697
    %v1082 = vpack.c.b16 %v706, %v702
    %v1083 = vpack.c.b16 %v707, %v703
    %v1084 = vpack.c.b16 %v708, %v704
    %v1085 = vpack.c.b16 %v709, %v705
    %v1086 = vpack.c.b16 %v714, %v710
    %v1087 = vpack.c.b16 %v715, %v711
    %v1088 = vpack.c.b16 %v716, %v712
    %v1089 = vpack.c.b16 %v717, %v713
    %v1090 = vpack.c.b16 %v722, %v718
    %v1091 = vpack.c.b16 %v723, %v719
    %v1092 = vpack.c.b16 %v724, %v720
    %v1093 = vpack.c.b16 %v725, %v721
    %v1094 = vpack.c.b16 %v730, %v726
    %v1095 = vpack.c.b16 %v731, %v727
    %v1096 = vpack.c.b16 %v732, %v728
    %v1097 = vpack.c.b16 %v733, %v729
    %v1098 = vpack.c.b16 %v738, %v734
    %v1099 = vpack.c.b16 %v739, %v735
    %v1100 = vpack.c.b16 %v740, %v736
    %v1101 = vpack.c.b16 %v741, %v737
    %v1102 = vpack.c.b16 %v746, %v742
    %v1103 = vpack.c.b16 %v747, %v743
    %v1104 = vpack.c.b16 %v748, %v744
    %v1105 = vpack.c.b16 %v749, %v745
    %v1106 = vpack.c.b16 %v754, %v750
    %v1107 = vpack.c.b16 %v755, %v751
    %v1108 = vpack.c.b16 %v756, %v752
    %v1109 = vpack.c.b16 %v757, %v753
    %v1110 = vpack.c.b16 %v762, %v758
    %v1111 = vpack.c.b16 %v763, %v759
    %v1112 = vpack.c.b16 %v764, %v760
    %v1113 = vpack.c.b16 %v765, %v761
    %v1114 = vpack.c.b16 %v770, %v766
    %v1115 = vpack.c.b16 %v771, %v767
    %v1116 = vpack.c.b16 %v772, %v768
    %v1117 = vpack.c.b16 %v773, %v769
    %v1118 = vpack.c.b16 %v778, %v774
    %v1119 = vpack.c.b16 %v779, %v775
    %v1120 = vpack.c.b16 %v780, %v776
    %v1121 = vpack.c.b16 %v781, %v777
    %v1122 = vpack.c.b16 %v786, %v782
    %v1123 = vpack.c.b16 %v787, %v783
    %v1124 = vpack.c.b16 %v788, %v784
    %v1125 = vpack.c.b16 %v789, %v785
    %v1126 = vpack.c.b16 %v794, %v790
    %v1127 = vpack.c.b16 %v795, %v791
    %v1128 = vpack.c.b16 %v796, %v792
    %v1129 = vpack.c.b16 %v797, %v793
    %v1130 = vpack.c.b16 %v802, %v798
    %v1131 = vpack.c.b16 %v803, %v799
    %v1132 = vpack.c.b16 %v804, %v800
    %v1133 = vpack.c.b16 %v805, %v801
    %v1134 = vpack.c.b16 %v810, %v806
    %v1135 = vpack.c.b16 %v811, %v807
    %v1136 = vpack.c.b16 %v812, %v808
    %v1137 = vpack.c.b16 %v813, %v809
    %v1138 = vpack.c.b16 %v818, %v814
    %v1139 = vpack.c.b16 %v819, %v815
    %v1140 = vpack.c.b16 %v820, %v816
    %v1141 = vpack.c.b16 %v821, %v817
    %v1142 = vpack.c.b16 %v826, %v822
    %v1143 = vpack.c.b16 %v827, %v823
    %v1144 = vpack.c.b16 %v828, %v824
    %v1145 = vpack.c.b16 %v829, %v825
    %v1146 = vpack.c.b16 %v834, %v830
    %v1147 = vpack.c.b16 %v835, %v831
    %v1148 = vpack.c.b16 %v836, %v832
    %v1149 = vpack.c.b16 %v837, %v833
    %v1150 = vpack.c.b16 %v842, %v838
    %v1151 = vpack.c.b16 %v843, %v839
    %v1152 = vpack.c.b16 %v844, %v840
    %v1153 = vpack.c.b16 %v845, %v841
    %v1154 = vpack.c.b16 %v850, %v846
    %v1155 = vpack.c.b16 %v851, %v847
    %v1156 = vpack.c.b16 %v852, %v848
    %v1157 = vpack.c.b16 %v853, %v849
    %v1158 = vpack.c.b16 %v858, %v854
    %v1159 = vpack.c.b16 %v859, %v855
    %v1160 = vpack.c.b16 %v860, %v856
    %v1161 = vpack.c.b16 %v861, %v857
    %v1162 = vpack.c.b16 %v866, %v862
    %v1163 = vpack.c.b16 %v867, %v863
    %v1164 = vpack.c.b16 %v868, %v864
    %v1165 = vpack.c.b16 %v869, %v865
    %v1166 = vpack.c.b16 %v874, %v870
    %v1167 = vpack.c.b16 %v875, %v871
    %v1168 = vpack.c.b16 %v876, %v872
    %v1169 = vpack.c.b16 %v877, %v873
    %v1170 = vpack.c.b16 %v882, %v878
    %v1171 = vpack.c.b16 %v883, %v879
    %v1172 = vpack.c.b16 %v884, %v880
    %v1173 = vpack.c.b16 %v885, %v881
    %v1174 = vpack.c.b16 %v890, %v886
    %v1175 = vpack.c.b16 %v891, %v887
    %v1176 = vpack.c.b16 %v892, %v888
    %v1177 = vpack.c.b16 %v893, %v889
    %v1178 = vpack.c.b16 %v898, %v894
    %v1179 = vpack.c.b16 %v899, %v895
    %v1180 = vpack.c.b16 %v900, %v896
    %v1181 = vpack.c.b16 %v901, %v897
    %v1182 = vpack.c.b16 %v906, %v902
    %v1183 = vpack.c.b16 %v907, %v903
    %v1184 = vpack.c.b16 %v908, %v904
    %v1185 = vpack.c.b16 %v909, %v905
    %v1186 = vpack.c.b16 %v914, %v910
    %v1187 = vpack.c.b16 %v915, %v911
    %v1188 = vpack.c.b16 %v916, %v912
    %v1189 = vpack.c.b16 %v917, %v913
    %v1190 = vpack.c.b16 %v922, %v918
    %v1191 = vpack.c.b16 %v923, %v919
    %v1192 = vpack.c.b16 %v924, %v920
    %v1193 = vpack.c.b16 %v925, %v921
    %v1194 = vpack.c.b16 %v930, %v926
    %v1195 = vpack.c.b16 %v931, %v927
    %v1196 = vpack.c.b16 %v932, %v928
    %v1197 = vpack.c.b16 %v933, %v929
    %v1198 = vpack.c.b16 %v938, %v934
    %v1199 = vpack.c.b16 %v939, %v935
    %v1200 = vpack.c.b16 %v940, %v936
    %v1201 = vpack.c.b16 %v941, %v937
    %v1202 = vpack.c.b16 %v946, %v942
    %v1203 = vpack.c.b16 %v947, %v943
    %v1204 = vpack.c.b16 %v948, %v944
    %v1205 = vpack.c.b16 %v949, %v945
    %v1206 = vpack.c.b16 %v954, %v950
    %v1207 = vpack.c.b16 %v955, %v951
    %v1208 = vpack.c.b16 %v956, %v952
    %v1209 = vpack.c.b16 %v957, %v953
    %v1210 = vpack.c.b16 %v962, %v958
    %v1211 = vpack.c.b16 %v963, %v959
    %v1212 = vpack.c.b16 %v964, %v960
    %v1213 = vpack.c.b16 %v965, %v961
    %v1214 = vpack.c.b16 %v970, %v966
    %v1215 = vpack.c.b16 %v971, %v967
    %v1216 = vpack.c.b16 %v972, %v968
    %v1217 = vpack.c.b16 %v973, %v969
    %v1218 = vpack.c.b16 %v978, %v974
    %v1219 = vpack.c.b16 %v979, %v975
    %v1220 = vpack.c.b16 %v980, %v976
    %v1221 = vpack.c.b16 %v981, %v977
    %v1222 = vpack.c.b16 %v986, %v982
    %v1223 = vpack.c.b16 %v987, %v983
    %v1224 = vpack.c.b16 %v988, %v984
    %v1225 = vpack.c.b16 %v989, %v985
    %v1226 = vpack.c.b16 %v994, %v990
    %v1227 = vpack.c.b16 %v995, %v991
    %v1228 = vpack.c.b16 %v996, %v992
    %v1229 = vpack.c.b16 %v997, %v993
    %v1230 = vpack.c.b16 %v1002, %v998
    %v1231 = vpack.c.b16 %v1003, %v999
    %v1232 = vpack.c.b16 %v1004, %v1000
    %v1233 = vpack.c.b16 %v1005, %v1001
    %v1234 = vpack.c.b16 %v1010, %v1006
    %v1235 = vpack.c.b16 %v1011, %v1007
    %v1236 = vpack.c.b16 %v1012, %v1008
    %v1237 = vpack.c.b16 %v1013, %v1009
    %v1238 = vpack.c.b16 %v1018, %v1014
    %v1239 = vpack.c.b16 %v1019, %v1015
    %v1240 = vpack.c.b16 %v1020, %v1016
    %v1241 = vpack.c.b16 %v1021, %v1017
    %v1242 = vpack.c.b16 %v1026, %v1022
    %v1243 = vpack.c.b16 %v1027, %v1023
    %v1244 = vpack.c.b16 %v1028, %v1024
    %v1245 = vpack.c.b16 %v1029, %v1025
    %v1246 = vpack.c.b16 %v1034, %v1030
    %v1247 = vpack.c.b16 %v1035, %v1031
    %v1248 = vpack.c.b16 %v1036, %v1032
    %v1249 = vpack.c.b16 %v1037, %v1033
    %v1250 = vpack.c.b16 %v1042, %v1038
    %v1251 = vpack.c.b16 %v1043, %v1039
    %v1252 = vpack.c.b16 %v1044, %v1040
    %v1253 = vpack.c.b16 %v1045, %v1041
    %v1254 = vpack.c.b16 %v1050, %v1046
    %v1255 = vpack.c.b16 %v1051, %v1047
    %v1256 = vpack.c.b16 %v1052, %v1048
    %v1257 = vpack.c.b16 %v1053, %v1049
    %v1258 = vpack.c.b16 %v1058, %v1054
    %v1259 = vpack.c.b16 %v1059, %v1055
    %v1260 = vpack.c.b16 %v1060, %v1056
    %v1261 = vpack.c.b16 %v1061, %v1057
    %v1262 = vpack.c.b16 %v1066, %v1062
    %v1263 = vpack.c.b16 %v1067, %v1063
    %v1264 = vpack.c.b16 %v1068, %v1064
    %v1265 = vpack.c.b16 %v1069, %v1065
    %v1266 = vpack.c.b16 %v1074, %v1070
    %v1267 = vpack.c.b16 %v1075, %v1071
    %v1268 = vpack.c.b16 %v1076, %v1072
    %v1269 = vpack.c.b16 %v1077, %v1073
    %1462 = vmatpush.bf16.msra.mxu0 %v1106
    %1463 = vmatpush.bf16.msra.mxu0 %v1102
    %1464 = vmatpush.bf16.msra.mxu0 %v1098
    %1465 = vmatpush.bf16.msra.mxu0 %v1094
    %1466 = vmatpush.bf16.msra.mxu0 %v1090
    %1467 = vmatpush.bf16.msra.mxu0 %v1086
    %1468 = vmatpush.bf16.msra.mxu0 %v1082
    %1469 = vmatpush.bf16.msra.mxu0 %v1078
    %1470 = vmatmul.bf16.gmra.mxu0 %v478
    %v1471 = vpop.f32.mrf.mxu0
    %v1472 = vadd.f32 %v434, %v1471
    %v1473 = vpop.f32.mrf.mxu0
    %v1474 = vadd.f32 %v434, %v1473
    %1475 = vmatmul.bf16.gmra.mxu0 %v484
    %v1476 = vpop.f32.mrf.mxu0
    %v1477 = vadd.f32 %v434, %v1476
    %v1478 = vpop.f32.mrf.mxu0
    %v1479 = vadd.f32 %v434, %v1478
    %1480 = vdwg.mxu0
    %1481 = vmatpush.bf16.msra.mxu0 %v1138
    %1482 = vmatpush.bf16.msra.mxu0 %v1134
    %1483 = vmatpush.bf16.msra.mxu0 %v1130
    %1484 = vmatpush.bf16.msra.mxu0 %v1126
    %1485 = vmatpush.bf16.msra.mxu0 %v1122
    %1486 = vmatpush.bf16.msra.mxu0 %v1118
    %1487 = vmatpush.bf16.msra.mxu0 %v1114
    %1488 = vmatpush.bf16.msra.mxu0 %v1110
    %1489 = vmatmul.bf16.gmra.mxu0 %v479
    %v1490 = vpop.f32.mrf.mxu0
    %v1491 = vadd.f32 %v1472, %v1490
    %v1492 = vpop.f32.mrf.mxu0
    %v1493 = vadd.f32 %v1474, %v1492
    %1494 = vmatmul.bf16.gmra.mxu0 %v485
    %v1495 = vpop.f32.mrf.mxu0
    %v1496 = vadd.f32 %v1477, %v1495
    %v1497 = vpop.f32.mrf.mxu0
    %v1498 = vadd.f32 %v1479, %v1497
    %1499 = vdwg.mxu0
    %1500 = vmatpush.bf16.msra.mxu0 %v1170
    %1501 = vmatpush.bf16.msra.mxu0 %v1166
    %1502 = vmatpush.bf16.msra.mxu0 %v1162
    %1503 = vmatpush.bf16.msra.mxu0 %v1158
    %1504 = vmatpush.bf16.msra.mxu0 %v1154
    %1505 = vmatpush.bf16.msra.mxu0 %v1150
    %1506 = vmatpush.bf16.msra.mxu0 %v1146
    %1507 = vmatpush.bf16.msra.mxu0 %v1142
    %1508 = vmatmul.bf16.gmra.mxu0 %v480
    %v1509 = vpop.f32.mrf.mxu0
    %v1510 = vadd.f32 %v1491, %v1509
    %v1511 = vpop.f32.mrf.mxu0
    %v1512 = vadd.f32 %v1493, %v1511
    %1513 = vmatmul.bf16.gmra.mxu0 %v486
    %v1514 = vpop.f32.mrf.mxu0
    %v1515 = vadd.f32 %v1496, %v1514
    %v1516 = vpop.f32.mrf.mxu0
    %v1517 = vadd.f32 %v1498, %v1516
    %1518 = vdwg.mxu0
    %1519 = vmatpush.bf16.msra.mxu0 %v1202
    %1520 = vmatpush.bf16.msra.mxu0 %v1198
    %1521 = vmatpush.bf16.msra.mxu0 %v1194
    %1522 = vmatpush.bf16.msra.mxu0 %v1190
    %1523 = vmatpush.bf16.msra.mxu0 %v1186
    %1524 = vmatpush.bf16.msra.mxu0 %v1182
    %1525 = vmatpush.bf16.msra.mxu0 %v1178
    %1526 = vmatpush.bf16.msra.mxu0 %v1174
    %1527 = vmatmul.bf16.gmra.mxu0 %v481
    %v1528 = vpop.f32.mrf.mxu0
    %v1529 = vadd.f32 %v1510, %v1528
    %v1530 = vpop.f32.mrf.mxu0
    %v1531 = vadd.f32 %v1512, %v1530
    %1532 = vmatmul.bf16.gmra.mxu0 %v487
    %v1533 = vpop.f32.mrf.mxu0
    %v1534 = vadd.f32 %v1515, %v1533
    %v1535 = vpop.f32.mrf.mxu0
    %v1536 = vadd.f32 %v1517, %v1535
    %1537 = vdwg.mxu0
    %1538 = vmatpush.bf16.msra.mxu0 %v1234
    %1539 = vmatpush.bf16.msra.mxu0 %v1230
    %1540 = vmatpush.bf16.msra.mxu0 %v1226
    %1541 = vmatpush.bf16.msra.mxu0 %v1222
    %1542 = vmatpush.bf16.msra.mxu0 %v1218
    %1543 = vmatpush.bf16.msra.mxu0 %v1214
    %1544 = vmatpush.bf16.msra.mxu0 %v1210
    %1545 = vmatpush.bf16.msra.mxu0 %v1206
    %1546 = vmatmul.bf16.gmra.mxu0 %v482
    %v1547 = vpop.f32.mrf.mxu0
    %v1548 = vadd.f32 %v1529, %v1547
    %v1549 = vpop.f32.mrf.mxu0
    %v1550 = vadd.f32 %v1531, %v1549
    %1551 = vmatmul.bf16.gmra.mxu0 %v488
    %v1552 = vpop.f32.mrf.mxu0
    %v1553 = vadd.f32 %v1534, %v1552
    %v1554 = vpop.f32.mrf.mxu0
    %v1555 = vadd.f32 %v1536, %v1554
    %1556 = vdwg.mxu0
    %1557 = vmatpush.bf16.msra.mxu0 %v1266
    %1558 = vmatpush.bf16.msra.mxu0 %v1262
    %1559 = vmatpush.bf16.msra.mxu0 %v1258
    %1560 = vmatpush.bf16.msra.mxu0 %v1254
    %1561 = vmatpush.bf16.msra.mxu0 %v1250
    %1562 = vmatpush.bf16.msra.mxu0 %v1246
    %1563 = vmatpush.bf16.msra.mxu0 %v1242
    %1564 = vmatpush.bf16.msra.mxu0 %v1238
    %1565 = vmatmul.bf16.gmra.mxu0 %v483
    %v1566 = vpop.f32.mrf.mxu0
    %v1567 = vadd.f32 %v1548, %v1566
    %v1568 = vpop.f32.mrf.mxu0
    %v1569 = vadd.f32 %v1550, %v1568
    %1570 = vmatmul.bf16.gmra.mxu0 %v489
    %v1571 = vpop.f32.mrf.mxu0
    %v1572 = vadd.f32 %v1553, %v1571
    %v1573 = vpop.f32.mrf.mxu0
    %v1574 = vadd.f32 %v1555, %v1573
    %1575 = vdwg.mxu0
    %1576 = vmatpush.bf16.msra.mxu0 %v1107
    %1577 = vmatpush.bf16.msra.mxu0 %v1103
    %1578 = vmatpush.bf16.msra.mxu0 %v1099
    %1579 = vmatpush.bf16.msra.mxu0 %v1095
    %1580 = vmatpush.bf16.msra.mxu0 %v1091
    %1581 = vmatpush.bf16.msra.mxu0 %v1087
    %1582 = vmatpush.bf16.msra.mxu0 %v1083
    %1583 = vmatpush.bf16.msra.mxu0 %v1079
    %1584 = vmatmul.bf16.gmra.mxu0 %v478
    %v1585 = vpop.f32.mrf.mxu0
    %v1586 = vadd.f32 %v435, %v1585
    %v1587 = vpop.f32.mrf.mxu0
    %v1588 = vadd.f32 %v435, %v1587
    %1589 = vmatmul.bf16.gmra.mxu0 %v484
    %v1590 = vpop.f32.mrf.mxu0
    %v1591 = vadd.f32 %v435, %v1590
    %v1592 = vpop.f32.mrf.mxu0
    %v1593 = vadd.f32 %v435, %v1592
    %1594 = vdwg.mxu0
    %1595 = vmatpush.bf16.msra.mxu0 %v1139
    %1596 = vmatpush.bf16.msra.mxu0 %v1135
    %1597 = vmatpush.bf16.msra.mxu0 %v1131
    %1598 = vmatpush.bf16.msra.mxu0 %v1127
    %1599 = vmatpush.bf16.msra.mxu0 %v1123
    %1600 = vmatpush.bf16.msra.mxu0 %v1119
    %1601 = vmatpush.bf16.msra.mxu0 %v1115
    %1602 = vmatpush.bf16.msra.mxu0 %v1111
    %1603 = vmatmul.bf16.gmra.mxu0 %v479
    %v1604 = vpop.f32.mrf.mxu0
    %v1605 = vadd.f32 %v1586, %v1604
    %v1606 = vpop.f32.mrf.mxu0
    %v1607 = vadd.f32 %v1588, %v1606
    %1608 = vmatmul.bf16.gmra.mxu0 %v485
    %v1609 = vpop.f32.mrf.mxu0
    %v1610 = vadd.f32 %v1591, %v1609
    %v1611 = vpop.f32.mrf.mxu0
    %v1612 = vadd.f32 %v1593, %v1611
    %1613 = vdwg.mxu0
    %1614 = vmatpush.bf16.msra.mxu0 %v1171
    %1615 = vmatpush.bf16.msra.mxu0 %v1167
    %1616 = vmatpush.bf16.msra.mxu0 %v1163
    %1617 = vmatpush.bf16.msra.mxu0 %v1159
    %1618 = vmatpush.bf16.msra.mxu0 %v1155
    %1619 = vmatpush.bf16.msra.mxu0 %v1151
    %1620 = vmatpush.bf16.msra.mxu0 %v1147
    %1621 = vmatpush.bf16.msra.mxu0 %v1143
    %1622 = vmatmul.bf16.gmra.mxu0 %v480
    %v1623 = vpop.f32.mrf.mxu0
    %v1624 = vadd.f32 %v1605, %v1623
    %v1625 = vpop.f32.mrf.mxu0
    %v1626 = vadd.f32 %v1607, %v1625
    %1627 = vmatmul.bf16.gmra.mxu0 %v486
    %v1628 = vpop.f32.mrf.mxu0
    %v1629 = vadd.f32 %v1610, %v1628
    %v1630 = vpop.f32.mrf.mxu0
    %v1631 = vadd.f32 %v1612, %v1630
    %1632 = vdwg.mxu0
    %1633 = vmatpush.bf16.msra.mxu0 %v1203
    %1634 = vmatpush.bf16.msra.mxu0 %v1199
    %1635 = vmatpush.bf16.msra.mxu0 %v1195
    %1636 = vmatpush.bf16.msra.mxu0 %v1191
    %1637 = vmatpush.bf16.msra.mxu0 %v1187
    %1638 = vmatpush.bf16.msra.mxu0 %v1183
    %1639 = vmatpush.bf16.msra.mxu0 %v1179
    %1640 = vmatpush.bf16.msra.mxu0 %v1175
    %1641 = vmatmul.bf16.gmra.mxu0 %v481
    %v1642 = vpop.f32.mrf.mxu0
    %v1643 = vadd.f32 %v1624, %v1642
    %v1644 = vpop.f32.mrf.mxu0
    %v1645 = vadd.f32 %v1626, %v1644
    %1646 = vmatmul.bf16.gmra.mxu0 %v487
    %v1647 = vpop.f32.mrf.mxu0
    %v1648 = vadd.f32 %v1629, %v1647
    %v1649 = vpop.f32.mrf.mxu0
    %v1650 = vadd.f32 %v1631, %v1649
    %1651 = vdwg.mxu0
    %1652 = vmatpush.bf16.msra.mxu0 %v1235
    %1653 = vmatpush.bf16.msra.mxu0 %v1231
    %1654 = vmatpush.bf16.msra.mxu0 %v1227
    %1655 = vmatpush.bf16.msra.mxu0 %v1223
    %1656 = vmatpush.bf16.msra.mxu0 %v1219
    %1657 = vmatpush.bf16.msra.mxu0 %v1215
    %1658 = vmatpush.bf16.msra.mxu0 %v1211
    %1659 = vmatpush.bf16.msra.mxu0 %v1207
    %1660 = vmatmul.bf16.gmra.mxu0 %v482
    %v1661 = vpop.f32.mrf.mxu0
    %v1662 = vadd.f32 %v1643, %v1661
    %v1663 = vpop.f32.mrf.mxu0
    %v1664 = vadd.f32 %v1645, %v1663
    %1665 = vmatmul.bf16.gmra.mxu0 %v488
    %v1666 = vpop.f32.mrf.mxu0
    %v1667 = vadd.f32 %v1648, %v1666
    %v1668 = vpop.f32.mrf.mxu0
    %v1669 = vadd.f32 %v1650, %v1668
    %1670 = vdwg.mxu0
    %1671 = vmatpush.bf16.msra.mxu0 %v1267
    %1672 = vmatpush.bf16.msra.mxu0 %v1263
    %1673 = vmatpush.bf16.msra.mxu0 %v1259
    %1674 = vmatpush.bf16.msra.mxu0 %v1255
    %1675 = vmatpush.bf16.msra.mxu0 %v1251
    %1676 = vmatpush.bf16.msra.mxu0 %v1247
    %1677 = vmatpush.bf16.msra.mxu0 %v1243
    %1678 = vmatpush.bf16.msra.mxu0 %v1239
    %1679 = vmatmul.bf16.gmra.mxu0 %v483
    %v1680 = vpop.f32.mrf.mxu0
    %v1681 = vadd.f32 %v1662, %v1680
    %v1682 = vpop.f32.mrf.mxu0
    %v1683 = vadd.f32 %v1664, %v1682
    %1684 = vmatmul.bf16.gmra.mxu0 %v489
    %v1685 = vpop.f32.mrf.mxu0
    %v1686 = vadd.f32 %v1667, %v1685
    %v1687 = vpop.f32.mrf.mxu0
    %v1688 = vadd.f32 %v1669, %v1687
    %1689 = vdwg.mxu0
    %1690 = vmatpush.bf16.msra.mxu0 %v1108
    %1691 = vmatpush.bf16.msra.mxu0 %v1104
    %1692 = vmatpush.bf16.msra.mxu0 %v1100
    %1693 = vmatpush.bf16.msra.mxu0 %v1096
    %1694 = vmatpush.bf16.msra.mxu0 %v1092
    %1695 = vmatpush.bf16.msra.mxu0 %v1088
    %1696 = vmatpush.bf16.msra.mxu0 %v1084
    %1697 = vmatpush.bf16.msra.mxu0 %v1080
    %1698 = vmatmul.bf16.gmra.mxu0 %v478
    %v1699 = vpop.f32.mrf.mxu0
    %v1700 = vadd.f32 %v436, %v1699
    %v1701 = vpop.f32.mrf.mxu0
    %v1702 = vadd.f32 %v436, %v1701
    %1703 = vmatmul.bf16.gmra.mxu0 %v484
    %v1704 = vpop.f32.mrf.mxu0
    %v1705 = vadd.f32 %v436, %v1704
    %v1706 = vpop.f32.mrf.mxu0
    %v1707 = vadd.f32 %v436, %v1706
    %1708 = vdwg.mxu0
    %1709 = vmatpush.bf16.msra.mxu0 %v1140
    %1710 = vmatpush.bf16.msra.mxu0 %v1136
    %1711 = vmatpush.bf16.msra.mxu0 %v1132
    %1712 = vmatpush.bf16.msra.mxu0 %v1128
    %1713 = vmatpush.bf16.msra.mxu0 %v1124
    %1714 = vmatpush.bf16.msra.mxu0 %v1120
    %1715 = vmatpush.bf16.msra.mxu0 %v1116
    %1716 = vmatpush.bf16.msra.mxu0 %v1112
    %1717 = vmatmul.bf16.gmra.mxu0 %v479
    %v1718 = vpop.f32.mrf.mxu0
    %v1719 = vadd.f32 %v1700, %v1718
    %v1720 = vpop.f32.mrf.mxu0
    %v1721 = vadd.f32 %v1702, %v1720
    %1722 = vmatmul.bf16.gmra.mxu0 %v485
    %v1723 = vpop.f32.mrf.mxu0
    %v1724 = vadd.f32 %v1705, %v1723
    %v1725 = vpop.f32.mrf.mxu0
    %v1726 = vadd.f32 %v1707, %v1725
    %1727 = vdwg.mxu0
    %1728 = vmatpush.bf16.msra.mxu0 %v1172
    %1729 = vmatpush.bf16.msra.mxu0 %v1168
    %1730 = vmatpush.bf16.msra.mxu0 %v1164
    %1731 = vmatpush.bf16.msra.mxu0 %v1160
    %1732 = vmatpush.bf16.msra.mxu0 %v1156
    %1733 = vmatpush.bf16.msra.mxu0 %v1152
    %1734 = vmatpush.bf16.msra.mxu0 %v1148
    %1735 = vmatpush.bf16.msra.mxu0 %v1144
    %1736 = vmatmul.bf16.gmra.mxu0 %v480
    %v1737 = vpop.f32.mrf.mxu0
    %v1738 = vadd.f32 %v1719, %v1737
    %v1739 = vpop.f32.mrf.mxu0
    %v1740 = vadd.f32 %v1721, %v1739
    %1741 = vmatmul.bf16.gmra.mxu0 %v486
    %v1742 = vpop.f32.mrf.mxu0
    %v1743 = vadd.f32 %v1724, %v1742
    %v1744 = vpop.f32.mrf.mxu0
    %v1745 = vadd.f32 %v1726, %v1744
    %1746 = vdwg.mxu0
    %1747 = vmatpush.bf16.msra.mxu0 %v1204
    %1748 = vmatpush.bf16.msra.mxu0 %v1200
    %1749 = vmatpush.bf16.msra.mxu0 %v1196
    %1750 = vmatpush.bf16.msra.mxu0 %v1192
    %1751 = vmatpush.bf16.msra.mxu0 %v1188
    %1752 = vmatpush.bf16.msra.mxu0 %v1184
    %1753 = vmatpush.bf16.msra.mxu0 %v1180
    %1754 = vmatpush.bf16.msra.mxu0 %v1176
    %1755 = vmatmul.bf16.gmra.mxu0 %v481
    %v1756 = vpop.f32.mrf.mxu0
    %v1757 = vadd.f32 %v1738, %v1756
    %v1758 = vpop.f32.mrf.mxu0
    %v1759 = vadd.f32 %v1740, %v1758
    %1760 = vmatmul.bf16.gmra.mxu0 %v487
    %v1761 = vpop.f32.mrf.mxu0
    %v1762 = vadd.f32 %v1743, %v1761
    %v1763 = vpop.f32.mrf.mxu0
    %v1764 = vadd.f32 %v1745, %v1763
    %1765 = vdwg.mxu0
    %1766 = vmatpush.bf16.msra.mxu0 %v1236
    %1767 = vmatpush.bf16.msra.mxu0 %v1232
    %1768 = vmatpush.bf16.msra.mxu0 %v1228
    %1769 = vmatpush.bf16.msra.mxu0 %v1224
    %1770 = vmatpush.bf16.msra.mxu0 %v1220
    %1771 = vmatpush.bf16.msra.mxu0 %v1216
    %1772 = vmatpush.bf16.msra.mxu0 %v1212
    %1773 = vmatpush.bf16.msra.mxu0 %v1208
    %1774 = vmatmul.bf16.gmra.mxu0 %v482
    %v1775 = vpop.f32.mrf.mxu0
    %v1776 = vadd.f32 %v1757, %v1775
    %v1777 = vpop.f32.mrf.mxu0
    %v1778 = vadd.f32 %v1759, %v1777
    %1779 = vmatmul.bf16.gmra.mxu0 %v488
    %v1780 = vpop.f32.mrf.mxu0
    %v1781 = vadd.f32 %v1762, %v1780
    %v1782 = vpop.f32.mrf.mxu0
    %v1783 = vadd.f32 %v1764, %v1782
    %1784 = vdwg.mxu0
    %1785 = vmatpush.bf16.msra.mxu0 %v1268
    %1786 = vmatpush.bf16.msra.mxu0 %v1264
    %1787 = vmatpush.bf16.msra.mxu0 %v1260
    %1788 = vmatpush.bf16.msra.mxu0 %v1256
    %1789 = vmatpush.bf16.msra.mxu0 %v1252
    %1790 = vmatpush.bf16.msra.mxu0 %v1248
    %1791 = vmatpush.bf16.msra.mxu0 %v1244
    %1792 = vmatpush.bf16.msra.mxu0 %v1240
    %1793 = vmatmul.bf16.gmra.mxu0 %v483
    %v1794 = vpop.f32.mrf.mxu0
    %v1795 = vadd.f32 %v1776, %v1794
    %v1796 = vpop.f32.mrf.mxu0
    %v1797 = vadd.f32 %v1778, %v1796
    %1798 = vmatmul.bf16.gmra.mxu0 %v489
    %v1799 = vpop.f32.mrf.mxu0
    %v1800 = vadd.f32 %v1781, %v1799
    %v1801 = vpop.f32.mrf.mxu0
    %v1802 = vadd.f32 %v1783, %v1801
    %1803 = vdwg.mxu0
    %1804 = vmatpush.bf16.msra.mxu0 %v1109
    %1805 = vmatpush.bf16.msra.mxu0 %v1105
    %1806 = vmatpush.bf16.msra.mxu0 %v1101
    %1807 = vmatpush.bf16.msra.mxu0 %v1097
    %1808 = vmatpush.bf16.msra.mxu0 %v1093
    %1809 = vmatpush.bf16.msra.mxu0 %v1089
    %1810 = vmatpush.bf16.msra.mxu0 %v1085
    %1811 = vmatpush.bf16.msra.mxu0 %v1081
    %1812 = vmatmul.bf16.gmra.mxu0 %v478
    %v1813 = vpop.f32.mrf.mxu0
    %v1814 = vadd.f32 %v437, %v1813
    %v1815 = vpop.f32.mrf.mxu0
    %v1816 = vadd.f32 %v437, %v1815
    %1817 = vmatmul.bf16.gmra.mxu0 %v484
    %v1818 = vpop.f32.mrf.mxu0
    %v1819 = vadd.f32 %v437, %v1818
    %v1820 = vpop.f32.mrf.mxu0
    %v1821 = vadd.f32 %v437, %v1820
    %1822 = vdwg.mxu0
    %1823 = vmatpush.bf16.msra.mxu0 %v1141
    %1824 = vmatpush.bf16.msra.mxu0 %v1137
    %1825 = vmatpush.bf16.msra.mxu0 %v1133
    %1826 = vmatpush.bf16.msra.mxu0 %v1129
    %1827 = vmatpush.bf16.msra.mxu0 %v1125
    %1828 = vmatpush.bf16.msra.mxu0 %v1121
    %1829 = vmatpush.bf16.msra.mxu0 %v1117
    %1830 = vmatpush.bf16.msra.mxu0 %v1113
    %1831 = vmatmul.bf16.gmra.mxu0 %v479
    %v1832 = vpop.f32.mrf.mxu0
    %v1833 = vadd.f32 %v1814, %v1832
    %v1834 = vpop.f32.mrf.mxu0
    %v1835 = vadd.f32 %v1816, %v1834
    %1836 = vmatmul.bf16.gmra.mxu0 %v485
    %v1837 = vpop.f32.mrf.mxu0
    %v1838 = vadd.f32 %v1819, %v1837
    %v1839 = vpop.f32.mrf.mxu0
    %v1840 = vadd.f32 %v1821, %v1839
    %1841 = vdwg.mxu0
    %1842 = vmatpush.bf16.msra.mxu0 %v1173
    %1843 = vmatpush.bf16.msra.mxu0 %v1169
    %1844 = vmatpush.bf16.msra.mxu0 %v1165
    %1845 = vmatpush.bf16.msra.mxu0 %v1161
    %1846 = vmatpush.bf16.msra.mxu0 %v1157
    %1847 = vmatpush.bf16.msra.mxu0 %v1153
    %1848 = vmatpush.bf16.msra.mxu0 %v1149
    %1849 = vmatpush.bf16.msra.mxu0 %v1145
    %1850 = vmatmul.bf16.gmra.mxu0 %v480
    %v1851 = vpop.f32.mrf.mxu0
    %v1852 = vadd.f32 %v1833, %v1851
    %v1853 = vpop.f32.mrf.mxu0
    %v1854 = vadd.f32 %v1835, %v1853
    %1855 = vmatmul.bf16.gmra.mxu0 %v486
    %v1856 = vpop.f32.mrf.mxu0
    %v1857 = vadd.f32 %v1838, %v1856
    %v1858 = vpop.f32.mrf.mxu0
    %v1859 = vadd.f32 %v1840, %v1858
    %1860 = vdwg.mxu0
    %1861 = vmatpush.bf16.msra.mxu0 %v1205
    %1862 = vmatpush.bf16.msra.mxu0 %v1201
    %1863 = vmatpush.bf16.msra.mxu0 %v1197
    %1864 = vmatpush.bf16.msra.mxu0 %v1193
    %1865 = vmatpush.bf16.msra.mxu0 %v1189
    %1866 = vmatpush.bf16.msra.mxu0 %v1185
    %1867 = vmatpush.bf16.msra.mxu0 %v1181
    %1868 = vmatpush.bf16.msra.mxu0 %v1177
    %1869 = vmatmul.bf16.gmra.mxu0 %v481
    %v1870 = vpop.f32.mrf.mxu0
    %v1871 = vadd.f32 %v1852, %v1870
    %v1872 = vpop.f32.mrf.mxu0
    %v1873 = vadd.f32 %v1854, %v1872
    %1874 = vmatmul.bf16.gmra.mxu0 %v487
    %v1875 = vpop.f32.mrf.mxu0
    %v1876 = vadd.f32 %v1857, %v1875
    %v1877 = vpop.f32.mrf.mxu0
    %v1878 = vadd.f32 %v1859, %v1877
    %1879 = vdwg.mxu0
    %1880 = vmatpush.bf16.msra.mxu0 %v1237
    %1881 = vmatpush.bf16.msra.mxu0 %v1233
    %1882 = vmatpush.bf16.msra.mxu0 %v1229
    %1883 = vmatpush.bf16.msra.mxu0 %v1225
    %1884 = vmatpush.bf16.msra.mxu0 %v1221
    %1885 = vmatpush.bf16.msra.mxu0 %v1217
    %1886 = vmatpush.bf16.msra.mxu0 %v1213
    %1887 = vmatpush.bf16.msra.mxu0 %v1209
    %1888 = vmatmul.bf16.gmra.mxu0 %v482
    %v1889 = vpop.f32.mrf.mxu0
    %v1890 = vadd.f32 %v1871, %v1889
    %v1891 = vpop.f32.mrf.mxu0
    %v1892 = vadd.f32 %v1873, %v1891
    %1893 = vmatmul.bf16.gmra.mxu0 %v488
    %v1894 = vpop.f32.mrf.mxu0
    %v1895 = vadd.f32 %v1876, %v1894
    %v1896 = vpop.f32.mrf.mxu0
    %v1897 = vadd.f32 %v1878, %v1896
    %1898 = vdwg.mxu0
    %1899 = vmatpush.bf16.msra.mxu0 %v1269
    %1900 = vmatpush.bf16.msra.mxu0 %v1265
    %1901 = vmatpush.bf16.msra.mxu0 %v1261
    %1902 = vmatpush.bf16.msra.mxu0 %v1257
    %1903 = vmatpush.bf16.msra.mxu0 %v1253
    %1904 = vmatpush.bf16.msra.mxu0 %v1249
    %1905 = vmatpush.bf16.msra.mxu0 %v1245
    %1906 = vmatpush.bf16.msra.mxu0 %v1241
    %1907 = vmatmul.bf16.gmra.mxu0 %v483
    %v1908 = vpop.f32.mrf.mxu0
    %v1909 = vadd.f32 %v1890, %v1908
    %v1910 = vpop.f32.mrf.mxu0
    %v1911 = vadd.f32 %v1892, %v1910
    %1912 = vmatmul.bf16.gmra.mxu0 %v489
    %v1913 = vpop.f32.mrf.mxu0
    %v1914 = vadd.f32 %v1895, %v1913
    %v1915 = vpop.f32.mrf.mxu0
    %v1916 = vadd.f32 %v1897, %v1915
    %1917 = vdwg.mxu0
    %v1918 = vpack.c.bf16 %v1569, %v1567
    %v1919 = vpack.c.bf16 %v1683, %v1681
    %v1920 = vpack.c.bf16 %v1797, %v1795
    %v1921 = vpack.c.bf16 %v1911, %v1909
    %v1922 = vpack.c.bf16 %v1574, %v1572
    %v1923 = vpack.c.bf16 %v1688, %v1686
    %v1924 = vpack.c.bf16 %v1802, %v1800
    %v1925 = vpack.c.bf16 %v1916, %v1914
    %v1926 = vld [vmem:[#allocation8] sm:$0xff]
    %v1927 = vld [vmem:[#allocation8 + $0x8] sm:$0xff]
    %v1928 = vld [vmem:[#allocation8 + $0x10] sm:$0xff]
    %v1929 = vld [vmem:[#allocation8 + $0x18] sm:$0xff]
    %v1930 = vld [vmem:[#allocation8 + $0x20] sm:$0xff]
    %v1931 = vld [vmem:[#allocation8 + $0x28] sm:$0xff]
    %v1932 = vld [vmem:[#allocation8 + $0x30] sm:$0xff]
    %v1933 = vld [vmem:[#allocation8 + $0x38] sm:$0xff]
    %v1934 = vld [vmem:[#allocation8 + $0x40] sm:$0xff]
    %v1935 = vld [vmem:[#allocation8 + $0x48] sm:$0xff]
    %v1936 = vld [vmem:[#allocation8 + $0x50] sm:$0xff]
    %v1937 = vld [vmem:[#allocation8 + $0x58] sm:$0xff]
    %v1938 = vld [vmem:[#allocation8 + $0x60] sm:$0xff]
    %v1939 = vld [vmem:[#allocation8 + $0x68] sm:$0xff]
    %v1940 = vld [vmem:[#allocation8 + $0x70] sm:$0xff]
    %v1941 = vld [vmem:[#allocation8 + $0x78] sm:$0xff]
    %v1942 = vld [vmem:[#allocation8 + $0x80] sm:$0xff]
    %v1943 = vld [vmem:[#allocation8 + $0x88] sm:$0xff]
    %v1944 = vld [vmem:[#allocation8 + $0x90] sm:$0xff]
    %v1945 = vld [vmem:[#allocation8 + $0x98] sm:$0xff]
    %v1946 = vld [vmem:[#allocation8 + $0xa0] sm:$0xff]
    %v1947 = vld [vmem:[#allocation8 + $0xa8] sm:$0xff]
    %v1948 = vld [vmem:[#allocation8 + $0xb0] sm:$0xff]
    %v1949 = vld [vmem:[#allocation8 + $0xb8] sm:$0xff]
    %v1950 = vld [vmem:[#allocation8 + $0xc0] sm:$0xff]
    %v1951 = vld [vmem:[#allocation8 + $0xc8] sm:$0xff]
    %v1952 = vld [vmem:[#allocation8 + $0xd0] sm:$0xff]
    %v1953 = vld [vmem:[#allocation8 + $0xd8] sm:$0xff]
    %v1954 = vld [vmem:[#allocation8 + $0xe0] sm:$0xff]
    %v1955 = vld [vmem:[#allocation8 + $0xe8] sm:$0xff]
    %v1956 = vld [vmem:[#allocation8 + $0xf0] sm:$0xff]
    %v1957 = vld [vmem:[#allocation8 + $0xf8] sm:$0xff]
    %v1958 = vld [vmem:[#allocation8 + $0x100] sm:$0xff]
    %v1959 = vld [vmem:[#allocation8 + $0x108] sm:$0xff]
    %v1960 = vld [vmem:[#allocation8 + $0x110] sm:$0xff]
    %v1961 = vld [vmem:[#allocation8 + $0x118] sm:$0xff]
    %v1962 = vld [vmem:[#allocation8 + $0x120] sm:$0xff]
    %v1963 = vld [vmem:[#allocation8 + $0x128] sm:$0xff]
    %v1964 = vld [vmem:[#allocation8 + $0x130] sm:$0xff]
    %v1965 = vld [vmem:[#allocation8 + $0x138] sm:$0xff]
    %v1966 = vld [vmem:[#allocation8 + $0x140] sm:$0xff]
    %v1967 = vld [vmem:[#allocation8 + $0x148] sm:$0xff]
    %v1968 = vld [vmem:[#allocation8 + $0x150] sm:$0xff]
    %v1969 = vld [vmem:[#allocation8 + $0x158] sm:$0xff]
    %v1970 = vld [vmem:[#allocation8 + $0x160] sm:$0xff]
    %v1971 = vld [vmem:[#allocation8 + $0x168] sm:$0xff]
    %v1972 = vld [vmem:[#allocation8 + $0x170] sm:$0xff]
    %v1973 = vld [vmem:[#allocation8 + $0x178] sm:$0xff]
    %v1974 = vld [vmem:[#allocation8 + $0x180] sm:$0xff]
    %v1975 = vld [vmem:[#allocation8 + $0x188] sm:$0xff]
    %v1976 = vld [vmem:[#allocation8 + $0x190] sm:$0xff]
    %v1977 = vld [vmem:[#allocation8 + $0x198] sm:$0xff]
    %v1978 = vld [vmem:[#allocation8 + $0x1a0] sm:$0xff]
    %v1979 = vld [vmem:[#allocation8 + $0x1a8] sm:$0xff]
    %v1980 = vld [vmem:[#allocation8 + $0x1b0] sm:$0xff]
    %v1981 = vld [vmem:[#allocation8 + $0x1b8] sm:$0xff]
    %v1982 = vld [vmem:[#allocation8 + $0x1c0] sm:$0xff]
    %v1983 = vld [vmem:[#allocation8 + $0x1c8] sm:$0xff]
    %v1984 = vld [vmem:[#allocation8 + $0x1d0] sm:$0xff]
    %v1985 = vld [vmem:[#allocation8 + $0x1d8] sm:$0xff]
    %v1986 = vld [vmem:[#allocation8 + $0x1e0] sm:$0xff]
    %v1987 = vld [vmem:[#allocation8 + $0x1e8] sm:$0xff]
    %v1988 = vld [vmem:[#allocation8 + $0x1f0] sm:$0xff]
    %v1989 = vld [vmem:[#allocation8 + $0x1f8] sm:$0xff]
    %v1990 = vld [vmem:[#allocation8 + $0x200] sm:$0xff]
    %v1991 = vld [vmem:[#allocation8 + $0x208] sm:$0xff]
    %v1992 = vld [vmem:[#allocation8 + $0x210] sm:$0xff]
    %v1993 = vld [vmem:[#allocation8 + $0x218] sm:$0xff]
    %v1994 = vld [vmem:[#allocation8 + $0x220] sm:$0xff]
    %v1995 = vld [vmem:[#allocation8 + $0x228] sm:$0xff]
    %v1996 = vld [vmem:[#allocation8 + $0x230] sm:$0xff]
    %v1997 = vld [vmem:[#allocation8 + $0x238] sm:$0xff]
    %v1998 = vld [vmem:[#allocation8 + $0x240] sm:$0xff]
    %v1999 = vld [vmem:[#allocation8 + $0x248] sm:$0xff]
    %v2000 = vld [vmem:[#allocation8 + $0x250] sm:$0xff]
    %v2001 = vld [vmem:[#allocation8 + $0x258] sm:$0xff]
    %v2002 = vld [vmem:[#allocation8 + $0x260] sm:$0xff]
    %v2003 = vld [vmem:[#allocation8 + $0x268] sm:$0xff]
    %v2004 = vld [vmem:[#allocation8 + $0x270] sm:$0xff]
    %v2005 = vld [vmem:[#allocation8 + $0x278] sm:$0xff]
    %v2006 = vld [vmem:[#allocation8 + $0x280] sm:$0xff]
    %v2007 = vld [vmem:[#allocation8 + $0x288] sm:$0xff]
    %v2008 = vld [vmem:[#allocation8 + $0x290] sm:$0xff]
    %v2009 = vld [vmem:[#allocation8 + $0x298] sm:$0xff]
    %v2010 = vld [vmem:[#allocation8 + $0x2a0] sm:$0xff]
    %v2011 = vld [vmem:[#allocation8 + $0x2a8] sm:$0xff]
    %v2012 = vld [vmem:[#allocation8 + $0x2b0] sm:$0xff]
    %v2013 = vld [vmem:[#allocation8 + $0x2b8] sm:$0xff]
    %v2014 = vld [vmem:[#allocation8 + $0x2c0] sm:$0xff]
    %v2015 = vld [vmem:[#allocation8 + $0x2c8] sm:$0xff]
    %v2016 = vld [vmem:[#allocation8 + $0x2d0] sm:$0xff]
    %v2017 = vld [vmem:[#allocation8 + $0x2d8] sm:$0xff]
    %v2018 = vld [vmem:[#allocation8 + $0x2e0] sm:$0xff]
    %v2019 = vld [vmem:[#allocation8 + $0x2e8] sm:$0xff]
    %v2020 = vld [vmem:[#allocation8 + $0x2f0] sm:$0xff]
    %v2021 = vld [vmem:[#allocation8 + $0x2f8] sm:$0xff]
    %v2022 = vld [vmem:[#allocation8 + $0x300] sm:$0xff]
    %v2023 = vld [vmem:[#allocation8 + $0x308] sm:$0xff]
    %v2024 = vld [vmem:[#allocation8 + $0x310] sm:$0xff]
    %v2025 = vld [vmem:[#allocation8 + $0x318] sm:$0xff]
    %v2026 = vld [vmem:[#allocation8 + $0x320] sm:$0xff]
    %v2027 = vld [vmem:[#allocation8 + $0x328] sm:$0xff]
    %v2028 = vld [vmem:[#allocation8 + $0x330] sm:$0xff]
    %v2029 = vld [vmem:[#allocation8 + $0x338] sm:$0xff]
    %v2030 = vld [vmem:[#allocation8 + $0x340] sm:$0xff]
    %v2031 = vld [vmem:[#allocation8 + $0x348] sm:$0xff]
    %v2032 = vld [vmem:[#allocation8 + $0x350] sm:$0xff]
    %v2033 = vld [vmem:[#allocation8 + $0x358] sm:$0xff]
    %v2034 = vld [vmem:[#allocation8 + $0x360] sm:$0xff]
    %v2035 = vld [vmem:[#allocation8 + $0x368] sm:$0xff]
    %v2036 = vld [vmem:[#allocation8 + $0x370] sm:$0xff]
    %v2037 = vld [vmem:[#allocation8 + $0x378] sm:$0xff]
    %v2038 = vld [vmem:[#allocation8 + $0x380] sm:$0xff]
    %v2039 = vld [vmem:[#allocation8 + $0x388] sm:$0xff]
    %v2040 = vld [vmem:[#allocation8 + $0x390] sm:$0xff]
    %v2041 = vld [vmem:[#allocation8 + $0x398] sm:$0xff]
    %v2042 = vld [vmem:[#allocation8 + $0x3a0] sm:$0xff]
    %v2043 = vld [vmem:[#allocation8 + $0x3a8] sm:$0xff]
    %v2044 = vld [vmem:[#allocation8 + $0x3b0] sm:$0xff]
    %v2045 = vld [vmem:[#allocation8 + $0x3b8] sm:$0xff]
    %v2046 = vld [vmem:[#allocation8 + $0x3c0] sm:$0xff]
    %v2047 = vld [vmem:[#allocation8 + $0x3c8] sm:$0xff]
    %v2048 = vld [vmem:[#allocation8 + $0x3d0] sm:$0xff]
    %v2049 = vld [vmem:[#allocation8 + $0x3d8] sm:$0xff]
    %v2050 = vld [vmem:[#allocation8 + $0x3e0] sm:$0xff]
    %v2051 = vld [vmem:[#allocation8 + $0x3e8] sm:$0xff]
    %v2052 = vld [vmem:[#allocation8 + $0x3f0] sm:$0xff]
    %v2053 = vld [vmem:[#allocation8 + $0x3f8] sm:$0xff]
    %v2054 = vld [vmem:[#allocation10] sm:$0xf]
    %v2056 = vperm.slane %v2054, 0
    %v2057 = vperm.slane %v2054, 1
    %v2058 = vperm.slane %v2054, 2
    %v2059 = vperm.slane %v2054, 3
    %v2192 = vunpack.c.l.b16 %v1926
    %v2193 = vunpack.c.h.b16 %v1926
    %v2194 = vunpack.c.l.b16 %v1927
    %v2195 = vunpack.c.h.b16 %v1927
    %v2196 = vunpack.c.l.b16 %v1928
    %v2197 = vunpack.c.h.b16 %v1928
    %v2198 = vunpack.c.l.b16 %v1929
    %v2199 = vunpack.c.h.b16 %v1929
    %v2200 = vunpack.c.l.b16 %v1930
    %v2201 = vunpack.c.h.b16 %v1930
    %v2202 = vunpack.c.l.b16 %v1931
    %v2203 = vunpack.c.h.b16 %v1931
    %v2204 = vunpack.c.l.b16 %v1932
    %v2205 = vunpack.c.h.b16 %v1932
    %v2206 = vunpack.c.l.b16 %v1933
    %v2207 = vunpack.c.h.b16 %v1933
    %v2208 = vunpack.c.l.b16 %v1934
    %v2209 = vunpack.c.h.b16 %v1934
    %v2210 = vunpack.c.l.b16 %v1935
    %v2211 = vunpack.c.h.b16 %v1935
    %v2212 = vunpack.c.l.b16 %v1936
    %v2213 = vunpack.c.h.b16 %v1936
    %v2214 = vunpack.c.l.b16 %v1937
    %v2215 = vunpack.c.h.b16 %v1937
    %v2216 = vunpack.c.l.b16 %v1938
    %v2217 = vunpack.c.h.b16 %v1938
    %v2218 = vunpack.c.l.b16 %v1939
    %v2219 = vunpack.c.h.b16 %v1939
    %v2220 = vunpack.c.l.b16 %v1940
    %v2221 = vunpack.c.h.b16 %v1940
    %v2222 = vunpack.c.l.b16 %v1941
    %v2223 = vunpack.c.h.b16 %v1941
    %v2224 = vunpack.c.l.b16 %v1942
    %v2225 = vunpack.c.h.b16 %v1942
    %v2226 = vunpack.c.l.b16 %v1943
    %v2227 = vunpack.c.h.b16 %v1943
    %v2228 = vunpack.c.l.b16 %v1944
    %v2229 = vunpack.c.h.b16 %v1944
    %v2230 = vunpack.c.l.b16 %v1945
    %v2231 = vunpack.c.h.b16 %v1945
    %v2232 = vunpack.c.l.b16 %v1946
    %v2233 = vunpack.c.h.b16 %v1946
    %v2234 = vunpack.c.l.b16 %v1947
    %v2235 = vunpack.c.h.b16 %v1947
    %v2236 = vunpack.c.l.b16 %v1948
    %v2237 = vunpack.c.h.b16 %v1948
    %v2238 = vunpack.c.l.b16 %v1949
    %v2239 = vunpack.c.h.b16 %v1949
    %v2240 = vunpack.c.l.b16 %v1950
    %v2241 = vunpack.c.h.b16 %v1950
    %v2242 = vunpack.c.l.b16 %v1951
    %v2243 = vunpack.c.h.b16 %v1951
    %v2244 = vunpack.c.l.b16 %v1952
    %v2245 = vunpack.c.h.b16 %v1952
    %v2246 = vunpack.c.l.b16 %v1953
    %v2247 = vunpack.c.h.b16 %v1953
    %v2248 = vunpack.c.l.b16 %v1954
    %v2249 = vunpack.c.h.b16 %v1954
    %v2250 = vunpack.c.l.b16 %v1955
    %v2251 = vunpack.c.h.b16 %v1955
    %v2252 = vunpack.c.l.b16 %v1956
    %v2253 = vunpack.c.h.b16 %v1956
    %v2254 = vunpack.c.l.b16 %v1957
    %v2255 = vunpack.c.h.b16 %v1957
    %v2256 = vunpack.c.l.b16 %v1958
    %v2257 = vunpack.c.h.b16 %v1958
    %v2258 = vunpack.c.l.b16 %v1959
    %v2259 = vunpack.c.h.b16 %v1959
    %v2260 = vunpack.c.l.b16 %v1960
    %v2261 = vunpack.c.h.b16 %v1960
    %v2262 = vunpack.c.l.b16 %v1961
    %v2263 = vunpack.c.h.b16 %v1961
    %v2264 = vunpack.c.l.b16 %v1962
    %v2265 = vunpack.c.h.b16 %v1962
    %v2266 = vunpack.c.l.b16 %v1963
    %v2267 = vunpack.c.h.b16 %v1963
    %v2268 = vunpack.c.l.b16 %v1964
    %v2269 = vunpack.c.h.b16 %v1964
    %v2270 = vunpack.c.l.b16 %v1965
    %v2271 = vunpack.c.h.b16 %v1965
    %v2272 = vunpack.c.l.b16 %v1966
    %v2273 = vunpack.c.h.b16 %v1966
    %v2274 = vunpack.c.l.b16 %v1967
    %v2275 = vunpack.c.h.b16 %v1967
    %v2276 = vunpack.c.l.b16 %v1968
    %v2277 = vunpack.c.h.b16 %v1968
    %v2278 = vunpack.c.l.b16 %v1969
    %v2279 = vunpack.c.h.b16 %v1969
    %v2280 = vunpack.c.l.b16 %v1970
    %v2281 = vunpack.c.h.b16 %v1970
    %v2282 = vunpack.c.l.b16 %v1971
    %v2283 = vunpack.c.h.b16 %v1971
    %v2284 = vunpack.c.l.b16 %v1972
    %v2285 = vunpack.c.h.b16 %v1972
    %v2286 = vunpack.c.l.b16 %v1973
    %v2287 = vunpack.c.h.b16 %v1973
    %v2288 = vunpack.c.l.b16 %v1974
    %v2289 = vunpack.c.h.b16 %v1974
    %v2290 = vunpack.c.l.b16 %v1975
    %v2291 = vunpack.c.h.b16 %v1975
    %v2292 = vunpack.c.l.b16 %v1976
    %v2293 = vunpack.c.h.b16 %v1976
    %v2294 = vunpack.c.l.b16 %v1977
    %v2295 = vunpack.c.h.b16 %v1977
    %v2296 = vunpack.c.l.b16 %v1978
    %v2297 = vunpack.c.h.b16 %v1978
    %v2298 = vunpack.c.l.b16 %v1979
    %v2299 = vunpack.c.h.b16 %v1979
    %v2300 = vunpack.c.l.b16 %v1980
    %v2301 = vunpack.c.h.b16 %v1980
    %v2302 = vunpack.c.l.b16 %v1981
    %v2303 = vunpack.c.h.b16 %v1981
    %v2304 = vunpack.c.l.b16 %v1982
    %v2305 = vunpack.c.h.b16 %v1982
    %v2306 = vunpack.c.l.b16 %v1983
    %v2307 = vunpack.c.h.b16 %v1983
    %v2308 = vunpack.c.l.b16 %v1984
    %v2309 = vunpack.c.h.b16 %v1984
    %v2310 = vunpack.c.l.b16 %v1985
    %v2311 = vunpack.c.h.b16 %v1985
    %v2312 = vunpack.c.l.b16 %v1986
    %v2313 = vunpack.c.h.b16 %v1986
    %v2314 = vunpack.c.l.b16 %v1987
    %v2315 = vunpack.c.h.b16 %v1987
    %v2316 = vunpack.c.l.b16 %v1988
    %v2317 = vunpack.c.h.b16 %v1988
    %v2318 = vunpack.c.l.b16 %v1989
    %v2319 = vunpack.c.h.b16 %v1989
    %v2320 = vunpack.c.l.b16 %v1990
    %v2321 = vunpack.c.h.b16 %v1990
    %v2322 = vunpack.c.l.b16 %v1991
    %v2323 = vunpack.c.h.b16 %v1991
    %v2324 = vunpack.c.l.b16 %v1992
    %v2325 = vunpack.c.h.b16 %v1992
    %v2326 = vunpack.c.l.b16 %v1993
    %v2327 = vunpack.c.h.b16 %v1993
    %v2328 = vunpack.c.l.b16 %v1994
    %v2329 = vunpack.c.h.b16 %v1994
    %v2330 = vunpack.c.l.b16 %v1995
    %v2331 = vunpack.c.h.b16 %v1995
    %v2332 = vunpack.c.l.b16 %v1996
    %v2333 = vunpack.c.h.b16 %v1996
    %v2334 = vunpack.c.l.b16 %v1997
    %v2335 = vunpack.c.h.b16 %v1997
    %v2336 = vunpack.c.l.b16 %v1998
    %v2337 = vunpack.c.h.b16 %v1998
    %v2338 = vunpack.c.l.b16 %v1999
    %v2339 = vunpack.c.h.b16 %v1999
    %v2340 = vunpack.c.l.b16 %v2000
    %v2341 = vunpack.c.h.b16 %v2000
    %v2342 = vunpack.c.l.b16 %v2001
    %v2343 = vunpack.c.h.b16 %v2001
    %v2344 = vunpack.c.l.b16 %v2002
    %v2345 = vunpack.c.h.b16 %v2002
    %v2346 = vunpack.c.l.b16 %v2003
    %v2347 = vunpack.c.h.b16 %v2003
    %v2348 = vunpack.c.l.b16 %v2004
    %v2349 = vunpack.c.h.b16 %v2004
    %v2350 = vunpack.c.l.b16 %v2005
    %v2351 = vunpack.c.h.b16 %v2005
    %v2352 = vunpack.c.l.b16 %v2006
    %v2353 = vunpack.c.h.b16 %v2006
    %v2354 = vunpack.c.l.b16 %v2007
    %v2355 = vunpack.c.h.b16 %v2007
    %v2356 = vunpack.c.l.b16 %v2008
    %v2357 = vunpack.c.h.b16 %v2008
    %v2358 = vunpack.c.l.b16 %v2009
    %v2359 = vunpack.c.h.b16 %v2009
    %v2360 = vunpack.c.l.b16 %v2010
    %v2361 = vunpack.c.h.b16 %v2010
    %v2362 = vunpack.c.l.b16 %v2011
    %v2363 = vunpack.c.h.b16 %v2011
    %v2364 = vunpack.c.l.b16 %v2012
    %v2365 = vunpack.c.h.b16 %v2012
    %v2366 = vunpack.c.l.b16 %v2013
    %v2367 = vunpack.c.h.b16 %v2013
    %v2368 = vunpack.c.l.b16 %v2014
    %v2369 = vunpack.c.h.b16 %v2014
    %v2370 = vunpack.c.l.b16 %v2015
    %v2371 = vunpack.c.h.b16 %v2015
    %v2372 = vunpack.c.l.b16 %v2016
    %v2373 = vunpack.c.h.b16 %v2016
    %v2374 = vunpack.c.l.b16 %v2017
    %v2375 = vunpack.c.h.b16 %v2017
    %v2376 = vunpack.c.l.b16 %v2018
    %v2377 = vunpack.c.h.b16 %v2018
    %v2378 = vunpack.c.l.b16 %v2019
    %v2379 = vunpack.c.h.b16 %v2019
    %v2380 = vunpack.c.l.b16 %v2020
    %v2381 = vunpack.c.h.b16 %v2020
    %v2382 = vunpack.c.l.b16 %v2021
    %v2383 = vunpack.c.h.b16 %v2021
    %v2384 = vunpack.c.l.b16 %v2022
    %v2385 = vunpack.c.h.b16 %v2022
    %v2386 = vunpack.c.l.b16 %v2023
    %v2387 = vunpack.c.h.b16 %v2023
    %v2388 = vunpack.c.l.b16 %v2024
    %v2389 = vunpack.c.h.b16 %v2024
    %v2390 = vunpack.c.l.b16 %v2025
    %v2391 = vunpack.c.h.b16 %v2025
    %v2392 = vunpack.c.l.b16 %v2026
    %v2393 = vunpack.c.h.b16 %v2026
    %v2394 = vunpack.c.l.b16 %v2027
    %v2395 = vunpack.c.h.b16 %v2027
    %v2396 = vunpack.c.l.b16 %v2028
    %v2397 = vunpack.c.h.b16 %v2028
    %v2398 = vunpack.c.l.b16 %v2029
    %v2399 = vunpack.c.h.b16 %v2029
    %v2400 = vunpack.c.l.b16 %v2030
    %v2401 = vunpack.c.h.b16 %v2030
    %v2402 = vunpack.c.l.b16 %v2031
    %v2403 = vunpack.c.h.b16 %v2031
    %v2404 = vunpack.c.l.b16 %v2032
    %v2405 = vunpack.c.h.b16 %v2032
    %v2406 = vunpack.c.l.b16 %v2033
    %v2407 = vunpack.c.h.b16 %v2033
    %v2408 = vunpack.c.l.b16 %v2034
    %v2409 = vunpack.c.h.b16 %v2034
    %v2410 = vunpack.c.l.b16 %v2035
    %v2411 = vunpack.c.h.b16 %v2035
    %v2412 = vunpack.c.l.b16 %v2036
    %v2413 = vunpack.c.h.b16 %v2036
    %v2414 = vunpack.c.l.b16 %v2037
    %v2415 = vunpack.c.h.b16 %v2037
    %v2416 = vunpack.c.l.b16 %v2038
    %v2417 = vunpack.c.h.b16 %v2038
    %v2418 = vunpack.c.l.b16 %v2039
    %v2419 = vunpack.c.h.b16 %v2039
    %v2420 = vunpack.c.l.b16 %v2040
    %v2421 = vunpack.c.h.b16 %v2040
    %v2422 = vunpack.c.l.b16 %v2041
    %v2423 = vunpack.c.h.b16 %v2041
    %v2424 = vunpack.c.l.b16 %v2042
    %v2425 = vunpack.c.h.b16 %v2042
    %v2426 = vunpack.c.l.b16 %v2043
    %v2427 = vunpack.c.h.b16 %v2043
    %v2428 = vunpack.c.l.b16 %v2044
    %v2429 = vunpack.c.h.b16 %v2044
    %v2430 = vunpack.c.l.b16 %v2045
    %v2431 = vunpack.c.h.b16 %v2045
    %v2432 = vunpack.c.l.b16 %v2046
    %v2433 = vunpack.c.h.b16 %v2046
    %v2434 = vunpack.c.l.b16 %v2047
    %v2435 = vunpack.c.h.b16 %v2047
    %v2436 = vunpack.c.l.b16 %v2048
    %v2437 = vunpack.c.h.b16 %v2048
    %v2438 = vunpack.c.l.b16 %v2049
    %v2439 = vunpack.c.h.b16 %v2049
    %v2440 = vunpack.c.l.b16 %v2050
    %v2441 = vunpack.c.h.b16 %v2050
    %v2442 = vunpack.c.l.b16 %v2051
    %v2443 = vunpack.c.h.b16 %v2051
    %v2444 = vunpack.c.l.b16 %v2052
    %v2445 = vunpack.c.h.b16 %v2052
    %v2446 = vunpack.c.l.b16 %v2053
    %v2447 = vunpack.c.h.b16 %v2053
    %v2448 = vpack.c.b16 %v2196, %v2192
    %v2449 = vpack.c.b16 %v2197, %v2193
    %v2450 = vpack.c.b16 %v2198, %v2194
    %v2451 = vpack.c.b16 %v2199, %v2195
    %v2452 = vpack.c.b16 %v2204, %v2200
    %v2453 = vpack.c.b16 %v2205, %v2201
    %v2454 = vpack.c.b16 %v2206, %v2202
    %v2455 = vpack.c.b16 %v2207, %v2203
    %v2456 = vpack.c.b16 %v2212, %v2208
    %v2457 = vpack.c.b16 %v2213, %v2209
    %v2458 = vpack.c.b16 %v2214, %v2210
    %v2459 = vpack.c.b16 %v2215, %v2211
    %v2460 = vpack.c.b16 %v2220, %v2216
    %v2461 = vpack.c.b16 %v2221, %v2217
    %v2462 = vpack.c.b16 %v2222, %v2218
    %v2463 = vpack.c.b16 %v2223, %v2219
    %v2464 = vpack.c.b16 %v2228, %v2224
    %v2465 = vpack.c.b16 %v2229, %v2225
    %v2466 = vpack.c.b16 %v2230, %v2226
    %v2467 = vpack.c.b16 %v2231, %v2227
    %v2468 = vpack.c.b16 %v2236, %v2232
    %v2469 = vpack.c.b16 %v2237, %v2233
    %v2470 = vpack.c.b16 %v2238, %v2234
    %v2471 = vpack.c.b16 %v2239, %v2235
    %v2472 = vpack.c.b16 %v2244, %v2240
    %v2473 = vpack.c.b16 %v2245, %v2241
    %v2474 = vpack.c.b16 %v2246, %v2242
    %v2475 = vpack.c.b16 %v2247, %v2243
    %v2476 = vpack.c.b16 %v2252, %v2248
    %v2477 = vpack.c.b16 %v2253, %v2249
    %v2478 = vpack.c.b16 %v2254, %v2250
    %v2479 = vpack.c.b16 %v2255, %v2251
    %v2480 = vpack.c.b16 %v2260, %v2256
    %v2481 = vpack.c.b16 %v2261, %v2257
    %v2482 = vpack.c.b16 %v2262, %v2258
    %v2483 = vpack.c.b16 %v2263, %v2259
    %v2484 = vpack.c.b16 %v2268, %v2264
    %v2485 = vpack.c.b16 %v2269, %v2265
    %v2486 = vpack.c.b16 %v2270, %v2266
    %v2487 = vpack.c.b16 %v2271, %v2267
    %v2488 = vpack.c.b16 %v2276, %v2272
    %v2489 = vpack.c.b16 %v2277, %v2273
    %v2490 = vpack.c.b16 %v2278, %v2274
    %v2491 = vpack.c.b16 %v2279, %v2275
    %v2492 = vpack.c.b16 %v2284, %v2280
    %v2493 = vpack.c.b16 %v2285, %v2281
    %v2494 = vpack.c.b16 %v2286, %v2282
    %v2495 = vpack.c.b16 %v2287, %v2283
    %v2496 = vpack.c.b16 %v2292, %v2288
    %v2497 = vpack.c.b16 %v2293, %v2289
    %v2498 = vpack.c.b16 %v2294, %v2290
    %v2499 = vpack.c.b16 %v2295, %v2291
    %v2500 = vpack.c.b16 %v2300, %v2296
    %v2501 = vpack.c.b16 %v2301, %v2297
    %v2502 = vpack.c.b16 %v2302, %v2298
    %v2503 = vpack.c.b16 %v2303, %v2299
    %v2504 = vpack.c.b16 %v2308, %v2304
    %v2505 = vpack.c.b16 %v2309, %v2305
    %v2506 = vpack.c.b16 %v2310, %v2306
    %v2507 = vpack.c.b16 %v2311, %v2307
    %v2508 = vpack.c.b16 %v2316, %v2312
    %v2509 = vpack.c.b16 %v2317, %v2313
    %v2510 = vpack.c.b16 %v2318, %v2314
    %v2511 = vpack.c.b16 %v2319, %v2315
    %v2512 = vpack.c.b16 %v2324, %v2320
    %v2513 = vpack.c.b16 %v2325, %v2321
    %v2514 = vpack.c.b16 %v2326, %v2322
    %v2515 = vpack.c.b16 %v2327, %v2323
    %v2516 = vpack.c.b16 %v2332, %v2328
    %v2517 = vpack.c.b16 %v2333, %v2329
    %v2518 = vpack.c.b16 %v2334, %v2330
    %v2519 = vpack.c.b16 %v2335, %v2331
    %v2520 = vpack.c.b16 %v2340, %v2336
    %v2521 = vpack.c.b16 %v2341, %v2337
    %v2522 = vpack.c.b16 %v2342, %v2338
    %v2523 = vpack.c.b16 %v2343, %v2339
    %v2524 = vpack.c.b16 %v2348, %v2344
    %v2525 = vpack.c.b16 %v2349, %v2345
    %v2526 = vpack.c.b16 %v2350, %v2346
    %v2527 = vpack.c.b16 %v2351, %v2347
    %v2528 = vpack.c.b16 %v2356, %v2352
    %v2529 = vpack.c.b16 %v2357, %v2353
    %v2530 = vpack.c.b16 %v2358, %v2354
    %v2531 = vpack.c.b16 %v2359, %v2355
    %v2532 = vpack.c.b16 %v2364, %v2360
    %v2533 = vpack.c.b16 %v2365, %v2361
    %v2534 = vpack.c.b16 %v2366, %v2362
    %v2535 = vpack.c.b16 %v2367, %v2363
    %v2536 = vpack.c.b16 %v2372, %v2368
    %v2537 = vpack.c.b16 %v2373, %v2369
    %v2538 = vpack.c.b16 %v2374, %v2370
    %v2539 = vpack.c.b16 %v2375, %v2371
    %v2540 = vpack.c.b16 %v2380, %v2376
    %v2541 = vpack.c.b16 %v2381, %v2377
    %v2542 = vpack.c.b16 %v2382, %v2378
    %v2543 = vpack.c.b16 %v2383, %v2379
    %v2544 = vpack.c.b16 %v2388, %v2384
    %v2545 = vpack.c.b16 %v2389, %v2385
    %v2546 = vpack.c.b16 %v2390, %v2386
    %v2547 = vpack.c.b16 %v2391, %v2387
    %v2548 = vpack.c.b16 %v2396, %v2392
    %v2549 = vpack.c.b16 %v2397, %v2393
    %v2550 = vpack.c.b16 %v2398, %v2394
    %v2551 = vpack.c.b16 %v2399, %v2395
    %v2552 = vpack.c.b16 %v2404, %v2400
    %v2553 = vpack.c.b16 %v2405, %v2401
    %v2554 = vpack.c.b16 %v2406, %v2402
    %v2555 = vpack.c.b16 %v2407, %v2403
    %v2556 = vpack.c.b16 %v2412, %v2408
    %v2557 = vpack.c.b16 %v2413, %v2409
    %v2558 = vpack.c.b16 %v2414, %v2410
    %v2559 = vpack.c.b16 %v2415, %v2411
    %v2560 = vpack.c.b16 %v2420, %v2416
    %v2561 = vpack.c.b16 %v2421, %v2417
    %v2562 = vpack.c.b16 %v2422, %v2418
    %v2563 = vpack.c.b16 %v2423, %v2419
    %v2564 = vpack.c.b16 %v2428, %v2424
    %v2565 = vpack.c.b16 %v2429, %v2425
    %v2566 = vpack.c.b16 %v2430, %v2426
    %v2567 = vpack.c.b16 %v2431, %v2427
    %v2568 = vpack.c.b16 %v2436, %v2432
    %v2569 = vpack.c.b16 %v2437, %v2433
    %v2570 = vpack.c.b16 %v2438, %v2434
    %v2571 = vpack.c.b16 %v2439, %v2435
    %v2572 = vpack.c.b16 %v2444, %v2440
    %v2573 = vpack.c.b16 %v2445, %v2441
    %v2574 = vpack.c.b16 %v2446, %v2442
    %v2575 = vpack.c.b16 %v2447, %v2443
    %2704 = vmatpush.bf16.msra.mxu0 %v2476
    %2705 = vmatpush.bf16.msra.mxu0 %v2472
    %2706 = vmatpush.bf16.msra.mxu0 %v2468
    %2707 = vmatpush.bf16.msra.mxu0 %v2464
    %2708 = vmatpush.bf16.msra.mxu0 %v2460
    %2709 = vmatpush.bf16.msra.mxu0 %v2456
    %2710 = vmatpush.bf16.msra.mxu0 %v2452
    %2711 = vmatpush.bf16.msra.mxu0 %v2448
    %2712 = vmatmul.bf16.gmra.mxu0 %v1918
    %v2713 = vpop.f32.mrf.mxu0
    %v2714 = vadd.f32 %v2056, %v2713
    %v2715 = vpop.f32.mrf.mxu0
    %v2716 = vadd.f32 %v2056, %v2715
    %2717 = vmatmul.bf16.gmra.mxu0 %v1922
    %v2718 = vpop.f32.mrf.mxu0
    %v2719 = vadd.f32 %v2056, %v2718
    %v2720 = vpop.f32.mrf.mxu0
    %v2721 = vadd.f32 %v2056, %v2720
    %2722 = vdwg.mxu0
    %2723 = vmatpush.bf16.msra.mxu0 %v2508
    %2724 = vmatpush.bf16.msra.mxu0 %v2504
    %2725 = vmatpush.bf16.msra.mxu0 %v2500
    %2726 = vmatpush.bf16.msra.mxu0 %v2496
    %2727 = vmatpush.bf16.msra.mxu0 %v2492
    %2728 = vmatpush.bf16.msra.mxu0 %v2488
    %2729 = vmatpush.bf16.msra.mxu0 %v2484
    %2730 = vmatpush.bf16.msra.mxu0 %v2480
    %2731 = vmatmul.bf16.gmra.mxu0 %v1919
    %v2732 = vpop.f32.mrf.mxu0
    %v2733 = vadd.f32 %v2714, %v2732
    %v2734 = vpop.f32.mrf.mxu0
    %v2735 = vadd.f32 %v2716, %v2734
    %2736 = vmatmul.bf16.gmra.mxu0 %v1923
    %v2737 = vpop.f32.mrf.mxu0
    %v2738 = vadd.f32 %v2719, %v2737
    %v2739 = vpop.f32.mrf.mxu0
    %v2740 = vadd.f32 %v2721, %v2739
    %2741 = vdwg.mxu0
    %2742 = vmatpush.bf16.msra.mxu0 %v2540
    %2743 = vmatpush.bf16.msra.mxu0 %v2536
    %2744 = vmatpush.bf16.msra.mxu0 %v2532
    %2745 = vmatpush.bf16.msra.mxu0 %v2528
    %2746 = vmatpush.bf16.msra.mxu0 %v2524
    %2747 = vmatpush.bf16.msra.mxu0 %v2520
    %2748 = vmatpush.bf16.msra.mxu0 %v2516
    %2749 = vmatpush.bf16.msra.mxu0 %v2512
    %2750 = vmatmul.bf16.gmra.mxu0 %v1920
    %v2751 = vpop.f32.mrf.mxu0
    %v2752 = vadd.f32 %v2733, %v2751
    %v2753 = vpop.f32.mrf.mxu0
    %v2754 = vadd.f32 %v2735, %v2753
    %2755 = vmatmul.bf16.gmra.mxu0 %v1924
    %v2756 = vpop.f32.mrf.mxu0
    %v2757 = vadd.f32 %v2738, %v2756
    %v2758 = vpop.f32.mrf.mxu0
    %v2759 = vadd.f32 %v2740, %v2758
    %2760 = vdwg.mxu0
    %2761 = vmatpush.bf16.msra.mxu0 %v2572
    %2762 = vmatpush.bf16.msra.mxu0 %v2568
    %2763 = vmatpush.bf16.msra.mxu0 %v2564
    %2764 = vmatpush.bf16.msra.mxu0 %v2560
    %2765 = vmatpush.bf16.msra.mxu0 %v2556
    %2766 = vmatpush.bf16.msra.mxu0 %v2552
    %2767 = vmatpush.bf16.msra.mxu0 %v2548
    %2768 = vmatpush.bf16.msra.mxu0 %v2544
    %2769 = vmatmul.bf16.gmra.mxu0 %v1921
    %v2770 = vpop.f32.mrf.mxu0
    %v2771 = vadd.f32 %v2752, %v2770
    %v2772 = vpop.f32.mrf.mxu0
    %v2773 = vadd.f32 %v2754, %v2772
    %2774 = vmatmul.bf16.gmra.mxu0 %v1925
    %v2775 = vpop.f32.mrf.mxu0
    %v2776 = vadd.f32 %v2757, %v2775
    %v2777 = vpop.f32.mrf.mxu0
    %v2778 = vadd.f32 %v2759, %v2777
    %2779 = vdwg.mxu0
    %2780 = vmatpush.bf16.msra.mxu0 %v2477
    %2781 = vmatpush.bf16.msra.mxu0 %v2473
    %2782 = vmatpush.bf16.msra.mxu0 %v2469
    %2783 = vmatpush.bf16.msra.mxu0 %v2465
    %2784 = vmatpush.bf16.msra.mxu0 %v2461
    %2785 = vmatpush.bf16.msra.mxu0 %v2457
    %2786 = vmatpush.bf16.msra.mxu0 %v2453
    %2787 = vmatpush.bf16.msra.mxu0 %v2449
    %2788 = vmatmul.bf16.gmra.mxu0 %v1918
    %v2789 = vpop.f32.mrf.mxu0
    %v2790 = vadd.f32 %v2057, %v2789
    %v2791 = vpop.f32.mrf.mxu0
    %v2792 = vadd.f32 %v2057, %v2791
    %2793 = vmatmul.bf16.gmra.mxu0 %v1922
    %v2794 = vpop.f32.mrf.mxu0
    %v2795 = vadd.f32 %v2057, %v2794
    %v2796 = vpop.f32.mrf.mxu0
    %v2797 = vadd.f32 %v2057, %v2796
    %2798 = vdwg.mxu0
    %2799 = vmatpush.bf16.msra.mxu0 %v2509
    %2800 = vmatpush.bf16.msra.mxu0 %v2505
    %2801 = vmatpush.bf16.msra.mxu0 %v2501
    %2802 = vmatpush.bf16.msra.mxu0 %v2497
    %2803 = vmatpush.bf16.msra.mxu0 %v2493
    %2804 = vmatpush.bf16.msra.mxu0 %v2489
    %2805 = vmatpush.bf16.msra.mxu0 %v2485
    %2806 = vmatpush.bf16.msra.mxu0 %v2481
    %2807 = vmatmul.bf16.gmra.mxu0 %v1919
    %v2808 = vpop.f32.mrf.mxu0
    %v2809 = vadd.f32 %v2790, %v2808
    %v2810 = vpop.f32.mrf.mxu0
    %v2811 = vadd.f32 %v2792, %v2810
    %2812 = vmatmul.bf16.gmra.mxu0 %v1923
    %v2813 = vpop.f32.mrf.mxu0
    %v2814 = vadd.f32 %v2795, %v2813
    %v2815 = vpop.f32.mrf.mxu0
    %v2816 = vadd.f32 %v2797, %v2815
    %2817 = vdwg.mxu0
    %2818 = vmatpush.bf16.msra.mxu0 %v2541
    %2819 = vmatpush.bf16.msra.mxu0 %v2537
    %2820 = vmatpush.bf16.msra.mxu0 %v2533
    %2821 = vmatpush.bf16.msra.mxu0 %v2529
    %2822 = vmatpush.bf16.msra.mxu0 %v2525
    %2823 = vmatpush.bf16.msra.mxu0 %v2521
    %2824 = vmatpush.bf16.msra.mxu0 %v2517
    %2825 = vmatpush.bf16.msra.mxu0 %v2513
    %2826 = vmatmul.bf16.gmra.mxu0 %v1920
    %v2827 = vpop.f32.mrf.mxu0
    %v2828 = vadd.f32 %v2809, %v2827
    %v2829 = vpop.f32.mrf.mxu0
    %v2830 = vadd.f32 %v2811, %v2829
    %2831 = vmatmul.bf16.gmra.mxu0 %v1924
    %v2832 = vpop.f32.mrf.mxu0
    %v2833 = vadd.f32 %v2814, %v2832
    %v2834 = vpop.f32.mrf.mxu0
    %v2835 = vadd.f32 %v2816, %v2834
    %2836 = vdwg.mxu0
    %2837 = vmatpush.bf16.msra.mxu0 %v2573
    %2838 = vmatpush.bf16.msra.mxu0 %v2569
    %2839 = vmatpush.bf16.msra.mxu0 %v2565
    %2840 = vmatpush.bf16.msra.mxu0 %v2561
    %2841 = vmatpush.bf16.msra.mxu0 %v2557
    %2842 = vmatpush.bf16.msra.mxu0 %v2553
    %2843 = vmatpush.bf16.msra.mxu0 %v2549
    %2844 = vmatpush.bf16.msra.mxu0 %v2545
    %2845 = vmatmul.bf16.gmra.mxu0 %v1921
    %v2846 = vpop.f32.mrf.mxu0
    %v2847 = vadd.f32 %v2828, %v2846
    %v2848 = vpop.f32.mrf.mxu0
    %v2849 = vadd.f32 %v2830, %v2848
    %2850 = vmatmul.bf16.gmra.mxu0 %v1925
    %v2851 = vpop.f32.mrf.mxu0
    %v2852 = vadd.f32 %v2833, %v2851
    %v2853 = vpop.f32.mrf.mxu0
    %v2854 = vadd.f32 %v2835, %v2853
    %2855 = vdwg.mxu0
    %2856 = vmatpush.bf16.msra.mxu0 %v2478
    %2857 = vmatpush.bf16.msra.mxu0 %v2474
    %2858 = vmatpush.bf16.msra.mxu0 %v2470
    %2859 = vmatpush.bf16.msra.mxu0 %v2466
    %2860 = vmatpush.bf16.msra.mxu0 %v2462
    %2861 = vmatpush.bf16.msra.mxu0 %v2458
    %2862 = vmatpush.bf16.msra.mxu0 %v2454
    %2863 = vmatpush.bf16.msra.mxu0 %v2450
    %2864 = vmatmul.bf16.gmra.mxu0 %v1918
    %v2865 = vpop.f32.mrf.mxu0
    %v2866 = vadd.f32 %v2058, %v2865
    %v2867 = vpop.f32.mrf.mxu0
    %v2868 = vadd.f32 %v2058, %v2867
    %2869 = vmatmul.bf16.gmra.mxu0 %v1922
    %v2870 = vpop.f32.mrf.mxu0
    %v2871 = vadd.f32 %v2058, %v2870
    %v2872 = vpop.f32.mrf.mxu0
    %v2873 = vadd.f32 %v2058, %v2872
    %2874 = vdwg.mxu0
    %2875 = vmatpush.bf16.msra.mxu0 %v2510
    %2876 = vmatpush.bf16.msra.mxu0 %v2506
    %2877 = vmatpush.bf16.msra.mxu0 %v2502
    %2878 = vmatpush.bf16.msra.mxu0 %v2498
    %2879 = vmatpush.bf16.msra.mxu0 %v2494
    %2880 = vmatpush.bf16.msra.mxu0 %v2490
    %2881 = vmatpush.bf16.msra.mxu0 %v2486
    %2882 = vmatpush.bf16.msra.mxu0 %v2482
    %2883 = vmatmul.bf16.gmra.mxu0 %v1919
    %v2884 = vpop.f32.mrf.mxu0
    %v2885 = vadd.f32 %v2866, %v2884
    %v2886 = vpop.f32.mrf.mxu0
    %v2887 = vadd.f32 %v2868, %v2886
    %2888 = vmatmul.bf16.gmra.mxu0 %v1923
    %v2889 = vpop.f32.mrf.mxu0
    %v2890 = vadd.f32 %v2871, %v2889
    %v2891 = vpop.f32.mrf.mxu0
    %v2892 = vadd.f32 %v2873, %v2891
    %2893 = vdwg.mxu0
    %2894 = vmatpush.bf16.msra.mxu0 %v2542
    %2895 = vmatpush.bf16.msra.mxu0 %v2538
    %2896 = vmatpush.bf16.msra.mxu0 %v2534
    %2897 = vmatpush.bf16.msra.mxu0 %v2530
    %2898 = vmatpush.bf16.msra.mxu0 %v2526
    %2899 = vmatpush.bf16.msra.mxu0 %v2522
    %2900 = vmatpush.bf16.msra.mxu0 %v2518
    %2901 = vmatpush.bf16.msra.mxu0 %v2514
    %2902 = vmatmul.bf16.gmra.mxu0 %v1920
    %v2903 = vpop.f32.mrf.mxu0
    %v2904 = vadd.f32 %v2885, %v2903
    %v2905 = vpop.f32.mrf.mxu0
    %v2906 = vadd.f32 %v2887, %v2905
    %2907 = vmatmul.bf16.gmra.mxu0 %v1924
    %v2908 = vpop.f32.mrf.mxu0
    %v2909 = vadd.f32 %v2890, %v2908
    %v2910 = vpop.f32.mrf.mxu0
    %v2911 = vadd.f32 %v2892, %v2910
    %2912 = vdwg.mxu0
    %2913 = vmatpush.bf16.msra.mxu0 %v2574
    %2914 = vmatpush.bf16.msra.mxu0 %v2570
    %2915 = vmatpush.bf16.msra.mxu0 %v2566
    %2916 = vmatpush.bf16.msra.mxu0 %v2562
    %2917 = vmatpush.bf16.msra.mxu0 %v2558
    %2918 = vmatpush.bf16.msra.mxu0 %v2554
    %2919 = vmatpush.bf16.msra.mxu0 %v2550
    %2920 = vmatpush.bf16.msra.mxu0 %v2546
    %2921 = vmatmul.bf16.gmra.mxu0 %v1921
    %v2922 = vpop.f32.mrf.mxu0
    %v2923 = vadd.f32 %v2904, %v2922
    %v2924 = vpop.f32.mrf.mxu0
    %v2925 = vadd.f32 %v2906, %v2924
    %2926 = vmatmul.bf16.gmra.mxu0 %v1925
    %v2927 = vpop.f32.mrf.mxu0
    %v2928 = vadd.f32 %v2909, %v2927
    %v2929 = vpop.f32.mrf.mxu0
    %v2930 = vadd.f32 %v2911, %v2929
    %2931 = vdwg.mxu0
    %2932 = vmatpush.bf16.msra.mxu0 %v2479
    %2933 = vmatpush.bf16.msra.mxu0 %v2475
    %2934 = vmatpush.bf16.msra.mxu0 %v2471
    %2935 = vmatpush.bf16.msra.mxu0 %v2467
    %2936 = vmatpush.bf16.msra.mxu0 %v2463
    %2937 = vmatpush.bf16.msra.mxu0 %v2459
    %2938 = vmatpush.bf16.msra.mxu0 %v2455
    %2939 = vmatpush.bf16.msra.mxu0 %v2451
    %2940 = vmatmul.bf16.gmra.mxu0 %v1918
    %v2941 = vpop.f32.mrf.mxu0
    %v2942 = vadd.f32 %v2059, %v2941
    %v2943 = vpop.f32.mrf.mxu0
    %v2944 = vadd.f32 %v2059, %v2943
    %2945 = vmatmul.bf16.gmra.mxu0 %v1922
    %v2946 = vpop.f32.mrf.mxu0
    %v2947 = vadd.f32 %v2059, %v2946
    %v2948 = vpop.f32.mrf.mxu0
    %v2949 = vadd.f32 %v2059, %v2948
    %2950 = vdwg.mxu0
    %2951 = vmatpush.bf16.msra.mxu0 %v2511
    %2952 = vmatpush.bf16.msra.mxu0 %v2507
    %2953 = vmatpush.bf16.msra.mxu0 %v2503
    %2954 = vmatpush.bf16.msra.mxu0 %v2499
    %2955 = vmatpush.bf16.msra.mxu0 %v2495
    %2956 = vmatpush.bf16.msra.mxu0 %v2491
    %2957 = vmatpush.bf16.msra.mxu0 %v2487
    %2958 = vmatpush.bf16.msra.mxu0 %v2483
    %2959 = vmatmul.bf16.gmra.mxu0 %v1919
    %v2960 = vpop.f32.mrf.mxu0
    %v2961 = vadd.f32 %v2942, %v2960
    %v2962 = vpop.f32.mrf.mxu0
    %v2963 = vadd.f32 %v2944, %v2962
    %2964 = vmatmul.bf16.gmra.mxu0 %v1923
    %v2965 = vpop.f32.mrf.mxu0
    %v2966 = vadd.f32 %v2947, %v2965
    %v2967 = vpop.f32.mrf.mxu0
    %v2968 = vadd.f32 %v2949, %v2967
    %2969 = vdwg.mxu0
    %2970 = vmatpush.bf16.msra.mxu0 %v2543
    %2971 = vmatpush.bf16.msra.mxu0 %v2539
    %2972 = vmatpush.bf16.msra.mxu0 %v2535
    %2973 = vmatpush.bf16.msra.mxu0 %v2531
    %2974 = vmatpush.bf16.msra.mxu0 %v2527
    %2975 = vmatpush.bf16.msra.mxu0 %v2523
    %2976 = vmatpush.bf16.msra.mxu0 %v2519
    %2977 = vmatpush.bf16.msra.mxu0 %v2515
    %2978 = vmatmul.bf16.gmra.mxu0 %v1920
    %v2979 = vpop.f32.mrf.mxu0
    %v2980 = vadd.f32 %v2961, %v2979
    %v2981 = vpop.f32.mrf.mxu0
    %v2982 = vadd.f32 %v2963, %v2981
    %2983 = vmatmul.bf16.gmra.mxu0 %v1924
    %v2984 = vpop.f32.mrf.mxu0
    %v2985 = vadd.f32 %v2966, %v2984
    %v2986 = vpop.f32.mrf.mxu0
    %v2987 = vadd.f32 %v2968, %v2986
    %2988 = vdwg.mxu0
    %2989 = vmatpush.bf16.msra.mxu0 %v2575
    %2990 = vmatpush.bf16.msra.mxu0 %v2571
    %2991 = vmatpush.bf16.msra.mxu0 %v2567
    %2992 = vmatpush.bf16.msra.mxu0 %v2563
    %2993 = vmatpush.bf16.msra.mxu0 %v2559
    %2994 = vmatpush.bf16.msra.mxu0 %v2555
    %2995 = vmatpush.bf16.msra.mxu0 %v2551
    %2996 = vmatpush.bf16.msra.mxu0 %v2547
    %2997 = vmatmul.bf16.gmra.mxu0 %v1921
    %v2998 = vpop.f32.mrf.mxu0
    %v2999 = vadd.f32 %v2980, %v2998
    %v3000 = vpop.f32.mrf.mxu0
    %v3001 = vadd.f32 %v2982, %v3000
    %3002 = vmatmul.bf16.gmra.mxu0 %v1925
    %v3003 = vpop.f32.mrf.mxu0
    %v3004 = vadd.f32 %v2985, %v3003
    %v3005 = vpop.f32.mrf.mxu0
    %v3006 = vadd.f32 %v2987, %v3005
    %3007 = vdwg.mxu0
    %v3008 = vmul.f32 %v2771, 0.044194173
    %v3009 = vmul.f32 %v2847, 0.044194173
    %v3010 = vmul.f32 %v2923, 0.044194173
    %v3011 = vmul.f32 %v2999, 0.044194173
    %v3012 = vmul.f32 %v2773, 0.044194173
    %v3013 = vmul.f32 %v2849, 0.044194173
    %v3014 = vmul.f32 %v2925, 0.044194173
    %v3015 = vmul.f32 %v3001, 0.044194173
    %v3016 = vmul.f32 %v2776, 0.044194173
    %v3017 = vmul.f32 %v2852, 0.044194173
    %v3018 = vmul.f32 %v2928, 0.044194173
    %v3019 = vmul.f32 %v3004, 0.044194173
    %v3020 = vmul.f32 %v2778, 0.044194173
    %v3021 = vmul.f32 %v2854, 0.044194173
    %v3022 = vmul.f32 %v2930, 0.044194173
    %v3023 = vmul.f32 %v3006, 0.044194173
    %v3024 = vld [vmem:[#allocation11] sm:$0xff]
    %v3025 = vld [vmem:[#allocation11 + $0x8] sm:$0xff]
    %v3026 = vld [vmem:[#allocation11 + $0x10] sm:$0xff]
    %v3027 = vld [vmem:[#allocation11 + $0x18] sm:$0xff]
    %v3028 = vld [vmem:[#allocation11 + $0x20] sm:$0xff]
    %v3029 = vld [vmem:[#allocation11 + $0x28] sm:$0xff]
    %v3030 = vld [vmem:[#allocation11 + $0x30] sm:$0xff]
    %v3031 = vld [vmem:[#allocation11 + $0x38] sm:$0xff]
    %v3032 = vld [vmem:[#allocation11 + $0x40] sm:$0xff]
    %v3033 = vld [vmem:[#allocation11 + $0x48] sm:$0xff]
    %v3034 = vld [vmem:[#allocation11 + $0x50] sm:$0xff]
    %v3035 = vld [vmem:[#allocation11 + $0x58] sm:$0xff]
    %v3036 = vld [vmem:[#allocation11 + $0x60] sm:$0xff]
    %v3037 = vld [vmem:[#allocation11 + $0x68] sm:$0xff]
    %v3038 = vld [vmem:[#allocation11 + $0x70] sm:$0xff]
    %v3039 = vld [vmem:[#allocation11 + $0x78] sm:$0xff]
    %v3040 = vld [vmem:[#allocation11 + $0x80] sm:$0xff]
    %v3041 = vld [vmem:[#allocation11 + $0x88] sm:$0xff]
    %v3042 = vld [vmem:[#allocation11 + $0x90] sm:$0xff]
    %v3043 = vld [vmem:[#allocation11 + $0x98] sm:$0xff]
    %v3044 = vld [vmem:[#allocation11 + $0xa0] sm:$0xff]
    %v3045 = vld [vmem:[#allocation11 + $0xa8] sm:$0xff]
    %v3046 = vld [vmem:[#allocation11 + $0xb0] sm:$0xff]
    %v3047 = vld [vmem:[#allocation11 + $0xb8] sm:$0xff]
    %v3048 = vld [vmem:[#allocation11 + $0xc0] sm:$0xff]
    %v3049 = vld [vmem:[#allocation11 + $0xc8] sm:$0xff]
    %v3050 = vld [vmem:[#allocation11 + $0xd0] sm:$0xff]
    %v3051 = vld [vmem:[#allocation11 + $0xd8] sm:$0xff]
    %v3052 = vld [vmem:[#allocation11 + $0xe0] sm:$0xff]
    %v3053 = vld [vmem:[#allocation11 + $0xe8] sm:$0xff]
    %v3054 = vld [vmem:[#allocation11 + $0xf0] sm:$0xff]
    %v3055 = vld [vmem:[#allocation11 + $0xf8] sm:$0xff]
    %v3056 = vld [vmem:[#allocation11 + $0x100] sm:$0xff]
    %v3057 = vld [vmem:[#allocation11 + $0x108] sm:$0xff]
    %v3058 = vld [vmem:[#allocation11 + $0x110] sm:$0xff]
    %v3059 = vld [vmem:[#allocation11 + $0x118] sm:$0xff]
    %v3060 = vld [vmem:[#allocation11 + $0x120] sm:$0xff]
    %v3061 = vld [vmem:[#allocation11 + $0x128] sm:$0xff]
    %v3062 = vld [vmem:[#allocation11 + $0x130] sm:$0xff]
    %v3063 = vld [vmem:[#allocation11 + $0x138] sm:$0xff]
    %v3064 = vld [vmem:[#allocation11 + $0x140] sm:$0xff]
    %v3065 = vld [vmem:[#allocation11 + $0x148] sm:$0xff]
    %v3066 = vld [vmem:[#allocation11 + $0x150] sm:$0xff]
    %v3067 = vld [vmem:[#allocation11 + $0x158] sm:$0xff]
    %v3068 = vld [vmem:[#allocation11 + $0x160] sm:$0xff]
    %v3069 = vld [vmem:[#allocation11 + $0x168] sm:$0xff]
    %v3070 = vld [vmem:[#allocation11 + $0x170] sm:$0xff]
    %v3071 = vld [vmem:[#allocation11 + $0x178] sm:$0xff]
    %v3072 = vld [vmem:[#allocation11 + $0x180] sm:$0xff]
    %v3073 = vld [vmem:[#allocation11 + $0x188] sm:$0xff]
    %v3074 = vld [vmem:[#allocation11 + $0x190] sm:$0xff]
    %v3075 = vld [vmem:[#allocation11 + $0x198] sm:$0xff]
    %v3076 = vld [vmem:[#allocation11 + $0x1a0] sm:$0xff]
    %v3077 = vld [vmem:[#allocation11 + $0x1a8] sm:$0xff]
    %v3078 = vld [vmem:[#allocation11 + $0x1b0] sm:$0xff]
    %v3079 = vld [vmem:[#allocation11 + $0x1b8] sm:$0xff]
    %v3080 = vld [vmem:[#allocation11 + $0x1c0] sm:$0xff]
    %v3081 = vld [vmem:[#allocation11 + $0x1c8] sm:$0xff]
    %v3082 = vld [vmem:[#allocation11 + $0x1d0] sm:$0xff]
    %v3083 = vld [vmem:[#allocation11 + $0x1d8] sm:$0xff]
    %v3084 = vld [vmem:[#allocation11 + $0x1e0] sm:$0xff]
    %v3085 = vld [vmem:[#allocation11 + $0x1e8] sm:$0xff]
    %v3086 = vld [vmem:[#allocation11 + $0x1f0] sm:$0xff]
    %v3087 = vld [vmem:[#allocation11 + $0x1f8] sm:$0xff]
    %v3088 = vld [vmem:[#allocation11 + $0x200] sm:$0xff]
    %v3089 = vld [vmem:[#allocation11 + $0x208] sm:$0xff]
    %v3090 = vld [vmem:[#allocation11 + $0x210] sm:$0xff]
    %v3091 = vld [vmem:[#allocation11 + $0x218] sm:$0xff]
    %v3092 = vld [vmem:[#allocation11 + $0x220] sm:$0xff]
    %v3093 = vld [vmem:[#allocation11 + $0x228] sm:$0xff]
    %v3094 = vld [vmem:[#allocation11 + $0x230] sm:$0xff]
    %v3095 = vld [vmem:[#allocation11 + $0x238] sm:$0xff]
    %v3096 = vld [vmem:[#allocation11 + $0x240] sm:$0xff]
    %v3097 = vld [vmem:[#allocation11 + $0x248] sm:$0xff]
    %v3098 = vld [vmem:[#allocation11 + $0x250] sm:$0xff]
    %v3099 = vld [vmem:[#allocation11 + $0x258] sm:$0xff]
    %v3100 = vld [vmem:[#allocation11 + $0x260] sm:$0xff]
    %v3101 = vld [vmem:[#allocation11 + $0x268] sm:$0xff]
    %v3102 = vld [vmem:[#allocation11 + $0x270] sm:$0xff]
    %v3103 = vld [vmem:[#allocation11 + $0x278] sm:$0xff]
    %v3104 = vld [vmem:[#allocation11 + $0x280] sm:$0xff]
    %v3105 = vld [vmem:[#allocation11 + $0x288] sm:$0xff]
    %v3106 = vld [vmem:[#allocation11 + $0x290] sm:$0xff]
    %v3107 = vld [vmem:[#allocation11 + $0x298] sm:$0xff]
    %v3108 = vld [vmem:[#allocation11 + $0x2a0] sm:$0xff]
    %v3109 = vld [vmem:[#allocation11 + $0x2a8] sm:$0xff]
    %v3110 = vld [vmem:[#allocation11 + $0x2b0] sm:$0xff]
    %v3111 = vld [vmem:[#allocation11 + $0x2b8] sm:$0xff]
    %v3112 = vld [vmem:[#allocation11 + $0x2c0] sm:$0xff]
    %v3113 = vld [vmem:[#allocation11 + $0x2c8] sm:$0xff]
    %v3114 = vld [vmem:[#allocation11 + $0x2d0] sm:$0xff]
    %v3115 = vld [vmem:[#allocation11 + $0x2d8] sm:$0xff]
    %v3116 = vld [vmem:[#allocation11 + $0x2e0] sm:$0xff]
    %v3117 = vld [vmem:[#allocation11 + $0x2e8] sm:$0xff]
    %v3118 = vld [vmem:[#allocation11 + $0x2f0] sm:$0xff]
    %v3119 = vld [vmem:[#allocation11 + $0x2f8] sm:$0xff]
    %v3120 = vld [vmem:[#allocation11 + $0x300] sm:$0xff]
    %v3121 = vld [vmem:[#allocation11 + $0x308] sm:$0xff]
    %v3122 = vld [vmem:[#allocation11 + $0x310] sm:$0xff]
    %v3123 = vld [vmem:[#allocation11 + $0x318] sm:$0xff]
    %v3124 = vld [vmem:[#allocation11 + $0x320] sm:$0xff]
    %v3125 = vld [vmem:[#allocation11 + $0x328] sm:$0xff]
    %v3126 = vld [vmem:[#allocation11 + $0x330] sm:$0xff]
    %v3127 = vld [vmem:[#allocation11 + $0x338] sm:$0xff]
    %v3128 = vld [vmem:[#allocation11 + $0x340] sm:$0xff]
    %v3129 = vld [vmem:[#allocation11 + $0x348] sm:$0xff]
    %v3130 = vld [vmem:[#allocation11 + $0x350] sm:$0xff]
    %v3131 = vld [vmem:[#allocation11 + $0x358] sm:$0xff]
    %v3132 = vld [vmem:[#allocation11 + $0x360] sm:$0xff]
    %v3133 = vld [vmem:[#allocation11 + $0x368] sm:$0xff]
    %v3134 = vld [vmem:[#allocation11 + $0x370] sm:$0xff]
    %v3135 = vld [vmem:[#allocation11 + $0x378] sm:$0xff]
    %v3136 = vld [vmem:[#allocation11 + $0x380] sm:$0xff]
    %v3137 = vld [vmem:[#allocation11 + $0x388] sm:$0xff]
    %v3138 = vld [vmem:[#allocation11 + $0x390] sm:$0xff]
    %v3139 = vld [vmem:[#allocation11 + $0x398] sm:$0xff]
    %v3140 = vld [vmem:[#allocation11 + $0x3a0] sm:$0xff]
    %v3141 = vld [vmem:[#allocation11 + $0x3a8] sm:$0xff]
    %v3142 = vld [vmem:[#allocation11 + $0x3b0] sm:$0xff]
    %v3143 = vld [vmem:[#allocation11 + $0x3b8] sm:$0xff]
    %v3144 = vld [vmem:[#allocation11 + $0x3c0] sm:$0xff]
    %v3145 = vld [vmem:[#allocation11 + $0x3c8] sm:$0xff]
    %v3146 = vld [vmem:[#allocation11 + $0x3d0] sm:$0xff]
    %v3147 = vld [vmem:[#allocation11 + $0x3d8] sm:$0xff]
    %v3148 = vld [vmem:[#allocation11 + $0x3e0] sm:$0xff]
    %v3149 = vld [vmem:[#allocation11 + $0x3e8] sm:$0xff]
    %v3150 = vld [vmem:[#allocation11 + $0x3f0] sm:$0xff]
    %v3151 = vld [vmem:[#allocation11 + $0x3f8] sm:$0xff]
    %v3152 = vld [vmem:[#allocation13] sm:$0xf]
    %v3154 = vperm.slane %v3152, 0
    %v3155 = vperm.slane %v3152, 1
    %v3156 = vperm.slane %v3152, 2
    %v3157 = vperm.slane %v3152, 3
    %v3290 = vunpack.c.l.b16 %v3024
    %v3291 = vunpack.c.h.b16 %v3024
    %v3292 = vunpack.c.l.b16 %v3025
    %v3293 = vunpack.c.h.b16 %v3025
    %v3294 = vunpack.c.l.b16 %v3026
    %v3295 = vunpack.c.h.b16 %v3026
    %v3296 = vunpack.c.l.b16 %v3027
    %v3297 = vunpack.c.h.b16 %v3027
    %v3298 = vunpack.c.l.b16 %v3028
    %v3299 = vunpack.c.h.b16 %v3028
    %v3300 = vunpack.c.l.b16 %v3029
    %v3301 = vunpack.c.h.b16 %v3029
    %v3302 = vunpack.c.l.b16 %v3030
    %v3303 = vunpack.c.h.b16 %v3030
    %v3304 = vunpack.c.l.b16 %v3031
    %v3305 = vunpack.c.h.b16 %v3031
    %v3306 = vunpack.c.l.b16 %v3032
    %v3307 = vunpack.c.h.b16 %v3032
    %v3308 = vunpack.c.l.b16 %v3033
    %v3309 = vunpack.c.h.b16 %v3033
    %v3310 = vunpack.c.l.b16 %v3034
    %v3311 = vunpack.c.h.b16 %v3034
    %v3312 = vunpack.c.l.b16 %v3035
    %v3313 = vunpack.c.h.b16 %v3035
    %v3314 = vunpack.c.l.b16 %v3036
    %v3315 = vunpack.c.h.b16 %v3036
    %v3316 = vunpack.c.l.b16 %v3037
    %v3317 = vunpack.c.h.b16 %v3037
    %v3318 = vunpack.c.l.b16 %v3038
    %v3319 = vunpack.c.h.b16 %v3038
    %v3320 = vunpack.c.l.b16 %v3039
    %v3321 = vunpack.c.h.b16 %v3039
    %v3322 = vunpack.c.l.b16 %v3040
    %v3323 = vunpack.c.h.b16 %v3040
    %v3324 = vunpack.c.l.b16 %v3041
    %v3325 = vunpack.c.h.b16 %v3041
    %v3326 = vunpack.c.l.b16 %v3042
    %v3327 = vunpack.c.h.b16 %v3042
    %v3328 = vunpack.c.l.b16 %v3043
    %v3329 = vunpack.c.h.b16 %v3043
    %v3330 = vunpack.c.l.b16 %v3044
    %v3331 = vunpack.c.h.b16 %v3044
    %v3332 = vunpack.c.l.b16 %v3045
    %v3333 = vunpack.c.h.b16 %v3045
    %v3334 = vunpack.c.l.b16 %v3046
    %v3335 = vunpack.c.h.b16 %v3046
    %v3336 = vunpack.c.l.b16 %v3047
    %v3337 = vunpack.c.h.b16 %v3047
    %v3338 = vunpack.c.l.b16 %v3048
    %v3339 = vunpack.c.h.b16 %v3048
    %v3340 = vunpack.c.l.b16 %v3049
    %v3341 = vunpack.c.h.b16 %v3049
    %v3342 = vunpack.c.l.b16 %v3050
    %v3343 = vunpack.c.h.b16 %v3050
    %v3344 = vunpack.c.l.b16 %v3051
    %v3345 = vunpack.c.h.b16 %v3051
    %v3346 = vunpack.c.l.b16 %v3052
    %v3347 = vunpack.c.h.b16 %v3052
    %v3348 = vunpack.c.l.b16 %v3053
    %v3349 = vunpack.c.h.b16 %v3053
    %v3350 = vunpack.c.l.b16 %v3054
    %v3351 = vunpack.c.h.b16 %v3054
    %v3352 = vunpack.c.l.b16 %v3055
    %v3353 = vunpack.c.h.b16 %v3055
    %v3354 = vunpack.c.l.b16 %v3056
    %v3355 = vunpack.c.h.b16 %v3056
    %v3356 = vunpack.c.l.b16 %v3057
    %v3357 = vunpack.c.h.b16 %v3057
    %v3358 = vunpack.c.l.b16 %v3058
    %v3359 = vunpack.c.h.b16 %v3058
    %v3360 = vunpack.c.l.b16 %v3059
    %v3361 = vunpack.c.h.b16 %v3059
    %v3362 = vunpack.c.l.b16 %v3060
    %v3363 = vunpack.c.h.b16 %v3060
    %v3364 = vunpack.c.l.b16 %v3061
    %v3365 = vunpack.c.h.b16 %v3061
    %v3366 = vunpack.c.l.b16 %v3062
    %v3367 = vunpack.c.h.b16 %v3062
    %v3368 = vunpack.c.l.b16 %v3063
    %v3369 = vunpack.c.h.b16 %v3063
    %v3370 = vunpack.c.l.b16 %v3064
    %v3371 = vunpack.c.h.b16 %v3064
    %v3372 = vunpack.c.l.b16 %v3065
    %v3373 = vunpack.c.h.b16 %v3065
    %v3374 = vunpack.c.l.b16 %v3066
    %v3375 = vunpack.c.h.b16 %v3066
    %v3376 = vunpack.c.l.b16 %v3067
    %v3377 = vunpack.c.h.b16 %v3067
    %v3378 = vunpack.c.l.b16 %v3068
    %v3379 = vunpack.c.h.b16 %v3068
    %v3380 = vunpack.c.l.b16 %v3069
    %v3381 = vunpack.c.h.b16 %v3069
    %v3382 = vunpack.c.l.b16 %v3070
    %v3383 = vunpack.c.h.b16 %v3070
    %v3384 = vunpack.c.l.b16 %v3071
    %v3385 = vunpack.c.h.b16 %v3071
    %v3386 = vunpack.c.l.b16 %v3072
    %v3387 = vunpack.c.h.b16 %v3072
    %v3388 = vunpack.c.l.b16 %v3073
    %v3389 = vunpack.c.h.b16 %v3073
    %v3390 = vunpack.c.l.b16 %v3074
    %v3391 = vunpack.c.h.b16 %v3074
    %v3392 = vunpack.c.l.b16 %v3075
    %v3393 = vunpack.c.h.b16 %v3075
    %v3394 = vunpack.c.l.b16 %v3076
    %v3395 = vunpack.c.h.b16 %v3076
    %v3396 = vunpack.c.l.b16 %v3077
    %v3397 = vunpack.c.h.b16 %v3077
    %v3398 = vunpack.c.l.b16 %v3078
    %v3399 = vunpack.c.h.b16 %v3078
    %v3400 = vunpack.c.l.b16 %v3079
    %v3401 = vunpack.c.h.b16 %v3079
    %v3402 = vunpack.c.l.b16 %v3080
    %v3403 = vunpack.c.h.b16 %v3080
    %v3404 = vunpack.c.l.b16 %v3081
    %v3405 = vunpack.c.h.b16 %v3081
    %v3406 = vunpack.c.l.b16 %v3082
    %v3407 = vunpack.c.h.b16 %v3082
    %v3408 = vunpack.c.l.b16 %v3083
    %v3409 = vunpack.c.h.b16 %v3083
    %v3410 = vunpack.c.l.b16 %v3084
    %v3411 = vunpack.c.h.b16 %v3084
    %v3412 = vunpack.c.l.b16 %v3085
    %v3413 = vunpack.c.h.b16 %v3085
    %v3414 = vunpack.c.l.b16 %v3086
    %v3415 = vunpack.c.h.b16 %v3086
    %v3416 = vunpack.c.l.b16 %v3087
    %v3417 = vunpack.c.h.b16 %v3087
    %v3418 = vunpack.c.l.b16 %v3088
    %v3419 = vunpack.c.h.b16 %v3088
    %v3420 = vunpack.c.l.b16 %v3089
    %v3421 = vunpack.c.h.b16 %v3089
    %v3422 = vunpack.c.l.b16 %v3090
    %v3423 = vunpack.c.h.b16 %v3090
    %v3424 = vunpack.c.l.b16 %v3091
    %v3425 = vunpack.c.h.b16 %v3091
    %v3426 = vunpack.c.l.b16 %v3092
    %v3427 = vunpack.c.h.b16 %v3092
    %v3428 = vunpack.c.l.b16 %v3093
    %v3429 = vunpack.c.h.b16 %v3093
    %v3430 = vunpack.c.l.b16 %v3094
    %v3431 = vunpack.c.h.b16 %v3094
    %v3432 = vunpack.c.l.b16 %v3095
    %v3433 = vunpack.c.h.b16 %v3095
    %v3434 = vunpack.c.l.b16 %v3096
    %v3435 = vunpack.c.h.b16 %v3096
    %v3436 = vunpack.c.l.b16 %v3097
    %v3437 = vunpack.c.h.b16 %v3097
    %v3438 = vunpack.c.l.b16 %v3098
    %v3439 = vunpack.c.h.b16 %v3098
    %v3440 = vunpack.c.l.b16 %v3099
    %v3441 = vunpack.c.h.b16 %v3099
    %v3442 = vunpack.c.l.b16 %v3100
    %v3443 = vunpack.c.h.b16 %v3100
    %v3444 = vunpack.c.l.b16 %v3101
    %v3445 = vunpack.c.h.b16 %v3101
    %v3446 = vunpack.c.l.b16 %v3102
    %v3447 = vunpack.c.h.b16 %v3102
    %v3448 = vunpack.c.l.b16 %v3103
    %v3449 = vunpack.c.h.b16 %v3103
    %v3450 = vunpack.c.l.b16 %v3104
    %v3451 = vunpack.c.h.b16 %v3104
    %v3452 = vunpack.c.l.b16 %v3105
    %v3453 = vunpack.c.h.b16 %v3105
    %v3454 = vunpack.c.l.b16 %v3106
    %v3455 = vunpack.c.h.b16 %v3106
    %v3456 = vunpack.c.l.b16 %v3107
    %v3457 = vunpack.c.h.b16 %v3107
    %v3458 = vunpack.c.l.b16 %v3108
    %v3459 = vunpack.c.h.b16 %v3108
    %v3460 = vunpack.c.l.b16 %v3109
    %v3461 = vunpack.c.h.b16 %v3109
    %v3462 = vunpack.c.l.b16 %v3110
    %v3463 = vunpack.c.h.b16 %v3110
    %v3464 = vunpack.c.l.b16 %v3111
    %v3465 = vunpack.c.h.b16 %v3111
    %v3466 = vunpack.c.l.b16 %v3112
    %v3467 = vunpack.c.h.b16 %v3112
    %v3468 = vunpack.c.l.b16 %v3113
    %v3469 = vunpack.c.h.b16 %v3113
    %v3470 = vunpack.c.l.b16 %v3114
    %v3471 = vunpack.c.h.b16 %v3114
    %v3472 = vunpack.c.l.b16 %v3115
    %v3473 = vunpack.c.h.b16 %v3115
    %v3474 = vunpack.c.l.b16 %v3116
    %v3475 = vunpack.c.h.b16 %v3116
    %v3476 = vunpack.c.l.b16 %v3117
    %v3477 = vunpack.c.h.b16 %v3117
    %v3478 = vunpack.c.l.b16 %v3118
    %v3479 = vunpack.c.h.b16 %v3118
    %v3480 = vunpack.c.l.b16 %v3119
    %v3481 = vunpack.c.h.b16 %v3119
    %v3482 = vunpack.c.l.b16 %v3120
    %v3483 = vunpack.c.h.b16 %v3120
    %v3484 = vunpack.c.l.b16 %v3121
    %v3485 = vunpack.c.h.b16 %v3121
    %v3486 = vunpack.c.l.b16 %v3122
    %v3487 = vunpack.c.h.b16 %v3122
    %v3488 = vunpack.c.l.b16 %v3123
    %v3489 = vunpack.c.h.b16 %v3123
    %v3490 = vunpack.c.l.b16 %v3124
    %v3491 = vunpack.c.h.b16 %v3124
    %v3492 = vunpack.c.l.b16 %v3125
    %v3493 = vunpack.c.h.b16 %v3125
    %v3494 = vunpack.c.l.b16 %v3126
    %v3495 = vunpack.c.h.b16 %v3126
    %v3496 = vunpack.c.l.b16 %v3127
    %v3497 = vunpack.c.h.b16 %v3127
    %v3498 = vunpack.c.l.b16 %v3128
    %v3499 = vunpack.c.h.b16 %v3128
    %v3500 = vunpack.c.l.b16 %v3129
    %v3501 = vunpack.c.h.b16 %v3129
    %v3502 = vunpack.c.l.b16 %v3130
    %v3503 = vunpack.c.h.b16 %v3130
    %v3504 = vunpack.c.l.b16 %v3131
    %v3505 = vunpack.c.h.b16 %v3131
    %v3506 = vunpack.c.l.b16 %v3132
    %v3507 = vunpack.c.h.b16 %v3132
    %v3508 = vunpack.c.l.b16 %v3133
    %v3509 = vunpack.c.h.b16 %v3133
    %v3510 = vunpack.c.l.b16 %v3134
    %v3511 = vunpack.c.h.b16 %v3134
    %v3512 = vunpack.c.l.b16 %v3135
    %v3513 = vunpack.c.h.b16 %v3135
    %v3514 = vunpack.c.l.b16 %v3136
    %v3515 = vunpack.c.h.b16 %v3136
    %v3516 = vunpack.c.l.b16 %v3137
    %v3517 = vunpack.c.h.b16 %v3137
    %v3518 = vunpack.c.l.b16 %v3138
    %v3519 = vunpack.c.h.b16 %v3138
    %v3520 = vunpack.c.l.b16 %v3139
    %v3521 = vunpack.c.h.b16 %v3139
    %v3522 = vunpack.c.l.b16 %v3140
    %v3523 = vunpack.c.h.b16 %v3140
    %v3524 = vunpack.c.l.b16 %v3141
    %v3525 = vunpack.c.h.b16 %v3141
    %v3526 = vunpack.c.l.b16 %v3142
    %v3527 = vunpack.c.h.b16 %v3142
    %v3528 = vunpack.c.l.b16 %v3143
    %v3529 = vunpack.c.h.b16 %v3143
    %v3530 = vunpack.c.l.b16 %v3144
    %v3531 = vunpack.c.h.b16 %v3144
    %v3532 = vunpack.c.l.b16 %v3145
    %v3533 = vunpack.c.h.b16 %v3145
    %v3534 = vunpack.c.l.b16 %v3146
    %v3535 = vunpack.c.h.b16 %v3146
    %v3536 = vunpack.c.l.b16 %v3147
    %v3537 = vunpack.c.h.b16 %v3147
    %v3538 = vunpack.c.l.b16 %v3148
    %v3539 = vunpack.c.h.b16 %v3148
    %v3540 = vunpack.c.l.b16 %v3149
    %v3541 = vunpack.c.h.b16 %v3149
    %v3542 = vunpack.c.l.b16 %v3150
    %v3543 = vunpack.c.h.b16 %v3150
    %v3544 = vunpack.c.l.b16 %v3151
    %v3545 = vunpack.c.h.b16 %v3151
    %v3546 = vpack.c.b16 %v3294, %v3290
    %v3547 = vpack.c.b16 %v3295, %v3291
    %v3548 = vpack.c.b16 %v3296, %v3292
    %v3549 = vpack.c.b16 %v3297, %v3293
    %v3550 = vpack.c.b16 %v3302, %v3298
    %v3551 = vpack.c.b16 %v3303, %v3299
    %v3552 = vpack.c.b16 %v3304, %v3300
    %v3553 = vpack.c.b16 %v3305, %v3301
    %v3554 = vpack.c.b16 %v3310, %v3306
    %v3555 = vpack.c.b16 %v3311, %v3307
    %v3556 = vpack.c.b16 %v3312, %v3308
    %v3557 = vpack.c.b16 %v3313, %v3309
    %v3558 = vpack.c.b16 %v3318, %v3314
    %v3559 = vpack.c.b16 %v3319, %v3315
    %v3560 = vpack.c.b16 %v3320, %v3316
    %v3561 = vpack.c.b16 %v3321, %v3317
    %v3562 = vpack.c.b16 %v3326, %v3322
    %v3563 = vpack.c.b16 %v3327, %v3323
    %v3564 = vpack.c.b16 %v3328, %v3324
    %v3565 = vpack.c.b16 %v3329, %v3325
    %v3566 = vpack.c.b16 %v3334, %v3330
    %v3567 = vpack.c.b16 %v3335, %v3331
    %v3568 = vpack.c.b16 %v3336, %v3332
    %v3569 = vpack.c.b16 %v3337, %v3333
    %v3570 = vpack.c.b16 %v3342, %v3338
    %v3571 = vpack.c.b16 %v3343, %v3339
    %v3572 = vpack.c.b16 %v3344, %v3340
    %v3573 = vpack.c.b16 %v3345, %v3341
    %v3574 = vpack.c.b16 %v3350, %v3346
    %v3575 = vpack.c.b16 %v3351, %v3347
    %v3576 = vpack.c.b16 %v3352, %v3348
    %v3577 = vpack.c.b16 %v3353, %v3349
    %v3578 = vpack.c.b16 %v3358, %v3354
    %v3579 = vpack.c.b16 %v3359, %v3355
    %v3580 = vpack.c.b16 %v3360, %v3356
    %v3581 = vpack.c.b16 %v3361, %v3357
    %v3582 = vpack.c.b16 %v3366, %v3362
    %v3583 = vpack.c.b16 %v3367, %v3363
    %v3584 = vpack.c.b16 %v3368, %v3364
    %v3585 = vpack.c.b16 %v3369, %v3365
    %v3586 = vpack.c.b16 %v3374, %v3370
    %v3587 = vpack.c.b16 %v3375, %v3371
    %v3588 = vpack.c.b16 %v3376, %v3372
    %v3589 = vpack.c.b16 %v3377, %v3373
    %v3590 = vpack.c.b16 %v3382, %v3378
    %v3591 = vpack.c.b16 %v3383, %v3379
    %v3592 = vpack.c.b16 %v3384, %v3380
    %v3593 = vpack.c.b16 %v3385, %v3381
    %v3594 = vpack.c.b16 %v3390, %v3386
    %v3595 = vpack.c.b16 %v3391, %v3387
    %v3596 = vpack.c.b16 %v3392, %v3388
    %v3597 = vpack.c.b16 %v3393, %v3389
    %v3598 = vpack.c.b16 %v3398, %v3394
    %v3599 = vpack.c.b16 %v3399, %v3395
    %v3600 = vpack.c.b16 %v3400, %v3396
    %v3601 = vpack.c.b16 %v3401, %v3397
    %v3602 = vpack.c.b16 %v3406, %v3402
    %v3603 = vpack.c.b16 %v3407, %v3403
    %v3604 = vpack.c.b16 %v3408, %v3404
    %v3605 = vpack.c.b16 %v3409, %v3405
    %v3606 = vpack.c.b16 %v3414, %v3410
    %v3607 = vpack.c.b16 %v3415, %v3411
    %v3608 = vpack.c.b16 %v3416, %v3412
    %v3609 = vpack.c.b16 %v3417, %v3413
    %v3610 = vpack.c.b16 %v3422, %v3418
    %v3611 = vpack.c.b16 %v3423, %v3419
    %v3612 = vpack.c.b16 %v3424, %v3420
    %v3613 = vpack.c.b16 %v3425, %v3421
    %v3614 = vpack.c.b16 %v3430, %v3426
    %v3615 = vpack.c.b16 %v3431, %v3427
    %v3616 = vpack.c.b16 %v3432, %v3428
    %v3617 = vpack.c.b16 %v3433, %v3429
    %v3618 = vpack.c.b16 %v3438, %v3434
    %v3619 = vpack.c.b16 %v3439, %v3435
    %v3620 = vpack.c.b16 %v3440, %v3436
    %v3621 = vpack.c.b16 %v3441, %v3437
    %v3622 = vpack.c.b16 %v3446, %v3442
    %v3623 = vpack.c.b16 %v3447, %v3443
    %v3624 = vpack.c.b16 %v3448, %v3444
    %v3625 = vpack.c.b16 %v3449, %v3445
    %v3626 = vpack.c.b16 %v3454, %v3450
    %v3627 = vpack.c.b16 %v3455, %v3451
    %v3628 = vpack.c.b16 %v3456, %v3452
    %v3629 = vpack.c.b16 %v3457, %v3453
    %v3630 = vpack.c.b16 %v3462, %v3458
    %v3631 = vpack.c.b16 %v3463, %v3459
    %v3632 = vpack.c.b16 %v3464, %v3460
    %v3633 = vpack.c.b16 %v3465, %v3461
    %v3634 = vpack.c.b16 %v3470, %v3466
    %v3635 = vpack.c.b16 %v3471, %v3467
    %v3636 = vpack.c.b16 %v3472, %v3468
    %v3637 = vpack.c.b16 %v3473, %v3469
    %v3638 = vpack.c.b16 %v3478, %v3474
    %v3639 = vpack.c.b16 %v3479, %v3475
    %v3640 = vpack.c.b16 %v3480, %v3476
    %v3641 = vpack.c.b16 %v3481, %v3477
    %v3642 = vpack.c.b16 %v3486, %v3482
    %v3643 = vpack.c.b16 %v3487, %v3483
    %v3644 = vpack.c.b16 %v3488, %v3484
    %v3645 = vpack.c.b16 %v3489, %v3485
    %v3646 = vpack.c.b16 %v3494, %v3490
    %v3647 = vpack.c.b16 %v3495, %v3491
    %v3648 = vpack.c.b16 %v3496, %v3492
    %v3649 = vpack.c.b16 %v3497, %v3493
    %v3650 = vpack.c.b16 %v3502, %v3498
    %v3651 = vpack.c.b16 %v3503, %v3499
    %v3652 = vpack.c.b16 %v3504, %v3500
    %v3653 = vpack.c.b16 %v3505, %v3501
    %v3654 = vpack.c.b16 %v3510, %v3506
    %v3655 = vpack.c.b16 %v3511, %v3507
    %v3656 = vpack.c.b16 %v3512, %v3508
    %v3657 = vpack.c.b16 %v3513, %v3509
    %v3658 = vpack.c.b16 %v3518, %v3514
    %v3659 = vpack.c.b16 %v3519, %v3515
    %v3660 = vpack.c.b16 %v3520, %v3516
    %v3661 = vpack.c.b16 %v3521, %v3517
    %v3662 = vpack.c.b16 %v3526, %v3522
    %v3663 = vpack.c.b16 %v3527, %v3523
    %v3664 = vpack.c.b16 %v3528, %v3524
    %v3665 = vpack.c.b16 %v3529, %v3525
    %v3666 = vpack.c.b16 %v3534, %v3530
    %v3667 = vpack.c.b16 %v3535, %v3531
    %v3668 = vpack.c.b16 %v3536, %v3532
    %v3669 = vpack.c.b16 %v3537, %v3533
    %v3670 = vpack.c.b16 %v3542, %v3538
    %v3671 = vpack.c.b16 %v3543, %v3539
    %v3672 = vpack.c.b16 %v3544, %v3540
    %v3673 = vpack.c.b16 %v3545, %v3541
    %3802 = vmatpush.bf16.msra.mxu0 %v3574
    %3803 = vmatpush.bf16.msra.mxu0 %v3570
    %3804 = vmatpush.bf16.msra.mxu0 %v3566
    %3805 = vmatpush.bf16.msra.mxu0 %v3562
    %3806 = vmatpush.bf16.msra.mxu0 %v3558
    %3807 = vmatpush.bf16.msra.mxu0 %v3554
    %3808 = vmatpush.bf16.msra.mxu0 %v3550
    %3809 = vmatpush.bf16.msra.mxu0 %v3546
    %3810 = vmatmul.bf16.gmra.mxu0 %v1918
    %v3811 = vpop.f32.mrf.mxu0
    %v3812 = vadd.f32 %v3154, %v3811
    %v3813 = vpop.f32.mrf.mxu0
    %v3814 = vadd.f32 %v3154, %v3813
    %3815 = vmatmul.bf16.gmra.mxu0 %v1922
    %v3816 = vpop.f32.mrf.mxu0
    %v3817 = vadd.f32 %v3154, %v3816
    %v3818 = vpop.f32.mrf.mxu0
    %v3819 = vadd.f32 %v3154, %v3818
    %3820 = vdwg.mxu0
    %3821 = vmatpush.bf16.msra.mxu0 %v3606
    %3822 = vmatpush.bf16.msra.mxu0 %v3602
    %3823 = vmatpush.bf16.msra.mxu0 %v3598
    %3824 = vmatpush.bf16.msra.mxu0 %v3594
    %3825 = vmatpush.bf16.msra.mxu0 %v3590
    %3826 = vmatpush.bf16.msra.mxu0 %v3586
    %3827 = vmatpush.bf16.msra.mxu0 %v3582
    %3828 = vmatpush.bf16.msra.mxu0 %v3578
    %3829 = vmatmul.bf16.gmra.mxu0 %v1919
    %v3830 = vpop.f32.mrf.mxu0
    %v3831 = vadd.f32 %v3812, %v3830
    %v3832 = vpop.f32.mrf.mxu0
    %v3833 = vadd.f32 %v3814, %v3832
    %3834 = vmatmul.bf16.gmra.mxu0 %v1923
    %v3835 = vpop.f32.mrf.mxu0
    %v3836 = vadd.f32 %v3817, %v3835
    %v3837 = vpop.f32.mrf.mxu0
    %v3838 = vadd.f32 %v3819, %v3837
    %3839 = vdwg.mxu0
    %3840 = vmatpush.bf16.msra.mxu0 %v3638
    %3841 = vmatpush.bf16.msra.mxu0 %v3634
    %3842 = vmatpush.bf16.msra.mxu0 %v3630
    %3843 = vmatpush.bf16.msra.mxu0 %v3626
    %3844 = vmatpush.bf16.msra.mxu0 %v3622
    %3845 = vmatpush.bf16.msra.mxu0 %v3618
    %3846 = vmatpush.bf16.msra.mxu0 %v3614
    %3847 = vmatpush.bf16.msra.mxu0 %v3610
    %3848 = vmatmul.bf16.gmra.mxu0 %v1920
    %v3849 = vpop.f32.mrf.mxu0
    %v3850 = vadd.f32 %v3831, %v3849
    %v3851 = vpop.f32.mrf.mxu0
    %v3852 = vadd.f32 %v3833, %v3851
    %3853 = vmatmul.bf16.gmra.mxu0 %v1924
    %v3854 = vpop.f32.mrf.mxu0
    %v3855 = vadd.f32 %v3836, %v3854
    %v3856 = vpop.f32.mrf.mxu0
    %v3857 = vadd.f32 %v3838, %v3856
    %3858 = vdwg.mxu0
    %3859 = vmatpush.bf16.msra.mxu0 %v3670
    %3860 = vmatpush.bf16.msra.mxu0 %v3666
    %3861 = vmatpush.bf16.msra.mxu0 %v3662
    %3862 = vmatpush.bf16.msra.mxu0 %v3658
    %3863 = vmatpush.bf16.msra.mxu0 %v3654
    %3864 = vmatpush.bf16.msra.mxu0 %v3650
    %3865 = vmatpush.bf16.msra.mxu0 %v3646
    %3866 = vmatpush.bf16.msra.mxu0 %v3642
    %3867 = vmatmul.bf16.gmra.mxu0 %v1921
    %v3868 = vpop.f32.mrf.mxu0
    %v3869 = vadd.f32 %v3850, %v3868
    %v3870 = vpop.f32.mrf.mxu0
    %v3871 = vadd.f32 %v3852, %v3870
    %3872 = vmatmul.bf16.gmra.mxu0 %v1925
    %v3873 = vpop.f32.mrf.mxu0
    %v3874 = vadd.f32 %v3855, %v3873
    %v3875 = vpop.f32.mrf.mxu0
    %v3876 = vadd.f32 %v3857, %v3875
    %3877 = vdwg.mxu0
    %3878 = vmatpush.bf16.msra.mxu0 %v3575
    %3879 = vmatpush.bf16.msra.mxu0 %v3571
    %3880 = vmatpush.bf16.msra.mxu0 %v3567
    %3881 = vmatpush.bf16.msra.mxu0 %v3563
    %3882 = vmatpush.bf16.msra.mxu0 %v3559
    %3883 = vmatpush.bf16.msra.mxu0 %v3555
    %3884 = vmatpush.bf16.msra.mxu0 %v3551
    %3885 = vmatpush.bf16.msra.mxu0 %v3547
    %3886 = vmatmul.bf16.gmra.mxu0 %v1918
    %v3887 = vpop.f32.mrf.mxu0
    %v3888 = vadd.f32 %v3155, %v3887
    %v3889 = vpop.f32.mrf.mxu0
    %v3890 = vadd.f32 %v3155, %v3889
    %3891 = vmatmul.bf16.gmra.mxu0 %v1922
    %v3892 = vpop.f32.mrf.mxu0
    %v3893 = vadd.f32 %v3155, %v3892
    %v3894 = vpop.f32.mrf.mxu0
    %v3895 = vadd.f32 %v3155, %v3894
    %3896 = vdwg.mxu0
    %3897 = vmatpush.bf16.msra.mxu0 %v3607
    %3898 = vmatpush.bf16.msra.mxu0 %v3603
    %3899 = vmatpush.bf16.msra.mxu0 %v3599
    %3900 = vmatpush.bf16.msra.mxu0 %v3595
    %3901 = vmatpush.bf16.msra.mxu0 %v3591
    %3902 = vmatpush.bf16.msra.mxu0 %v3587
    %3903 = vmatpush.bf16.msra.mxu0 %v3583
    %3904 = vmatpush.bf16.msra.mxu0 %v3579
    %3905 = vmatmul.bf16.gmra.mxu0 %v1919
    %v3906 = vpop.f32.mrf.mxu0
    %v3907 = vadd.f32 %v3888, %v3906
    %v3908 = vpop.f32.mrf.mxu0
    %v3909 = vadd.f32 %v3890, %v3908
    %3910 = vmatmul.bf16.gmra.mxu0 %v1923
    %v3911 = vpop.f32.mrf.mxu0
    %v3912 = vadd.f32 %v3893, %v3911
    %v3913 = vpop.f32.mrf.mxu0
    %v3914 = vadd.f32 %v3895, %v3913
    %3915 = vdwg.mxu0
    %3916 = vmatpush.bf16.msra.mxu0 %v3639
    %3917 = vmatpush.bf16.msra.mxu0 %v3635
    %3918 = vmatpush.bf16.msra.mxu0 %v3631
    %3919 = vmatpush.bf16.msra.mxu0 %v3627
    %3920 = vmatpush.bf16.msra.mxu0 %v3623
    %3921 = vmatpush.bf16.msra.mxu0 %v3619
    %3922 = vmatpush.bf16.msra.mxu0 %v3615
    %3923 = vmatpush.bf16.msra.mxu0 %v3611
    %3924 = vmatmul.bf16.gmra.mxu0 %v1920
    %v3925 = vpop.f32.mrf.mxu0
    %v3926 = vadd.f32 %v3907, %v3925
    %v3927 = vpop.f32.mrf.mxu0
    %v3928 = vadd.f32 %v3909, %v3927
    %3929 = vmatmul.bf16.gmra.mxu0 %v1924
    %v3930 = vpop.f32.mrf.mxu0
    %v3931 = vadd.f32 %v3912, %v3930
    %v3932 = vpop.f32.mrf.mxu0
    %v3933 = vadd.f32 %v3914, %v3932
    %3934 = vdwg.mxu0
    %3935 = vmatpush.bf16.msra.mxu0 %v3671
    %3936 = vmatpush.bf16.msra.mxu0 %v3667
    %3937 = vmatpush.bf16.msra.mxu0 %v3663
    %3938 = vmatpush.bf16.msra.mxu0 %v3659
    %3939 = vmatpush.bf16.msra.mxu0 %v3655
    %3940 = vmatpush.bf16.msra.mxu0 %v3651
    %3941 = vmatpush.bf16.msra.mxu0 %v3647
    %3942 = vmatpush.bf16.msra.mxu0 %v3643
    %3943 = vmatmul.bf16.gmra.mxu0 %v1921
    %v3944 = vpop.f32.mrf.mxu0
    %v3945 = vadd.f32 %v3926, %v3944
    %v3946 = vpop.f32.mrf.mxu0
    %v3947 = vadd.f32 %v3928, %v3946
    %3948 = vmatmul.bf16.gmra.mxu0 %v1925
    %v3949 = vpop.f32.mrf.mxu0
    %v3950 = vadd.f32 %v3931, %v3949
    %v3951 = vpop.f32.mrf.mxu0
    %v3952 = vadd.f32 %v3933, %v3951
    %3953 = vdwg.mxu0
    %3954 = vmatpush.bf16.msra.mxu0 %v3576
    %3955 = vmatpush.bf16.msra.mxu0 %v3572
    %3956 = vmatpush.bf16.msra.mxu0 %v3568
    %3957 = vmatpush.bf16.msra.mxu0 %v3564
    %3958 = vmatpush.bf16.msra.mxu0 %v3560
    %3959 = vmatpush.bf16.msra.mxu0 %v3556
    %3960 = vmatpush.bf16.msra.mxu0 %v3552
    %3961 = vmatpush.bf16.msra.mxu0 %v3548
    %3962 = vmatmul.bf16.gmra.mxu0 %v1918
    %v3963 = vpop.f32.mrf.mxu0
    %v3964 = vadd.f32 %v3156, %v3963
    %v3965 = vpop.f32.mrf.mxu0
    %v3966 = vadd.f32 %v3156, %v3965
    %3967 = vmatmul.bf16.gmra.mxu0 %v1922
    %v3968 = vpop.f32.mrf.mxu0
    %v3969 = vadd.f32 %v3156, %v3968
    %v3970 = vpop.f32.mrf.mxu0
    %v3971 = vadd.f32 %v3156, %v3970
    %3972 = vdwg.mxu0
    %3973 = vmatpush.bf16.msra.mxu0 %v3608
    %3974 = vmatpush.bf16.msra.mxu0 %v3604
    %3975 = vmatpush.bf16.msra.mxu0 %v3600
    %3976 = vmatpush.bf16.msra.mxu0 %v3596
    %3977 = vmatpush.bf16.msra.mxu0 %v3592
    %3978 = vmatpush.bf16.msra.mxu0 %v3588
    %3979 = vmatpush.bf16.msra.mxu0 %v3584
    %3980 = vmatpush.bf16.msra.mxu0 %v3580
    %3981 = vmatmul.bf16.gmra.mxu0 %v1919
    %v3982 = vpop.f32.mrf.mxu0
    %v3983 = vadd.f32 %v3964, %v3982
    %v3984 = vpop.f32.mrf.mxu0
    %v3985 = vadd.f32 %v3966, %v3984
    %3986 = vmatmul.bf16.gmra.mxu0 %v1923
    %v3987 = vpop.f32.mrf.mxu0
    %v3988 = vadd.f32 %v3969, %v3987
    %v3989 = vpop.f32.mrf.mxu0
    %v3990 = vadd.f32 %v3971, %v3989
    %3991 = vdwg.mxu0
    %3992 = vmatpush.bf16.msra.mxu0 %v3640
    %3993 = vmatpush.bf16.msra.mxu0 %v3636
    %3994 = vmatpush.bf16.msra.mxu0 %v3632
    %3995 = vmatpush.bf16.msra.mxu0 %v3628
    %3996 = vmatpush.bf16.msra.mxu0 %v3624
    %3997 = vmatpush.bf16.msra.mxu0 %v3620
    %3998 = vmatpush.bf16.msra.mxu0 %v3616
    %3999 = vmatpush.bf16.msra.mxu0 %v3612
    %4000 = vmatmul.bf16.gmra.mxu0 %v1920
    %v4001 = vpop.f32.mrf.mxu0
    %v4002 = vadd.f32 %v3983, %v4001
    %v4003 = vpop.f32.mrf.mxu0
    %v4004 = vadd.f32 %v3985, %v4003
    %4005 = vmatmul.bf16.gmra.mxu0 %v1924
    %v4006 = vpop.f32.mrf.mxu0
    %v4007 = vadd.f32 %v3988, %v4006
    %v4008 = vpop.f32.mrf.mxu0
    %v4009 = vadd.f32 %v3990, %v4008
    %4010 = vdwg.mxu0
    %4011 = vmatpush.bf16.msra.mxu0 %v3672
    %4012 = vmatpush.bf16.msra.mxu0 %v3668
    %4013 = vmatpush.bf16.msra.mxu0 %v3664
    %4014 = vmatpush.bf16.msra.mxu0 %v3660
    %4015 = vmatpush.bf16.msra.mxu0 %v3656
    %4016 = vmatpush.bf16.msra.mxu0 %v3652
    %4017 = vmatpush.bf16.msra.mxu0 %v3648
    %4018 = vmatpush.bf16.msra.mxu0 %v3644
    %4019 = vmatmul.bf16.gmra.mxu0 %v1921
    %v4020 = vpop.f32.mrf.mxu0
    %v4021 = vadd.f32 %v4002, %v4020
    %v4022 = vpop.f32.mrf.mxu0
    %v4023 = vadd.f32 %v4004, %v4022
    %4024 = vmatmul.bf16.gmra.mxu0 %v1925
    %v4025 = vpop.f32.mrf.mxu0
    %v4026 = vadd.f32 %v4007, %v4025
    %v4027 = vpop.f32.mrf.mxu0
    %v4028 = vadd.f32 %v4009, %v4027
    %4029 = vdwg.mxu0
    %4030 = vmatpush.bf16.msra.mxu0 %v3577
    %4031 = vmatpush.bf16.msra.mxu0 %v3573
    %4032 = vmatpush.bf16.msra.mxu0 %v3569
    %4033 = vmatpush.bf16.msra.mxu0 %v3565
    %4034 = vmatpush.bf16.msra.mxu0 %v3561
    %4035 = vmatpush.bf16.msra.mxu0 %v3557
    %4036 = vmatpush.bf16.msra.mxu0 %v3553
    %4037 = vmatpush.bf16.msra.mxu0 %v3549
    %4038 = vmatmul.bf16.gmra.mxu0 %v1918
    %v4039 = vpop.f32.mrf.mxu0
    %v4040 = vadd.f32 %v3157, %v4039
    %v4041 = vpop.f32.mrf.mxu0
    %v4042 = vadd.f32 %v3157, %v4041
    %4043 = vmatmul.bf16.gmra.mxu0 %v1922
    %v4044 = vpop.f32.mrf.mxu0
    %v4045 = vadd.f32 %v3157, %v4044
    %v4046 = vpop.f32.mrf.mxu0
    %v4047 = vadd.f32 %v3157, %v4046
    %4048 = vdwg.mxu0
    %4049 = vmatpush.bf16.msra.mxu0 %v3609
    %4050 = vmatpush.bf16.msra.mxu0 %v3605
    %4051 = vmatpush.bf16.msra.mxu0 %v3601
    %4052 = vmatpush.bf16.msra.mxu0 %v3597
    %4053 = vmatpush.bf16.msra.mxu0 %v3593
    %4054 = vmatpush.bf16.msra.mxu0 %v3589
    %4055 = vmatpush.bf16.msra.mxu0 %v3585
    %4056 = vmatpush.bf16.msra.mxu0 %v3581
    %4057 = vmatmul.bf16.gmra.mxu0 %v1919
    %v4058 = vpop.f32.mrf.mxu0
    %v4059 = vadd.f32 %v4040, %v4058
    %v4060 = vpop.f32.mrf.mxu0
    %v4061 = vadd.f32 %v4042, %v4060
    %4062 = vmatmul.bf16.gmra.mxu0 %v1923
    %v4063 = vpop.f32.mrf.mxu0
    %v4064 = vadd.f32 %v4045, %v4063
    %v4065 = vpop.f32.mrf.mxu0
    %v4066 = vadd.f32 %v4047, %v4065
    %4067 = vdwg.mxu0
    %4068 = vmatpush.bf16.msra.mxu0 %v3641
    %4069 = vmatpush.bf16.msra.mxu0 %v3637
    %4070 = vmatpush.bf16.msra.mxu0 %v3633
    %4071 = vmatpush.bf16.msra.mxu0 %v3629
    %4072 = vmatpush.bf16.msra.mxu0 %v3625
    %4073 = vmatpush.bf16.msra.mxu0 %v3621
    %4074 = vmatpush.bf16.msra.mxu0 %v3617
    %4075 = vmatpush.bf16.msra.mxu0 %v3613
    %4076 = vmatmul.bf16.gmra.mxu0 %v1920
    %v4077 = vpop.f32.mrf.mxu0
    %v4078 = vadd.f32 %v4059, %v4077
    %v4079 = vpop.f32.mrf.mxu0
    %v4080 = vadd.f32 %v4061, %v4079
    %4081 = vmatmul.bf16.gmra.mxu0 %v1924
    %v4082 = vpop.f32.mrf.mxu0
    %v4083 = vadd.f32 %v4064, %v4082
    %v4084 = vpop.f32.mrf.mxu0
    %v4085 = vadd.f32 %v4066, %v4084
    %4086 = vdwg.mxu0
    %4087 = vmatpush.bf16.msra.mxu0 %v3673
    %4088 = vmatpush.bf16.msra.mxu0 %v3669
    %4089 = vmatpush.bf16.msra.mxu0 %v3665
    %4090 = vmatpush.bf16.msra.mxu0 %v3661
    %4091 = vmatpush.bf16.msra.mxu0 %v3657
    %4092 = vmatpush.bf16.msra.mxu0 %v3653
    %4093 = vmatpush.bf16.msra.mxu0 %v3649
    %4094 = vmatpush.bf16.msra.mxu0 %v3645
    %4095 = vmatmul.bf16.gmra.mxu0 %v1921
    %v4096 = vpop.f32.mrf.mxu0
    %v4097 = vadd.f32 %v4078, %v4096
    %v4098 = vpop.f32.mrf.mxu0
    %v4099 = vadd.f32 %v4080, %v4098
    %4100 = vmatmul.bf16.gmra.mxu0 %v1925
    %v4101 = vpop.f32.mrf.mxu0
    %v4102 = vadd.f32 %v4083, %v4101
    %v4103 = vpop.f32.mrf.mxu0
    %v4104 = vadd.f32 %v4085, %v4103
    %4105 = vdwg.mxu0
    %v4106 = vld [vmem:[#allocation14] sm:$0xff]
    %v4107 = vld [vmem:[#allocation14 + $0x8] sm:$0xff]
    %v4108 = vld [vmem:[#allocation14 + $0x10] sm:$0xff]
    %v4109 = vld [vmem:[#allocation14 + $0x18] sm:$0xff]
    %v4110 = vld [vmem:[#allocation14 + $0x20] sm:$0xff]
    %v4111 = vld [vmem:[#allocation14 + $0x28] sm:$0xff]
    %v4112 = vld [vmem:[#allocation14 + $0x30] sm:$0xff]
    %v4113 = vld [vmem:[#allocation14 + $0x38] sm:$0xff]
    %v4114 = vld [vmem:[#allocation14 + $0x40] sm:$0xff]
    %v4115 = vld [vmem:[#allocation14 + $0x48] sm:$0xff]
    %v4116 = vld [vmem:[#allocation14 + $0x50] sm:$0xff]
    %v4117 = vld [vmem:[#allocation14 + $0x58] sm:$0xff]
    %v4118 = vld [vmem:[#allocation14 + $0x60] sm:$0xff]
    %v4119 = vld [vmem:[#allocation14 + $0x68] sm:$0xff]
    %v4120 = vld [vmem:[#allocation14 + $0x70] sm:$0xff]
    %v4121 = vld [vmem:[#allocation14 + $0x78] sm:$0xff]
    %v4122 = vld [vmem:[#allocation14 + $0x80] sm:$0xff]
    %v4123 = vld [vmem:[#allocation14 + $0x88] sm:$0xff]
    %v4124 = vld [vmem:[#allocation14 + $0x90] sm:$0xff]
    %v4125 = vld [vmem:[#allocation14 + $0x98] sm:$0xff]
    %v4126 = vld [vmem:[#allocation14 + $0xa0] sm:$0xff]
    %v4127 = vld [vmem:[#allocation14 + $0xa8] sm:$0xff]
    %v4128 = vld [vmem:[#allocation14 + $0xb0] sm:$0xff]
    %v4129 = vld [vmem:[#allocation14 + $0xb8] sm:$0xff]
    %v4130 = vld [vmem:[#allocation14 + $0xc0] sm:$0xff]
    %v4131 = vld [vmem:[#allocation14 + $0xc8] sm:$0xff]
    %v4132 = vld [vmem:[#allocation14 + $0xd0] sm:$0xff]
    %v4133 = vld [vmem:[#allocation14 + $0xd8] sm:$0xff]
    %v4134 = vld [vmem:[#allocation14 + $0xe0] sm:$0xff]
    %v4135 = vld [vmem:[#allocation14 + $0xe8] sm:$0xff]
    %v4136 = vld [vmem:[#allocation14 + $0xf0] sm:$0xff]
    %v4137 = vld [vmem:[#allocation14 + $0xf8] sm:$0xff]
    %v4138 = vld [vmem:[#allocation14 + $0x100] sm:$0xff]
    %v4139 = vld [vmem:[#allocation14 + $0x108] sm:$0xff]
    %v4140 = vld [vmem:[#allocation14 + $0x110] sm:$0xff]
    %v4141 = vld [vmem:[#allocation14 + $0x118] sm:$0xff]
    %v4142 = vld [vmem:[#allocation14 + $0x120] sm:$0xff]
    %v4143 = vld [vmem:[#allocation14 + $0x128] sm:$0xff]
    %v4144 = vld [vmem:[#allocation14 + $0x130] sm:$0xff]
    %v4145 = vld [vmem:[#allocation14 + $0x138] sm:$0xff]
    %v4146 = vld [vmem:[#allocation14 + $0x140] sm:$0xff]
    %v4147 = vld [vmem:[#allocation14 + $0x148] sm:$0xff]
    %v4148 = vld [vmem:[#allocation14 + $0x150] sm:$0xff]
    %v4149 = vld [vmem:[#allocation14 + $0x158] sm:$0xff]
    %v4150 = vld [vmem:[#allocation14 + $0x160] sm:$0xff]
    %v4151 = vld [vmem:[#allocation14 + $0x168] sm:$0xff]
    %v4152 = vld [vmem:[#allocation14 + $0x170] sm:$0xff]
    %v4153 = vld [vmem:[#allocation14 + $0x178] sm:$0xff]
    %v4154 = vld [vmem:[#allocation14 + $0x180] sm:$0xff]
    %v4155 = vld [vmem:[#allocation14 + $0x188] sm:$0xff]
    %v4156 = vld [vmem:[#allocation14 + $0x190] sm:$0xff]
    %v4157 = vld [vmem:[#allocation14 + $0x198] sm:$0xff]
    %v4158 = vld [vmem:[#allocation14 + $0x1a0] sm:$0xff]
    %v4159 = vld [vmem:[#allocation14 + $0x1a8] sm:$0xff]
    %v4160 = vld [vmem:[#allocation14 + $0x1b0] sm:$0xff]
    %v4161 = vld [vmem:[#allocation14 + $0x1b8] sm:$0xff]
    %v4162 = vld [vmem:[#allocation14 + $0x1c0] sm:$0xff]
    %v4163 = vld [vmem:[#allocation14 + $0x1c8] sm:$0xff]
    %v4164 = vld [vmem:[#allocation14 + $0x1d0] sm:$0xff]
    %v4165 = vld [vmem:[#allocation14 + $0x1d8] sm:$0xff]
    %v4166 = vld [vmem:[#allocation14 + $0x1e0] sm:$0xff]
    %v4167 = vld [vmem:[#allocation14 + $0x1e8] sm:$0xff]
    %v4168 = vld [vmem:[#allocation14 + $0x1f0] sm:$0xff]
    %v4169 = vld [vmem:[#allocation14 + $0x1f8] sm:$0xff]
    %v4170 = vld [vmem:[#allocation14 + $0x200] sm:$0xff]
    %v4171 = vld [vmem:[#allocation14 + $0x208] sm:$0xff]
    %v4172 = vld [vmem:[#allocation14 + $0x210] sm:$0xff]
    %v4173 = vld [vmem:[#allocation14 + $0x218] sm:$0xff]
    %v4174 = vld [vmem:[#allocation14 + $0x220] sm:$0xff]
    %v4175 = vld [vmem:[#allocation14 + $0x228] sm:$0xff]
    %v4176 = vld [vmem:[#allocation14 + $0x230] sm:$0xff]
    %v4177 = vld [vmem:[#allocation14 + $0x238] sm:$0xff]
    %v4178 = vld [vmem:[#allocation14 + $0x240] sm:$0xff]
    %v4179 = vld [vmem:[#allocation14 + $0x248] sm:$0xff]
    %v4180 = vld [vmem:[#allocation14 + $0x250] sm:$0xff]
    %v4181 = vld [vmem:[#allocation14 + $0x258] sm:$0xff]
    %v4182 = vld [vmem:[#allocation14 + $0x260] sm:$0xff]
    %v4183 = vld [vmem:[#allocation14 + $0x268] sm:$0xff]
    %v4184 = vld [vmem:[#allocation14 + $0x270] sm:$0xff]
    %v4185 = vld [vmem:[#allocation14 + $0x278] sm:$0xff]
    %v4186 = vld [vmem:[#allocation14 + $0x280] sm:$0xff]
    %v4187 = vld [vmem:[#allocation14 + $0x288] sm:$0xff]
    %v4188 = vld [vmem:[#allocation14 + $0x290] sm:$0xff]
    %v4189 = vld [vmem:[#allocation14 + $0x298] sm:$0xff]
    %v4190 = vld [vmem:[#allocation14 + $0x2a0] sm:$0xff]
    %v4191 = vld [vmem:[#allocation14 + $0x2a8] sm:$0xff]
    %v4192 = vld [vmem:[#allocation14 + $0x2b0] sm:$0xff]
    %v4193 = vld [vmem:[#allocation14 + $0x2b8] sm:$0xff]
    %v4194 = vld [vmem:[#allocation14 + $0x2c0] sm:$0xff]
    %v4195 = vld [vmem:[#allocation14 + $0x2c8] sm:$0xff]
    %v4196 = vld [vmem:[#allocation14 + $0x2d0] sm:$0xff]
    %v4197 = vld [vmem:[#allocation14 + $0x2d8] sm:$0xff]
    %v4198 = vld [vmem:[#allocation14 + $0x2e0] sm:$0xff]
    %v4199 = vld [vmem:[#allocation14 + $0x2e8] sm:$0xff]
    %v4200 = vld [vmem:[#allocation14 + $0x2f0] sm:$0xff]
    %v4201 = vld [vmem:[#allocation14 + $0x2f8] sm:$0xff]
    %v4202 = vld [vmem:[#allocation14 + $0x300] sm:$0xff]
    %v4203 = vld [vmem:[#allocation14 + $0x308] sm:$0xff]
    %v4204 = vld [vmem:[#allocation14 + $0x310] sm:$0xff]
    %v4205 = vld [vmem:[#allocation14 + $0x318] sm:$0xff]
    %v4206 = vld [vmem:[#allocation14 + $0x320] sm:$0xff]
    %v4207 = vld [vmem:[#allocation14 + $0x328] sm:$0xff]
    %v4208 = vld [vmem:[#allocation14 + $0x330] sm:$0xff]
    %v4209 = vld [vmem:[#allocation14 + $0x338] sm:$0xff]
    %v4210 = vld [vmem:[#allocation14 + $0x340] sm:$0xff]
    %v4211 = vld [vmem:[#allocation14 + $0x348] sm:$0xff]
    %v4212 = vld [vmem:[#allocation14 + $0x350] sm:$0xff]
    %v4213 = vld [vmem:[#allocation14 + $0x358] sm:$0xff]
    %v4214 = vld [vmem:[#allocation14 + $0x360] sm:$0xff]
    %v4215 = vld [vmem:[#allocation14 + $0x368] sm:$0xff]
    %v4216 = vld [vmem:[#allocation14 + $0x370] sm:$0xff]
    %v4217 = vld [vmem:[#allocation14 + $0x378] sm:$0xff]
    %v4218 = vld [vmem:[#allocation14 + $0x380] sm:$0xff]
    %v4219 = vld [vmem:[#allocation14 + $0x388] sm:$0xff]
    %v4220 = vld [vmem:[#allocation14 + $0x390] sm:$0xff]
    %v4221 = vld [vmem:[#allocation14 + $0x398] sm:$0xff]
    %v4222 = vld [vmem:[#allocation14 + $0x3a0] sm:$0xff]
    %v4223 = vld [vmem:[#allocation14 + $0x3a8] sm:$0xff]
    %v4224 = vld [vmem:[#allocation14 + $0x3b0] sm:$0xff]
    %v4225 = vld [vmem:[#allocation14 + $0x3b8] sm:$0xff]
    %v4226 = vld [vmem:[#allocation14 + $0x3c0] sm:$0xff]
    %v4227 = vld [vmem:[#allocation14 + $0x3c8] sm:$0xff]
    %v4228 = vld [vmem:[#allocation14 + $0x3d0] sm:$0xff]
    %v4229 = vld [vmem:[#allocation14 + $0x3d8] sm:$0xff]
    %v4230 = vld [vmem:[#allocation14 + $0x3e0] sm:$0xff]
    %v4231 = vld [vmem:[#allocation14 + $0x3e8] sm:$0xff]
    %v4232 = vld [vmem:[#allocation14 + $0x3f0] sm:$0xff]
    %v4233 = vld [vmem:[#allocation14 + $0x3f8] sm:$0xff]
    %v4234 = vld [vmem:[#allocation16] sm:$0xf]
    %v4236 = vperm.slane %v4234, 0
    %v4237 = vperm.slane %v4234, 1
    %v4238 = vperm.slane %v4234, 2
    %v4239 = vperm.slane %v4234, 3
    %v4372 = vunpack.c.l.b16 %v4106
    %v4373 = vunpack.c.h.b16 %v4106
    %v4374 = vunpack.c.l.b16 %v4107
    %v4375 = vunpack.c.h.b16 %v4107
    %v4376 = vunpack.c.l.b16 %v4108
    %v4377 = vunpack.c.h.b16 %v4108
    %v4378 = vunpack.c.l.b16 %v4109
    %v4379 = vunpack.c.h.b16 %v4109
    %v4380 = vunpack.c.l.b16 %v4110
    %v4381 = vunpack.c.h.b16 %v4110
    %v4382 = vunpack.c.l.b16 %v4111
    %v4383 = vunpack.c.h.b16 %v4111
    %v4384 = vunpack.c.l.b16 %v4112
    %v4385 = vunpack.c.h.b16 %v4112
    %v4386 = vunpack.c.l.b16 %v4113
    %v4387 = vunpack.c.h.b16 %v4113
    %v4388 = vunpack.c.l.b16 %v4114
    %v4389 = vunpack.c.h.b16 %v4114
    %v4390 = vunpack.c.l.b16 %v4115
    %v4391 = vunpack.c.h.b16 %v4115
    %v4392 = vunpack.c.l.b16 %v4116
    %v4393 = vunpack.c.h.b16 %v4116
    %v4394 = vunpack.c.l.b16 %v4117
    %v4395 = vunpack.c.h.b16 %v4117
    %v4396 = vunpack.c.l.b16 %v4118
    %v4397 = vunpack.c.h.b16 %v4118
    %v4398 = vunpack.c.l.b16 %v4119
    %v4399 = vunpack.c.h.b16 %v4119
    %v4400 = vunpack.c.l.b16 %v4120
    %v4401 = vunpack.c.h.b16 %v4120
    %v4402 = vunpack.c.l.b16 %v4121
    %v4403 = vunpack.c.h.b16 %v4121
    %v4404 = vunpack.c.l.b16 %v4122
    %v4405 = vunpack.c.h.b16 %v4122
    %v4406 = vunpack.c.l.b16 %v4123
    %v4407 = vunpack.c.h.b16 %v4123
    %v4408 = vunpack.c.l.b16 %v4124
    %v4409 = vunpack.c.h.b16 %v4124
    %v4410 = vunpack.c.l.b16 %v4125
    %v4411 = vunpack.c.h.b16 %v4125
    %v4412 = vunpack.c.l.b16 %v4126
    %v4413 = vunpack.c.h.b16 %v4126
    %v4414 = vunpack.c.l.b16 %v4127
    %v4415 = vunpack.c.h.b16 %v4127
    %v4416 = vunpack.c.l.b16 %v4128
    %v4417 = vunpack.c.h.b16 %v4128
    %v4418 = vunpack.c.l.b16 %v4129
    %v4419 = vunpack.c.h.b16 %v4129
    %v4420 = vunpack.c.l.b16 %v4130
    %v4421 = vunpack.c.h.b16 %v4130
    %v4422 = vunpack.c.l.b16 %v4131
    %v4423 = vunpack.c.h.b16 %v4131
    %v4424 = vunpack.c.l.b16 %v4132
    %v4425 = vunpack.c.h.b16 %v4132
    %v4426 = vunpack.c.l.b16 %v4133
    %v4427 = vunpack.c.h.b16 %v4133
    %v4428 = vunpack.c.l.b16 %v4134
    %v4429 = vunpack.c.h.b16 %v4134
    %v4430 = vunpack.c.l.b16 %v4135
    %v4431 = vunpack.c.h.b16 %v4135
    %v4432 = vunpack.c.l.b16 %v4136
    %v4433 = vunpack.c.h.b16 %v4136
    %v4434 = vunpack.c.l.b16 %v4137
    %v4435 = vunpack.c.h.b16 %v4137
    %v4436 = vunpack.c.l.b16 %v4138
    %v4437 = vunpack.c.h.b16 %v4138
    %v4438 = vunpack.c.l.b16 %v4139
    %v4439 = vunpack.c.h.b16 %v4139
    %v4440 = vunpack.c.l.b16 %v4140
    %v4441 = vunpack.c.h.b16 %v4140
    %v4442 = vunpack.c.l.b16 %v4141
    %v4443 = vunpack.c.h.b16 %v4141
    %v4444 = vunpack.c.l.b16 %v4142
    %v4445 = vunpack.c.h.b16 %v4142
    %v4446 = vunpack.c.l.b16 %v4143
    %v4447 = vunpack.c.h.b16 %v4143
    %v4448 = vunpack.c.l.b16 %v4144
    %v4449 = vunpack.c.h.b16 %v4144
    %v4450 = vunpack.c.l.b16 %v4145
    %v4451 = vunpack.c.h.b16 %v4145
    %v4452 = vunpack.c.l.b16 %v4146
    %v4453 = vunpack.c.h.b16 %v4146
    %v4454 = vunpack.c.l.b16 %v4147
    %v4455 = vunpack.c.h.b16 %v4147
    %v4456 = vunpack.c.l.b16 %v4148
    %v4457 = vunpack.c.h.b16 %v4148
    %v4458 = vunpack.c.l.b16 %v4149
    %v4459 = vunpack.c.h.b16 %v4149
    %v4460 = vunpack.c.l.b16 %v4150
    %v4461 = vunpack.c.h.b16 %v4150
    %v4462 = vunpack.c.l.b16 %v4151
    %v4463 = vunpack.c.h.b16 %v4151
    %v4464 = vunpack.c.l.b16 %v4152
    %v4465 = vunpack.c.h.b16 %v4152
    %v4466 = vunpack.c.l.b16 %v4153
    %v4467 = vunpack.c.h.b16 %v4153
    %v4468 = vunpack.c.l.b16 %v4154
    %v4469 = vunpack.c.h.b16 %v4154
    %v4470 = vunpack.c.l.b16 %v4155
    %v4471 = vunpack.c.h.b16 %v4155
    %v4472 = vunpack.c.l.b16 %v4156
    %v4473 = vunpack.c.h.b16 %v4156
    %v4474 = vunpack.c.l.b16 %v4157
    %v4475 = vunpack.c.h.b16 %v4157
    %v4476 = vunpack.c.l.b16 %v4158
    %v4477 = vunpack.c.h.b16 %v4158
    %v4478 = vunpack.c.l.b16 %v4159
    %v4479 = vunpack.c.h.b16 %v4159
    %v4480 = vunpack.c.l.b16 %v4160
    %v4481 = vunpack.c.h.b16 %v4160
    %v4482 = vunpack.c.l.b16 %v4161
    %v4483 = vunpack.c.h.b16 %v4161
    %v4484 = vunpack.c.l.b16 %v4162
    %v4485 = vunpack.c.h.b16 %v4162
    %v4486 = vunpack.c.l.b16 %v4163
    %v4487 = vunpack.c.h.b16 %v4163
    %v4488 = vunpack.c.l.b16 %v4164
    %v4489 = vunpack.c.h.b16 %v4164
    %v4490 = vunpack.c.l.b16 %v4165
    %v4491 = vunpack.c.h.b16 %v4165
    %v4492 = vunpack.c.l.b16 %v4166
    %v4493 = vunpack.c.h.b16 %v4166
    %v4494 = vunpack.c.l.b16 %v4167
    %v4495 = vunpack.c.h.b16 %v4167
    %v4496 = vunpack.c.l.b16 %v4168
    %v4497 = vunpack.c.h.b16 %v4168
    %v4498 = vunpack.c.l.b16 %v4169
    %v4499 = vunpack.c.h.b16 %v4169
    %v4500 = vunpack.c.l.b16 %v4170
    %v4501 = vunpack.c.h.b16 %v4170
    %v4502 = vunpack.c.l.b16 %v4171
    %v4503 = vunpack.c.h.b16 %v4171
    %v4504 = vunpack.c.l.b16 %v4172
    %v4505 = vunpack.c.h.b16 %v4172
    %v4506 = vunpack.c.l.b16 %v4173
    %v4507 = vunpack.c.h.b16 %v4173
    %v4508 = vunpack.c.l.b16 %v4174
    %v4509 = vunpack.c.h.b16 %v4174
    %v4510 = vunpack.c.l.b16 %v4175
    %v4511 = vunpack.c.h.b16 %v4175
    %v4512 = vunpack.c.l.b16 %v4176
    %v4513 = vunpack.c.h.b16 %v4176
    %v4514 = vunpack.c.l.b16 %v4177
    %v4515 = vunpack.c.h.b16 %v4177
    %v4516 = vunpack.c.l.b16 %v4178
    %v4517 = vunpack.c.h.b16 %v4178
    %v4518 = vunpack.c.l.b16 %v4179
    %v4519 = vunpack.c.h.b16 %v4179
    %v4520 = vunpack.c.l.b16 %v4180
    %v4521 = vunpack.c.h.b16 %v4180
    %v4522 = vunpack.c.l.b16 %v4181
    %v4523 = vunpack.c.h.b16 %v4181
    %v4524 = vunpack.c.l.b16 %v4182
    %v4525 = vunpack.c.h.b16 %v4182
    %v4526 = vunpack.c.l.b16 %v4183
    %v4527 = vunpack.c.h.b16 %v4183
    %v4528 = vunpack.c.l.b16 %v4184
    %v4529 = vunpack.c.h.b16 %v4184
    %v4530 = vunpack.c.l.b16 %v4185
    %v4531 = vunpack.c.h.b16 %v4185
    %v4532 = vunpack.c.l.b16 %v4186
    %v4533 = vunpack.c.h.b16 %v4186
    %v4534 = vunpack.c.l.b16 %v4187
    %v4535 = vunpack.c.h.b16 %v4187
    %v4536 = vunpack.c.l.b16 %v4188
    %v4537 = vunpack.c.h.b16 %v4188
    %v4538 = vunpack.c.l.b16 %v4189
    %v4539 = vunpack.c.h.b16 %v4189
    %v4540 = vunpack.c.l.b16 %v4190
    %v4541 = vunpack.c.h.b16 %v4190
    %v4542 = vunpack.c.l.b16 %v4191
    %v4543 = vunpack.c.h.b16 %v4191
    %v4544 = vunpack.c.l.b16 %v4192
    %v4545 = vunpack.c.h.b16 %v4192
    %v4546 = vunpack.c.l.b16 %v4193
    %v4547 = vunpack.c.h.b16 %v4193
    %v4548 = vunpack.c.l.b16 %v4194
    %v4549 = vunpack.c.h.b16 %v4194
    %v4550 = vunpack.c.l.b16 %v4195
    %v4551 = vunpack.c.h.b16 %v4195
    %v4552 = vunpack.c.l.b16 %v4196
    %v4553 = vunpack.c.h.b16 %v4196
    %v4554 = vunpack.c.l.b16 %v4197
    %v4555 = vunpack.c.h.b16 %v4197
    %v4556 = vunpack.c.l.b16 %v4198
    %v4557 = vunpack.c.h.b16 %v4198
    %v4558 = vunpack.c.l.b16 %v4199
    %v4559 = vunpack.c.h.b16 %v4199
    %v4560 = vunpack.c.l.b16 %v4200
    %v4561 = vunpack.c.h.b16 %v4200
    %v4562 = vunpack.c.l.b16 %v4201
    %v4563 = vunpack.c.h.b16 %v4201
    %v4564 = vunpack.c.l.b16 %v4202
    %v4565 = vunpack.c.h.b16 %v4202
    %v4566 = vunpack.c.l.b16 %v4203
    %v4567 = vunpack.c.h.b16 %v4203
    %v4568 = vunpack.c.l.b16 %v4204
    %v4569 = vunpack.c.h.b16 %v4204
    %v4570 = vunpack.c.l.b16 %v4205
    %v4571 = vunpack.c.h.b16 %v4205
    %v4572 = vunpack.c.l.b16 %v4206
    %v4573 = vunpack.c.h.b16 %v4206
    %v4574 = vunpack.c.l.b16 %v4207
    %v4575 = vunpack.c.h.b16 %v4207
    %v4576 = vunpack.c.l.b16 %v4208
    %v4577 = vunpack.c.h.b16 %v4208
    %v4578 = vunpack.c.l.b16 %v4209
    %v4579 = vunpack.c.h.b16 %v4209
    %v4580 = vunpack.c.l.b16 %v4210
    %v4581 = vunpack.c.h.b16 %v4210
    %v4582 = vunpack.c.l.b16 %v4211
    %v4583 = vunpack.c.h.b16 %v4211
    %v4584 = vunpack.c.l.b16 %v4212
    %v4585 = vunpack.c.h.b16 %v4212
    %v4586 = vunpack.c.l.b16 %v4213
    %v4587 = vunpack.c.h.b16 %v4213
    %v4588 = vunpack.c.l.b16 %v4214
    %v4589 = vunpack.c.h.b16 %v4214
    %v4590 = vunpack.c.l.b16 %v4215
    %v4591 = vunpack.c.h.b16 %v4215
    %v4592 = vunpack.c.l.b16 %v4216
    %v4593 = vunpack.c.h.b16 %v4216
    %v4594 = vunpack.c.l.b16 %v4217
    %v4595 = vunpack.c.h.b16 %v4217
    %v4596 = vunpack.c.l.b16 %v4218
    %v4597 = vunpack.c.h.b16 %v4218
    %v4598 = vunpack.c.l.b16 %v4219
    %v4599 = vunpack.c.h.b16 %v4219
    %v4600 = vunpack.c.l.b16 %v4220
    %v4601 = vunpack.c.h.b16 %v4220
    %v4602 = vunpack.c.l.b16 %v4221
    %v4603 = vunpack.c.h.b16 %v4221
    %v4604 = vunpack.c.l.b16 %v4222
    %v4605 = vunpack.c.h.b16 %v4222
    %v4606 = vunpack.c.l.b16 %v4223
    %v4607 = vunpack.c.h.b16 %v4223
    %v4608 = vunpack.c.l.b16 %v4224
    %v4609 = vunpack.c.h.b16 %v4224
    %v4610 = vunpack.c.l.b16 %v4225
    %v4611 = vunpack.c.h.b16 %v4225
    %v4612 = vunpack.c.l.b16 %v4226
    %v4613 = vunpack.c.h.b16 %v4226
    %v4614 = vunpack.c.l.b16 %v4227
    %v4615 = vunpack.c.h.b16 %v4227
    %v4616 = vunpack.c.l.b16 %v4228
    %v4617 = vunpack.c.h.b16 %v4228
    %v4618 = vunpack.c.l.b16 %v4229
    %v4619 = vunpack.c.h.b16 %v4229
    %v4620 = vunpack.c.l.b16 %v4230
    %v4621 = vunpack.c.h.b16 %v4230
    %v4622 = vunpack.c.l.b16 %v4231
    %v4623 = vunpack.c.h.b16 %v4231
    %v4624 = vunpack.c.l.b16 %v4232
    %v4625 = vunpack.c.h.b16 %v4232
    %v4626 = vunpack.c.l.b16 %v4233
    %v4627 = vunpack.c.h.b16 %v4233
    %v4628 = vpack.c.b16 %v4376, %v4372
    %v4629 = vpack.c.b16 %v4377, %v4373
    %v4630 = vpack.c.b16 %v4378, %v4374
    %v4631 = vpack.c.b16 %v4379, %v4375
    %v4632 = vpack.c.b16 %v4384, %v4380
    %v4633 = vpack.c.b16 %v4385, %v4381
    %v4634 = vpack.c.b16 %v4386, %v4382
    %v4635 = vpack.c.b16 %v4387, %v4383
    %v4636 = vpack.c.b16 %v4392, %v4388
    %v4637 = vpack.c.b16 %v4393, %v4389
    %v4638 = vpack.c.b16 %v4394, %v4390
    %v4639 = vpack.c.b16 %v4395, %v4391
    %v4640 = vpack.c.b16 %v4400, %v4396
    %v4641 = vpack.c.b16 %v4401, %v4397
    %v4642 = vpack.c.b16 %v4402, %v4398
    %v4643 = vpack.c.b16 %v4403, %v4399
    %v4644 = vpack.c.b16 %v4408, %v4404
    %v4645 = vpack.c.b16 %v4409, %v4405
    %v4646 = vpack.c.b16 %v4410, %v4406
    %v4647 = vpack.c.b16 %v4411, %v4407
    %v4648 = vpack.c.b16 %v4416, %v4412
    %v4649 = vpack.c.b16 %v4417, %v4413
    %v4650 = vpack.c.b16 %v4418, %v4414
    %v4651 = vpack.c.b16 %v4419, %v4415
    %v4652 = vpack.c.b16 %v4424, %v4420
    %v4653 = vpack.c.b16 %v4425, %v4421
    %v4654 = vpack.c.b16 %v4426, %v4422
    %v4655 = vpack.c.b16 %v4427, %v4423
    %v4656 = vpack.c.b16 %v4432, %v4428
    %v4657 = vpack.c.b16 %v4433, %v4429
    %v4658 = vpack.c.b16 %v4434, %v4430
    %v4659 = vpack.c.b16 %v4435, %v4431
    %v4660 = vpack.c.b16 %v4440, %v4436
    %v4661 = vpack.c.b16 %v4441, %v4437
    %v4662 = vpack.c.b16 %v4442, %v4438
    %v4663 = vpack.c.b16 %v4443, %v4439
    %v4664 = vpack.c.b16 %v4448, %v4444
    %v4665 = vpack.c.b16 %v4449, %v4445
    %v4666 = vpack.c.b16 %v4450, %v4446
    %v4667 = vpack.c.b16 %v4451, %v4447
    %v4668 = vpack.c.b16 %v4456, %v4452
    %v4669 = vpack.c.b16 %v4457, %v4453
    %v4670 = vpack.c.b16 %v4458, %v4454
    %v4671 = vpack.c.b16 %v4459, %v4455
    %v4672 = vpack.c.b16 %v4464, %v4460
    %v4673 = vpack.c.b16 %v4465, %v4461
    %v4674 = vpack.c.b16 %v4466, %v4462
    %v4675 = vpack.c.b16 %v4467, %v4463
    %v4676 = vpack.c.b16 %v4472, %v4468
    %v4677 = vpack.c.b16 %v4473, %v4469
    %v4678 = vpack.c.b16 %v4474, %v4470
    %v4679 = vpack.c.b16 %v4475, %v4471
    %v4680 = vpack.c.b16 %v4480, %v4476
    %v4681 = vpack.c.b16 %v4481, %v4477
    %v4682 = vpack.c.b16 %v4482, %v4478
    %v4683 = vpack.c.b16 %v4483, %v4479
    %v4684 = vpack.c.b16 %v4488, %v4484
    %v4685 = vpack.c.b16 %v4489, %v4485
    %v4686 = vpack.c.b16 %v4490, %v4486
    %v4687 = vpack.c.b16 %v4491, %v4487
    %v4688 = vpack.c.b16 %v4496, %v4492
    %v4689 = vpack.c.b16 %v4497, %v4493
    %v4690 = vpack.c.b16 %v4498, %v4494
    %v4691 = vpack.c.b16 %v4499, %v4495
    %v4692 = vpack.c.b16 %v4504, %v4500
    %v4693 = vpack.c.b16 %v4505, %v4501
    %v4694 = vpack.c.b16 %v4506, %v4502
    %v4695 = vpack.c.b16 %v4507, %v4503
    %v4696 = vpack.c.b16 %v4512, %v4508
    %v4697 = vpack.c.b16 %v4513, %v4509
    %v4698 = vpack.c.b16 %v4514, %v4510
    %v4699 = vpack.c.b16 %v4515, %v4511
    %v4700 = vpack.c.b16 %v4520, %v4516
    %v4701 = vpack.c.b16 %v4521, %v4517
    %v4702 = vpack.c.b16 %v4522, %v4518
    %v4703 = vpack.c.b16 %v4523, %v4519
    %v4704 = vpack.c.b16 %v4528, %v4524
    %v4705 = vpack.c.b16 %v4529, %v4525
    %v4706 = vpack.c.b16 %v4530, %v4526
    %v4707 = vpack.c.b16 %v4531, %v4527
    %v4708 = vpack.c.b16 %v4536, %v4532
    %v4709 = vpack.c.b16 %v4537, %v4533
    %v4710 = vpack.c.b16 %v4538, %v4534
    %v4711 = vpack.c.b16 %v4539, %v4535
    %v4712 = vpack.c.b16 %v4544, %v4540
    %v4713 = vpack.c.b16 %v4545, %v4541
    %v4714 = vpack.c.b16 %v4546, %v4542
    %v4715 = vpack.c.b16 %v4547, %v4543
    %v4716 = vpack.c.b16 %v4552, %v4548
    %v4717 = vpack.c.b16 %v4553, %v4549
    %v4718 = vpack.c.b16 %v4554, %v4550
    %v4719 = vpack.c.b16 %v4555, %v4551
    %v4720 = vpack.c.b16 %v4560, %v4556
    %v4721 = vpack.c.b16 %v4561, %v4557
    %v4722 = vpack.c.b16 %v4562, %v4558
    %v4723 = vpack.c.b16 %v4563, %v4559
    %v4724 = vpack.c.b16 %v4568, %v4564
    %v4725 = vpack.c.b16 %v4569, %v4565
    %v4726 = vpack.c.b16 %v4570, %v4566
    %v4727 = vpack.c.b16 %v4571, %v4567
    %v4728 = vpack.c.b16 %v4576, %v4572
    %v4729 = vpack.c.b16 %v4577, %v4573
    %v4730 = vpack.c.b16 %v4578, %v4574
    %v4731 = vpack.c.b16 %v4579, %v4575
    %v4732 = vpack.c.b16 %v4584, %v4580
    %v4733 = vpack.c.b16 %v4585, %v4581
    %v4734 = vpack.c.b16 %v4586, %v4582
    %v4735 = vpack.c.b16 %v4587, %v4583
    %v4736 = vpack.c.b16 %v4592, %v4588
    %v4737 = vpack.c.b16 %v4593, %v4589
    %v4738 = vpack.c.b16 %v4594, %v4590
    %v4739 = vpack.c.b16 %v4595, %v4591
    %v4740 = vpack.c.b16 %v4600, %v4596
    %v4741 = vpack.c.b16 %v4601, %v4597
    %v4742 = vpack.c.b16 %v4602, %v4598
    %v4743 = vpack.c.b16 %v4603, %v4599
    %v4744 = vpack.c.b16 %v4608, %v4604
    %v4745 = vpack.c.b16 %v4609, %v4605
    %v4746 = vpack.c.b16 %v4610, %v4606
    %v4747 = vpack.c.b16 %v4611, %v4607
    %v4748 = vpack.c.b16 %v4616, %v4612
    %v4749 = vpack.c.b16 %v4617, %v4613
    %v4750 = vpack.c.b16 %v4618, %v4614
    %v4751 = vpack.c.b16 %v4619, %v4615
    %v4752 = vpack.c.b16 %v4624, %v4620
    %v4753 = vpack.c.b16 %v4625, %v4621
    %v4754 = vpack.c.b16 %v4626, %v4622
    %v4755 = vpack.c.b16 %v4627, %v4623
    %4884 = vmatpush.bf16.msra.mxu0 %v4656
    %4885 = vmatpush.bf16.msra.mxu0 %v4652
    %4886 = vmatpush.bf16.msra.mxu0 %v4648
    %4887 = vmatpush.bf16.msra.mxu0 %v4644
    %4888 = vmatpush.bf16.msra.mxu0 %v4640
    %4889 = vmatpush.bf16.msra.mxu0 %v4636
    %4890 = vmatpush.bf16.msra.mxu0 %v4632
    %4891 = vmatpush.bf16.msra.mxu0 %v4628
    %4892 = vmatmul.bf16.gmra.mxu0 %v1918
    %v4893 = vpop.f32.mrf.mxu0
    %v4894 = vadd.f32 %v4236, %v4893
    %v4895 = vpop.f32.mrf.mxu0
    %v4896 = vadd.f32 %v4236, %v4895
    %4897 = vmatmul.bf16.gmra.mxu0 %v1922
    %v4898 = vpop.f32.mrf.mxu0
    %v4899 = vadd.f32 %v4236, %v4898
    %v4900 = vpop.f32.mrf.mxu0
    %v4901 = vadd.f32 %v4236, %v4900
    %4902 = vdwg.mxu0
    %4903 = vmatpush.bf16.msra.mxu0 %v4688
    %4904 = vmatpush.bf16.msra.mxu0 %v4684
    %4905 = vmatpush.bf16.msra.mxu0 %v4680
    %4906 = vmatpush.bf16.msra.mxu0 %v4676
    %4907 = vmatpush.bf16.msra.mxu0 %v4672
    %4908 = vmatpush.bf16.msra.mxu0 %v4668
    %4909 = vmatpush.bf16.msra.mxu0 %v4664
    %4910 = vmatpush.bf16.msra.mxu0 %v4660
    %4911 = vmatmul.bf16.gmra.mxu0 %v1919
    %v4912 = vpop.f32.mrf.mxu0
    %v4913 = vadd.f32 %v4894, %v4912
    %v4914 = vpop.f32.mrf.mxu0
    %v4915 = vadd.f32 %v4896, %v4914
    %4916 = vmatmul.bf16.gmra.mxu0 %v1923
    %v4917 = vpop.f32.mrf.mxu0
    %v4918 = vadd.f32 %v4899, %v4917
    %v4919 = vpop.f32.mrf.mxu0
    %v4920 = vadd.f32 %v4901, %v4919
    %4921 = vdwg.mxu0
    %4922 = vmatpush.bf16.msra.mxu0 %v4720
    %4923 = vmatpush.bf16.msra.mxu0 %v4716
    %4924 = vmatpush.bf16.msra.mxu0 %v4712
    %4925 = vmatpush.bf16.msra.mxu0 %v4708
    %4926 = vmatpush.bf16.msra.mxu0 %v4704
    %4927 = vmatpush.bf16.msra.mxu0 %v4700
    %4928 = vmatpush.bf16.msra.mxu0 %v4696
    %4929 = vmatpush.bf16.msra.mxu0 %v4692
    %4930 = vmatmul.bf16.gmra.mxu0 %v1920
    %v4931 = vpop.f32.mrf.mxu0
    %v4932 = vadd.f32 %v4913, %v4931
    %v4933 = vpop.f32.mrf.mxu0
    %v4934 = vadd.f32 %v4915, %v4933
    %4935 = vmatmul.bf16.gmra.mxu0 %v1924
    %v4936 = vpop.f32.mrf.mxu0
    %v4937 = vadd.f32 %v4918, %v4936
    %v4938 = vpop.f32.mrf.mxu0
    %v4939 = vadd.f32 %v4920, %v4938
    %4940 = vdwg.mxu0
    %4941 = vmatpush.bf16.msra.mxu0 %v4752
    %4942 = vmatpush.bf16.msra.mxu0 %v4748
    %4943 = vmatpush.bf16.msra.mxu0 %v4744
    %4944 = vmatpush.bf16.msra.mxu0 %v4740
    %4945 = vmatpush.bf16.msra.mxu0 %v4736
    %4946 = vmatpush.bf16.msra.mxu0 %v4732
    %4947 = vmatpush.bf16.msra.mxu0 %v4728
    %4948 = vmatpush.bf16.msra.mxu0 %v4724
    %4949 = vmatmul.bf16.gmra.mxu0 %v1921
    %v4950 = vpop.f32.mrf.mxu0
    %v4951 = vadd.f32 %v4932, %v4950
    %v4952 = vpop.f32.mrf.mxu0
    %v4953 = vadd.f32 %v4934, %v4952
    %4954 = vmatmul.bf16.gmra.mxu0 %v1925
    %v4955 = vpop.f32.mrf.mxu0
    %v4956 = vadd.f32 %v4937, %v4955
    %v4957 = vpop.f32.mrf.mxu0
    %v4958 = vadd.f32 %v4939, %v4957
    %4959 = vdwg.mxu0
    %4960 = vmatpush.bf16.msra.mxu0 %v4657
    %4961 = vmatpush.bf16.msra.mxu0 %v4653
    %4962 = vmatpush.bf16.msra.mxu0 %v4649
    %4963 = vmatpush.bf16.msra.mxu0 %v4645
    %4964 = vmatpush.bf16.msra.mxu0 %v4641
    %4965 = vmatpush.bf16.msra.mxu0 %v4637
    %4966 = vmatpush.bf16.msra.mxu0 %v4633
    %4967 = vmatpush.bf16.msra.mxu0 %v4629
    %4968 = vmatmul.bf16.gmra.mxu0 %v1918
    %v4969 = vpop.f32.mrf.mxu0
    %v4970 = vadd.f32 %v4237, %v4969
    %v4971 = vpop.f32.mrf.mxu0
    %v4972 = vadd.f32 %v4237, %v4971
    %4973 = vmatmul.bf16.gmra.mxu0 %v1922
    %v4974 = vpop.f32.mrf.mxu0
    %v4975 = vadd.f32 %v4237, %v4974
    %v4976 = vpop.f32.mrf.mxu0
    %v4977 = vadd.f32 %v4237, %v4976
    %4978 = vdwg.mxu0
    %4979 = vmatpush.bf16.msra.mxu0 %v4689
    %4980 = vmatpush.bf16.msra.mxu0 %v4685
    %4981 = vmatpush.bf16.msra.mxu0 %v4681
    %4982 = vmatpush.bf16.msra.mxu0 %v4677
    %4983 = vmatpush.bf16.msra.mxu0 %v4673
    %4984 = vmatpush.bf16.msra.mxu0 %v4669
    %4985 = vmatpush.bf16.msra.mxu0 %v4665
    %4986 = vmatpush.bf16.msra.mxu0 %v4661
    %4987 = vmatmul.bf16.gmra.mxu0 %v1919
    %v4988 = vpop.f32.mrf.mxu0
    %v4989 = vadd.f32 %v4970, %v4988
    %v4990 = vpop.f32.mrf.mxu0
    %v4991 = vadd.f32 %v4972, %v4990
    %4992 = vmatmul.bf16.gmra.mxu0 %v1923
    %v4993 = vpop.f32.mrf.mxu0
    %v4994 = vadd.f32 %v4975, %v4993
    %v4995 = vpop.f32.mrf.mxu0
    %v4996 = vadd.f32 %v4977, %v4995
    %4997 = vdwg.mxu0
    %4998 = vmatpush.bf16.msra.mxu0 %v4721
    %4999 = vmatpush.bf16.msra.mxu0 %v4717
    %5000 = vmatpush.bf16.msra.mxu0 %v4713
    %5001 = vmatpush.bf16.msra.mxu0 %v4709
    %5002 = vmatpush.bf16.msra.mxu0 %v4705
    %5003 = vmatpush.bf16.msra.mxu0 %v4701
    %5004 = vmatpush.bf16.msra.mxu0 %v4697
    %5005 = vmatpush.bf16.msra.mxu0 %v4693
    %5006 = vmatmul.bf16.gmra.mxu0 %v1920
    %v5007 = vpop.f32.mrf.mxu0
    %v5008 = vadd.f32 %v4989, %v5007
    %v5009 = vpop.f32.mrf.mxu0
    %v5010 = vadd.f32 %v4991, %v5009
    %5011 = vmatmul.bf16.gmra.mxu0 %v1924
    %v5012 = vpop.f32.mrf.mxu0
    %v5013 = vadd.f32 %v4994, %v5012
    %v5014 = vpop.f32.mrf.mxu0
    %v5015 = vadd.f32 %v4996, %v5014
    %5016 = vdwg.mxu0
    %5017 = vmatpush.bf16.msra.mxu0 %v4753
    %5018 = vmatpush.bf16.msra.mxu0 %v4749
    %5019 = vmatpush.bf16.msra.mxu0 %v4745
    %5020 = vmatpush.bf16.msra.mxu0 %v4741
    %5021 = vmatpush.bf16.msra.mxu0 %v4737
    %5022 = vmatpush.bf16.msra.mxu0 %v4733
    %5023 = vmatpush.bf16.msra.mxu0 %v4729
    %5024 = vmatpush.bf16.msra.mxu0 %v4725
    %5025 = vmatmul.bf16.gmra.mxu0 %v1921
    %v5026 = vpop.f32.mrf.mxu0
    %v5027 = vadd.f32 %v5008, %v5026
    %v5028 = vpop.f32.mrf.mxu0
    %v5029 = vadd.f32 %v5010, %v5028
    %5030 = vmatmul.bf16.gmra.mxu0 %v1925
    %v5031 = vpop.f32.mrf.mxu0
    %v5032 = vadd.f32 %v5013, %v5031
    %v5033 = vpop.f32.mrf.mxu0
    %v5034 = vadd.f32 %v5015, %v5033
    %5035 = vdwg.mxu0
    %5036 = vmatpush.bf16.msra.mxu0 %v4658
    %5037 = vmatpush.bf16.msra.mxu0 %v4654
    %5038 = vmatpush.bf16.msra.mxu0 %v4650
    %5039 = vmatpush.bf16.msra.mxu0 %v4646
    %5040 = vmatpush.bf16.msra.mxu0 %v4642
    %5041 = vmatpush.bf16.msra.mxu0 %v4638
    %5042 = vmatpush.bf16.msra.mxu0 %v4634
    %5043 = vmatpush.bf16.msra.mxu0 %v4630
    %5044 = vmatmul.bf16.gmra.mxu0 %v1918
    %v5045 = vpop.f32.mrf.mxu0
    %v5046 = vadd.f32 %v4238, %v5045
    %v5047 = vpop.f32.mrf.mxu0
    %v5048 = vadd.f32 %v4238, %v5047
    %5049 = vmatmul.bf16.gmra.mxu0 %v1922
    %v5050 = vpop.f32.mrf.mxu0
    %v5051 = vadd.f32 %v4238, %v5050
    %v5052 = vpop.f32.mrf.mxu0
    %v5053 = vadd.f32 %v4238, %v5052
    %5054 = vdwg.mxu0
    %5055 = vmatpush.bf16.msra.mxu0 %v4690
    %5056 = vmatpush.bf16.msra.mxu0 %v4686
    %5057 = vmatpush.bf16.msra.mxu0 %v4682
    %5058 = vmatpush.bf16.msra.mxu0 %v4678
    %5059 = vmatpush.bf16.msra.mxu0 %v4674
    %5060 = vmatpush.bf16.msra.mxu0 %v4670
    %5061 = vmatpush.bf16.msra.mxu0 %v4666
    %5062 = vmatpush.bf16.msra.mxu0 %v4662
    %5063 = vmatmul.bf16.gmra.mxu0 %v1919
    %v5064 = vpop.f32.mrf.mxu0
    %v5065 = vadd.f32 %v5046, %v5064
    %v5066 = vpop.f32.mrf.mxu0
    %v5067 = vadd.f32 %v5048, %v5066
    %5068 = vmatmul.bf16.gmra.mxu0 %v1923
    %v5069 = vpop.f32.mrf.mxu0
    %v5070 = vadd.f32 %v5051, %v5069
    %v5071 = vpop.f32.mrf.mxu0
    %v5072 = vadd.f32 %v5053, %v5071
    %5073 = vdwg.mxu0
    %5074 = vmatpush.bf16.msra.mxu0 %v4722
    %5075 = vmatpush.bf16.msra.mxu0 %v4718
    %5076 = vmatpush.bf16.msra.mxu0 %v4714
    %5077 = vmatpush.bf16.msra.mxu0 %v4710
    %5078 = vmatpush.bf16.msra.mxu0 %v4706
    %5079 = vmatpush.bf16.msra.mxu0 %v4702
    %5080 = vmatpush.bf16.msra.mxu0 %v4698
    %5081 = vmatpush.bf16.msra.mxu0 %v4694
    %5082 = vmatmul.bf16.gmra.mxu0 %v1920
    %v5083 = vpop.f32.mrf.mxu0
    %v5084 = vadd.f32 %v5065, %v5083
    %v5085 = vpop.f32.mrf.mxu0
    %v5086 = vadd.f32 %v5067, %v5085
    %5087 = vmatmul.bf16.gmra.mxu0 %v1924
    %v5088 = vpop.f32.mrf.mxu0
    %v5089 = vadd.f32 %v5070, %v5088
    %v5090 = vpop.f32.mrf.mxu0
    %v5091 = vadd.f32 %v5072, %v5090
    %5092 = vdwg.mxu0
    %5093 = vmatpush.bf16.msra.mxu0 %v4754
    %5094 = vmatpush.bf16.msra.mxu0 %v4750
    %5095 = vmatpush.bf16.msra.mxu0 %v4746
    %5096 = vmatpush.bf16.msra.mxu0 %v4742
    %5097 = vmatpush.bf16.msra.mxu0 %v4738
    %5098 = vmatpush.bf16.msra.mxu0 %v4734
    %5099 = vmatpush.bf16.msra.mxu0 %v4730
    %5100 = vmatpush.bf16.msra.mxu0 %v4726
    %5101 = vmatmul.bf16.gmra.mxu0 %v1921
    %v5102 = vpop.f32.mrf.mxu0
    %v5103 = vadd.f32 %v5084, %v5102
    %v5104 = vpop.f32.mrf.mxu0
    %v5105 = vadd.f32 %v5086, %v5104
    %5106 = vmatmul.bf16.gmra.mxu0 %v1925
    %v5107 = vpop.f32.mrf.mxu0
    %v5108 = vadd.f32 %v5089, %v5107
    %v5109 = vpop.f32.mrf.mxu0
    %v5110 = vadd.f32 %v5091, %v5109
    %5111 = vdwg.mxu0
    %5112 = vmatpush.bf16.msra.mxu0 %v4659
    %5113 = vmatpush.bf16.msra.mxu0 %v4655
    %5114 = vmatpush.bf16.msra.mxu0 %v4651
    %5115 = vmatpush.bf16.msra.mxu0 %v4647
    %5116 = vmatpush.bf16.msra.mxu0 %v4643
    %5117 = vmatpush.bf16.msra.mxu0 %v4639
    %5118 = vmatpush.bf16.msra.mxu0 %v4635
    %5119 = vmatpush.bf16.msra.mxu0 %v4631
    %5120 = vmatmul.bf16.gmra.mxu0 %v1918
    %v5121 = vpop.f32.mrf.mxu0
    %v5122 = vadd.f32 %v4239, %v5121
    %v5123 = vpop.f32.mrf.mxu0
    %v5124 = vadd.f32 %v4239, %v5123
    %5125 = vmatmul.bf16.gmra.mxu0 %v1922
    %v5126 = vpop.f32.mrf.mxu0
    %v5127 = vadd.f32 %v4239, %v5126
    %v5128 = vpop.f32.mrf.mxu0
    %v5129 = vadd.f32 %v4239, %v5128
    %5130 = vdwg.mxu0
    %5131 = vmatpush.bf16.msra.mxu0 %v4691
    %5132 = vmatpush.bf16.msra.mxu0 %v4687
    %5133 = vmatpush.bf16.msra.mxu0 %v4683
    %5134 = vmatpush.bf16.msra.mxu0 %v4679
    %5135 = vmatpush.bf16.msra.mxu0 %v4675
    %5136 = vmatpush.bf16.msra.mxu0 %v4671
    %5137 = vmatpush.bf16.msra.mxu0 %v4667
    %5138 = vmatpush.bf16.msra.mxu0 %v4663
    %5139 = vmatmul.bf16.gmra.mxu0 %v1919
    %v5140 = vpop.f32.mrf.mxu0
    %v5141 = vadd.f32 %v5122, %v5140
    %v5142 = vpop.f32.mrf.mxu0
    %v5143 = vadd.f32 %v5124, %v5142
    %5144 = vmatmul.bf16.gmra.mxu0 %v1923
    %v5145 = vpop.f32.mrf.mxu0
    %v5146 = vadd.f32 %v5127, %v5145
    %v5147 = vpop.f32.mrf.mxu0
    %v5148 = vadd.f32 %v5129, %v5147
    %5149 = vdwg.mxu0
    %5150 = vmatpush.bf16.msra.mxu0 %v4723
    %5151 = vmatpush.bf16.msra.mxu0 %v4719
    %5152 = vmatpush.bf16.msra.mxu0 %v4715
    %5153 = vmatpush.bf16.msra.mxu0 %v4711
    %5154 = vmatpush.bf16.msra.mxu0 %v4707
    %5155 = vmatpush.bf16.msra.mxu0 %v4703
    %5156 = vmatpush.bf16.msra.mxu0 %v4699
    %5157 = vmatpush.bf16.msra.mxu0 %v4695
    %5158 = vmatmul.bf16.gmra.mxu0 %v1920
    %v5159 = vpop.f32.mrf.mxu0
    %v5160 = vadd.f32 %v5141, %v5159
    %v5161 = vpop.f32.mrf.mxu0
    %v5162 = vadd.f32 %v5143, %v5161
    %5163 = vmatmul.bf16.gmra.mxu0 %v1924
    %v5164 = vpop.f32.mrf.mxu0
    %v5165 = vadd.f32 %v5146, %v5164
    %v5166 = vpop.f32.mrf.mxu0
    %v5167 = vadd.f32 %v5148, %v5166
    %5168 = vdwg.mxu0
    %5169 = vmatpush.bf16.msra.mxu0 %v4755
    %5170 = vmatpush.bf16.msra.mxu0 %v4751
    %5171 = vmatpush.bf16.msra.mxu0 %v4747
    %5172 = vmatpush.bf16.msra.mxu0 %v4743
    %5173 = vmatpush.bf16.msra.mxu0 %v4739
    %5174 = vmatpush.bf16.msra.mxu0 %v4735
    %5175 = vmatpush.bf16.msra.mxu0 %v4731
    %5176 = vmatpush.bf16.msra.mxu0 %v4727
    %5177 = vmatmul.bf16.gmra.mxu0 %v1921
    %v5178 = vpop.f32.mrf.mxu0
    %v5179 = vadd.f32 %v5160, %v5178
    %v5180 = vpop.f32.mrf.mxu0
    %v5181 = vadd.f32 %v5162, %v5180
    %5182 = vmatmul.bf16.gmra.mxu0 %v1925
    %v5183 = vpop.f32.mrf.mxu0
    %v5184 = vadd.f32 %v5165, %v5183
    %v5185 = vpop.f32.mrf.mxu0
    %v5186 = vadd.f32 %v5167, %v5185
    %5187 = vdwg.mxu0
    %v5188 = vpack.c.bf16 %v3012, %v3008
    %v5189 = vpack.c.bf16 %v3013, %v3009
    %v5190 = vpack.c.bf16 %v3014, %v3010
    %v5191 = vpack.c.bf16 %v3015, %v3011
    %v5192 = vpack.c.bf16 %v3020, %v3016
    %v5193 = vpack.c.bf16 %v3021, %v3017
    %v5194 = vpack.c.bf16 %v3022, %v3018
    %v5195 = vpack.c.bf16 %v3023, %v3019
    %v5196 = vpack.c.bf16 %v3871, %v3869
    %v5197 = vpack.c.bf16 %v3947, %v3945
    %v5198 = vpack.c.bf16 %v4023, %v4021
    %v5199 = vpack.c.bf16 %v4099, %v4097
    %v5200 = vpack.c.bf16 %v3876, %v3874
    %v5201 = vpack.c.bf16 %v3952, %v3950
    %v5202 = vpack.c.bf16 %v4028, %v4026
    %v5203 = vpack.c.bf16 %v4104, %v4102
    %v5204 = vpack.c.bf16 %v4953, %v4951
    %v5205 = vpack.c.bf16 %v5029, %v5027
    %v5206 = vpack.c.bf16 %v5105, %v5103
    %v5207 = vpack.c.bf16 %v5181, %v5179
    %v5208 = vpack.c.bf16 %v4958, %v4956
    %v5209 = vpack.c.bf16 %v5034, %v5032
    %v5210 = vpack.c.bf16 %v5110, %v5108
    %v5211 = vpack.c.bf16 %v5186, %v5184
    %v5212 = vlaneseq
    %v5213 = vand.u32 %v5212, 127
    %vm5214 = vcmp.lt.s32.totalorder %v5213, 2
    %5215 = vmatpush.bf16.xpose.msra.mxu0 0
    %5216 = vmatpush.bf16.xpose.msra.mxu0 0
    %5217 = vmatpush.bf16.xpose.msra.mxu0 0
    %5218 = vmatpush.bf16.xpose.msra.mxu0 0
    %5219 = vmatpush.bf16.xpose.msra.mxu0 0
    %5220 = vmatpush.bf16.xpose.msra.mxu0 0
    %5221 = vmatpush.bf16.xpose.msra.mxu0 0
    %5222 = vmatpush.bf16.xpose.msra.mxu0 %v5196
    %5223 = vmatmul.bf16.gmra.mxu0 %v5192
    %v5224 = vpop.f32.mrf.mxu0
    %v5225 = vadd.f32 0.0, %v5224
    %v5226 = vpop.f32.mrf.mxu0
    %v5227 = vadd.f32 0.0, %v5226
    %5228 = vdwg.mxu0
    %5229 = vmatpush.bf16.xpose.msra.mxu0 0
    %5230 = vmatpush.bf16.xpose.msra.mxu0 0
    %5231 = vmatpush.bf16.xpose.msra.mxu0 0
    %5232 = vmatpush.bf16.xpose.msra.mxu0 0
    %5233 = vmatpush.bf16.xpose.msra.mxu0 0
    %5234 = vmatpush.bf16.xpose.msra.mxu0 0
    %5235 = vmatpush.bf16.xpose.msra.mxu0 0
    %5236 = vmatpush.bf16.xpose.msra.mxu0 %v5197
    %5237 = vmatmul.bf16.gmra.mxu0 %v5193
    %v5238 = vpop.f32.mrf.mxu0
    %v5239 = vadd.f32 %v5225, %v5238
    %v5240 = vpop.f32.mrf.mxu0
    %v5241 = vadd.f32 %v5227, %v5240
    %5242 = vdwg.mxu0
    %5243 = vmatpush.bf16.xpose.msra.mxu0 0
    %5244 = vmatpush.bf16.xpose.msra.mxu0 0
    %5245 = vmatpush.bf16.xpose.msra.mxu0 0
    %5246 = vmatpush.bf16.xpose.msra.mxu0 0
    %5247 = vmatpush.bf16.xpose.msra.mxu0 0
    %5248 = vmatpush.bf16.xpose.msra.mxu0 0
    %5249 = vmatpush.bf16.xpose.msra.mxu0 0
    %5250 = vmatpush.bf16.xpose.msra.mxu0 %v5198
    %5251 = vmatmul.bf16.gmra.mxu0 %v5194
    %v5252 = vpop.f32.mrf.mxu0
    %v5253 = vadd.f32 %v5239, %v5252
    %v5254 = vpop.f32.mrf.mxu0
    %v5255 = vadd.f32 %v5241, %v5254
    %5256 = vdwg.mxu0
    %5257 = vmatpush.bf16.xpose.msra.mxu0 0
    %5258 = vmatpush.bf16.xpose.msra.mxu0 0
    %5259 = vmatpush.bf16.xpose.msra.mxu0 0
    %5260 = vmatpush.bf16.xpose.msra.mxu0 0
    %5261 = vmatpush.bf16.xpose.msra.mxu0 0
    %5262 = vmatpush.bf16.xpose.msra.mxu0 0
    %5263 = vmatpush.bf16.xpose.msra.mxu0 0
    %5264 = vmatpush.bf16.xpose.msra.mxu0 %v5199
    %5265 = vmatmul.bf16.gmra.mxu0 %v5195
    %v5266 = vpop.f32.mrf.mxu0
    %v5267 = vadd.f32 %v5253, %v5266
    %v5268 = vpop.f32.mrf.mxu0
    %v5269 = vadd.f32 %v5255, %v5268
    %5270 = vdwg.mxu0
    %v5271 = vsel %vm5214, %v5267, -1e+30
    %v5272 = vsel %vm5214, %v5269, -1e+30
    %vm5273 = vcmask 130048
    %v5274 = vsel %vm5273, %v5271, -inf
    %5275 = vmax.xlane.f32.xlu0 %v5274
    %v5276 = vpop.xlane.xlu0 %5275
    %v5277 = vsel %vm5273, %v5272, -inf
    %5278 = vmax.xlane.f32.xlu0 %v5277
    %v5279 = vpop.xlane.xlu0 %5278
    %v5280 = vsub.f32 %v5271, %v5276
    %v5281 = vsub.f32 %v5272, %v5279
    %v5282 = vmul.f32 %v5280, 1.442695
    %v5283 = vpow.pop %v5282
    %v5284 = vmul.f32 %v5281, 1.442695
    %v5285 = vpow.pop %v5284
    %v5286 = vsel %vm5273, %v5283, 0.0
    %5287 = vadd.xlane.f32.xlu0 %v5286
    %v5288 = vpop.xlane.xlu0 %5287
    %v5289 = vsel %vm5273, %v5285, 0.0
    %5290 = vadd.xlane.f32.xlu0 %v5289
    %v5291 = vpop.xlane.xlu0 %5290
    %v5292 = vrcp.pop %v5288
    %v5293 = vrcp.pop %v5291
    %v5294 = vmul.f32 %v5283, %v5292
    %v5295 = vmul.f32 %v5285, %v5293
    %v5296 = vpack.c.bf16 %v5295, %v5294
    %v5298 = vsel %vm5273, %v5296, 0
    %5300 = vmatpush.bf16.msra.mxu0 0
    %5301 = vmatpush.bf16.msra.mxu0 0
    %5302 = vmatpush.bf16.msra.mxu0 0
    %5303 = vmatpush.bf16.msra.mxu0 0
    %5304 = vmatpush.bf16.msra.mxu0 0
    %5305 = vmatpush.bf16.msra.mxu0 0
    %5306 = vmatpush.bf16.msra.mxu0 0
    %5307 = vmatpush.bf16.msra.mxu0 %v5204
    %5308 = vmatmul.bf16.gmra.mxu0 %v5298
    %v5309 = vpop.f32.mrf.mxu0
    %v5310 = vadd.f32 0.0, %v5309
    %v5311 = vpop.f32.mrf.mxu0
    %v5312 = vadd.f32 0.0, %v5311
    %5313 = vdwg.mxu0
    %5314 = vmatpush.bf16.msra.mxu0 0
    %5315 = vmatpush.bf16.msra.mxu0 0
    %5316 = vmatpush.bf16.msra.mxu0 0
    %5317 = vmatpush.bf16.msra.mxu0 0
    %5318 = vmatpush.bf16.msra.mxu0 0
    %5319 = vmatpush.bf16.msra.mxu0 0
    %5320 = vmatpush.bf16.msra.mxu0 0
    %5321 = vmatpush.bf16.msra.mxu0 %v5205
    %5322 = vmatmul.bf16.gmra.mxu0 %v5298
    %v5323 = vpop.f32.mrf.mxu0
    %v5324 = vadd.f32 0.0, %v5323
    %v5325 = vpop.f32.mrf.mxu0
    %v5326 = vadd.f32 0.0, %v5325
    %5327 = vdwg.mxu0
    %5328 = vmatpush.bf16.msra.mxu0 0
    %5329 = vmatpush.bf16.msra.mxu0 0
    %5330 = vmatpush.bf16.msra.mxu0 0
    %5331 = vmatpush.bf16.msra.mxu0 0
    %5332 = vmatpush.bf16.msra.mxu0 0
    %5333 = vmatpush.bf16.msra.mxu0 0
    %5334 = vmatpush.bf16.msra.mxu0 0
    %5335 = vmatpush.bf16.msra.mxu0 %v5206
    %5336 = vmatmul.bf16.gmra.mxu0 %v5298
    %v5337 = vpop.f32.mrf.mxu0
    %v5338 = vadd.f32 0.0, %v5337
    %v5339 = vpop.f32.mrf.mxu0
    %v5340 = vadd.f32 0.0, %v5339
    %5341 = vdwg.mxu0
    %5342 = vmatpush.bf16.msra.mxu0 0
    %5343 = vmatpush.bf16.msra.mxu0 0
    %5344 = vmatpush.bf16.msra.mxu0 0
    %5345 = vmatpush.bf16.msra.mxu0 0
    %5346 = vmatpush.bf16.msra.mxu0 0
    %5347 = vmatpush.bf16.msra.mxu0 0
    %5348 = vmatpush.bf16.msra.mxu0 0
    %5349 = vmatpush.bf16.msra.mxu0 %v5207
    %5350 = vmatmul.bf16.gmra.mxu0 %v5298
    %v5351 = vpop.f32.mrf.mxu0
    %v5352 = vadd.f32 0.0, %v5351
    %v5353 = vpop.f32.mrf.mxu0
    %v5354 = vadd.f32 0.0, %v5353
    %5355 = vdwg.mxu0
    %5356 = vmatpush.bf16.xpose.msra.mxu0 0
    %5357 = vmatpush.bf16.xpose.msra.mxu0 0
    %5358 = vmatpush.bf16.xpose.msra.mxu0 0
    %5359 = vmatpush.bf16.xpose.msra.mxu0 0
    %5360 = vmatpush.bf16.xpose.msra.mxu0 0
    %5361 = vmatpush.bf16.xpose.msra.mxu0 0
    %5362 = vmatpush.bf16.xpose.msra.mxu0 0
    %5363 = vmatpush.bf16.xpose.msra.mxu0 %v5200
    %5364 = vmatmul.bf16.gmra.mxu0 %v5188
    %v5365 = vpop.f32.mrf.mxu0
    %v5366 = vadd.f32 0.0, %v5365
    %v5367 = vpop.f32.mrf.mxu0
    %v5368 = vadd.f32 0.0, %v5367
    %5369 = vdwg.mxu0
    %5370 = vmatpush.bf16.xpose.msra.mxu0 0
    %5371 = vmatpush.bf16.xpose.msra.mxu0 0
    %5372 = vmatpush.bf16.xpose.msra.mxu0 0
    %5373 = vmatpush.bf16.xpose.msra.mxu0 0
    %5374 = vmatpush.bf16.xpose.msra.mxu0 0
    %5375 = vmatpush.bf16.xpose.msra.mxu0 0
    %5376 = vmatpush.bf16.xpose.msra.mxu0 0
    %5377 = vmatpush.bf16.xpose.msra.mxu0 %v5201
    %5378 = vmatmul.bf16.gmra.mxu0 %v5189
    %v5379 = vpop.f32.mrf.mxu0
    %v5380 = vadd.f32 %v5366, %v5379
    %v5381 = vpop.f32.mrf.mxu0
    %v5382 = vadd.f32 %v5368, %v5381
    %5383 = vdwg.mxu0
    %5384 = vmatpush.bf16.xpose.msra.mxu0 0
    %5385 = vmatpush.bf16.xpose.msra.mxu0 0
    %5386 = vmatpush.bf16.xpose.msra.mxu0 0
    %5387 = vmatpush.bf16.xpose.msra.mxu0 0
    %5388 = vmatpush.bf16.xpose.msra.mxu0 0
    %5389 = vmatpush.bf16.xpose.msra.mxu0 0
    %5390 = vmatpush.bf16.xpose.msra.mxu0 0
    %5391 = vmatpush.bf16.xpose.msra.mxu0 %v5202
    %5392 = vmatmul.bf16.gmra.mxu0 %v5190
    %v5393 = vpop.f32.mrf.mxu0
    %v5394 = vadd.f32 %v5380, %v5393
    %v5395 = vpop.f32.mrf.mxu0
    %v5396 = vadd.f32 %v5382, %v5395
    %5397 = vdwg.mxu0
    %5398 = vmatpush.bf16.xpose.msra.mxu0 0
    %5399 = vmatpush.bf16.xpose.msra.mxu0 0
    %5400 = vmatpush.bf16.xpose.msra.mxu0 0
    %5401 = vmatpush.bf16.xpose.msra.mxu0 0
    %5402 = vmatpush.bf16.xpose.msra.mxu0 0
    %5403 = vmatpush.bf16.xpose.msra.mxu0 0
    %5404 = vmatpush.bf16.xpose.msra.mxu0 0
    %5405 = vmatpush.bf16.xpose.msra.mxu0 %v5203
    %5406 = vmatmul.bf16.gmra.mxu0 %v5191
    %v5407 = vpop.f32.mrf.mxu0
    %v5408 = vadd.f32 %v5394, %v5407
    %v5409 = vpop.f32.mrf.mxu0
    %v5410 = vadd.f32 %v5396, %v5409
    %5411 = vdwg.mxu0
    %v5412 = vsel %vm5214, %v5408, -1e+30
    %v5413 = vsel %vm5214, %v5410, -1e+30
    %v5414 = vsel %vm5273, %v5412, -inf
    %5415 = vmax.xlane.f32.xlu0 %v5414
    %v5416 = vpop.xlane.xlu0 %5415
    %v5417 = vsel %vm5273, %v5413, -inf
    %5418 = vmax.xlane.f32.xlu0 %v5417
    %v5419 = vpop.xlane.xlu0 %5418
    %v5420 = vsub.f32 %v5412, %v5416
    %v5421 = vsub.f32 %v5413, %v5419
    %v5422 = vmul.f32 %v5420, 1.442695
    %v5423 = vpow.pop %v5422
    %v5424 = vmul.f32 %v5421, 1.442695
    %v5425 = vpow.pop %v5424
    %v5426 = vsel %vm5273, %v5423, 0.0
    %5427 = vadd.xlane.f32.xlu0 %v5426
    %v5428 = vpop.xlane.xlu0 %5427
    %v5429 = vsel %vm5273, %v5425, 0.0
    %5430 = vadd.xlane.f32.xlu0 %v5429
    %v5431 = vpop.xlane.xlu0 %5430
    %v5432 = vrcp.pop %v5428
    %v5433 = vrcp.pop %v5431
    %v5434 = vmul.f32 %v5423, %v5432
    %v5435 = vmul.f32 %v5425, %v5433
    %v5436 = vpack.c.bf16 %v5435, %v5434
    %v5438 = vsel %vm5273, %v5436, 0
    %5440 = vmatpush.bf16.msra.mxu0 0
    %5441 = vmatpush.bf16.msra.mxu0 0
    %5442 = vmatpush.bf16.msra.mxu0 0
    %5443 = vmatpush.bf16.msra.mxu0 0
    %5444 = vmatpush.bf16.msra.mxu0 0
    %5445 = vmatpush.bf16.msra.mxu0 0
    %5446 = vmatpush.bf16.msra.mxu0 0
    %5447 = vmatpush.bf16.msra.mxu0 %v5208
    %5448 = vmatmul.bf16.gmra.mxu0 %v5438
    %v5449 = vpop.f32.mrf.mxu0
    %v5450 = vadd.f32 0.0, %v5449
    %v5451 = vpop.f32.mrf.mxu0
    %v5452 = vadd.f32 0.0, %v5451
    %5453 = vdwg.mxu0
    %5454 = vmatpush.bf16.msra.mxu0 0
    %5455 = vmatpush.bf16.msra.mxu0 0
    %5456 = vmatpush.bf16.msra.mxu0 0
    %5457 = vmatpush.bf16.msra.mxu0 0
    %5458 = vmatpush.bf16.msra.mxu0 0
    %5459 = vmatpush.bf16.msra.mxu0 0
    %5460 = vmatpush.bf16.msra.mxu0 0
    %5461 = vmatpush.bf16.msra.mxu0 %v5209
    %5462 = vmatmul.bf16.gmra.mxu0 %v5438
    %v5463 = vpop.f32.mrf.mxu0
    %v5464 = vadd.f32 0.0, %v5463
    %v5465 = vpop.f32.mrf.mxu0
    %v5466 = vadd.f32 0.0, %v5465
    %5467 = vdwg.mxu0
    %5468 = vmatpush.bf16.msra.mxu0 0
    %5469 = vmatpush.bf16.msra.mxu0 0
    %5470 = vmatpush.bf16.msra.mxu0 0
    %5471 = vmatpush.bf16.msra.mxu0 0
    %5472 = vmatpush.bf16.msra.mxu0 0
    %5473 = vmatpush.bf16.msra.mxu0 0
    %5474 = vmatpush.bf16.msra.mxu0 0
    %5475 = vmatpush.bf16.msra.mxu0 %v5210
    %5476 = vmatmul.bf16.gmra.mxu0 %v5438
    %v5477 = vpop.f32.mrf.mxu0
    %v5478 = vadd.f32 0.0, %v5477
    %v5479 = vpop.f32.mrf.mxu0
    %v5480 = vadd.f32 0.0, %v5479
    %5481 = vdwg.mxu0
    %5482 = vmatpush.bf16.msra.mxu0 0
    %5483 = vmatpush.bf16.msra.mxu0 0
    %5484 = vmatpush.bf16.msra.mxu0 0
    %5485 = vmatpush.bf16.msra.mxu0 0
    %5486 = vmatpush.bf16.msra.mxu0 0
    %5487 = vmatpush.bf16.msra.mxu0 0
    %5488 = vmatpush.bf16.msra.mxu0 0
    %5489 = vmatpush.bf16.msra.mxu0 %v5211
    %5490 = vmatmul.bf16.gmra.mxu0 %v5438
    %v5491 = vpop.f32.mrf.mxu0
    %v5492 = vadd.f32 0.0, %v5491
    %v5493 = vpop.f32.mrf.mxu0
    %v5494 = vadd.f32 0.0, %v5493
    %5495 = vdwg.mxu0
    %v5496 = vpack.c.bf16 %v5312, %v5310
    %v5497 = vpack.c.bf16 %v5326, %v5324
    %v5498 = vpack.c.bf16 %v5340, %v5338
    %v5499 = vpack.c.bf16 %v5354, %v5352
    %v5500 = vld [vmem:[#allocation17] sm:$0xff]
    %v5501 = vld [vmem:[#allocation17 + $0x8] sm:$0xff]
    %v5502 = vld [vmem:[#allocation17 + $0x10] sm:$0xff]
    %v5503 = vld [vmem:[#allocation17 + $0x18] sm:$0xff]
    %v5504 = vld [vmem:[#allocation17 + $0x20] sm:$0xff]
    %v5505 = vld [vmem:[#allocation17 + $0x28] sm:$0xff]
    %v5506 = vld [vmem:[#allocation17 + $0x30] sm:$0xff]
    %v5507 = vld [vmem:[#allocation17 + $0x38] sm:$0xff]
    %v5508 = vld [vmem:[#allocation17 + $0x40] sm:$0xff]
    %v5509 = vld [vmem:[#allocation17 + $0x48] sm:$0xff]
    %v5510 = vld [vmem:[#allocation17 + $0x50] sm:$0xff]
    %v5511 = vld [vmem:[#allocation17 + $0x58] sm:$0xff]
    %v5512 = vld [vmem:[#allocation17 + $0x60] sm:$0xff]
    %v5513 = vld [vmem:[#allocation17 + $0x68] sm:$0xff]
    %v5514 = vld [vmem:[#allocation17 + $0x70] sm:$0xff]
    %v5515 = vld [vmem:[#allocation17 + $0x78] sm:$0xff]
    %v5516 = vld [vmem:[#allocation17 + $0x80] sm:$0xff]
    %v5517 = vld [vmem:[#allocation17 + $0x88] sm:$0xff]
    %v5518 = vld [vmem:[#allocation17 + $0x90] sm:$0xff]
    %v5519 = vld [vmem:[#allocation17 + $0x98] sm:$0xff]
    %v5520 = vld [vmem:[#allocation17 + $0xa0] sm:$0xff]
    %v5521 = vld [vmem:[#allocation17 + $0xa8] sm:$0xff]
    %v5522 = vld [vmem:[#allocation17 + $0xb0] sm:$0xff]
    %v5523 = vld [vmem:[#allocation17 + $0xb8] sm:$0xff]
    %v5524 = vld [vmem:[#allocation17 + $0xc0] sm:$0xff]
    %v5525 = vld [vmem:[#allocation17 + $0xc8] sm:$0xff]
    %v5526 = vld [vmem:[#allocation17 + $0xd0] sm:$0xff]
    %v5527 = vld [vmem:[#allocation17 + $0xd8] sm:$0xff]
    %v5528 = vld [vmem:[#allocation17 + $0xe0] sm:$0xff]
    %v5529 = vld [vmem:[#allocation17 + $0xe8] sm:$0xff]
    %v5530 = vld [vmem:[#allocation17 + $0xf0] sm:$0xff]
    %v5531 = vld [vmem:[#allocation17 + $0xf8] sm:$0xff]
    %v5532 = vld [vmem:[#allocation17 + $0x100] sm:$0xff]
    %v5533 = vld [vmem:[#allocation17 + $0x108] sm:$0xff]
    %v5534 = vld [vmem:[#allocation17 + $0x110] sm:$0xff]
    %v5535 = vld [vmem:[#allocation17 + $0x118] sm:$0xff]
    %v5536 = vld [vmem:[#allocation17 + $0x120] sm:$0xff]
    %v5537 = vld [vmem:[#allocation17 + $0x128] sm:$0xff]
    %v5538 = vld [vmem:[#allocation17 + $0x130] sm:$0xff]
    %v5539 = vld [vmem:[#allocation17 + $0x138] sm:$0xff]
    %v5540 = vld [vmem:[#allocation17 + $0x140] sm:$0xff]
    %v5541 = vld [vmem:[#allocation17 + $0x148] sm:$0xff]
    %v5542 = vld [vmem:[#allocation17 + $0x150] sm:$0xff]
    %v5543 = vld [vmem:[#allocation17 + $0x158] sm:$0xff]
    %v5544 = vld [vmem:[#allocation17 + $0x160] sm:$0xff]
    %v5545 = vld [vmem:[#allocation17 + $0x168] sm:$0xff]
    %v5546 = vld [vmem:[#allocation17 + $0x170] sm:$0xff]
    %v5547 = vld [vmem:[#allocation17 + $0x178] sm:$0xff]
    %v5548 = vld [vmem:[#allocation17 + $0x180] sm:$0xff]
    %v5549 = vld [vmem:[#allocation17 + $0x188] sm:$0xff]
    %v5550 = vld [vmem:[#allocation17 + $0x190] sm:$0xff]
    %v5551 = vld [vmem:[#allocation17 + $0x198] sm:$0xff]
    %v5552 = vld [vmem:[#allocation17 + $0x1a0] sm:$0xff]
    %v5553 = vld [vmem:[#allocation17 + $0x1a8] sm:$0xff]
    %v5554 = vld [vmem:[#allocation17 + $0x1b0] sm:$0xff]
    %v5555 = vld [vmem:[#allocation17 + $0x1b8] sm:$0xff]
    %v5556 = vld [vmem:[#allocation17 + $0x1c0] sm:$0xff]
    %v5557 = vld [vmem:[#allocation17 + $0x1c8] sm:$0xff]
    %v5558 = vld [vmem:[#allocation17 + $0x1d0] sm:$0xff]
    %v5559 = vld [vmem:[#allocation17 + $0x1d8] sm:$0xff]
    %v5560 = vld [vmem:[#allocation17 + $0x1e0] sm:$0xff]
    %v5561 = vld [vmem:[#allocation17 + $0x1e8] sm:$0xff]
    %v5562 = vld [vmem:[#allocation17 + $0x1f0] sm:$0xff]
    %v5563 = vld [vmem:[#allocation17 + $0x1f8] sm:$0xff]
    %v5564 = vld [vmem:[#allocation17 + $0x200] sm:$0xff]
    %v5565 = vld [vmem:[#allocation17 + $0x208] sm:$0xff]
    %v5566 = vld [vmem:[#allocation17 + $0x210] sm:$0xff]
    %v5567 = vld [vmem:[#allocation17 + $0x218] sm:$0xff]
    %v5568 = vld [vmem:[#allocation17 + $0x220] sm:$0xff]
    %v5569 = vld [vmem:[#allocation17 + $0x228] sm:$0xff]
    %v5570 = vld [vmem:[#allocation17 + $0x230] sm:$0xff]
    %v5571 = vld [vmem:[#allocation17 + $0x238] sm:$0xff]
    %v5572 = vld [vmem:[#allocation17 + $0x240] sm:$0xff]
    %v5573 = vld [vmem:[#allocation17 + $0x248] sm:$0xff]
    %v5574 = vld [vmem:[#allocation17 + $0x250] sm:$0xff]
    %v5575 = vld [vmem:[#allocation17 + $0x258] sm:$0xff]
    %v5576 = vld [vmem:[#allocation17 + $0x260] sm:$0xff]
    %v5577 = vld [vmem:[#allocation17 + $0x268] sm:$0xff]
    %v5578 = vld [vmem:[#allocation17 + $0x270] sm:$0xff]
    %v5579 = vld [vmem:[#allocation17 + $0x278] sm:$0xff]
    %v5580 = vld [vmem:[#allocation17 + $0x280] sm:$0xff]
    %v5581 = vld [vmem:[#allocation17 + $0x288] sm:$0xff]
    %v5582 = vld [vmem:[#allocation17 + $0x290] sm:$0xff]
    %v5583 = vld [vmem:[#allocation17 + $0x298] sm:$0xff]
    %v5584 = vld [vmem:[#allocation17 + $0x2a0] sm:$0xff]
    %v5585 = vld [vmem:[#allocation17 + $0x2a8] sm:$0xff]
    %v5586 = vld [vmem:[#allocation17 + $0x2b0] sm:$0xff]
    %v5587 = vld [vmem:[#allocation17 + $0x2b8] sm:$0xff]
    %v5588 = vld [vmem:[#allocation17 + $0x2c0] sm:$0xff]
    %v5589 = vld [vmem:[#allocation17 + $0x2c8] sm:$0xff]
    %v5590 = vld [vmem:[#allocation17 + $0x2d0] sm:$0xff]
    %v5591 = vld [vmem:[#allocation17 + $0x2d8] sm:$0xff]
    %v5592 = vld [vmem:[#allocation17 + $0x2e0] sm:$0xff]
    %v5593 = vld [vmem:[#allocation17 + $0x2e8] sm:$0xff]
    %v5594 = vld [vmem:[#allocation17 + $0x2f0] sm:$0xff]
    %v5595 = vld [vmem:[#allocation17 + $0x2f8] sm:$0xff]
    %v5596 = vld [vmem:[#allocation17 + $0x300] sm:$0xff]
    %v5597 = vld [vmem:[#allocation17 + $0x308] sm:$0xff]
    %v5598 = vld [vmem:[#allocation17 + $0x310] sm:$0xff]
    %v5599 = vld [vmem:[#allocation17 + $0x318] sm:$0xff]
    %v5600 = vld [vmem:[#allocation17 + $0x320] sm:$0xff]
    %v5601 = vld [vmem:[#allocation17 + $0x328] sm:$0xff]
    %v5602 = vld [vmem:[#allocation17 + $0x330] sm:$0xff]
    %v5603 = vld [vmem:[#allocation17 + $0x338] sm:$0xff]
    %v5604 = vld [vmem:[#allocation17 + $0x340] sm:$0xff]
    %v5605 = vld [vmem:[#allocation17 + $0x348] sm:$0xff]
    %v5606 = vld [vmem:[#allocation17 + $0x350] sm:$0xff]
    %v5607 = vld [vmem:[#allocation17 + $0x358] sm:$0xff]
    %v5608 = vld [vmem:[#allocation17 + $0x360] sm:$0xff]
    %v5609 = vld [vmem:[#allocation17 + $0x368] sm:$0xff]
    %v5610 = vld [vmem:[#allocation17 + $0x370] sm:$0xff]
    %v5611 = vld [vmem:[#allocation17 + $0x378] sm:$0xff]
    %v5612 = vld [vmem:[#allocation17 + $0x380] sm:$0xff]
    %v5613 = vld [vmem:[#allocation17 + $0x388] sm:$0xff]
    %v5614 = vld [vmem:[#allocation17 + $0x390] sm:$0xff]
    %v5615 = vld [vmem:[#allocation17 + $0x398] sm:$0xff]
    %v5616 = vld [vmem:[#allocation17 + $0x3a0] sm:$0xff]
    %v5617 = vld [vmem:[#allocation17 + $0x3a8] sm:$0xff]
    %v5618 = vld [vmem:[#allocation17 + $0x3b0] sm:$0xff]
    %v5619 = vld [vmem:[#allocation17 + $0x3b8] sm:$0xff]
    %v5620 = vld [vmem:[#allocation17 + $0x3c0] sm:$0xff]
    %v5621 = vld [vmem:[#allocation17 + $0x3c8] sm:$0xff]
    %v5622 = vld [vmem:[#allocation17 + $0x3d0] sm:$0xff]
    %v5623 = vld [vmem:[#allocation17 + $0x3d8] sm:$0xff]
    %v5624 = vld [vmem:[#allocation17 + $0x3e0] sm:$0xff]
    %v5625 = vld [vmem:[#allocation17 + $0x3e8] sm:$0xff]
    %v5626 = vld [vmem:[#allocation17 + $0x3f0] sm:$0xff]
    %v5627 = vld [vmem:[#allocation17 + $0x3f8] sm:$0xff]
    %v5628 = vld [vmem:[#allocation17 + $0x400] sm:$0xff]
    %v5629 = vld [vmem:[#allocation17 + $0x408] sm:$0xff]
    %v5630 = vld [vmem:[#allocation17 + $0x410] sm:$0xff]
    %v5631 = vld [vmem:[#allocation17 + $0x418] sm:$0xff]
    %v5632 = vld [vmem:[#allocation17 + $0x420] sm:$0xff]
    %v5633 = vld [vmem:[#allocation17 + $0x428] sm:$0xff]
    %v5634 = vld [vmem:[#allocation17 + $0x430] sm:$0xff]
    %v5635 = vld [vmem:[#allocation17 + $0x438] sm:$0xff]
    %v5636 = vld [vmem:[#allocation17 + $0x440] sm:$0xff]
    %v5637 = vld [vmem:[#allocation17 + $0x448] sm:$0xff]
    %v5638 = vld [vmem:[#allocation17 + $0x450] sm:$0xff]
    %v5639 = vld [vmem:[#allocation17 + $0x458] sm:$0xff]
    %v5640 = vld [vmem:[#allocation17 + $0x460] sm:$0xff]
    %v5641 = vld [vmem:[#allocation17 + $0x468] sm:$0xff]
    %v5642 = vld [vmem:[#allocation17 + $0x470] sm:$0xff]
    %v5643 = vld [vmem:[#allocation17 + $0x478] sm:$0xff]
    %v5644 = vld [vmem:[#allocation17 + $0x480] sm:$0xff]
    %v5645 = vld [vmem:[#allocation17 + $0x488] sm:$0xff]
    %v5646 = vld [vmem:[#allocation17 + $0x490] sm:$0xff]
    %v5647 = vld [vmem:[#allocation17 + $0x498] sm:$0xff]
    %v5648 = vld [vmem:[#allocation17 + $0x4a0] sm:$0xff]
    %v5649 = vld [vmem:[#allocation17 + $0x4a8] sm:$0xff]
    %v5650 = vld [vmem:[#allocation17 + $0x4b0] sm:$0xff]
    %v5651 = vld [vmem:[#allocation17 + $0x4b8] sm:$0xff]
    %v5652 = vld [vmem:[#allocation17 + $0x4c0] sm:$0xff]
    %v5653 = vld [vmem:[#allocation17 + $0x4c8] sm:$0xff]
    %v5654 = vld [vmem:[#allocation17 + $0x4d0] sm:$0xff]
    %v5655 = vld [vmem:[#allocation17 + $0x4d8] sm:$0xff]
    %v5656 = vld [vmem:[#allocation17 + $0x4e0] sm:$0xff]
    %v5657 = vld [vmem:[#allocation17 + $0x4e8] sm:$0xff]
    %v5658 = vld [vmem:[#allocation17 + $0x4f0] sm:$0xff]
    %v5659 = vld [vmem:[#allocation17 + $0x4f8] sm:$0xff]
    %v5660 = vld [vmem:[#allocation17 + $0x500] sm:$0xff]
    %v5661 = vld [vmem:[#allocation17 + $0x508] sm:$0xff]
    %v5662 = vld [vmem:[#allocation17 + $0x510] sm:$0xff]
    %v5663 = vld [vmem:[#allocation17 + $0x518] sm:$0xff]
    %v5664 = vld [vmem:[#allocation17 + $0x520] sm:$0xff]
    %v5665 = vld [vmem:[#allocation17 + $0x528] sm:$0xff]
    %v5666 = vld [vmem:[#allocation17 + $0x530] sm:$0xff]
    %v5667 = vld [vmem:[#allocation17 + $0x538] sm:$0xff]
    %v5668 = vld [vmem:[#allocation17 + $0x540] sm:$0xff]
    %v5669 = vld [vmem:[#allocation17 + $0x548] sm:$0xff]
    %v5670 = vld [vmem:[#allocation17 + $0x550] sm:$0xff]
    %v5671 = vld [vmem:[#allocation17 + $0x558] sm:$0xff]
    %v5672 = vld [vmem:[#allocation17 + $0x560] sm:$0xff]
    %v5673 = vld [vmem:[#allocation17 + $0x568] sm:$0xff]
    %v5674 = vld [vmem:[#allocation17 + $0x570] sm:$0xff]
    %v5675 = vld [vmem:[#allocation17 + $0x578] sm:$0xff]
    %v5676 = vld [vmem:[#allocation17 + $0x580] sm:$0xff]
    %v5677 = vld [vmem:[#allocation17 + $0x588] sm:$0xff]
    %v5678 = vld [vmem:[#allocation17 + $0x590] sm:$0xff]
    %v5679 = vld [vmem:[#allocation17 + $0x598] sm:$0xff]
    %v5680 = vld [vmem:[#allocation17 + $0x5a0] sm:$0xff]
    %v5681 = vld [vmem:[#allocation17 + $0x5a8] sm:$0xff]
    %v5682 = vld [vmem:[#allocation17 + $0x5b0] sm:$0xff]
    %v5683 = vld [vmem:[#allocation17 + $0x5b8] sm:$0xff]
    %v5684 = vld [vmem:[#allocation17 + $0x5c0] sm:$0xff]
    %v5685 = vld [vmem:[#allocation17 + $0x5c8] sm:$0xff]
    %v5686 = vld [vmem:[#allocation17 + $0x5d0] sm:$0xff]
    %v5687 = vld [vmem:[#allocation17 + $0x5d8] sm:$0xff]
    %v5688 = vld [vmem:[#allocation17 + $0x5e0] sm:$0xff]
    %v5689 = vld [vmem:[#allocation17 + $0x5e8] sm:$0xff]
    %v5690 = vld [vmem:[#allocation17 + $0x5f0] sm:$0xff]
    %v5691 = vld [vmem:[#allocation17 + $0x5f8] sm:$0xff]
    %v5692 = vld [vmem:[#allocation17 + $0x600] sm:$0xff]
    %v5693 = vld [vmem:[#allocation17 + $0x608] sm:$0xff]
    %v5694 = vld [vmem:[#allocation17 + $0x610] sm:$0xff]
    %v5695 = vld [vmem:[#allocation17 + $0x618] sm:$0xff]
    %v5696 = vld [vmem:[#allocation17 + $0x620] sm:$0xff]
    %v5697 = vld [vmem:[#allocation17 + $0x628] sm:$0xff]
    %v5698 = vld [vmem:[#allocation17 + $0x630] sm:$0xff]
    %v5699 = vld [vmem:[#allocation17 + $0x638] sm:$0xff]
    %v5700 = vld [vmem:[#allocation17 + $0x640] sm:$0xff]
    %v5701 = vld [vmem:[#allocation17 + $0x648] sm:$0xff]
    %v5702 = vld [vmem:[#allocation17 + $0x650] sm:$0xff]
    %v5703 = vld [vmem:[#allocation17 + $0x658] sm:$0xff]
    %v5704 = vld [vmem:[#allocation17 + $0x660] sm:$0xff]
    %v5705 = vld [vmem:[#allocation17 + $0x668] sm:$0xff]
    %v5706 = vld [vmem:[#allocation17 + $0x670] sm:$0xff]
    %v5707 = vld [vmem:[#allocation17 + $0x678] sm:$0xff]
    %v5708 = vld [vmem:[#allocation17 + $0x680] sm:$0xff]
    %v5709 = vld [vmem:[#allocation17 + $0x688] sm:$0xff]
    %v5710 = vld [vmem:[#allocation17 + $0x690] sm:$0xff]
    %v5711 = vld [vmem:[#allocation17 + $0x698] sm:$0xff]
    %v5712 = vld [vmem:[#allocation17 + $0x6a0] sm:$0xff]
    %v5713 = vld [vmem:[#allocation17 + $0x6a8] sm:$0xff]
    %v5714 = vld [vmem:[#allocation17 + $0x6b0] sm:$0xff]
    %v5715 = vld [vmem:[#allocation17 + $0x6b8] sm:$0xff]
    %v5716 = vld [vmem:[#allocation17 + $0x6c0] sm:$0xff]
    %v5717 = vld [vmem:[#allocation17 + $0x6c8] sm:$0xff]
    %v5718 = vld [vmem:[#allocation17 + $0x6d0] sm:$0xff]
    %v5719 = vld [vmem:[#allocation17 + $0x6d8] sm:$0xff]
    %v5720 = vld [vmem:[#allocation17 + $0x6e0] sm:$0xff]
    %v5721 = vld [vmem:[#allocation17 + $0x6e8] sm:$0xff]
    %v5722 = vld [vmem:[#allocation17 + $0x6f0] sm:$0xff]
    %v5723 = vld [vmem:[#allocation17 + $0x6f8] sm:$0xff]
    %v5724 = vld [vmem:[#allocation17 + $0x700] sm:$0xff]
    %v5725 = vld [vmem:[#allocation17 + $0x708] sm:$0xff]
    %v5726 = vld [vmem:[#allocation17 + $0x710] sm:$0xff]
    %v5727 = vld [vmem:[#allocation17 + $0x718] sm:$0xff]
    %v5728 = vld [vmem:[#allocation17 + $0x720] sm:$0xff]
    %v5729 = vld [vmem:[#allocation17 + $0x728] sm:$0xff]
    %v5730 = vld [vmem:[#allocation17 + $0x730] sm:$0xff]
    %v5731 = vld [vmem:[#allocation17 + $0x738] sm:$0xff]
    %v5732 = vld [vmem:[#allocation17 + $0x740] sm:$0xff]
    %v5733 = vld [vmem:[#allocation17 + $0x748] sm:$0xff]
    %v5734 = vld [vmem:[#allocation17 + $0x750] sm:$0xff]
    %v5735 = vld [vmem:[#allocation17 + $0x758] sm:$0xff]
    %v5736 = vld [vmem:[#allocation17 + $0x760] sm:$0xff]
    %v5737 = vld [vmem:[#allocation17 + $0x768] sm:$0xff]
    %v5738 = vld [vmem:[#allocation17 + $0x770] sm:$0xff]
    %v5739 = vld [vmem:[#allocation17 + $0x778] sm:$0xff]
    %v5740 = vld [vmem:[#allocation17 + $0x780] sm:$0xff]
    %v5741 = vld [vmem:[#allocation17 + $0x788] sm:$0xff]
    %v5742 = vld [vmem:[#allocation17 + $0x790] sm:$0xff]
    %v5743 = vld [vmem:[#allocation17 + $0x798] sm:$0xff]
    %v5744 = vld [vmem:[#allocation17 + $0x7a0] sm:$0xff]
    %v5745 = vld [vmem:[#allocation17 + $0x7a8] sm:$0xff]
    %v5746 = vld [vmem:[#allocation17 + $0x7b0] sm:$0xff]
    %v5747 = vld [vmem:[#allocation17 + $0x7b8] sm:$0xff]
    %v5748 = vld [vmem:[#allocation17 + $0x7c0] sm:$0xff]
    %v5749 = vld [vmem:[#allocation17 + $0x7c8] sm:$0xff]
    %v5750 = vld [vmem:[#allocation17 + $0x7d0] sm:$0xff]
    %v5751 = vld [vmem:[#allocation17 + $0x7d8] sm:$0xff]
    %v5752 = vld [vmem:[#allocation17 + $0x7e0] sm:$0xff]
    %v5753 = vld [vmem:[#allocation17 + $0x7e8] sm:$0xff]
    %v5754 = vld [vmem:[#allocation17 + $0x7f0] sm:$0xff]
    %v5755 = vld [vmem:[#allocation17 + $0x7f8] sm:$0xff]
    %v5756 = vpack.c.bf16 %v5452, %v5450
    %v5757 = vpack.c.bf16 %v5466, %v5464
    %v5758 = vpack.c.bf16 %v5480, %v5478
    %v5759 = vpack.c.bf16 %v5494, %v5492
    %v5760 = vld [vmem:[#allocation19] sm:$0xff]
    %v5761 = vld [vmem:[#allocation19 + $0x8] sm:$0xff]
    %v5762 = vld [vmem:[#allocation19 + $0x10] sm:$0xff]
    %v5763 = vld [vmem:[#allocation19 + $0x18] sm:$0xff]
    %v5764 = vld [vmem:[#allocation19 + $0x20] sm:$0xff]
    %v5765 = vld [vmem:[#allocation19 + $0x28] sm:$0xff]
    %v5766 = vld [vmem:[#allocation19 + $0x30] sm:$0xff]
    %v5767 = vld [vmem:[#allocation19 + $0x38] sm:$0xff]
    %v5768 = vld [vmem:[#allocation19 + $0x40] sm:$0xff]
    %v5769 = vld [vmem:[#allocation19 + $0x48] sm:$0xff]
    %v5770 = vld [vmem:[#allocation19 + $0x50] sm:$0xff]
    %v5771 = vld [vmem:[#allocation19 + $0x58] sm:$0xff]
    %v5772 = vld [vmem:[#allocation19 + $0x60] sm:$0xff]
    %v5773 = vld [vmem:[#allocation19 + $0x68] sm:$0xff]
    %v5774 = vld [vmem:[#allocation19 + $0x70] sm:$0xff]
    %v5775 = vld [vmem:[#allocation19 + $0x78] sm:$0xff]
    %v5776 = vld [vmem:[#allocation19 + $0x80] sm:$0xff]
    %v5777 = vld [vmem:[#allocation19 + $0x88] sm:$0xff]
    %v5778 = vld [vmem:[#allocation19 + $0x90] sm:$0xff]
    %v5779 = vld [vmem:[#allocation19 + $0x98] sm:$0xff]
    %v5780 = vld [vmem:[#allocation19 + $0xa0] sm:$0xff]
    %v5781 = vld [vmem:[#allocation19 + $0xa8] sm:$0xff]
    %v5782 = vld [vmem:[#allocation19 + $0xb0] sm:$0xff]
    %v5783 = vld [vmem:[#allocation19 + $0xb8] sm:$0xff]
    %v5784 = vld [vmem:[#allocation19 + $0xc0] sm:$0xff]
    %v5785 = vld [vmem:[#allocation19 + $0xc8] sm:$0xff]
    %v5786 = vld [vmem:[#allocation19 + $0xd0] sm:$0xff]
    %v5787 = vld [vmem:[#allocation19 + $0xd8] sm:$0xff]
    %v5788 = vld [vmem:[#allocation19 + $0xe0] sm:$0xff]
    %v5789 = vld [vmem:[#allocation19 + $0xe8] sm:$0xff]
    %v5790 = vld [vmem:[#allocation19 + $0xf0] sm:$0xff]
    %v5791 = vld [vmem:[#allocation19 + $0xf8] sm:$0xff]
    %v5792 = vld [vmem:[#allocation19 + $0x100] sm:$0xff]
    %v5793 = vld [vmem:[#allocation19 + $0x108] sm:$0xff]
    %v5794 = vld [vmem:[#allocation19 + $0x110] sm:$0xff]
    %v5795 = vld [vmem:[#allocation19 + $0x118] sm:$0xff]
    %v5796 = vld [vmem:[#allocation19 + $0x120] sm:$0xff]
    %v5797 = vld [vmem:[#allocation19 + $0x128] sm:$0xff]
    %v5798 = vld [vmem:[#allocation19 + $0x130] sm:$0xff]
    %v5799 = vld [vmem:[#allocation19 + $0x138] sm:$0xff]
    %v5800 = vld [vmem:[#allocation19 + $0x140] sm:$0xff]
    %v5801 = vld [vmem:[#allocation19 + $0x148] sm:$0xff]
    %v5802 = vld [vmem:[#allocation19 + $0x150] sm:$0xff]
    %v5803 = vld [vmem:[#allocation19 + $0x158] sm:$0xff]
    %v5804 = vld [vmem:[#allocation19 + $0x160] sm:$0xff]
    %v5805 = vld [vmem:[#allocation19 + $0x168] sm:$0xff]
    %v5806 = vld [vmem:[#allocation19 + $0x170] sm:$0xff]
    %v5807 = vld [vmem:[#allocation19 + $0x178] sm:$0xff]
    %v5808 = vld [vmem:[#allocation19 + $0x180] sm:$0xff]
    %v5809 = vld [vmem:[#allocation19 + $0x188] sm:$0xff]
    %v5810 = vld [vmem:[#allocation19 + $0x190] sm:$0xff]
    %v5811 = vld [vmem:[#allocation19 + $0x198] sm:$0xff]
    %v5812 = vld [vmem:[#allocation19 + $0x1a0] sm:$0xff]
    %v5813 = vld [vmem:[#allocation19 + $0x1a8] sm:$0xff]
    %v5814 = vld [vmem:[#allocation19 + $0x1b0] sm:$0xff]
    %v5815 = vld [vmem:[#allocation19 + $0x1b8] sm:$0xff]
    %v5816 = vld [vmem:[#allocation19 + $0x1c0] sm:$0xff]
    %v5817 = vld [vmem:[#allocation19 + $0x1c8] sm:$0xff]
    %v5818 = vld [vmem:[#allocation19 + $0x1d0] sm:$0xff]
    %v5819 = vld [vmem:[#allocation19 + $0x1d8] sm:$0xff]
    %v5820 = vld [vmem:[#allocation19 + $0x1e0] sm:$0xff]
    %v5821 = vld [vmem:[#allocation19 + $0x1e8] sm:$0xff]
    %v5822 = vld [vmem:[#allocation19 + $0x1f0] sm:$0xff]
    %v5823 = vld [vmem:[#allocation19 + $0x1f8] sm:$0xff]
    %v5824 = vld [vmem:[#allocation19 + $0x200] sm:$0xff]
    %v5825 = vld [vmem:[#allocation19 + $0x208] sm:$0xff]
    %v5826 = vld [vmem:[#allocation19 + $0x210] sm:$0xff]
    %v5827 = vld [vmem:[#allocation19 + $0x218] sm:$0xff]
    %v5828 = vld [vmem:[#allocation19 + $0x220] sm:$0xff]
    %v5829 = vld [vmem:[#allocation19 + $0x228] sm:$0xff]
    %v5830 = vld [vmem:[#allocation19 + $0x230] sm:$0xff]
    %v5831 = vld [vmem:[#allocation19 + $0x238] sm:$0xff]
    %v5832 = vld [vmem:[#allocation19 + $0x240] sm:$0xff]
    %v5833 = vld [vmem:[#allocation19 + $0x248] sm:$0xff]
    %v5834 = vld [vmem:[#allocation19 + $0x250] sm:$0xff]
    %v5835 = vld [vmem:[#allocation19 + $0x258] sm:$0xff]
    %v5836 = vld [vmem:[#allocation19 + $0x260] sm:$0xff]
    %v5837 = vld [vmem:[#allocation19 + $0x268] sm:$0xff]
    %v5838 = vld [vmem:[#allocation19 + $0x270] sm:$0xff]
    %v5839 = vld [vmem:[#allocation19 + $0x278] sm:$0xff]
    %v5840 = vld [vmem:[#allocation19 + $0x280] sm:$0xff]
    %v5841 = vld [vmem:[#allocation19 + $0x288] sm:$0xff]
    %v5842 = vld [vmem:[#allocation19 + $0x290] sm:$0xff]
    %v5843 = vld [vmem:[#allocation19 + $0x298] sm:$0xff]
    %v5844 = vld [vmem:[#allocation19 + $0x2a0] sm:$0xff]
    %v5845 = vld [vmem:[#allocation19 + $0x2a8] sm:$0xff]
    %v5846 = vld [vmem:[#allocation19 + $0x2b0] sm:$0xff]
    %v5847 = vld [vmem:[#allocation19 + $0x2b8] sm:$0xff]
    %v5848 = vld [vmem:[#allocation19 + $0x2c0] sm:$0xff]
    %v5849 = vld [vmem:[#allocation19 + $0x2c8] sm:$0xff]
    %v5850 = vld [vmem:[#allocation19 + $0x2d0] sm:$0xff]
    %v5851 = vld [vmem:[#allocation19 + $0x2d8] sm:$0xff]
    %v5852 = vld [vmem:[#allocation19 + $0x2e0] sm:$0xff]
    %v5853 = vld [vmem:[#allocation19 + $0x2e8] sm:$0xff]
    %v5854 = vld [vmem:[#allocation19 + $0x2f0] sm:$0xff]
    %v5855 = vld [vmem:[#allocation19 + $0x2f8] sm:$0xff]
    %v5856 = vld [vmem:[#allocation19 + $0x300] sm:$0xff]
    %v5857 = vld [vmem:[#allocation19 + $0x308] sm:$0xff]
    %v5858 = vld [vmem:[#allocation19 + $0x310] sm:$0xff]
    %v5859 = vld [vmem:[#allocation19 + $0x318] sm:$0xff]
    %v5860 = vld [vmem:[#allocation19 + $0x320] sm:$0xff]
    %v5861 = vld [vmem:[#allocation19 + $0x328] sm:$0xff]
    %v5862 = vld [vmem:[#allocation19 + $0x330] sm:$0xff]
    %v5863 = vld [vmem:[#allocation19 + $0x338] sm:$0xff]
    %v5864 = vld [vmem:[#allocation19 + $0x340] sm:$0xff]
    %v5865 = vld [vmem:[#allocation19 + $0x348] sm:$0xff]
    %v5866 = vld [vmem:[#allocation19 + $0x350] sm:$0xff]
    %v5867 = vld [vmem:[#allocation19 + $0x358] sm:$0xff]
    %v5868 = vld [vmem:[#allocation19 + $0x360] sm:$0xff]
    %v5869 = vld [vmem:[#allocation19 + $0x368] sm:$0xff]
    %v5870 = vld [vmem:[#allocation19 + $0x370] sm:$0xff]
    %v5871 = vld [vmem:[#allocation19 + $0x378] sm:$0xff]
    %v5872 = vld [vmem:[#allocation19 + $0x380] sm:$0xff]
    %v5873 = vld [vmem:[#allocation19 + $0x388] sm:$0xff]
    %v5874 = vld [vmem:[#allocation19 + $0x390] sm:$0xff]
    %v5875 = vld [vmem:[#allocation19 + $0x398] sm:$0xff]
    %v5876 = vld [vmem:[#allocation19 + $0x3a0] sm:$0xff]
    %v5877 = vld [vmem:[#allocation19 + $0x3a8] sm:$0xff]
    %v5878 = vld [vmem:[#allocation19 + $0x3b0] sm:$0xff]
    %v5879 = vld [vmem:[#allocation19 + $0x3b8] sm:$0xff]
    %v5880 = vld [vmem:[#allocation19 + $0x3c0] sm:$0xff]
    %v5881 = vld [vmem:[#allocation19 + $0x3c8] sm:$0xff]
    %v5882 = vld [vmem:[#allocation19 + $0x3d0] sm:$0xff]
    %v5883 = vld [vmem:[#allocation19 + $0x3d8] sm:$0xff]
    %v5884 = vld [vmem:[#allocation19 + $0x3e0] sm:$0xff]
    %v5885 = vld [vmem:[#allocation19 + $0x3e8] sm:$0xff]
    %v5886 = vld [vmem:[#allocation19 + $0x3f0] sm:$0xff]
    %v5887 = vld [vmem:[#allocation19 + $0x3f8] sm:$0xff]
    %v5888 = vld [vmem:[#allocation19 + $0x400] sm:$0xff]
    %v5889 = vld [vmem:[#allocation19 + $0x408] sm:$0xff]
    %v5890 = vld [vmem:[#allocation19 + $0x410] sm:$0xff]
    %v5891 = vld [vmem:[#allocation19 + $0x418] sm:$0xff]
    %v5892 = vld [vmem:[#allocation19 + $0x420] sm:$0xff]
    %v5893 = vld [vmem:[#allocation19 + $0x428] sm:$0xff]
    %v5894 = vld [vmem:[#allocation19 + $0x430] sm:$0xff]
    %v5895 = vld [vmem:[#allocation19 + $0x438] sm:$0xff]
    %v5896 = vld [vmem:[#allocation19 + $0x440] sm:$0xff]
    %v5897 = vld [vmem:[#allocation19 + $0x448] sm:$0xff]
    %v5898 = vld [vmem:[#allocation19 + $0x450] sm:$0xff]
    %v5899 = vld [vmem:[#allocation19 + $0x458] sm:$0xff]
    %v5900 = vld [vmem:[#allocation19 + $0x460] sm:$0xff]
    %v5901 = vld [vmem:[#allocation19 + $0x468] sm:$0xff]
    %v5902 = vld [vmem:[#allocation19 + $0x470] sm:$0xff]
    %v5903 = vld [vmem:[#allocation19 + $0x478] sm:$0xff]
    %v5904 = vld [vmem:[#allocation19 + $0x480] sm:$0xff]
    %v5905 = vld [vmem:[#allocation19 + $0x488] sm:$0xff]
    %v5906 = vld [vmem:[#allocation19 + $0x490] sm:$0xff]
    %v5907 = vld [vmem:[#allocation19 + $0x498] sm:$0xff]
    %v5908 = vld [vmem:[#allocation19 + $0x4a0] sm:$0xff]
    %v5909 = vld [vmem:[#allocation19 + $0x4a8] sm:$0xff]
    %v5910 = vld [vmem:[#allocation19 + $0x4b0] sm:$0xff]
    %v5911 = vld [vmem:[#allocation19 + $0x4b8] sm:$0xff]
    %v5912 = vld [vmem:[#allocation19 + $0x4c0] sm:$0xff]
    %v5913 = vld [vmem:[#allocation19 + $0x4c8] sm:$0xff]
    %v5914 = vld [vmem:[#allocation19 + $0x4d0] sm:$0xff]
    %v5915 = vld [vmem:[#allocation19 + $0x4d8] sm:$0xff]
    %v5916 = vld [vmem:[#allocation19 + $0x4e0] sm:$0xff]
    %v5917 = vld [vmem:[#allocation19 + $0x4e8] sm:$0xff]
    %v5918 = vld [vmem:[#allocation19 + $0x4f0] sm:$0xff]
    %v5919 = vld [vmem:[#allocation19 + $0x4f8] sm:$0xff]
    %v5920 = vld [vmem:[#allocation19 + $0x500] sm:$0xff]
    %v5921 = vld [vmem:[#allocation19 + $0x508] sm:$0xff]
    %v5922 = vld [vmem:[#allocation19 + $0x510] sm:$0xff]
    %v5923 = vld [vmem:[#allocation19 + $0x518] sm:$0xff]
    %v5924 = vld [vmem:[#allocation19 + $0x520] sm:$0xff]
    %v5925 = vld [vmem:[#allocation19 + $0x528] sm:$0xff]
    %v5926 = vld [vmem:[#allocation19 + $0x530] sm:$0xff]
    %v5927 = vld [vmem:[#allocation19 + $0x538] sm:$0xff]
    %v5928 = vld [vmem:[#allocation19 + $0x540] sm:$0xff]
    %v5929 = vld [vmem:[#allocation19 + $0x548] sm:$0xff]
    %v5930 = vld [vmem:[#allocation19 + $0x550] sm:$0xff]
    %v5931 = vld [vmem:[#allocation19 + $0x558] sm:$0xff]
    %v5932 = vld [vmem:[#allocation19 + $0x560] sm:$0xff]
    %v5933 = vld [vmem:[#allocation19 + $0x568] sm:$0xff]
    %v5934 = vld [vmem:[#allocation19 + $0x570] sm:$0xff]
    %v5935 = vld [vmem:[#allocation19 + $0x578] sm:$0xff]
    %v5936 = vld [vmem:[#allocation19 + $0x580] sm:$0xff]
    %v5937 = vld [vmem:[#allocation19 + $0x588] sm:$0xff]
    %v5938 = vld [vmem:[#allocation19 + $0x590] sm:$0xff]
    %v5939 = vld [vmem:[#allocation19 + $0x598] sm:$0xff]
    %v5940 = vld [vmem:[#allocation19 + $0x5a0] sm:$0xff]
    %v5941 = vld [vmem:[#allocation19 + $0x5a8] sm:$0xff]
    %v5942 = vld [vmem:[#allocation19 + $0x5b0] sm:$0xff]
    %v5943 = vld [vmem:[#allocation19 + $0x5b8] sm:$0xff]
    %v5944 = vld [vmem:[#allocation19 + $0x5c0] sm:$0xff]
    %v5945 = vld [vmem:[#allocation19 + $0x5c8] sm:$0xff]
    %v5946 = vld [vmem:[#allocation19 + $0x5d0] sm:$0xff]
    %v5947 = vld [vmem:[#allocation19 + $0x5d8] sm:$0xff]
    %v5948 = vld [vmem:[#allocation19 + $0x5e0] sm:$0xff]
    %v5949 = vld [vmem:[#allocation19 + $0x5e8] sm:$0xff]
    %v5950 = vld [vmem:[#allocation19 + $0x5f0] sm:$0xff]
    %v5951 = vld [vmem:[#allocation19 + $0x5f8] sm:$0xff]
    %v5952 = vld [vmem:[#allocation19 + $0x600] sm:$0xff]
    %v5953 = vld [vmem:[#allocation19 + $0x608] sm:$0xff]
    %v5954 = vld [vmem:[#allocation19 + $0x610] sm:$0xff]
    %v5955 = vld [vmem:[#allocation19 + $0x618] sm:$0xff]
    %v5956 = vld [vmem:[#allocation19 + $0x620] sm:$0xff]
    %v5957 = vld [vmem:[#allocation19 + $0x628] sm:$0xff]
    %v5958 = vld [vmem:[#allocation19 + $0x630] sm:$0xff]
    %v5959 = vld [vmem:[#allocation19 + $0x638] sm:$0xff]
    %v5960 = vld [vmem:[#allocation19 + $0x640] sm:$0xff]
    %v5961 = vld [vmem:[#allocation19 + $0x648] sm:$0xff]
    %v5962 = vld [vmem:[#allocation19 + $0x650] sm:$0xff]
    %v5963 = vld [vmem:[#allocation19 + $0x658] sm:$0xff]
    %v5964 = vld [vmem:[#allocation19 + $0x660] sm:$0xff]
    %v5965 = vld [vmem:[#allocation19 + $0x668] sm:$0xff]
    %v5966 = vld [vmem:[#allocation19 + $0x670] sm:$0xff]
    %v5967 = vld [vmem:[#allocation19 + $0x678] sm:$0xff]
    %v5968 = vld [vmem:[#allocation19 + $0x680] sm:$0xff]
    %v5969 = vld [vmem:[#allocation19 + $0x688] sm:$0xff]
    %v5970 = vld [vmem:[#allocation19 + $0x690] sm:$0xff]
    %v5971 = vld [vmem:[#allocation19 + $0x698] sm:$0xff]
    %v5972 = vld [vmem:[#allocation19 + $0x6a0] sm:$0xff]
    %v5973 = vld [vmem:[#allocation19 + $0x6a8] sm:$0xff]
    %v5974 = vld [vmem:[#allocation19 + $0x6b0] sm:$0xff]
    %v5975 = vld [vmem:[#allocation19 + $0x6b8] sm:$0xff]
    %v5976 = vld [vmem:[#allocation19 + $0x6c0] sm:$0xff]
    %v5977 = vld [vmem:[#allocation19 + $0x6c8] sm:$0xff]
    %v5978 = vld [vmem:[#allocation19 + $0x6d0] sm:$0xff]
    %v5979 = vld [vmem:[#allocation19 + $0x6d8] sm:$0xff]
    %v5980 = vld [vmem:[#allocation19 + $0x6e0] sm:$0xff]
    %v5981 = vld [vmem:[#allocation19 + $0x6e8] sm:$0xff]
    %v5982 = vld [vmem:[#allocation19 + $0x6f0] sm:$0xff]
    %v5983 = vld [vmem:[#allocation19 + $0x6f8] sm:$0xff]
    %v5984 = vld [vmem:[#allocation19 + $0x700] sm:$0xff]
    %v5985 = vld [vmem:[#allocation19 + $0x708] sm:$0xff]
    %v5986 = vld [vmem:[#allocation19 + $0x710] sm:$0xff]
    %v5987 = vld [vmem:[#allocation19 + $0x718] sm:$0xff]
    %v5988 = vld [vmem:[#allocation19 + $0x720] sm:$0xff]
    %v5989 = vld [vmem:[#allocation19 + $0x728] sm:$0xff]
    %v5990 = vld [vmem:[#allocation19 + $0x730] sm:$0xff]
    %v5991 = vld [vmem:[#allocation19 + $0x738] sm:$0xff]
    %v5992 = vld [vmem:[#allocation19 + $0x740] sm:$0xff]
    %v5993 = vld [vmem:[#allocation19 + $0x748] sm:$0xff]
    %v5994 = vld [vmem:[#allocation19 + $0x750] sm:$0xff]
    %v5995 = vld [vmem:[#allocation19 + $0x758] sm:$0xff]
    %v5996 = vld [vmem:[#allocation19 + $0x760] sm:$0xff]
    %v5997 = vld [vmem:[#allocation19 + $0x768] sm:$0xff]
    %v5998 = vld [vmem:[#allocation19 + $0x770] sm:$0xff]
    %v5999 = vld [vmem:[#allocation19 + $0x778] sm:$0xff]
    %v6000 = vld [vmem:[#allocation19 + $0x780] sm:$0xff]
    %v6001 = vld [vmem:[#allocation19 + $0x788] sm:$0xff]
    %v6002 = vld [vmem:[#allocation19 + $0x790] sm:$0xff]
    %v6003 = vld [vmem:[#allocation19 + $0x798] sm:$0xff]
    %v6004 = vld [vmem:[#allocation19 + $0x7a0] sm:$0xff]
    %v6005 = vld [vmem:[#allocation19 + $0x7a8] sm:$0xff]
    %v6006 = vld [vmem:[#allocation19 + $0x7b0] sm:$0xff]
    %v6007 = vld [vmem:[#allocation19 + $0x7b8] sm:$0xff]
    %v6008 = vld [vmem:[#allocation19 + $0x7c0] sm:$0xff]
    %v6009 = vld [vmem:[#allocation19 + $0x7c8] sm:$0xff]
    %v6010 = vld [vmem:[#allocation19 + $0x7d0] sm:$0xff]
    %v6011 = vld [vmem:[#allocation19 + $0x7d8] sm:$0xff]
    %v6012 = vld [vmem:[#allocation19 + $0x7e0] sm:$0xff]
    %v6013 = vld [vmem:[#allocation19 + $0x7e8] sm:$0xff]
    %v6014 = vld [vmem:[#allocation19 + $0x7f0] sm:$0xff]
    %v6015 = vld [vmem:[#allocation19 + $0x7f8] sm:$0xff]
    %v6272 = vunpack.c.l.b16 %v5760
    %v6273 = vunpack.c.h.b16 %v5760
    %v6274 = vunpack.c.l.b16 %v5761
    %v6275 = vunpack.c.h.b16 %v5761
    %v6276 = vunpack.c.l.b16 %v5762
    %v6277 = vunpack.c.h.b16 %v5762
    %v6278 = vunpack.c.l.b16 %v5763
    %v6279 = vunpack.c.h.b16 %v5763
    %v6280 = vunpack.c.l.b16 %v5764
    %v6281 = vunpack.c.h.b16 %v5764
    %v6282 = vunpack.c.l.b16 %v5765
    %v6283 = vunpack.c.h.b16 %v5765
    %v6284 = vunpack.c.l.b16 %v5766
    %v6285 = vunpack.c.h.b16 %v5766
    %v6286 = vunpack.c.l.b16 %v5767
    %v6287 = vunpack.c.h.b16 %v5767
    %v6288 = vunpack.c.l.b16 %v5768
    %v6289 = vunpack.c.h.b16 %v5768
    %v6290 = vunpack.c.l.b16 %v5769
    %v6291 = vunpack.c.h.b16 %v5769
    %v6292 = vunpack.c.l.b16 %v5770
    %v6293 = vunpack.c.h.b16 %v5770
    %v6294 = vunpack.c.l.b16 %v5771
    %v6295 = vunpack.c.h.b16 %v5771
    %v6296 = vunpack.c.l.b16 %v5772
    %v6297 = vunpack.c.h.b16 %v5772
    %v6298 = vunpack.c.l.b16 %v5773
    %v6299 = vunpack.c.h.b16 %v5773
    %v6300 = vunpack.c.l.b16 %v5774
    %v6301 = vunpack.c.h.b16 %v5774
    %v6302 = vunpack.c.l.b16 %v5775
    %v6303 = vunpack.c.h.b16 %v5775
    %v6304 = vunpack.c.l.b16 %v5776
    %v6305 = vunpack.c.h.b16 %v5776
    %v6306 = vunpack.c.l.b16 %v5777
    %v6307 = vunpack.c.h.b16 %v5777
    %v6308 = vunpack.c.l.b16 %v5778
    %v6309 = vunpack.c.h.b16 %v5778
    %v6310 = vunpack.c.l.b16 %v5779
    %v6311 = vunpack.c.h.b16 %v5779
    %v6312 = vunpack.c.l.b16 %v5780
    %v6313 = vunpack.c.h.b16 %v5780
    %v6314 = vunpack.c.l.b16 %v5781
    %v6315 = vunpack.c.h.b16 %v5781
    %v6316 = vunpack.c.l.b16 %v5782
    %v6317 = vunpack.c.h.b16 %v5782
    %v6318 = vunpack.c.l.b16 %v5783
    %v6319 = vunpack.c.h.b16 %v5783
    %v6320 = vunpack.c.l.b16 %v5784
    %v6321 = vunpack.c.h.b16 %v5784
    %v6322 = vunpack.c.l.b16 %v5785
    %v6323 = vunpack.c.h.b16 %v5785
    %v6324 = vunpack.c.l.b16 %v5786
    %v6325 = vunpack.c.h.b16 %v5786
    %v6326 = vunpack.c.l.b16 %v5787
    %v6327 = vunpack.c.h.b16 %v5787
    %v6328 = vunpack.c.l.b16 %v5788
    %v6329 = vunpack.c.h.b16 %v5788
    %v6330 = vunpack.c.l.b16 %v5789
    %v6331 = vunpack.c.h.b16 %v5789
    %v6332 = vunpack.c.l.b16 %v5790
    %v6333 = vunpack.c.h.b16 %v5790
    %v6334 = vunpack.c.l.b16 %v5791
    %v6335 = vunpack.c.h.b16 %v5791
    %v6336 = vunpack.c.l.b16 %v5792
    %v6337 = vunpack.c.h.b16 %v5792
    %v6338 = vunpack.c.l.b16 %v5793
    %v6339 = vunpack.c.h.b16 %v5793
    %v6340 = vunpack.c.l.b16 %v5794
    %v6341 = vunpack.c.h.b16 %v5794
    %v6342 = vunpack.c.l.b16 %v5795
    %v6343 = vunpack.c.h.b16 %v5795
    %v6344 = vunpack.c.l.b16 %v5796
    %v6345 = vunpack.c.h.b16 %v5796
    %v6346 = vunpack.c.l.b16 %v5797
    %v6347 = vunpack.c.h.b16 %v5797
    %v6348 = vunpack.c.l.b16 %v5798
    %v6349 = vunpack.c.h.b16 %v5798
    %v6350 = vunpack.c.l.b16 %v5799
    %v6351 = vunpack.c.h.b16 %v5799
    %v6352 = vunpack.c.l.b16 %v5800
    %v6353 = vunpack.c.h.b16 %v5800
    %v6354 = vunpack.c.l.b16 %v5801
    %v6355 = vunpack.c.h.b16 %v5801
    %v6356 = vunpack.c.l.b16 %v5802
    %v6357 = vunpack.c.h.b16 %v5802
    %v6358 = vunpack.c.l.b16 %v5803
    %v6359 = vunpack.c.h.b16 %v5803
    %v6360 = vunpack.c.l.b16 %v5804
    %v6361 = vunpack.c.h.b16 %v5804
    %v6362 = vunpack.c.l.b16 %v5805
    %v6363 = vunpack.c.h.b16 %v5805
    %v6364 = vunpack.c.l.b16 %v5806
    %v6365 = vunpack.c.h.b16 %v5806
    %v6366 = vunpack.c.l.b16 %v5807
    %v6367 = vunpack.c.h.b16 %v5807
    %v6368 = vunpack.c.l.b16 %v5808
    %v6369 = vunpack.c.h.b16 %v5808
    %v6370 = vunpack.c.l.b16 %v5809
    %v6371 = vunpack.c.h.b16 %v5809
    %v6372 = vunpack.c.l.b16 %v5810
    %v6373 = vunpack.c.h.b16 %v5810
    %v6374 = vunpack.c.l.b16 %v5811
    %v6375 = vunpack.c.h.b16 %v5811
    %v6376 = vunpack.c.l.b16 %v5812
    %v6377 = vunpack.c.h.b16 %v5812
    %v6378 = vunpack.c.l.b16 %v5813
    %v6379 = vunpack.c.h.b16 %v5813
    %v6380 = vunpack.c.l.b16 %v5814
    %v6381 = vunpack.c.h.b16 %v5814
    %v6382 = vunpack.c.l.b16 %v5815
    %v6383 = vunpack.c.h.b16 %v5815
    %v6384 = vunpack.c.l.b16 %v5816
    %v6385 = vunpack.c.h.b16 %v5816
    %v6386 = vunpack.c.l.b16 %v5817
    %v6387 = vunpack.c.h.b16 %v5817
    %v6388 = vunpack.c.l.b16 %v5818
    %v6389 = vunpack.c.h.b16 %v5818
    %v6390 = vunpack.c.l.b16 %v5819
    %v6391 = vunpack.c.h.b16 %v5819
    %v6392 = vunpack.c.l.b16 %v5820
    %v6393 = vunpack.c.h.b16 %v5820
    %v6394 = vunpack.c.l.b16 %v5821
    %v6395 = vunpack.c.h.b16 %v5821
    %v6396 = vunpack.c.l.b16 %v5822
    %v6397 = vunpack.c.h.b16 %v5822
    %v6398 = vunpack.c.l.b16 %v5823
    %v6399 = vunpack.c.h.b16 %v5823
    %v6400 = vunpack.c.l.b16 %v5824
    %v6401 = vunpack.c.h.b16 %v5824
    %v6402 = vunpack.c.l.b16 %v5825
    %v6403 = vunpack.c.h.b16 %v5825
    %v6404 = vunpack.c.l.b16 %v5826
    %v6405 = vunpack.c.h.b16 %v5826
    %v6406 = vunpack.c.l.b16 %v5827
    %v6407 = vunpack.c.h.b16 %v5827
    %v6408 = vunpack.c.l.b16 %v5828
    %v6409 = vunpack.c.h.b16 %v5828
    %v6410 = vunpack.c.l.b16 %v5829
    %v6411 = vunpack.c.h.b16 %v5829
    %v6412 = vunpack.c.l.b16 %v5830
    %v6413 = vunpack.c.h.b16 %v5830
    %v6414 = vunpack.c.l.b16 %v5831
    %v6415 = vunpack.c.h.b16 %v5831
    %v6416 = vunpack.c.l.b16 %v5832
    %v6417 = vunpack.c.h.b16 %v5832
    %v6418 = vunpack.c.l.b16 %v5833
    %v6419 = vunpack.c.h.b16 %v5833
    %v6420 = vunpack.c.l.b16 %v5834
    %v6421 = vunpack.c.h.b16 %v5834
    %v6422 = vunpack.c.l.b16 %v5835
    %v6423 = vunpack.c.h.b16 %v5835
    %v6424 = vunpack.c.l.b16 %v5836
    %v6425 = vunpack.c.h.b16 %v5836
    %v6426 = vunpack.c.l.b16 %v5837
    %v6427 = vunpack.c.h.b16 %v5837
    %v6428 = vunpack.c.l.b16 %v5838
    %v6429 = vunpack.c.h.b16 %v5838
    %v6430 = vunpack.c.l.b16 %v5839
    %v6431 = vunpack.c.h.b16 %v5839
    %v6432 = vunpack.c.l.b16 %v5840
    %v6433 = vunpack.c.h.b16 %v5840
    %v6434 = vunpack.c.l.b16 %v5841
    %v6435 = vunpack.c.h.b16 %v5841
    %v6436 = vunpack.c.l.b16 %v5842
    %v6437 = vunpack.c.h.b16 %v5842
    %v6438 = vunpack.c.l.b16 %v5843
    %v6439 = vunpack.c.h.b16 %v5843
    %v6440 = vunpack.c.l.b16 %v5844
    %v6441 = vunpack.c.h.b16 %v5844
    %v6442 = vunpack.c.l.b16 %v5845
    %v6443 = vunpack.c.h.b16 %v5845
    %v6444 = vunpack.c.l.b16 %v5846
    %v6445 = vunpack.c.h.b16 %v5846
    %v6446 = vunpack.c.l.b16 %v5847
    %v6447 = vunpack.c.h.b16 %v5847
    %v6448 = vunpack.c.l.b16 %v5848
    %v6449 = vunpack.c.h.b16 %v5848
    %v6450 = vunpack.c.l.b16 %v5849
    %v6451 = vunpack.c.h.b16 %v5849
    %v6452 = vunpack.c.l.b16 %v5850
    %v6453 = vunpack.c.h.b16 %v5850
    %v6454 = vunpack.c.l.b16 %v5851
    %v6455 = vunpack.c.h.b16 %v5851
    %v6456 = vunpack.c.l.b16 %v5852
    %v6457 = vunpack.c.h.b16 %v5852
    %v6458 = vunpack.c.l.b16 %v5853
    %v6459 = vunpack.c.h.b16 %v5853
    %v6460 = vunpack.c.l.b16 %v5854
    %v6461 = vunpack.c.h.b16 %v5854
    %v6462 = vunpack.c.l.b16 %v5855
    %v6463 = vunpack.c.h.b16 %v5855
    %v6464 = vunpack.c.l.b16 %v5856
    %v6465 = vunpack.c.h.b16 %v5856
    %v6466 = vunpack.c.l.b16 %v5857
    %v6467 = vunpack.c.h.b16 %v5857
    %v6468 = vunpack.c.l.b16 %v5858
    %v6469 = vunpack.c.h.b16 %v5858
    %v6470 = vunpack.c.l.b16 %v5859
    %v6471 = vunpack.c.h.b16 %v5859
    %v6472 = vunpack.c.l.b16 %v5860
    %v6473 = vunpack.c.h.b16 %v5860
    %v6474 = vunpack.c.l.b16 %v5861
    %v6475 = vunpack.c.h.b16 %v5861
    %v6476 = vunpack.c.l.b16 %v5862
    %v6477 = vunpack.c.h.b16 %v5862
    %v6478 = vunpack.c.l.b16 %v5863
    %v6479 = vunpack.c.h.b16 %v5863
    %v6480 = vunpack.c.l.b16 %v5864
    %v6481 = vunpack.c.h.b16 %v5864
    %v6482 = vunpack.c.l.b16 %v5865
    %v6483 = vunpack.c.h.b16 %v5865
    %v6484 = vunpack.c.l.b16 %v5866
    %v6485 = vunpack.c.h.b16 %v5866
    %v6486 = vunpack.c.l.b16 %v5867
    %v6487 = vunpack.c.h.b16 %v5867
    %v6488 = vunpack.c.l.b16 %v5868
    %v6489 = vunpack.c.h.b16 %v5868
    %v6490 = vunpack.c.l.b16 %v5869
    %v6491 = vunpack.c.h.b16 %v5869
    %v6492 = vunpack.c.l.b16 %v5870
    %v6493 = vunpack.c.h.b16 %v5870
    %v6494 = vunpack.c.l.b16 %v5871
    %v6495 = vunpack.c.h.b16 %v5871
    %v6496 = vunpack.c.l.b16 %v5872
    %v6497 = vunpack.c.h.b16 %v5872
    %v6498 = vunpack.c.l.b16 %v5873
    %v6499 = vunpack.c.h.b16 %v5873
    %v6500 = vunpack.c.l.b16 %v5874
    %v6501 = vunpack.c.h.b16 %v5874
    %v6502 = vunpack.c.l.b16 %v5875
    %v6503 = vunpack.c.h.b16 %v5875
    %v6504 = vunpack.c.l.b16 %v5876
    %v6505 = vunpack.c.h.b16 %v5876
    %v6506 = vunpack.c.l.b16 %v5877
    %v6507 = vunpack.c.h.b16 %v5877
    %v6508 = vunpack.c.l.b16 %v5878
    %v6509 = vunpack.c.h.b16 %v5878
    %v6510 = vunpack.c.l.b16 %v5879
    %v6511 = vunpack.c.h.b16 %v5879
    %v6512 = vunpack.c.l.b16 %v5880
    %v6513 = vunpack.c.h.b16 %v5880
    %v6514 = vunpack.c.l.b16 %v5881
    %v6515 = vunpack.c.h.b16 %v5881
    %v6516 = vunpack.c.l.b16 %v5882
    %v6517 = vunpack.c.h.b16 %v5882
    %v6518 = vunpack.c.l.b16 %v5883
    %v6519 = vunpack.c.h.b16 %v5883
    %v6520 = vunpack.c.l.b16 %v5884
    %v6521 = vunpack.c.h.b16 %v5884
    %v6522 = vunpack.c.l.b16 %v5885
    %v6523 = vunpack.c.h.b16 %v5885
    %v6524 = vunpack.c.l.b16 %v5886
    %v6525 = vunpack.c.h.b16 %v5886
    %v6526 = vunpack.c.l.b16 %v5887
    %v6527 = vunpack.c.h.b16 %v5887
    %v6528 = vunpack.c.l.b16 %v5888
    %v6529 = vunpack.c.h.b16 %v5888
    %v6530 = vunpack.c.l.b16 %v5889
    %v6531 = vunpack.c.h.b16 %v5889
    %v6532 = vunpack.c.l.b16 %v5890
    %v6533 = vunpack.c.h.b16 %v5890
    %v6534 = vunpack.c.l.b16 %v5891
    %v6535 = vunpack.c.h.b16 %v5891
    %v6536 = vunpack.c.l.b16 %v5892
    %v6537 = vunpack.c.h.b16 %v5892
    %v6538 = vunpack.c.l.b16 %v5893
    %v6539 = vunpack.c.h.b16 %v5893
    %v6540 = vunpack.c.l.b16 %v5894
    %v6541 = vunpack.c.h.b16 %v5894
    %v6542 = vunpack.c.l.b16 %v5895
    %v6543 = vunpack.c.h.b16 %v5895
    %v6544 = vunpack.c.l.b16 %v5896
    %v6545 = vunpack.c.h.b16 %v5896
    %v6546 = vunpack.c.l.b16 %v5897
    %v6547 = vunpack.c.h.b16 %v5897
    %v6548 = vunpack.c.l.b16 %v5898
    %v6549 = vunpack.c.h.b16 %v5898
    %v6550 = vunpack.c.l.b16 %v5899
    %v6551 = vunpack.c.h.b16 %v5899
    %v6552 = vunpack.c.l.b16 %v5900
    %v6553 = vunpack.c.h.b16 %v5900
    %v6554 = vunpack.c.l.b16 %v5901
    %v6555 = vunpack.c.h.b16 %v5901
    %v6556 = vunpack.c.l.b16 %v5902
    %v6557 = vunpack.c.h.b16 %v5902
    %v6558 = vunpack.c.l.b16 %v5903
    %v6559 = vunpack.c.h.b16 %v5903
    %v6560 = vunpack.c.l.b16 %v5904
    %v6561 = vunpack.c.h.b16 %v5904
    %v6562 = vunpack.c.l.b16 %v5905
    %v6563 = vunpack.c.h.b16 %v5905
    %v6564 = vunpack.c.l.b16 %v5906
    %v6565 = vunpack.c.h.b16 %v5906
    %v6566 = vunpack.c.l.b16 %v5907
    %v6567 = vunpack.c.h.b16 %v5907
    %v6568 = vunpack.c.l.b16 %v5908
    %v6569 = vunpack.c.h.b16 %v5908
    %v6570 = vunpack.c.l.b16 %v5909
    %v6571 = vunpack.c.h.b16 %v5909
    %v6572 = vunpack.c.l.b16 %v5910
    %v6573 = vunpack.c.h.b16 %v5910
    %v6574 = vunpack.c.l.b16 %v5911
    %v6575 = vunpack.c.h.b16 %v5911
    %v6576 = vunpack.c.l.b16 %v5912
    %v6577 = vunpack.c.h.b16 %v5912
    %v6578 = vunpack.c.l.b16 %v5913
    %v6579 = vunpack.c.h.b16 %v5913
    %v6580 = vunpack.c.l.b16 %v5914
    %v6581 = vunpack.c.h.b16 %v5914
    %v6582 = vunpack.c.l.b16 %v5915
    %v6583 = vunpack.c.h.b16 %v5915
    %v6584 = vunpack.c.l.b16 %v5916
    %v6585 = vunpack.c.h.b16 %v5916
    %v6586 = vunpack.c.l.b16 %v5917
    %v6587 = vunpack.c.h.b16 %v5917
    %v6588 = vunpack.c.l.b16 %v5918
    %v6589 = vunpack.c.h.b16 %v5918
    %v6590 = vunpack.c.l.b16 %v5919
    %v6591 = vunpack.c.h.b16 %v5919
    %v6592 = vunpack.c.l.b16 %v5920
    %v6593 = vunpack.c.h.b16 %v5920
    %v6594 = vunpack.c.l.b16 %v5921
    %v6595 = vunpack.c.h.b16 %v5921
    %v6596 = vunpack.c.l.b16 %v5922
    %v6597 = vunpack.c.h.b16 %v5922
    %v6598 = vunpack.c.l.b16 %v5923
    %v6599 = vunpack.c.h.b16 %v5923
    %v6600 = vunpack.c.l.b16 %v5924
    %v6601 = vunpack.c.h.b16 %v5924
    %v6602 = vunpack.c.l.b16 %v5925
    %v6603 = vunpack.c.h.b16 %v5925
    %v6604 = vunpack.c.l.b16 %v5926
    %v6605 = vunpack.c.h.b16 %v5926
    %v6606 = vunpack.c.l.b16 %v5927
    %v6607 = vunpack.c.h.b16 %v5927
    %v6608 = vunpack.c.l.b16 %v5928
    %v6609 = vunpack.c.h.b16 %v5928
    %v6610 = vunpack.c.l.b16 %v5929
    %v6611 = vunpack.c.h.b16 %v5929
    %v6612 = vunpack.c.l.b16 %v5930
    %v6613 = vunpack.c.h.b16 %v5930
    %v6614 = vunpack.c.l.b16 %v5931
    %v6615 = vunpack.c.h.b16 %v5931
    %v6616 = vunpack.c.l.b16 %v5932
    %v6617 = vunpack.c.h.b16 %v5932
    %v6618 = vunpack.c.l.b16 %v5933
    %v6619 = vunpack.c.h.b16 %v5933
    %v6620 = vunpack.c.l.b16 %v5934
    %v6621 = vunpack.c.h.b16 %v5934
    %v6622 = vunpack.c.l.b16 %v5935
    %v6623 = vunpack.c.h.b16 %v5935
    %v6624 = vunpack.c.l.b16 %v5936
    %v6625 = vunpack.c.h.b16 %v5936
    %v6626 = vunpack.c.l.b16 %v5937
    %v6627 = vunpack.c.h.b16 %v5937
    %v6628 = vunpack.c.l.b16 %v5938
    %v6629 = vunpack.c.h.b16 %v5938
    %v6630 = vunpack.c.l.b16 %v5939
    %v6631 = vunpack.c.h.b16 %v5939
    %v6632 = vunpack.c.l.b16 %v5940
    %v6633 = vunpack.c.h.b16 %v5940
    %v6634 = vunpack.c.l.b16 %v5941
    %v6635 = vunpack.c.h.b16 %v5941
    %v6636 = vunpack.c.l.b16 %v5942
    %v6637 = vunpack.c.h.b16 %v5942
    %v6638 = vunpack.c.l.b16 %v5943
    %v6639 = vunpack.c.h.b16 %v5943
    %v6640 = vunpack.c.l.b16 %v5944
    %v6641 = vunpack.c.h.b16 %v5944
    %v6642 = vunpack.c.l.b16 %v5945
    %v6643 = vunpack.c.h.b16 %v5945
    %v6644 = vunpack.c.l.b16 %v5946
    %v6645 = vunpack.c.h.b16 %v5946
    %v6646 = vunpack.c.l.b16 %v5947
    %v6647 = vunpack.c.h.b16 %v5947
    %v6648 = vunpack.c.l.b16 %v5948
    %v6649 = vunpack.c.h.b16 %v5948
    %v6650 = vunpack.c.l.b16 %v5949
    %v6651 = vunpack.c.h.b16 %v5949
    %v6652 = vunpack.c.l.b16 %v5950
    %v6653 = vunpack.c.h.b16 %v5950
    %v6654 = vunpack.c.l.b16 %v5951
    %v6655 = vunpack.c.h.b16 %v5951
    %v6656 = vunpack.c.l.b16 %v5952
    %v6657 = vunpack.c.h.b16 %v5952
    %v6658 = vunpack.c.l.b16 %v5953
    %v6659 = vunpack.c.h.b16 %v5953
    %v6660 = vunpack.c.l.b16 %v5954
    %v6661 = vunpack.c.h.b16 %v5954
    %v6662 = vunpack.c.l.b16 %v5955
    %v6663 = vunpack.c.h.b16 %v5955
    %v6664 = vunpack.c.l.b16 %v5956
    %v6665 = vunpack.c.h.b16 %v5956
    %v6666 = vunpack.c.l.b16 %v5957
    %v6667 = vunpack.c.h.b16 %v5957
    %v6668 = vunpack.c.l.b16 %v5958
    %v6669 = vunpack.c.h.b16 %v5958
    %v6670 = vunpack.c.l.b16 %v5959
    %v6671 = vunpack.c.h.b16 %v5959
    %v6672 = vunpack.c.l.b16 %v5960
    %v6673 = vunpack.c.h.b16 %v5960
    %v6674 = vunpack.c.l.b16 %v5961
    %v6675 = vunpack.c.h.b16 %v5961
    %v6676 = vunpack.c.l.b16 %v5962
    %v6677 = vunpack.c.h.b16 %v5962
    %v6678 = vunpack.c.l.b16 %v5963
    %v6679 = vunpack.c.h.b16 %v5963
    %v6680 = vunpack.c.l.b16 %v5964
    %v6681 = vunpack.c.h.b16 %v5964
    %v6682 = vunpack.c.l.b16 %v5965
    %v6683 = vunpack.c.h.b16 %v5965
    %v6684 = vunpack.c.l.b16 %v5966
    %v6685 = vunpack.c.h.b16 %v5966
    %v6686 = vunpack.c.l.b16 %v5967
    %v6687 = vunpack.c.h.b16 %v5967
    %v6688 = vunpack.c.l.b16 %v5968
    %v6689 = vunpack.c.h.b16 %v5968
    %v6690 = vunpack.c.l.b16 %v5969
    %v6691 = vunpack.c.h.b16 %v5969
    %v6692 = vunpack.c.l.b16 %v5970
    %v6693 = vunpack.c.h.b16 %v5970
    %v6694 = vunpack.c.l.b16 %v5971
    %v6695 = vunpack.c.h.b16 %v5971
    %v6696 = vunpack.c.l.b16 %v5972
    %v6697 = vunpack.c.h.b16 %v5972
    %v6698 = vunpack.c.l.b16 %v5973
    %v6699 = vunpack.c.h.b16 %v5973
    %v6700 = vunpack.c.l.b16 %v5974
    %v6701 = vunpack.c.h.b16 %v5974
    %v6702 = vunpack.c.l.b16 %v5975
    %v6703 = vunpack.c.h.b16 %v5975
    %v6704 = vunpack.c.l.b16 %v5976
    %v6705 = vunpack.c.h.b16 %v5976
    %v6706 = vunpack.c.l.b16 %v5977
    %v6707 = vunpack.c.h.b16 %v5977
    %v6708 = vunpack.c.l.b16 %v5978
    %v6709 = vunpack.c.h.b16 %v5978
    %v6710 = vunpack.c.l.b16 %v5979
    %v6711 = vunpack.c.h.b16 %v5979
    %v6712 = vunpack.c.l.b16 %v5980
    %v6713 = vunpack.c.h.b16 %v5980
    %v6714 = vunpack.c.l.b16 %v5981
    %v6715 = vunpack.c.h.b16 %v5981
    %v6716 = vunpack.c.l.b16 %v5982
    %v6717 = vunpack.c.h.b16 %v5982
    %v6718 = vunpack.c.l.b16 %v5983
    %v6719 = vunpack.c.h.b16 %v5983
    %v6720 = vunpack.c.l.b16 %v5984
    %v6721 = vunpack.c.h.b16 %v5984
    %v6722 = vunpack.c.l.b16 %v5985
    %v6723 = vunpack.c.h.b16 %v5985
    %v6724 = vunpack.c.l.b16 %v5986
    %v6725 = vunpack.c.h.b16 %v5986
    %v6726 = vunpack.c.l.b16 %v5987
    %v6727 = vunpack.c.h.b16 %v5987
    %v6728 = vunpack.c.l.b16 %v5988
    %v6729 = vunpack.c.h.b16 %v5988
    %v6730 = vunpack.c.l.b16 %v5989
    %v6731 = vunpack.c.h.b16 %v5989
    %v6732 = vunpack.c.l.b16 %v5990
    %v6733 = vunpack.c.h.b16 %v5990
    %v6734 = vunpack.c.l.b16 %v5991
    %v6735 = vunpack.c.h.b16 %v5991
    %v6736 = vunpack.c.l.b16 %v5992
    %v6737 = vunpack.c.h.b16 %v5992
    %v6738 = vunpack.c.l.b16 %v5993
    %v6739 = vunpack.c.h.b16 %v5993
    %v6740 = vunpack.c.l.b16 %v5994
    %v6741 = vunpack.c.h.b16 %v5994
    %v6742 = vunpack.c.l.b16 %v5995
    %v6743 = vunpack.c.h.b16 %v5995
    %v6744 = vunpack.c.l.b16 %v5996
    %v6745 = vunpack.c.h.b16 %v5996
    %v6746 = vunpack.c.l.b16 %v5997
    %v6747 = vunpack.c.h.b16 %v5997
    %v6748 = vunpack.c.l.b16 %v5998
    %v6749 = vunpack.c.h.b16 %v5998
    %v6750 = vunpack.c.l.b16 %v5999
    %v6751 = vunpack.c.h.b16 %v5999
    %v6752 = vunpack.c.l.b16 %v6000
    %v6753 = vunpack.c.h.b16 %v6000
    %v6754 = vunpack.c.l.b16 %v6001
    %v6755 = vunpack.c.h.b16 %v6001
    %v6756 = vunpack.c.l.b16 %v6002
    %v6757 = vunpack.c.h.b16 %v6002
    %v6758 = vunpack.c.l.b16 %v6003
    %v6759 = vunpack.c.h.b16 %v6003
    %v6760 = vunpack.c.l.b16 %v6004
    %v6761 = vunpack.c.h.b16 %v6004
    %v6762 = vunpack.c.l.b16 %v6005
    %v6763 = vunpack.c.h.b16 %v6005
    %v6764 = vunpack.c.l.b16 %v6006
    %v6765 = vunpack.c.h.b16 %v6006
    %v6766 = vunpack.c.l.b16 %v6007
    %v6767 = vunpack.c.h.b16 %v6007
    %v6768 = vunpack.c.l.b16 %v6008
    %v6769 = vunpack.c.h.b16 %v6008
    %v6770 = vunpack.c.l.b16 %v6009
    %v6771 = vunpack.c.h.b16 %v6009
    %v6772 = vunpack.c.l.b16 %v6010
    %v6773 = vunpack.c.h.b16 %v6010
    %v6774 = vunpack.c.l.b16 %v6011
    %v6775 = vunpack.c.h.b16 %v6011
    %v6776 = vunpack.c.l.b16 %v6012
    %v6777 = vunpack.c.h.b16 %v6012
    %v6778 = vunpack.c.l.b16 %v6013
    %v6779 = vunpack.c.h.b16 %v6013
    %v6780 = vunpack.c.l.b16 %v6014
    %v6781 = vunpack.c.h.b16 %v6014
    %v6782 = vunpack.c.l.b16 %v6015
    %v6783 = vunpack.c.h.b16 %v6015
    %v6784 = vpack.c.b16 %v6280, %v6272
    %v6785 = vpack.c.b16 %v6281, %v6273
    %v6786 = vpack.c.b16 %v6282, %v6274
    %v6787 = vpack.c.b16 %v6283, %v6275
    %v6788 = vpack.c.b16 %v6284, %v6276
    %v6789 = vpack.c.b16 %v6285, %v6277
    %v6790 = vpack.c.b16 %v6286, %v6278
    %v6791 = vpack.c.b16 %v6287, %v6279
    %v6792 = vpack.c.b16 %v6296, %v6288
    %v6793 = vpack.c.b16 %v6297, %v6289
    %v6794 = vpack.c.b16 %v6298, %v6290
    %v6795 = vpack.c.b16 %v6299, %v6291
    %v6796 = vpack.c.b16 %v6300, %v6292
    %v6797 = vpack.c.b16 %v6301, %v6293
    %v6798 = vpack.c.b16 %v6302, %v6294
    %v6799 = vpack.c.b16 %v6303, %v6295
    %v6800 = vpack.c.b16 %v6312, %v6304
    %v6801 = vpack.c.b16 %v6313, %v6305
    %v6802 = vpack.c.b16 %v6314, %v6306
    %v6803 = vpack.c.b16 %v6315, %v6307
    %v6804 = vpack.c.b16 %v6316, %v6308
    %v6805 = vpack.c.b16 %v6317, %v6309
    %v6806 = vpack.c.b16 %v6318, %v6310
    %v6807 = vpack.c.b16 %v6319, %v6311
    %v6808 = vpack.c.b16 %v6328, %v6320
    %v6809 = vpack.c.b16 %v6329, %v6321
    %v6810 = vpack.c.b16 %v6330, %v6322
    %v6811 = vpack.c.b16 %v6331, %v6323
    %v6812 = vpack.c.b16 %v6332, %v6324
    %v6813 = vpack.c.b16 %v6333, %v6325
    %v6814 = vpack.c.b16 %v6334, %v6326
    %v6815 = vpack.c.b16 %v6335, %v6327
    %v6816 = vpack.c.b16 %v6344, %v6336
    %v6817 = vpack.c.b16 %v6345, %v6337
    %v6818 = vpack.c.b16 %v6346, %v6338
    %v6819 = vpack.c.b16 %v6347, %v6339
    %v6820 = vpack.c.b16 %v6348, %v6340
    %v6821 = vpack.c.b16 %v6349, %v6341
    %v6822 = vpack.c.b16 %v6350, %v6342
    %v6823 = vpack.c.b16 %v6351, %v6343
    %v6824 = vpack.c.b16 %v6360, %v6352
    %v6825 = vpack.c.b16 %v6361, %v6353
    %v6826 = vpack.c.b16 %v6362, %v6354
    %v6827 = vpack.c.b16 %v6363, %v6355
    %v6828 = vpack.c.b16 %v6364, %v6356
    %v6829 = vpack.c.b16 %v6365, %v6357
    %v6830 = vpack.c.b16 %v6366, %v6358
    %v6831 = vpack.c.b16 %v6367, %v6359
    %v6832 = vpack.c.b16 %v6376, %v6368
    %v6833 = vpack.c.b16 %v6377, %v6369
    %v6834 = vpack.c.b16 %v6378, %v6370
    %v6835 = vpack.c.b16 %v6379, %v6371
    %v6836 = vpack.c.b16 %v6380, %v6372
    %v6837 = vpack.c.b16 %v6381, %v6373
    %v6838 = vpack.c.b16 %v6382, %v6374
    %v6839 = vpack.c.b16 %v6383, %v6375
    %v6840 = vpack.c.b16 %v6392, %v6384
    %v6841 = vpack.c.b16 %v6393, %v6385
    %v6842 = vpack.c.b16 %v6394, %v6386
    %v6843 = vpack.c.b16 %v6395, %v6387
    %v6844 = vpack.c.b16 %v6396, %v6388
    %v6845 = vpack.c.b16 %v6397, %v6389
    %v6846 = vpack.c.b16 %v6398, %v6390
    %v6847 = vpack.c.b16 %v6399, %v6391
    %v6848 = vpack.c.b16 %v6408, %v6400
    %v6849 = vpack.c.b16 %v6409, %v6401
    %v6850 = vpack.c.b16 %v6410, %v6402
    %v6851 = vpack.c.b16 %v6411, %v6403
    %v6852 = vpack.c.b16 %v6412, %v6404
    %v6853 = vpack.c.b16 %v6413, %v6405
    %v6854 = vpack.c.b16 %v6414, %v6406
    %v6855 = vpack.c.b16 %v6415, %v6407
    %v6856 = vpack.c.b16 %v6424, %v6416
    %v6857 = vpack.c.b16 %v6425, %v6417
    %v6858 = vpack.c.b16 %v6426, %v6418
    %v6859 = vpack.c.b16 %v6427, %v6419
    %v6860 = vpack.c.b16 %v6428, %v6420
    %v6861 = vpack.c.b16 %v6429, %v6421
    %v6862 = vpack.c.b16 %v6430, %v6422
    %v6863 = vpack.c.b16 %v6431, %v6423
    %v6864 = vpack.c.b16 %v6440, %v6432
    %v6865 = vpack.c.b16 %v6441, %v6433
    %v6866 = vpack.c.b16 %v6442, %v6434
    %v6867 = vpack.c.b16 %v6443, %v6435
    %v6868 = vpack.c.b16 %v6444, %v6436
    %v6869 = vpack.c.b16 %v6445, %v6437
    %v6870 = vpack.c.b16 %v6446, %v6438
    %v6871 = vpack.c.b16 %v6447, %v6439
    %v6872 = vpack.c.b16 %v6456, %v6448
    %v6873 = vpack.c.b16 %v6457, %v6449
    %v6874 = vpack.c.b16 %v6458, %v6450
    %v6875 = vpack.c.b16 %v6459, %v6451
    %v6876 = vpack.c.b16 %v6460, %v6452
    %v6877 = vpack.c.b16 %v6461, %v6453
    %v6878 = vpack.c.b16 %v6462, %v6454
    %v6879 = vpack.c.b16 %v6463, %v6455
    %v6880 = vpack.c.b16 %v6472, %v6464
    %v6881 = vpack.c.b16 %v6473, %v6465
    %v6882 = vpack.c.b16 %v6474, %v6466
    %v6883 = vpack.c.b16 %v6475, %v6467
    %v6884 = vpack.c.b16 %v6476, %v6468
    %v6885 = vpack.c.b16 %v6477, %v6469
    %v6886 = vpack.c.b16 %v6478, %v6470
    %v6887 = vpack.c.b16 %v6479, %v6471
    %v6888 = vpack.c.b16 %v6488, %v6480
    %v6889 = vpack.c.b16 %v6489, %v6481
    %v6890 = vpack.c.b16 %v6490, %v6482
    %v6891 = vpack.c.b16 %v6491, %v6483
    %v6892 = vpack.c.b16 %v6492, %v6484
    %v6893 = vpack.c.b16 %v6493, %v6485
    %v6894 = vpack.c.b16 %v6494, %v6486
    %v6895 = vpack.c.b16 %v6495, %v6487
    %v6896 = vpack.c.b16 %v6504, %v6496
    %v6897 = vpack.c.b16 %v6505, %v6497
    %v6898 = vpack.c.b16 %v6506, %v6498
    %v6899 = vpack.c.b16 %v6507, %v6499
    %v6900 = vpack.c.b16 %v6508, %v6500
    %v6901 = vpack.c.b16 %v6509, %v6501
    %v6902 = vpack.c.b16 %v6510, %v6502
    %v6903 = vpack.c.b16 %v6511, %v6503
    %v6904 = vpack.c.b16 %v6520, %v6512
    %v6905 = vpack.c.b16 %v6521, %v6513
    %v6906 = vpack.c.b16 %v6522, %v6514
    %v6907 = vpack.c.b16 %v6523, %v6515
    %v6908 = vpack.c.b16 %v6524, %v6516
    %v6909 = vpack.c.b16 %v6525, %v6517
    %v6910 = vpack.c.b16 %v6526, %v6518
    %v6911 = vpack.c.b16 %v6527, %v6519
    %v6912 = vpack.c.b16 %v6536, %v6528
    %v6913 = vpack.c.b16 %v6537, %v6529
    %v6914 = vpack.c.b16 %v6538, %v6530
    %v6915 = vpack.c.b16 %v6539, %v6531
    %v6916 = vpack.c.b16 %v6540, %v6532
    %v6917 = vpack.c.b16 %v6541, %v6533
    %v6918 = vpack.c.b16 %v6542, %v6534
    %v6919 = vpack.c.b16 %v6543, %v6535
    %v6920 = vpack.c.b16 %v6552, %v6544
    %v6921 = vpack.c.b16 %v6553, %v6545
    %v6922 = vpack.c.b16 %v6554, %v6546
    %v6923 = vpack.c.b16 %v6555, %v6547
    %v6924 = vpack.c.b16 %v6556, %v6548
    %v6925 = vpack.c.b16 %v6557, %v6549
    %v6926 = vpack.c.b16 %v6558, %v6550
    %v6927 = vpack.c.b16 %v6559, %v6551
    %v6928 = vpack.c.b16 %v6568, %v6560
    %v6929 = vpack.c.b16 %v6569, %v6561
    %v6930 = vpack.c.b16 %v6570, %v6562
    %v6931 = vpack.c.b16 %v6571, %v6563
    %v6932 = vpack.c.b16 %v6572, %v6564
    %v6933 = vpack.c.b16 %v6573, %v6565
    %v6934 = vpack.c.b16 %v6574, %v6566
    %v6935 = vpack.c.b16 %v6575, %v6567
    %v6936 = vpack.c.b16 %v6584, %v6576
    %v6937 = vpack.c.b16 %v6585, %v6577
    %v6938 = vpack.c.b16 %v6586, %v6578
    %v6939 = vpack.c.b16 %v6587, %v6579
    %v6940 = vpack.c.b16 %v6588, %v6580
    %v6941 = vpack.c.b16 %v6589, %v6581
    %v6942 = vpack.c.b16 %v6590, %v6582
    %v6943 = vpack.c.b16 %v6591, %v6583
    %v6944 = vpack.c.b16 %v6600, %v6592
    %v6945 = vpack.c.b16 %v6601, %v6593
    %v6946 = vpack.c.b16 %v6602, %v6594
    %v6947 = vpack.c.b16 %v6603, %v6595
    %v6948 = vpack.c.b16 %v6604, %v6596
    %v6949 = vpack.c.b16 %v6605, %v6597
    %v6950 = vpack.c.b16 %v6606, %v6598
    %v6951 = vpack.c.b16 %v6607, %v6599
    %v6952 = vpack.c.b16 %v6616, %v6608
    %v6953 = vpack.c.b16 %v6617, %v6609
    %v6954 = vpack.c.b16 %v6618, %v6610
    %v6955 = vpack.c.b16 %v6619, %v6611
    %v6956 = vpack.c.b16 %v6620, %v6612
    %v6957 = vpack.c.b16 %v6621, %v6613
    %v6958 = vpack.c.b16 %v6622, %v6614
    %v6959 = vpack.c.b16 %v6623, %v6615
    %v6960 = vpack.c.b16 %v6632, %v6624
    %v6961 = vpack.c.b16 %v6633, %v6625
    %v6962 = vpack.c.b16 %v6634, %v6626
    %v6963 = vpack.c.b16 %v6635, %v6627
    %v6964 = vpack.c.b16 %v6636, %v6628
    %v6965 = vpack.c.b16 %v6637, %v6629
    %v6966 = vpack.c.b16 %v6638, %v6630
    %v6967 = vpack.c.b16 %v6639, %v6631
    %v6968 = vpack.c.b16 %v6648, %v6640
    %v6969 = vpack.c.b16 %v6649, %v6641
    %v6970 = vpack.c.b16 %v6650, %v6642
    %v6971 = vpack.c.b16 %v6651, %v6643
    %v6972 = vpack.c.b16 %v6652, %v6644
    %v6973 = vpack.c.b16 %v6653, %v6645
    %v6974 = vpack.c.b16 %v6654, %v6646
    %v6975 = vpack.c.b16 %v6655, %v6647
    %v6976 = vpack.c.b16 %v6664, %v6656
    %v6977 = vpack.c.b16 %v6665, %v6657
    %v6978 = vpack.c.b16 %v6666, %v6658
    %v6979 = vpack.c.b16 %v6667, %v6659
    %v6980 = vpack.c.b16 %v6668, %v6660
    %v6981 = vpack.c.b16 %v6669, %v6661
    %v6982 = vpack.c.b16 %v6670, %v6662
    %v6983 = vpack.c.b16 %v6671, %v6663
    %v6984 = vpack.c.b16 %v6680, %v6672
    %v6985 = vpack.c.b16 %v6681, %v6673
    %v6986 = vpack.c.b16 %v6682, %v6674
    %v6987 = vpack.c.b16 %v6683, %v6675
    %v6988 = vpack.c.b16 %v6684, %v6676
    %v6989 = vpack.c.b16 %v6685, %v6677
    %v6990 = vpack.c.b16 %v6686, %v6678
    %v6991 = vpack.c.b16 %v6687, %v6679
    %v6992 = vpack.c.b16 %v6696, %v6688
    %v6993 = vpack.c.b16 %v6697, %v6689
    %v6994 = vpack.c.b16 %v6698, %v6690
    %v6995 = vpack.c.b16 %v6699, %v6691
    %v6996 = vpack.c.b16 %v6700, %v6692
    %v6997 = vpack.c.b16 %v6701, %v6693
    %v6998 = vpack.c.b16 %v6702, %v6694
    %v6999 = vpack.c.b16 %v6703, %v6695
    %v7000 = vpack.c.b16 %v6712, %v6704
    %v7001 = vpack.c.b16 %v6713, %v6705
    %v7002 = vpack.c.b16 %v6714, %v6706
    %v7003 = vpack.c.b16 %v6715, %v6707
    %v7004 = vpack.c.b16 %v6716, %v6708
    %v7005 = vpack.c.b16 %v6717, %v6709
    %v7006 = vpack.c.b16 %v6718, %v6710
    %v7007 = vpack.c.b16 %v6719, %v6711
    %v7008 = vpack.c.b16 %v6728, %v6720
    %v7009 = vpack.c.b16 %v6729, %v6721
    %v7010 = vpack.c.b16 %v6730, %v6722
    %v7011 = vpack.c.b16 %v6731, %v6723
    %v7012 = vpack.c.b16 %v6732, %v6724
    %v7013 = vpack.c.b16 %v6733, %v6725
    %v7014 = vpack.c.b16 %v6734, %v6726
    %v7015 = vpack.c.b16 %v6735, %v6727
    %v7016 = vpack.c.b16 %v6744, %v6736
    %v7017 = vpack.c.b16 %v6745, %v6737
    %v7018 = vpack.c.b16 %v6746, %v6738
    %v7019 = vpack.c.b16 %v6747, %v6739
    %v7020 = vpack.c.b16 %v6748, %v6740
    %v7021 = vpack.c.b16 %v6749, %v6741
    %v7022 = vpack.c.b16 %v6750, %v6742
    %v7023 = vpack.c.b16 %v6751, %v6743
    %v7024 = vpack.c.b16 %v6760, %v6752
    %v7025 = vpack.c.b16 %v6761, %v6753
    %v7026 = vpack.c.b16 %v6762, %v6754
    %v7027 = vpack.c.b16 %v6763, %v6755
    %v7028 = vpack.c.b16 %v6764, %v6756
    %v7029 = vpack.c.b16 %v6765, %v6757
    %v7030 = vpack.c.b16 %v6766, %v6758
    %v7031 = vpack.c.b16 %v6767, %v6759
    %v7032 = vpack.c.b16 %v6776, %v6768
    %v7033 = vpack.c.b16 %v6777, %v6769
    %v7034 = vpack.c.b16 %v6778, %v6770
    %v7035 = vpack.c.b16 %v6779, %v6771
    %v7036 = vpack.c.b16 %v6780, %v6772
    %v7037 = vpack.c.b16 %v6781, %v6773
    %v7038 = vpack.c.b16 %v6782, %v6774
    %v7039 = vpack.c.b16 %v6783, %v6775
    %7296 = vmatpush.bf16.msra.mxu0 %v6840
    %7297 = vmatpush.bf16.msra.mxu0 %v6832
    %7298 = vmatpush.bf16.msra.mxu0 %v6824
    %7299 = vmatpush.bf16.msra.mxu0 %v6816
    %7300 = vmatpush.bf16.msra.mxu0 %v6808
    %7301 = vmatpush.bf16.msra.mxu0 %v6800
    %7302 = vmatpush.bf16.msra.mxu0 %v6792
    %7303 = vmatpush.bf16.msra.mxu0 %v6784
    %7304 = vmatmul.bf16.gmra.mxu0 %v5756
    %v7305 = vpop.f32.mrf.mxu0
    %v7306 = vadd.f32 0.0, %v7305
    %v7307 = vpop.f32.mrf.mxu0
    %v7308 = vadd.f32 0.0, %v7307
    %7309 = vdwg.mxu0
    %7310 = vmatpush.bf16.msra.mxu0 %v6904
    %7311 = vmatpush.bf16.msra.mxu0 %v6896
    %7312 = vmatpush.bf16.msra.mxu0 %v6888
    %7313 = vmatpush.bf16.msra.mxu0 %v6880
    %7314 = vmatpush.bf16.msra.mxu0 %v6872
    %7315 = vmatpush.bf16.msra.mxu0 %v6864
    %7316 = vmatpush.bf16.msra.mxu0 %v6856
    %7317 = vmatpush.bf16.msra.mxu0 %v6848
    %7318 = vmatmul.bf16.gmra.mxu0 %v5757
    %v7319 = vpop.f32.mrf.mxu0
    %v7320 = vadd.f32 %v7306, %v7319
    %v7321 = vpop.f32.mrf.mxu0
    %v7322 = vadd.f32 %v7308, %v7321
    %7323 = vdwg.mxu0
    %7324 = vmatpush.bf16.msra.mxu0 %v6968
    %7325 = vmatpush.bf16.msra.mxu0 %v6960
    %7326 = vmatpush.bf16.msra.mxu0 %v6952
    %7327 = vmatpush.bf16.msra.mxu0 %v6944
    %7328 = vmatpush.bf16.msra.mxu0 %v6936
    %7329 = vmatpush.bf16.msra.mxu0 %v6928
    %7330 = vmatpush.bf16.msra.mxu0 %v6920
    %7331 = vmatpush.bf16.msra.mxu0 %v6912
    %7332 = vmatmul.bf16.gmra.mxu0 %v5758
    %v7333 = vpop.f32.mrf.mxu0
    %v7334 = vadd.f32 %v7320, %v7333
    %v7335 = vpop.f32.mrf.mxu0
    %v7336 = vadd.f32 %v7322, %v7335
    %7337 = vdwg.mxu0
    %7338 = vmatpush.bf16.msra.mxu0 %v7032
    %7339 = vmatpush.bf16.msra.mxu0 %v7024
    %7340 = vmatpush.bf16.msra.mxu0 %v7016
    %7341 = vmatpush.bf16.msra.mxu0 %v7008
    %7342 = vmatpush.bf16.msra.mxu0 %v7000
    %7343 = vmatpush.bf16.msra.mxu0 %v6992
    %7344 = vmatpush.bf16.msra.mxu0 %v6984
    %7345 = vmatpush.bf16.msra.mxu0 %v6976
    %7346 = vmatmul.bf16.gmra.mxu0 %v5759
    %v7347 = vpop.f32.mrf.mxu0
    %v7348 = vadd.f32 %v7334, %v7347
    %v7349 = vpop.f32.mrf.mxu0
    %v7350 = vadd.f32 %v7336, %v7349
    %7351 = vdwg.mxu0
    %7352 = vmatpush.bf16.msra.mxu0 %v6841
    %7353 = vmatpush.bf16.msra.mxu0 %v6833
    %7354 = vmatpush.bf16.msra.mxu0 %v6825
    %7355 = vmatpush.bf16.msra.mxu0 %v6817
    %7356 = vmatpush.bf16.msra.mxu0 %v6809
    %7357 = vmatpush.bf16.msra.mxu0 %v6801
    %7358 = vmatpush.bf16.msra.mxu0 %v6793
    %7359 = vmatpush.bf16.msra.mxu0 %v6785
    %7360 = vmatmul.bf16.gmra.mxu0 %v5756
    %v7361 = vpop.f32.mrf.mxu0
    %v7362 = vadd.f32 0.0, %v7361
    %v7363 = vpop.f32.mrf.mxu0
    %v7364 = vadd.f32 0.0, %v7363
    %7365 = vdwg.mxu0
    %7366 = vmatpush.bf16.msra.mxu0 %v6905
    %7367 = vmatpush.bf16.msra.mxu0 %v6897
    %7368 = vmatpush.bf16.msra.mxu0 %v6889
    %7369 = vmatpush.bf16.msra.mxu0 %v6881
    %7370 = vmatpush.bf16.msra.mxu0 %v6873
    %7371 = vmatpush.bf16.msra.mxu0 %v6865
    %7372 = vmatpush.bf16.msra.mxu0 %v6857
    %7373 = vmatpush.bf16.msra.mxu0 %v6849
    %7374 = vmatmul.bf16.gmra.mxu0 %v5757
    %v7375 = vpop.f32.mrf.mxu0
    %v7376 = vadd.f32 %v7362, %v7375
    %v7377 = vpop.f32.mrf.mxu0
    %v7378 = vadd.f32 %v7364, %v7377
    %7379 = vdwg.mxu0
    %7380 = vmatpush.bf16.msra.mxu0 %v6969
    %7381 = vmatpush.bf16.msra.mxu0 %v6961
    %7382 = vmatpush.bf16.msra.mxu0 %v6953
    %7383 = vmatpush.bf16.msra.mxu0 %v6945
    %7384 = vmatpush.bf16.msra.mxu0 %v6937
    %7385 = vmatpush.bf16.msra.mxu0 %v6929
    %7386 = vmatpush.bf16.msra.mxu0 %v6921
    %7387 = vmatpush.bf16.msra.mxu0 %v6913
    %7388 = vmatmul.bf16.gmra.mxu0 %v5758
    %v7389 = vpop.f32.mrf.mxu0
    %v7390 = vadd.f32 %v7376, %v7389
    %v7391 = vpop.f32.mrf.mxu0
    %v7392 = vadd.f32 %v7378, %v7391
    %7393 = vdwg.mxu0
    %7394 = vmatpush.bf16.msra.mxu0 %v7033
    %7395 = vmatpush.bf16.msra.mxu0 %v7025
    %7396 = vmatpush.bf16.msra.mxu0 %v7017
    %7397 = vmatpush.bf16.msra.mxu0 %v7009
    %7398 = vmatpush.bf16.msra.mxu0 %v7001
    %7399 = vmatpush.bf16.msra.mxu0 %v6993
    %7400 = vmatpush.bf16.msra.mxu0 %v6985
    %7401 = vmatpush.bf16.msra.mxu0 %v6977
    %7402 = vmatmul.bf16.gmra.mxu0 %v5759
    %v7403 = vpop.f32.mrf.mxu0
    %v7404 = vadd.f32 %v7390, %v7403
    %v7405 = vpop.f32.mrf.mxu0
    %v7406 = vadd.f32 %v7392, %v7405
    %7407 = vdwg.mxu0
    %7408 = vmatpush.bf16.msra.mxu0 %v6842
    %7409 = vmatpush.bf16.msra.mxu0 %v6834
    %7410 = vmatpush.bf16.msra.mxu0 %v6826
    %7411 = vmatpush.bf16.msra.mxu0 %v6818
    %7412 = vmatpush.bf16.msra.mxu0 %v6810
    %7413 = vmatpush.bf16.msra.mxu0 %v6802
    %7414 = vmatpush.bf16.msra.mxu0 %v6794
    %7415 = vmatpush.bf16.msra.mxu0 %v6786
    %7416 = vmatmul.bf16.gmra.mxu0 %v5756
    %v7417 = vpop.f32.mrf.mxu0
    %v7418 = vadd.f32 0.0, %v7417
    %v7419 = vpop.f32.mrf.mxu0
    %v7420 = vadd.f32 0.0, %v7419
    %7421 = vdwg.mxu0
    %7422 = vmatpush.bf16.msra.mxu0 %v6906
    %7423 = vmatpush.bf16.msra.mxu0 %v6898
    %7424 = vmatpush.bf16.msra.mxu0 %v6890
    %7425 = vmatpush.bf16.msra.mxu0 %v6882
    %7426 = vmatpush.bf16.msra.mxu0 %v6874
    %7427 = vmatpush.bf16.msra.mxu0 %v6866
    %7428 = vmatpush.bf16.msra.mxu0 %v6858
    %7429 = vmatpush.bf16.msra.mxu0 %v6850
    %7430 = vmatmul.bf16.gmra.mxu0 %v5757
    %v7431 = vpop.f32.mrf.mxu0
    %v7432 = vadd.f32 %v7418, %v7431
    %v7433 = vpop.f32.mrf.mxu0
    %v7434 = vadd.f32 %v7420, %v7433
    %7435 = vdwg.mxu0
    %7436 = vmatpush.bf16.msra.mxu0 %v6970
    %7437 = vmatpush.bf16.msra.mxu0 %v6962
    %7438 = vmatpush.bf16.msra.mxu0 %v6954
    %7439 = vmatpush.bf16.msra.mxu0 %v6946
    %7440 = vmatpush.bf16.msra.mxu0 %v6938
    %7441 = vmatpush.bf16.msra.mxu0 %v6930
    %7442 = vmatpush.bf16.msra.mxu0 %v6922
    %7443 = vmatpush.bf16.msra.mxu0 %v6914
    %7444 = vmatmul.bf16.gmra.mxu0 %v5758
    %v7445 = vpop.f32.mrf.mxu0
    %v7446 = vadd.f32 %v7432, %v7445
    %v7447 = vpop.f32.mrf.mxu0
    %v7448 = vadd.f32 %v7434, %v7447
    %7449 = vdwg.mxu0
    %7450 = vmatpush.bf16.msra.mxu0 %v7034
    %7451 = vmatpush.bf16.msra.mxu0 %v7026
    %7452 = vmatpush.bf16.msra.mxu0 %v7018
    %7453 = vmatpush.bf16.msra.mxu0 %v7010
    %7454 = vmatpush.bf16.msra.mxu0 %v7002
    %7455 = vmatpush.bf16.msra.mxu0 %v6994
    %7456 = vmatpush.bf16.msra.mxu0 %v6986
    %7457 = vmatpush.bf16.msra.mxu0 %v6978
    %7458 = vmatmul.bf16.gmra.mxu0 %v5759
    %v7459 = vpop.f32.mrf.mxu0
    %v7460 = vadd.f32 %v7446, %v7459
    %v7461 = vpop.f32.mrf.mxu0
    %v7462 = vadd.f32 %v7448, %v7461
    %7463 = vdwg.mxu0
    %7464 = vmatpush.bf16.msra.mxu0 %v6843
    %7465 = vmatpush.bf16.msra.mxu0 %v6835
    %7466 = vmatpush.bf16.msra.mxu0 %v6827
    %7467 = vmatpush.bf16.msra.mxu0 %v6819
    %7468 = vmatpush.bf16.msra.mxu0 %v6811
    %7469 = vmatpush.bf16.msra.mxu0 %v6803
    %7470 = vmatpush.bf16.msra.mxu0 %v6795
    %7471 = vmatpush.bf16.msra.mxu0 %v6787
    %7472 = vmatmul.bf16.gmra.mxu0 %v5756
    %v7473 = vpop.f32.mrf.mxu0
    %v7474 = vadd.f32 0.0, %v7473
    %v7475 = vpop.f32.mrf.mxu0
    %v7476 = vadd.f32 0.0, %v7475
    %7477 = vdwg.mxu0
    %7478 = vmatpush.bf16.msra.mxu0 %v6907
    %7479 = vmatpush.bf16.msra.mxu0 %v6899
    %7480 = vmatpush.bf16.msra.mxu0 %v6891
    %7481 = vmatpush.bf16.msra.mxu0 %v6883
    %7482 = vmatpush.bf16.msra.mxu0 %v6875
    %7483 = vmatpush.bf16.msra.mxu0 %v6867
    %7484 = vmatpush.bf16.msra.mxu0 %v6859
    %7485 = vmatpush.bf16.msra.mxu0 %v6851
    %7486 = vmatmul.bf16.gmra.mxu0 %v5757
    %v7487 = vpop.f32.mrf.mxu0
    %v7488 = vadd.f32 %v7474, %v7487
    %v7489 = vpop.f32.mrf.mxu0
    %v7490 = vadd.f32 %v7476, %v7489
    %7491 = vdwg.mxu0
    %7492 = vmatpush.bf16.msra.mxu0 %v6971
    %7493 = vmatpush.bf16.msra.mxu0 %v6963
    %7494 = vmatpush.bf16.msra.mxu0 %v6955
    %7495 = vmatpush.bf16.msra.mxu0 %v6947
    %7496 = vmatpush.bf16.msra.mxu0 %v6939
    %7497 = vmatpush.bf16.msra.mxu0 %v6931
    %7498 = vmatpush.bf16.msra.mxu0 %v6923
    %7499 = vmatpush.bf16.msra.mxu0 %v6915
    %7500 = vmatmul.bf16.gmra.mxu0 %v5758
    %v7501 = vpop.f32.mrf.mxu0
    %v7502 = vadd.f32 %v7488, %v7501
    %v7503 = vpop.f32.mrf.mxu0
    %v7504 = vadd.f32 %v7490, %v7503
    %7505 = vdwg.mxu0
    %7506 = vmatpush.bf16.msra.mxu0 %v7035
    %7507 = vmatpush.bf16.msra.mxu0 %v7027
    %7508 = vmatpush.bf16.msra.mxu0 %v7019
    %7509 = vmatpush.bf16.msra.mxu0 %v7011
    %7510 = vmatpush.bf16.msra.mxu0 %v7003
    %7511 = vmatpush.bf16.msra.mxu0 %v6995
    %7512 = vmatpush.bf16.msra.mxu0 %v6987
    %7513 = vmatpush.bf16.msra.mxu0 %v6979
    %7514 = vmatmul.bf16.gmra.mxu0 %v5759
    %v7515 = vpop.f32.mrf.mxu0
    %v7516 = vadd.f32 %v7502, %v7515
    %v7517 = vpop.f32.mrf.mxu0
    %v7518 = vadd.f32 %v7504, %v7517
    %7519 = vdwg.mxu0
    %7520 = vmatpush.bf16.msra.mxu0 %v6844
    %7521 = vmatpush.bf16.msra.mxu0 %v6836
    %7522 = vmatpush.bf16.msra.mxu0 %v6828
    %7523 = vmatpush.bf16.msra.mxu0 %v6820
    %7524 = vmatpush.bf16.msra.mxu0 %v6812
    %7525 = vmatpush.bf16.msra.mxu0 %v6804
    %7526 = vmatpush.bf16.msra.mxu0 %v6796
    %7527 = vmatpush.bf16.msra.mxu0 %v6788
    %7528 = vmatmul.bf16.gmra.mxu0 %v5756
    %v7529 = vpop.f32.mrf.mxu0
    %v7530 = vadd.f32 0.0, %v7529
    %v7531 = vpop.f32.mrf.mxu0
    %v7532 = vadd.f32 0.0, %v7531
    %7533 = vdwg.mxu0
    %7534 = vmatpush.bf16.msra.mxu0 %v6908
    %7535 = vmatpush.bf16.msra.mxu0 %v6900
    %7536 = vmatpush.bf16.msra.mxu0 %v6892
    %7537 = vmatpush.bf16.msra.mxu0 %v6884
    %7538 = vmatpush.bf16.msra.mxu0 %v6876
    %7539 = vmatpush.bf16.msra.mxu0 %v6868
    %7540 = vmatpush.bf16.msra.mxu0 %v6860
    %7541 = vmatpush.bf16.msra.mxu0 %v6852
    %7542 = vmatmul.bf16.gmra.mxu0 %v5757
    %v7543 = vpop.f32.mrf.mxu0
    %v7544 = vadd.f32 %v7530, %v7543
    %v7545 = vpop.f32.mrf.mxu0
    %v7546 = vadd.f32 %v7532, %v7545
    %7547 = vdwg.mxu0
    %7548 = vmatpush.bf16.msra.mxu0 %v6972
    %7549 = vmatpush.bf16.msra.mxu0 %v6964
    %7550 = vmatpush.bf16.msra.mxu0 %v6956
    %7551 = vmatpush.bf16.msra.mxu0 %v6948
    %7552 = vmatpush.bf16.msra.mxu0 %v6940
    %7553 = vmatpush.bf16.msra.mxu0 %v6932
    %7554 = vmatpush.bf16.msra.mxu0 %v6924
    %7555 = vmatpush.bf16.msra.mxu0 %v6916
    %7556 = vmatmul.bf16.gmra.mxu0 %v5758
    %v7557 = vpop.f32.mrf.mxu0
    %v7558 = vadd.f32 %v7544, %v7557
    %v7559 = vpop.f32.mrf.mxu0
    %v7560 = vadd.f32 %v7546, %v7559
    %7561 = vdwg.mxu0
    %7562 = vmatpush.bf16.msra.mxu0 %v7036
    %7563 = vmatpush.bf16.msra.mxu0 %v7028
    %7564 = vmatpush.bf16.msra.mxu0 %v7020
    %7565 = vmatpush.bf16.msra.mxu0 %v7012
    %7566 = vmatpush.bf16.msra.mxu0 %v7004
    %7567 = vmatpush.bf16.msra.mxu0 %v6996
    %7568 = vmatpush.bf16.msra.mxu0 %v6988
    %7569 = vmatpush.bf16.msra.mxu0 %v6980
    %7570 = vmatmul.bf16.gmra.mxu0 %v5759
    %v7571 = vpop.f32.mrf.mxu0
    %v7572 = vadd.f32 %v7558, %v7571
    %v7573 = vpop.f32.mrf.mxu0
    %v7574 = vadd.f32 %v7560, %v7573
    %7575 = vdwg.mxu0
    %7576 = vmatpush.bf16.msra.mxu0 %v6845
    %7577 = vmatpush.bf16.msra.mxu0 %v6837
    %7578 = vmatpush.bf16.msra.mxu0 %v6829
    %7579 = vmatpush.bf16.msra.mxu0 %v6821
    %7580 = vmatpush.bf16.msra.mxu0 %v6813
    %7581 = vmatpush.bf16.msra.mxu0 %v6805
    %7582 = vmatpush.bf16.msra.mxu0 %v6797
    %7583 = vmatpush.bf16.msra.mxu0 %v6789
    %7584 = vmatmul.bf16.gmra.mxu0 %v5756
    %v7585 = vpop.f32.mrf.mxu0
    %v7586 = vadd.f32 0.0, %v7585
    %v7587 = vpop.f32.mrf.mxu0
    %v7588 = vadd.f32 0.0, %v7587
    %7589 = vdwg.mxu0
    %7590 = vmatpush.bf16.msra.mxu0 %v6909
    %7591 = vmatpush.bf16.msra.mxu0 %v6901
    %7592 = vmatpush.bf16.msra.mxu0 %v6893
    %7593 = vmatpush.bf16.msra.mxu0 %v6885
    %7594 = vmatpush.bf16.msra.mxu0 %v6877
    %7595 = vmatpush.bf16.msra.mxu0 %v6869
    %7596 = vmatpush.bf16.msra.mxu0 %v6861
    %7597 = vmatpush.bf16.msra.mxu0 %v6853
    %7598 = vmatmul.bf16.gmra.mxu0 %v5757
    %v7599 = vpop.f32.mrf.mxu0
    %v7600 = vadd.f32 %v7586, %v7599
    %v7601 = vpop.f32.mrf.mxu0
    %v7602 = vadd.f32 %v7588, %v7601
    %7603 = vdwg.mxu0
    %7604 = vmatpush.bf16.msra.mxu0 %v6973
    %7605 = vmatpush.bf16.msra.mxu0 %v6965
    %7606 = vmatpush.bf16.msra.mxu0 %v6957
    %7607 = vmatpush.bf16.msra.mxu0 %v6949
    %7608 = vmatpush.bf16.msra.mxu0 %v6941
    %7609 = vmatpush.bf16.msra.mxu0 %v6933
    %7610 = vmatpush.bf16.msra.mxu0 %v6925
    %7611 = vmatpush.bf16.msra.mxu0 %v6917
    %7612 = vmatmul.bf16.gmra.mxu0 %v5758
    %v7613 = vpop.f32.mrf.mxu0
    %v7614 = vadd.f32 %v7600, %v7613
    %v7615 = vpop.f32.mrf.mxu0
    %v7616 = vadd.f32 %v7602, %v7615
    %7617 = vdwg.mxu0
    %7618 = vmatpush.bf16.msra.mxu0 %v7037
    %7619 = vmatpush.bf16.msra.mxu0 %v7029
    %7620 = vmatpush.bf16.msra.mxu0 %v7021
    %7621 = vmatpush.bf16.msra.mxu0 %v7013
    %7622 = vmatpush.bf16.msra.mxu0 %v7005
    %7623 = vmatpush.bf16.msra.mxu0 %v6997
    %7624 = vmatpush.bf16.msra.mxu0 %v6989
    %7625 = vmatpush.bf16.msra.mxu0 %v6981
    %7626 = vmatmul.bf16.gmra.mxu0 %v5759
    %v7627 = vpop.f32.mrf.mxu0
    %v7628 = vadd.f32 %v7614, %v7627
    %v7629 = vpop.f32.mrf.mxu0
    %v7630 = vadd.f32 %v7616, %v7629
    %7631 = vdwg.mxu0
    %7632 = vmatpush.bf16.msra.mxu0 %v6846
    %7633 = vmatpush.bf16.msra.mxu0 %v6838
    %7634 = vmatpush.bf16.msra.mxu0 %v6830
    %7635 = vmatpush.bf16.msra.mxu0 %v6822
    %7636 = vmatpush.bf16.msra.mxu0 %v6814
    %7637 = vmatpush.bf16.msra.mxu0 %v6806
    %7638 = vmatpush.bf16.msra.mxu0 %v6798
    %7639 = vmatpush.bf16.msra.mxu0 %v6790
    %7640 = vmatmul.bf16.gmra.mxu0 %v5756
    %v7641 = vpop.f32.mrf.mxu0
    %v7642 = vadd.f32 0.0, %v7641
    %v7643 = vpop.f32.mrf.mxu0
    %v7644 = vadd.f32 0.0, %v7643
    %7645 = vdwg.mxu0
    %7646 = vmatpush.bf16.msra.mxu0 %v6910
    %7647 = vmatpush.bf16.msra.mxu0 %v6902
    %7648 = vmatpush.bf16.msra.mxu0 %v6894
    %7649 = vmatpush.bf16.msra.mxu0 %v6886
    %7650 = vmatpush.bf16.msra.mxu0 %v6878
    %7651 = vmatpush.bf16.msra.mxu0 %v6870
    %7652 = vmatpush.bf16.msra.mxu0 %v6862
    %7653 = vmatpush.bf16.msra.mxu0 %v6854
    %7654 = vmatmul.bf16.gmra.mxu0 %v5757
    %v7655 = vpop.f32.mrf.mxu0
    %v7656 = vadd.f32 %v7642, %v7655
    %v7657 = vpop.f32.mrf.mxu0
    %v7658 = vadd.f32 %v7644, %v7657
    %7659 = vdwg.mxu0
    %7660 = vmatpush.bf16.msra.mxu0 %v6974
    %7661 = vmatpush.bf16.msra.mxu0 %v6966
    %7662 = vmatpush.bf16.msra.mxu0 %v6958
    %7663 = vmatpush.bf16.msra.mxu0 %v6950
    %7664 = vmatpush.bf16.msra.mxu0 %v6942
    %7665 = vmatpush.bf16.msra.mxu0 %v6934
    %7666 = vmatpush.bf16.msra.mxu0 %v6926
    %7667 = vmatpush.bf16.msra.mxu0 %v6918
    %7668 = vmatmul.bf16.gmra.mxu0 %v5758
    %v7669 = vpop.f32.mrf.mxu0
    %v7670 = vadd.f32 %v7656, %v7669
    %v7671 = vpop.f32.mrf.mxu0
    %v7672 = vadd.f32 %v7658, %v7671
    %7673 = vdwg.mxu0
    %7674 = vmatpush.bf16.msra.mxu0 %v7038
    %7675 = vmatpush.bf16.msra.mxu0 %v7030
    %7676 = vmatpush.bf16.msra.mxu0 %v7022
    %7677 = vmatpush.bf16.msra.mxu0 %v7014
    %7678 = vmatpush.bf16.msra.mxu0 %v7006
    %7679 = vmatpush.bf16.msra.mxu0 %v6998
    %7680 = vmatpush.bf16.msra.mxu0 %v6990
    %7681 = vmatpush.bf16.msra.mxu0 %v6982
    %7682 = vmatmul.bf16.gmra.mxu0 %v5759
    %v7683 = vpop.f32.mrf.mxu0
    %v7684 = vadd.f32 %v7670, %v7683
    %v7685 = vpop.f32.mrf.mxu0
    %v7686 = vadd.f32 %v7672, %v7685
    %7687 = vdwg.mxu0
    %7688 = vmatpush.bf16.msra.mxu0 %v6847
    %7689 = vmatpush.bf16.msra.mxu0 %v6839
    %7690 = vmatpush.bf16.msra.mxu0 %v6831
    %7691 = vmatpush.bf16.msra.mxu0 %v6823
    %7692 = vmatpush.bf16.msra.mxu0 %v6815
    %7693 = vmatpush.bf16.msra.mxu0 %v6807
    %7694 = vmatpush.bf16.msra.mxu0 %v6799
    %7695 = vmatpush.bf16.msra.mxu0 %v6791
    %7696 = vmatmul.bf16.gmra.mxu0 %v5756
    %v7697 = vpop.f32.mrf.mxu0
    %v7698 = vadd.f32 0.0, %v7697
    %v7699 = vpop.f32.mrf.mxu0
    %v7700 = vadd.f32 0.0, %v7699
    %7701 = vdwg.mxu0
    %7702 = vmatpush.bf16.msra.mxu0 %v6911
    %7703 = vmatpush.bf16.msra.mxu0 %v6903
    %7704 = vmatpush.bf16.msra.mxu0 %v6895
    %7705 = vmatpush.bf16.msra.mxu0 %v6887
    %7706 = vmatpush.bf16.msra.mxu0 %v6879
    %7707 = vmatpush.bf16.msra.mxu0 %v6871
    %7708 = vmatpush.bf16.msra.mxu0 %v6863
    %7709 = vmatpush.bf16.msra.mxu0 %v6855
    %7710 = vmatmul.bf16.gmra.mxu0 %v5757
    %v7711 = vpop.f32.mrf.mxu0
    %v7712 = vadd.f32 %v7698, %v7711
    %v7713 = vpop.f32.mrf.mxu0
    %v7714 = vadd.f32 %v7700, %v7713
    %7715 = vdwg.mxu0
    %7716 = vmatpush.bf16.msra.mxu0 %v6975
    %7717 = vmatpush.bf16.msra.mxu0 %v6967
    %7718 = vmatpush.bf16.msra.mxu0 %v6959
    %7719 = vmatpush.bf16.msra.mxu0 %v6951
    %7720 = vmatpush.bf16.msra.mxu0 %v6943
    %7721 = vmatpush.bf16.msra.mxu0 %v6935
    %7722 = vmatpush.bf16.msra.mxu0 %v6927
    %7723 = vmatpush.bf16.msra.mxu0 %v6919
    %7724 = vmatmul.bf16.gmra.mxu0 %v5758
    %v7725 = vpop.f32.mrf.mxu0
    %v7726 = vadd.f32 %v7712, %v7725
    %v7727 = vpop.f32.mrf.mxu0
    %v7728 = vadd.f32 %v7714, %v7727
    %7729 = vdwg.mxu0
    %7730 = vmatpush.bf16.msra.mxu0 %v7039
    %7731 = vmatpush.bf16.msra.mxu0 %v7031
    %7732 = vmatpush.bf16.msra.mxu0 %v7023
    %7733 = vmatpush.bf16.msra.mxu0 %v7015
    %7734 = vmatpush.bf16.msra.mxu0 %v7007
    %7735 = vmatpush.bf16.msra.mxu0 %v6999
    %7736 = vmatpush.bf16.msra.mxu0 %v6991
    %7737 = vmatpush.bf16.msra.mxu0 %v6983
    %7738 = vmatmul.bf16.gmra.mxu0 %v5759
    %v7739 = vpop.f32.mrf.mxu0
    %v7740 = vadd.f32 %v7726, %v7739
    %v7741 = vpop.f32.mrf.mxu0
    %v7742 = vadd.f32 %v7728, %v7741
    %7743 = vdwg.mxu0
    %v8000 = vunpack.c.l.b16 %v5500
    %v8001 = vunpack.c.h.b16 %v5500
    %v8002 = vunpack.c.l.b16 %v5501
    %v8003 = vunpack.c.h.b16 %v5501
    %v8004 = vunpack.c.l.b16 %v5502
    %v8005 = vunpack.c.h.b16 %v5502
    %v8006 = vunpack.c.l.b16 %v5503
    %v8007 = vunpack.c.h.b16 %v5503
    %v8008 = vunpack.c.l.b16 %v5504
    %v8009 = vunpack.c.h.b16 %v5504
    %v8010 = vunpack.c.l.b16 %v5505
    %v8011 = vunpack.c.h.b16 %v5505
    %v8012 = vunpack.c.l.b16 %v5506
    %v8013 = vunpack.c.h.b16 %v5506
    %v8014 = vunpack.c.l.b16 %v5507
    %v8015 = vunpack.c.h.b16 %v5507
    %v8016 = vunpack.c.l.b16 %v5508
    %v8017 = vunpack.c.h.b16 %v5508
    %v8018 = vunpack.c.l.b16 %v5509
    %v8019 = vunpack.c.h.b16 %v5509
    %v8020 = vunpack.c.l.b16 %v5510
    %v8021 = vunpack.c.h.b16 %v5510
    %v8022 = vunpack.c.l.b16 %v5511
    %v8023 = vunpack.c.h.b16 %v5511
    %v8024 = vunpack.c.l.b16 %v5512
    %v8025 = vunpack.c.h.b16 %v5512
    %v8026 = vunpack.c.l.b16 %v5513
    %v8027 = vunpack.c.h.b16 %v5513
    %v8028 = vunpack.c.l.b16 %v5514
    %v8029 = vunpack.c.h.b16 %v5514
    %v8030 = vunpack.c.l.b16 %v5515
    %v8031 = vunpack.c.h.b16 %v5515
    %v8032 = vunpack.c.l.b16 %v5516
    %v8033 = vunpack.c.h.b16 %v5516
    %v8034 = vunpack.c.l.b16 %v5517
    %v8035 = vunpack.c.h.b16 %v5517
    %v8036 = vunpack.c.l.b16 %v5518
    %v8037 = vunpack.c.h.b16 %v5518
    %v8038 = vunpack.c.l.b16 %v5519
    %v8039 = vunpack.c.h.b16 %v5519
    %v8040 = vunpack.c.l.b16 %v5520
    %v8041 = vunpack.c.h.b16 %v5520
    %v8042 = vunpack.c.l.b16 %v5521
    %v8043 = vunpack.c.h.b16 %v5521
    %v8044 = vunpack.c.l.b16 %v5522
    %v8045 = vunpack.c.h.b16 %v5522
    %v8046 = vunpack.c.l.b16 %v5523
    %v8047 = vunpack.c.h.b16 %v5523
    %v8048 = vunpack.c.l.b16 %v5524
    %v8049 = vunpack.c.h.b16 %v5524
    %v8050 = vunpack.c.l.b16 %v5525
    %v8051 = vunpack.c.h.b16 %v5525
    %v8052 = vunpack.c.l.b16 %v5526
    %v8053 = vunpack.c.h.b16 %v5526
    %v8054 = vunpack.c.l.b16 %v5527
    %v8055 = vunpack.c.h.b16 %v5527
    %v8056 = vunpack.c.l.b16 %v5528
    %v8057 = vunpack.c.h.b16 %v5528
    %v8058 = vunpack.c.l.b16 %v5529
    %v8059 = vunpack.c.h.b16 %v5529
    %v8060 = vunpack.c.l.b16 %v5530
    %v8061 = vunpack.c.h.b16 %v5530
    %v8062 = vunpack.c.l.b16 %v5531
    %v8063 = vunpack.c.h.b16 %v5531
    %v8064 = vunpack.c.l.b16 %v5532
    %v8065 = vunpack.c.h.b16 %v5532
    %v8066 = vunpack.c.l.b16 %v5533
    %v8067 = vunpack.c.h.b16 %v5533
    %v8068 = vunpack.c.l.b16 %v5534
    %v8069 = vunpack.c.h.b16 %v5534
    %v8070 = vunpack.c.l.b16 %v5535
    %v8071 = vunpack.c.h.b16 %v5535
    %v8072 = vunpack.c.l.b16 %v5536
    %v8073 = vunpack.c.h.b16 %v5536
    %v8074 = vunpack.c.l.b16 %v5537
    %v8075 = vunpack.c.h.b16 %v5537
    %v8076 = vunpack.c.l.b16 %v5538
    %v8077 = vunpack.c.h.b16 %v5538
    %v8078 = vunpack.c.l.b16 %v5539
    %v8079 = vunpack.c.h.b16 %v5539
    %v8080 = vunpack.c.l.b16 %v5540
    %v8081 = vunpack.c.h.b16 %v5540
    %v8082 = vunpack.c.l.b16 %v5541
    %v8083 = vunpack.c.h.b16 %v5541
    %v8084 = vunpack.c.l.b16 %v5542
    %v8085 = vunpack.c.h.b16 %v5542
    %v8086 = vunpack.c.l.b16 %v5543
    %v8087 = vunpack.c.h.b16 %v5543
    %v8088 = vunpack.c.l.b16 %v5544
    %v8089 = vunpack.c.h.b16 %v5544
    %v8090 = vunpack.c.l.b16 %v5545
    %v8091 = vunpack.c.h.b16 %v5545
    %v8092 = vunpack.c.l.b16 %v5546
    %v8093 = vunpack.c.h.b16 %v5546
    %v8094 = vunpack.c.l.b16 %v5547
    %v8095 = vunpack.c.h.b16 %v5547
    %v8096 = vunpack.c.l.b16 %v5548
    %v8097 = vunpack.c.h.b16 %v5548
    %v8098 = vunpack.c.l.b16 %v5549
    %v8099 = vunpack.c.h.b16 %v5549
    %v8100 = vunpack.c.l.b16 %v5550
    %v8101 = vunpack.c.h.b16 %v5550
    %v8102 = vunpack.c.l.b16 %v5551
    %v8103 = vunpack.c.h.b16 %v5551
    %v8104 = vunpack.c.l.b16 %v5552
    %v8105 = vunpack.c.h.b16 %v5552
    %v8106 = vunpack.c.l.b16 %v5553
    %v8107 = vunpack.c.h.b16 %v5553
    %v8108 = vunpack.c.l.b16 %v5554
    %v8109 = vunpack.c.h.b16 %v5554
    %v8110 = vunpack.c.l.b16 %v5555
    %v8111 = vunpack.c.h.b16 %v5555
    %v8112 = vunpack.c.l.b16 %v5556
    %v8113 = vunpack.c.h.b16 %v5556
    %v8114 = vunpack.c.l.b16 %v5557
    %v8115 = vunpack.c.h.b16 %v5557
    %v8116 = vunpack.c.l.b16 %v5558
    %v8117 = vunpack.c.h.b16 %v5558
    %v8118 = vunpack.c.l.b16 %v5559
    %v8119 = vunpack.c.h.b16 %v5559
    %v8120 = vunpack.c.l.b16 %v5560
    %v8121 = vunpack.c.h.b16 %v5560
    %v8122 = vunpack.c.l.b16 %v5561
    %v8123 = vunpack.c.h.b16 %v5561
    %v8124 = vunpack.c.l.b16 %v5562
    %v8125 = vunpack.c.h.b16 %v5562
    %v8126 = vunpack.c.l.b16 %v5563
    %v8127 = vunpack.c.h.b16 %v5563
    %v8128 = vunpack.c.l.b16 %v5564
    %v8129 = vunpack.c.h.b16 %v5564
    %v8130 = vunpack.c.l.b16 %v5565
    %v8131 = vunpack.c.h.b16 %v5565
    %v8132 = vunpack.c.l.b16 %v5566
    %v8133 = vunpack.c.h.b16 %v5566
    %v8134 = vunpack.c.l.b16 %v5567
    %v8135 = vunpack.c.h.b16 %v5567
    %v8136 = vunpack.c.l.b16 %v5568
    %v8137 = vunpack.c.h.b16 %v5568
    %v8138 = vunpack.c.l.b16 %v5569
    %v8139 = vunpack.c.h.b16 %v5569
    %v8140 = vunpack.c.l.b16 %v5570
    %v8141 = vunpack.c.h.b16 %v5570
    %v8142 = vunpack.c.l.b16 %v5571
    %v8143 = vunpack.c.h.b16 %v5571
    %v8144 = vunpack.c.l.b16 %v5572
    %v8145 = vunpack.c.h.b16 %v5572
    %v8146 = vunpack.c.l.b16 %v5573
    %v8147 = vunpack.c.h.b16 %v5573
    %v8148 = vunpack.c.l.b16 %v5574
    %v8149 = vunpack.c.h.b16 %v5574
    %v8150 = vunpack.c.l.b16 %v5575
    %v8151 = vunpack.c.h.b16 %v5575
    %v8152 = vunpack.c.l.b16 %v5576
    %v8153 = vunpack.c.h.b16 %v5576
    %v8154 = vunpack.c.l.b16 %v5577
    %v8155 = vunpack.c.h.b16 %v5577
    %v8156 = vunpack.c.l.b16 %v5578
    %v8157 = vunpack.c.h.b16 %v5578
    %v8158 = vunpack.c.l.b16 %v5579
    %v8159 = vunpack.c.h.b16 %v5579
    %v8160 = vunpack.c.l.b16 %v5580
    %v8161 = vunpack.c.h.b16 %v5580
    %v8162 = vunpack.c.l.b16 %v5581
    %v8163 = vunpack.c.h.b16 %v5581
    %v8164 = vunpack.c.l.b16 %v5582
    %v8165 = vunpack.c.h.b16 %v5582
    %v8166 = vunpack.c.l.b16 %v5583
    %v8167 = vunpack.c.h.b16 %v5583
    %v8168 = vunpack.c.l.b16 %v5584
    %v8169 = vunpack.c.h.b16 %v5584
    %v8170 = vunpack.c.l.b16 %v5585
    %v8171 = vunpack.c.h.b16 %v5585
    %v8172 = vunpack.c.l.b16 %v5586
    %v8173 = vunpack.c.h.b16 %v5586
    %v8174 = vunpack.c.l.b16 %v5587
    %v8175 = vunpack.c.h.b16 %v5587
    %v8176 = vunpack.c.l.b16 %v5588
    %v8177 = vunpack.c.h.b16 %v5588
    %v8178 = vunpack.c.l.b16 %v5589
    %v8179 = vunpack.c.h.b16 %v5589
    %v8180 = vunpack.c.l.b16 %v5590
    %v8181 = vunpack.c.h.b16 %v5590
    %v8182 = vunpack.c.l.b16 %v5591
    %v8183 = vunpack.c.h.b16 %v5591
    %v8184 = vunpack.c.l.b16 %v5592
    %v8185 = vunpack.c.h.b16 %v5592
    %v8186 = vunpack.c.l.b16 %v5593
    %v8187 = vunpack.c.h.b16 %v5593
    %v8188 = vunpack.c.l.b16 %v5594
    %v8189 = vunpack.c.h.b16 %v5594
    %v8190 = vunpack.c.l.b16 %v5595
    %v8191 = vunpack.c.h.b16 %v5595
    %v8192 = vunpack.c.l.b16 %v5596
    %v8193 = vunpack.c.h.b16 %v5596
    %v8194 = vunpack.c.l.b16 %v5597
    %v8195 = vunpack.c.h.b16 %v5597
    %v8196 = vunpack.c.l.b16 %v5598
    %v8197 = vunpack.c.h.b16 %v5598
    %v8198 = vunpack.c.l.b16 %v5599
    %v8199 = vunpack.c.h.b16 %v5599
    %v8200 = vunpack.c.l.b16 %v5600
    %v8201 = vunpack.c.h.b16 %v5600
    %v8202 = vunpack.c.l.b16 %v5601
    %v8203 = vunpack.c.h.b16 %v5601
    %v8204 = vunpack.c.l.b16 %v5602
    %v8205 = vunpack.c.h.b16 %v5602
    %v8206 = vunpack.c.l.b16 %v5603
    %v8207 = vunpack.c.h.b16 %v5603
    %v8208 = vunpack.c.l.b16 %v5604
    %v8209 = vunpack.c.h.b16 %v5604
    %v8210 = vunpack.c.l.b16 %v5605
    %v8211 = vunpack.c.h.b16 %v5605
    %v8212 = vunpack.c.l.b16 %v5606
    %v8213 = vunpack.c.h.b16 %v5606
    %v8214 = vunpack.c.l.b16 %v5607
    %v8215 = vunpack.c.h.b16 %v5607
    %v8216 = vunpack.c.l.b16 %v5608
    %v8217 = vunpack.c.h.b16 %v5608
    %v8218 = vunpack.c.l.b16 %v5609
    %v8219 = vunpack.c.h.b16 %v5609
    %v8220 = vunpack.c.l.b16 %v5610
    %v8221 = vunpack.c.h.b16 %v5610
    %v8222 = vunpack.c.l.b16 %v5611
    %v8223 = vunpack.c.h.b16 %v5611
    %v8224 = vunpack.c.l.b16 %v5612
    %v8225 = vunpack.c.h.b16 %v5612
    %v8226 = vunpack.c.l.b16 %v5613
    %v8227 = vunpack.c.h.b16 %v5613
    %v8228 = vunpack.c.l.b16 %v5614
    %v8229 = vunpack.c.h.b16 %v5614
    %v8230 = vunpack.c.l.b16 %v5615
    %v8231 = vunpack.c.h.b16 %v5615
    %v8232 = vunpack.c.l.b16 %v5616
    %v8233 = vunpack.c.h.b16 %v5616
    %v8234 = vunpack.c.l.b16 %v5617
    %v8235 = vunpack.c.h.b16 %v5617
    %v8236 = vunpack.c.l.b16 %v5618
    %v8237 = vunpack.c.h.b16 %v5618
    %v8238 = vunpack.c.l.b16 %v5619
    %v8239 = vunpack.c.h.b16 %v5619
    %v8240 = vunpack.c.l.b16 %v5620
    %v8241 = vunpack.c.h.b16 %v5620
    %v8242 = vunpack.c.l.b16 %v5621
    %v8243 = vunpack.c.h.b16 %v5621
    %v8244 = vunpack.c.l.b16 %v5622
    %v8245 = vunpack.c.h.b16 %v5622
    %v8246 = vunpack.c.l.b16 %v5623
    %v8247 = vunpack.c.h.b16 %v5623
    %v8248 = vunpack.c.l.b16 %v5624
    %v8249 = vunpack.c.h.b16 %v5624
    %v8250 = vunpack.c.l.b16 %v5625
    %v8251 = vunpack.c.h.b16 %v5625
    %v8252 = vunpack.c.l.b16 %v5626
    %v8253 = vunpack.c.h.b16 %v5626
    %v8254 = vunpack.c.l.b16 %v5627
    %v8255 = vunpack.c.h.b16 %v5627
    %v8256 = vunpack.c.l.b16 %v5628
    %v8257 = vunpack.c.h.b16 %v5628
    %v8258 = vunpack.c.l.b16 %v5629
    %v8259 = vunpack.c.h.b16 %v5629
    %v8260 = vunpack.c.l.b16 %v5630
    %v8261 = vunpack.c.h.b16 %v5630
    %v8262 = vunpack.c.l.b16 %v5631
    %v8263 = vunpack.c.h.b16 %v5631
    %v8264 = vunpack.c.l.b16 %v5632
    %v8265 = vunpack.c.h.b16 %v5632
    %v8266 = vunpack.c.l.b16 %v5633
    %v8267 = vunpack.c.h.b16 %v5633
    %v8268 = vunpack.c.l.b16 %v5634
    %v8269 = vunpack.c.h.b16 %v5634
    %v8270 = vunpack.c.l.b16 %v5635
    %v8271 = vunpack.c.h.b16 %v5635
    %v8272 = vunpack.c.l.b16 %v5636
    %v8273 = vunpack.c.h.b16 %v5636
    %v8274 = vunpack.c.l.b16 %v5637
    %v8275 = vunpack.c.h.b16 %v5637
    %v8276 = vunpack.c.l.b16 %v5638
    %v8277 = vunpack.c.h.b16 %v5638
    %v8278 = vunpack.c.l.b16 %v5639
    %v8279 = vunpack.c.h.b16 %v5639
    %v8280 = vunpack.c.l.b16 %v5640
    %v8281 = vunpack.c.h.b16 %v5640
    %v8282 = vunpack.c.l.b16 %v5641
    %v8283 = vunpack.c.h.b16 %v5641
    %v8284 = vunpack.c.l.b16 %v5642
    %v8285 = vunpack.c.h.b16 %v5642
    %v8286 = vunpack.c.l.b16 %v5643
    %v8287 = vunpack.c.h.b16 %v5643
    %v8288 = vunpack.c.l.b16 %v5644
    %v8289 = vunpack.c.h.b16 %v5644
    %v8290 = vunpack.c.l.b16 %v5645
    %v8291 = vunpack.c.h.b16 %v5645
    %v8292 = vunpack.c.l.b16 %v5646
    %v8293 = vunpack.c.h.b16 %v5646
    %v8294 = vunpack.c.l.b16 %v5647
    %v8295 = vunpack.c.h.b16 %v5647
    %v8296 = vunpack.c.l.b16 %v5648
    %v8297 = vunpack.c.h.b16 %v5648
    %v8298 = vunpack.c.l.b16 %v5649
    %v8299 = vunpack.c.h.b16 %v5649
    %v8300 = vunpack.c.l.b16 %v5650
    %v8301 = vunpack.c.h.b16 %v5650
    %v8302 = vunpack.c.l.b16 %v5651
    %v8303 = vunpack.c.h.b16 %v5651
    %v8304 = vunpack.c.l.b16 %v5652
    %v8305 = vunpack.c.h.b16 %v5652
    %v8306 = vunpack.c.l.b16 %v5653
    %v8307 = vunpack.c.h.b16 %v5653
    %v8308 = vunpack.c.l.b16 %v5654
    %v8309 = vunpack.c.h.b16 %v5654
    %v8310 = vunpack.c.l.b16 %v5655
    %v8311 = vunpack.c.h.b16 %v5655
    %v8312 = vunpack.c.l.b16 %v5656
    %v8313 = vunpack.c.h.b16 %v5656
    %v8314 = vunpack.c.l.b16 %v5657
    %v8315 = vunpack.c.h.b16 %v5657
    %v8316 = vunpack.c.l.b16 %v5658
    %v8317 = vunpack.c.h.b16 %v5658
    %v8318 = vunpack.c.l.b16 %v5659
    %v8319 = vunpack.c.h.b16 %v5659
    %v8320 = vunpack.c.l.b16 %v5660
    %v8321 = vunpack.c.h.b16 %v5660
    %v8322 = vunpack.c.l.b16 %v5661
    %v8323 = vunpack.c.h.b16 %v5661
    %v8324 = vunpack.c.l.b16 %v5662
    %v8325 = vunpack.c.h.b16 %v5662
    %v8326 = vunpack.c.l.b16 %v5663
    %v8327 = vunpack.c.h.b16 %v5663
    %v8328 = vunpack.c.l.b16 %v5664
    %v8329 = vunpack.c.h.b16 %v5664
    %v8330 = vunpack.c.l.b16 %v5665
    %v8331 = vunpack.c.h.b16 %v5665
    %v8332 = vunpack.c.l.b16 %v5666
    %v8333 = vunpack.c.h.b16 %v5666
    %v8334 = vunpack.c.l.b16 %v5667
    %v8335 = vunpack.c.h.b16 %v5667
    %v8336 = vunpack.c.l.b16 %v5668
    %v8337 = vunpack.c.h.b16 %v5668
    %v8338 = vunpack.c.l.b16 %v5669
    %v8339 = vunpack.c.h.b16 %v5669
    %v8340 = vunpack.c.l.b16 %v5670
    %v8341 = vunpack.c.h.b16 %v5670
    %v8342 = vunpack.c.l.b16 %v5671
    %v8343 = vunpack.c.h.b16 %v5671
    %v8344 = vunpack.c.l.b16 %v5672
    %v8345 = vunpack.c.h.b16 %v5672
    %v8346 = vunpack.c.l.b16 %v5673
    %v8347 = vunpack.c.h.b16 %v5673
    %v8348 = vunpack.c.l.b16 %v5674
    %v8349 = vunpack.c.h.b16 %v5674
    %v8350 = vunpack.c.l.b16 %v5675
    %v8351 = vunpack.c.h.b16 %v5675
    %v8352 = vunpack.c.l.b16 %v5676
    %v8353 = vunpack.c.h.b16 %v5676
    %v8354 = vunpack.c.l.b16 %v5677
    %v8355 = vunpack.c.h.b16 %v5677
    %v8356 = vunpack.c.l.b16 %v5678
    %v8357 = vunpack.c.h.b16 %v5678
    %v8358 = vunpack.c.l.b16 %v5679
    %v8359 = vunpack.c.h.b16 %v5679
    %v8360 = vunpack.c.l.b16 %v5680
    %v8361 = vunpack.c.h.b16 %v5680
    %v8362 = vunpack.c.l.b16 %v5681
    %v8363 = vunpack.c.h.b16 %v5681
    %v8364 = vunpack.c.l.b16 %v5682
    %v8365 = vunpack.c.h.b16 %v5682
    %v8366 = vunpack.c.l.b16 %v5683
    %v8367 = vunpack.c.h.b16 %v5683
    %v8368 = vunpack.c.l.b16 %v5684
    %v8369 = vunpack.c.h.b16 %v5684
    %v8370 = vunpack.c.l.b16 %v5685
    %v8371 = vunpack.c.h.b16 %v5685
    %v8372 = vunpack.c.l.b16 %v5686
    %v8373 = vunpack.c.h.b16 %v5686
    %v8374 = vunpack.c.l.b16 %v5687
    %v8375 = vunpack.c.h.b16 %v5687
    %v8376 = vunpack.c.l.b16 %v5688
    %v8377 = vunpack.c.h.b16 %v5688
    %v8378 = vunpack.c.l.b16 %v5689
    %v8379 = vunpack.c.h.b16 %v5689
    %v8380 = vunpack.c.l.b16 %v5690
    %v8381 = vunpack.c.h.b16 %v5690
    %v8382 = vunpack.c.l.b16 %v5691
    %v8383 = vunpack.c.h.b16 %v5691
    %v8384 = vunpack.c.l.b16 %v5692
    %v8385 = vunpack.c.h.b16 %v5692
    %v8386 = vunpack.c.l.b16 %v5693
    %v8387 = vunpack.c.h.b16 %v5693
    %v8388 = vunpack.c.l.b16 %v5694
    %v8389 = vunpack.c.h.b16 %v5694
    %v8390 = vunpack.c.l.b16 %v5695
    %v8391 = vunpack.c.h.b16 %v5695
    %v8392 = vunpack.c.l.b16 %v5696
    %v8393 = vunpack.c.h.b16 %v5696
    %v8394 = vunpack.c.l.b16 %v5697
    %v8395 = vunpack.c.h.b16 %v5697
    %v8396 = vunpack.c.l.b16 %v5698
    %v8397 = vunpack.c.h.b16 %v5698
    %v8398 = vunpack.c.l.b16 %v5699
    %v8399 = vunpack.c.h.b16 %v5699
    %v8400 = vunpack.c.l.b16 %v5700
    %v8401 = vunpack.c.h.b16 %v5700
    %v8402 = vunpack.c.l.b16 %v5701
    %v8403 = vunpack.c.h.b16 %v5701
    %v8404 = vunpack.c.l.b16 %v5702
    %v8405 = vunpack.c.h.b16 %v5702
    %v8406 = vunpack.c.l.b16 %v5703
    %v8407 = vunpack.c.h.b16 %v5703
    %v8408 = vunpack.c.l.b16 %v5704
    %v8409 = vunpack.c.h.b16 %v5704
    %v8410 = vunpack.c.l.b16 %v5705
    %v8411 = vunpack.c.h.b16 %v5705
    %v8412 = vunpack.c.l.b16 %v5706
    %v8413 = vunpack.c.h.b16 %v5706
    %v8414 = vunpack.c.l.b16 %v5707
    %v8415 = vunpack.c.h.b16 %v5707
    %v8416 = vunpack.c.l.b16 %v5708
    %v8417 = vunpack.c.h.b16 %v5708
    %v8418 = vunpack.c.l.b16 %v5709
    %v8419 = vunpack.c.h.b16 %v5709
    %v8420 = vunpack.c.l.b16 %v5710
    %v8421 = vunpack.c.h.b16 %v5710
    %v8422 = vunpack.c.l.b16 %v5711
    %v8423 = vunpack.c.h.b16 %v5711
    %v8424 = vunpack.c.l.b16 %v5712
    %v8425 = vunpack.c.h.b16 %v5712
    %v8426 = vunpack.c.l.b16 %v5713
    %v8427 = vunpack.c.h.b16 %v5713
    %v8428 = vunpack.c.l.b16 %v5714
    %v8429 = vunpack.c.h.b16 %v5714
    %v8430 = vunpack.c.l.b16 %v5715
    %v8431 = vunpack.c.h.b16 %v5715
    %v8432 = vunpack.c.l.b16 %v5716
    %v8433 = vunpack.c.h.b16 %v5716
    %v8434 = vunpack.c.l.b16 %v5717
    %v8435 = vunpack.c.h.b16 %v5717
    %v8436 = vunpack.c.l.b16 %v5718
    %v8437 = vunpack.c.h.b16 %v5718
    %v8438 = vunpack.c.l.b16 %v5719
    %v8439 = vunpack.c.h.b16 %v5719
    %v8440 = vunpack.c.l.b16 %v5720
    %v8441 = vunpack.c.h.b16 %v5720
    %v8442 = vunpack.c.l.b16 %v5721
    %v8443 = vunpack.c.h.b16 %v5721
    %v8444 = vunpack.c.l.b16 %v5722
    %v8445 = vunpack.c.h.b16 %v5722
    %v8446 = vunpack.c.l.b16 %v5723
    %v8447 = vunpack.c.h.b16 %v5723
    %v8448 = vunpack.c.l.b16 %v5724
    %v8449 = vunpack.c.h.b16 %v5724
    %v8450 = vunpack.c.l.b16 %v5725
    %v8451 = vunpack.c.h.b16 %v5725
    %v8452 = vunpack.c.l.b16 %v5726
    %v8453 = vunpack.c.h.b16 %v5726
    %v8454 = vunpack.c.l.b16 %v5727
    %v8455 = vunpack.c.h.b16 %v5727
    %v8456 = vunpack.c.l.b16 %v5728
    %v8457 = vunpack.c.h.b16 %v5728
    %v8458 = vunpack.c.l.b16 %v5729
    %v8459 = vunpack.c.h.b16 %v5729
    %v8460 = vunpack.c.l.b16 %v5730
    %v8461 = vunpack.c.h.b16 %v5730
    %v8462 = vunpack.c.l.b16 %v5731
    %v8463 = vunpack.c.h.b16 %v5731
    %v8464 = vunpack.c.l.b16 %v5732
    %v8465 = vunpack.c.h.b16 %v5732
    %v8466 = vunpack.c.l.b16 %v5733
    %v8467 = vunpack.c.h.b16 %v5733
    %v8468 = vunpack.c.l.b16 %v5734
    %v8469 = vunpack.c.h.b16 %v5734
    %v8470 = vunpack.c.l.b16 %v5735
    %v8471 = vunpack.c.h.b16 %v5735
    %v8472 = vunpack.c.l.b16 %v5736
    %v8473 = vunpack.c.h.b16 %v5736
    %v8474 = vunpack.c.l.b16 %v5737
    %v8475 = vunpack.c.h.b16 %v5737
    %v8476 = vunpack.c.l.b16 %v5738
    %v8477 = vunpack.c.h.b16 %v5738
    %v8478 = vunpack.c.l.b16 %v5739
    %v8479 = vunpack.c.h.b16 %v5739
    %v8480 = vunpack.c.l.b16 %v5740
    %v8481 = vunpack.c.h.b16 %v5740
    %v8482 = vunpack.c.l.b16 %v5741
    %v8483 = vunpack.c.h.b16 %v5741
    %v8484 = vunpack.c.l.b16 %v5742
    %v8485 = vunpack.c.h.b16 %v5742
    %v8486 = vunpack.c.l.b16 %v5743
    %v8487 = vunpack.c.h.b16 %v5743
    %v8488 = vunpack.c.l.b16 %v5744
    %v8489 = vunpack.c.h.b16 %v5744
    %v8490 = vunpack.c.l.b16 %v5745
    %v8491 = vunpack.c.h.b16 %v5745
    %v8492 = vunpack.c.l.b16 %v5746
    %v8493 = vunpack.c.h.b16 %v5746
    %v8494 = vunpack.c.l.b16 %v5747
    %v8495 = vunpack.c.h.b16 %v5747
    %v8496 = vunpack.c.l.b16 %v5748
    %v8497 = vunpack.c.h.b16 %v5748
    %v8498 = vunpack.c.l.b16 %v5749
    %v8499 = vunpack.c.h.b16 %v5749
    %v8500 = vunpack.c.l.b16 %v5750
    %v8501 = vunpack.c.h.b16 %v5750
    %v8502 = vunpack.c.l.b16 %v5751
    %v8503 = vunpack.c.h.b16 %v5751
    %v8504 = vunpack.c.l.b16 %v5752
    %v8505 = vunpack.c.h.b16 %v5752
    %v8506 = vunpack.c.l.b16 %v5753
    %v8507 = vunpack.c.h.b16 %v5753
    %v8508 = vunpack.c.l.b16 %v5754
    %v8509 = vunpack.c.h.b16 %v5754
    %v8510 = vunpack.c.l.b16 %v5755
    %v8511 = vunpack.c.h.b16 %v5755
    %v8512 = vpack.c.b16 %v8008, %v8000
    %v8513 = vpack.c.b16 %v8009, %v8001
    %v8514 = vpack.c.b16 %v8010, %v8002
    %v8515 = vpack.c.b16 %v8011, %v8003
    %v8516 = vpack.c.b16 %v8012, %v8004
    %v8517 = vpack.c.b16 %v8013, %v8005
    %v8518 = vpack.c.b16 %v8014, %v8006
    %v8519 = vpack.c.b16 %v8015, %v8007
    %v8520 = vpack.c.b16 %v8024, %v8016
    %v8521 = vpack.c.b16 %v8025, %v8017
    %v8522 = vpack.c.b16 %v8026, %v8018
    %v8523 = vpack.c.b16 %v8027, %v8019
    %v8524 = vpack.c.b16 %v8028, %v8020
    %v8525 = vpack.c.b16 %v8029, %v8021
    %v8526 = vpack.c.b16 %v8030, %v8022
    %v8527 = vpack.c.b16 %v8031, %v8023
    %v8528 = vpack.c.b16 %v8040, %v8032
    %v8529 = vpack.c.b16 %v8041, %v8033
    %v8530 = vpack.c.b16 %v8042, %v8034
    %v8531 = vpack.c.b16 %v8043, %v8035
    %v8532 = vpack.c.b16 %v8044, %v8036
    %v8533 = vpack.c.b16 %v8045, %v8037
    %v8534 = vpack.c.b16 %v8046, %v8038
    %v8535 = vpack.c.b16 %v8047, %v8039
    %v8536 = vpack.c.b16 %v8056, %v8048
    %v8537 = vpack.c.b16 %v8057, %v8049
    %v8538 = vpack.c.b16 %v8058, %v8050
    %v8539 = vpack.c.b16 %v8059, %v8051
    %v8540 = vpack.c.b16 %v8060, %v8052
    %v8541 = vpack.c.b16 %v8061, %v8053
    %v8542 = vpack.c.b16 %v8062, %v8054
    %v8543 = vpack.c.b16 %v8063, %v8055
    %v8544 = vpack.c.b16 %v8072, %v8064
    %v8545 = vpack.c.b16 %v8073, %v8065
    %v8546 = vpack.c.b16 %v8074, %v8066
    %v8547 = vpack.c.b16 %v8075, %v8067
    %v8548 = vpack.c.b16 %v8076, %v8068
    %v8549 = vpack.c.b16 %v8077, %v8069
    %v8550 = vpack.c.b16 %v8078, %v8070
    %v8551 = vpack.c.b16 %v8079, %v8071
    %v8552 = vpack.c.b16 %v8088, %v8080
    %v8553 = vpack.c.b16 %v8089, %v8081
    %v8554 = vpack.c.b16 %v8090, %v8082
    %v8555 = vpack.c.b16 %v8091, %v8083
    %v8556 = vpack.c.b16 %v8092, %v8084
    %v8557 = vpack.c.b16 %v8093, %v8085
    %v8558 = vpack.c.b16 %v8094, %v8086
    %v8559 = vpack.c.b16 %v8095, %v8087
    %v8560 = vpack.c.b16 %v8104, %v8096
    %v8561 = vpack.c.b16 %v8105, %v8097
    %v8562 = vpack.c.b16 %v8106, %v8098
    %v8563 = vpack.c.b16 %v8107, %v8099
    %v8564 = vpack.c.b16 %v8108, %v8100
    %v8565 = vpack.c.b16 %v8109, %v8101
    %v8566 = vpack.c.b16 %v8110, %v8102
    %v8567 = vpack.c.b16 %v8111, %v8103
    %v8568 = vpack.c.b16 %v8120, %v8112
    %v8569 = vpack.c.b16 %v8121, %v8113
    %v8570 = vpack.c.b16 %v8122, %v8114
    %v8571 = vpack.c.b16 %v8123, %v8115
    %v8572 = vpack.c.b16 %v8124, %v8116
    %v8573 = vpack.c.b16 %v8125, %v8117
    %v8574 = vpack.c.b16 %v8126, %v8118
    %v8575 = vpack.c.b16 %v8127, %v8119
    %v8576 = vpack.c.b16 %v8136, %v8128
    %v8577 = vpack.c.b16 %v8137, %v8129
    %v8578 = vpack.c.b16 %v8138, %v8130
    %v8579 = vpack.c.b16 %v8139, %v8131
    %v8580 = vpack.c.b16 %v8140, %v8132
    %v8581 = vpack.c.b16 %v8141, %v8133
    %v8582 = vpack.c.b16 %v8142, %v8134
    %v8583 = vpack.c.b16 %v8143, %v8135
    %v8584 = vpack.c.b16 %v8152, %v8144
    %v8585 = vpack.c.b16 %v8153, %v8145
    %v8586 = vpack.c.b16 %v8154, %v8146
    %v8587 = vpack.c.b16 %v8155, %v8147
    %v8588 = vpack.c.b16 %v8156, %v8148
    %v8589 = vpack.c.b16 %v8157, %v8149
    %v8590 = vpack.c.b16 %v8158, %v8150
    %v8591 = vpack.c.b16 %v8159, %v8151
    %v8592 = vpack.c.b16 %v8168, %v8160
    %v8593 = vpack.c.b16 %v8169, %v8161
    %v8594 = vpack.c.b16 %v8170, %v8162
    %v8595 = vpack.c.b16 %v8171, %v8163
    %v8596 = vpack.c.b16 %v8172, %v8164
    %v8597 = vpack.c.b16 %v8173, %v8165
    %v8598 = vpack.c.b16 %v8174, %v8166
    %v8599 = vpack.c.b16 %v8175, %v8167
    %v8600 = vpack.c.b16 %v8184, %v8176
    %v8601 = vpack.c.b16 %v8185, %v8177
    %v8602 = vpack.c.b16 %v8186, %v8178
    %v8603 = vpack.c.b16 %v8187, %v8179
    %v8604 = vpack.c.b16 %v8188, %v8180
    %v8605 = vpack.c.b16 %v8189, %v8181
    %v8606 = vpack.c.b16 %v8190, %v8182
    %v8607 = vpack.c.b16 %v8191, %v8183
    %v8608 = vpack.c.b16 %v8200, %v8192
    %v8609 = vpack.c.b16 %v8201, %v8193
    %v8610 = vpack.c.b16 %v8202, %v8194
    %v8611 = vpack.c.b16 %v8203, %v8195
    %v8612 = vpack.c.b16 %v8204, %v8196
    %v8613 = vpack.c.b16 %v8205, %v8197
    %v8614 = vpack.c.b16 %v8206, %v8198
    %v8615 = vpack.c.b16 %v8207, %v8199
    %v8616 = vpack.c.b16 %v8216, %v8208
    %v8617 = vpack.c.b16 %v8217, %v8209
    %v8618 = vpack.c.b16 %v8218, %v8210
    %v8619 = vpack.c.b16 %v8219, %v8211
    %v8620 = vpack.c.b16 %v8220, %v8212
    %v8621 = vpack.c.b16 %v8221, %v8213
    %v8622 = vpack.c.b16 %v8222, %v8214
    %v8623 = vpack.c.b16 %v8223, %v8215
    %v8624 = vpack.c.b16 %v8232, %v8224
    %v8625 = vpack.c.b16 %v8233, %v8225
    %v8626 = vpack.c.b16 %v8234, %v8226
    %v8627 = vpack.c.b16 %v8235, %v8227
    %v8628 = vpack.c.b16 %v8236, %v8228
    %v8629 = vpack.c.b16 %v8237, %v8229
    %v8630 = vpack.c.b16 %v8238, %v8230
    %v8631 = vpack.c.b16 %v8239, %v8231
    %v8632 = vpack.c.b16 %v8248, %v8240
    %v8633 = vpack.c.b16 %v8249, %v8241
    %v8634 = vpack.c.b16 %v8250, %v8242
    %v8635 = vpack.c.b16 %v8251, %v8243
    %v8636 = vpack.c.b16 %v8252, %v8244
    %v8637 = vpack.c.b16 %v8253, %v8245
    %v8638 = vpack.c.b16 %v8254, %v8246
    %v8639 = vpack.c.b16 %v8255, %v8247
    %v8640 = vpack.c.b16 %v8264, %v8256
    %v8641 = vpack.c.b16 %v8265, %v8257
    %v8642 = vpack.c.b16 %v8266, %v8258
    %v8643 = vpack.c.b16 %v8267, %v8259
    %v8644 = vpack.c.b16 %v8268, %v8260
    %v8645 = vpack.c.b16 %v8269, %v8261
    %v8646 = vpack.c.b16 %v8270, %v8262
    %v8647 = vpack.c.b16 %v8271, %v8263
    %v8648 = vpack.c.b16 %v8280, %v8272
    %v8649 = vpack.c.b16 %v8281, %v8273
    %v8650 = vpack.c.b16 %v8282, %v8274
    %v8651 = vpack.c.b16 %v8283, %v8275
    %v8652 = vpack.c.b16 %v8284, %v8276
    %v8653 = vpack.c.b16 %v8285, %v8277
    %v8654 = vpack.c.b16 %v8286, %v8278
    %v8655 = vpack.c.b16 %v8287, %v8279
    %v8656 = vpack.c.b16 %v8296, %v8288
    %v8657 = vpack.c.b16 %v8297, %v8289
    %v8658 = vpack.c.b16 %v8298, %v8290
    %v8659 = vpack.c.b16 %v8299, %v8291
    %v8660 = vpack.c.b16 %v8300, %v8292
    %v8661 = vpack.c.b16 %v8301, %v8293
    %v8662 = vpack.c.b16 %v8302, %v8294
    %v8663 = vpack.c.b16 %v8303, %v8295
    %v8664 = vpack.c.b16 %v8312, %v8304
    %v8665 = vpack.c.b16 %v8313, %v8305
    %v8666 = vpack.c.b16 %v8314, %v8306
    %v8667 = vpack.c.b16 %v8315, %v8307
    %v8668 = vpack.c.b16 %v8316, %v8308
    %v8669 = vpack.c.b16 %v8317, %v8309
    %v8670 = vpack.c.b16 %v8318, %v8310
    %v8671 = vpack.c.b16 %v8319, %v8311
    %v8672 = vpack.c.b16 %v8328, %v8320
    %v8673 = vpack.c.b16 %v8329, %v8321
    %v8674 = vpack.c.b16 %v8330, %v8322
    %v8675 = vpack.c.b16 %v8331, %v8323
    %v8676 = vpack.c.b16 %v8332, %v8324
    %v8677 = vpack.c.b16 %v8333, %v8325
    %v8678 = vpack.c.b16 %v8334, %v8326
    %v8679 = vpack.c.b16 %v8335, %v8327
    %v8680 = vpack.c.b16 %v8344, %v8336
    %v8681 = vpack.c.b16 %v8345, %v8337
    %v8682 = vpack.c.b16 %v8346, %v8338
    %v8683 = vpack.c.b16 %v8347, %v8339
    %v8684 = vpack.c.b16 %v8348, %v8340
    %v8685 = vpack.c.b16 %v8349, %v8341
    %v8686 = vpack.c.b16 %v8350, %v8342
    %v8687 = vpack.c.b16 %v8351, %v8343
    %v8688 = vpack.c.b16 %v8360, %v8352
    %v8689 = vpack.c.b16 %v8361, %v8353
    %v8690 = vpack.c.b16 %v8362, %v8354
    %v8691 = vpack.c.b16 %v8363, %v8355
    %v8692 = vpack.c.b16 %v8364, %v8356
    %v8693 = vpack.c.b16 %v8365, %v8357
    %v8694 = vpack.c.b16 %v8366, %v8358
    %v8695 = vpack.c.b16 %v8367, %v8359
    %v8696 = vpack.c.b16 %v8376, %v8368
    %v8697 = vpack.c.b16 %v8377, %v8369
    %v8698 = vpack.c.b16 %v8378, %v8370
    %v8699 = vpack.c.b16 %v8379, %v8371
    %v8700 = vpack.c.b16 %v8380, %v8372
    %v8701 = vpack.c.b16 %v8381, %v8373
    %v8702 = vpack.c.b16 %v8382, %v8374
    %v8703 = vpack.c.b16 %v8383, %v8375
    %v8704 = vpack.c.b16 %v8392, %v8384
    %v8705 = vpack.c.b16 %v8393, %v8385
    %v8706 = vpack.c.b16 %v8394, %v8386
    %v8707 = vpack.c.b16 %v8395, %v8387
    %v8708 = vpack.c.b16 %v8396, %v8388
    %v8709 = vpack.c.b16 %v8397, %v8389
    %v8710 = vpack.c.b16 %v8398, %v8390
    %v8711 = vpack.c.b16 %v8399, %v8391
    %v8712 = vpack.c.b16 %v8408, %v8400
    %v8713 = vpack.c.b16 %v8409, %v8401
    %v8714 = vpack.c.b16 %v8410, %v8402
    %v8715 = vpack.c.b16 %v8411, %v8403
    %v8716 = vpack.c.b16 %v8412, %v8404
    %v8717 = vpack.c.b16 %v8413, %v8405
    %v8718 = vpack.c.b16 %v8414, %v8406
    %v8719 = vpack.c.b16 %v8415, %v8407
    %v8720 = vpack.c.b16 %v8424, %v8416
    %v8721 = vpack.c.b16 %v8425, %v8417
    %v8722 = vpack.c.b16 %v8426, %v8418
    %v8723 = vpack.c.b16 %v8427, %v8419
    %v8724 = vpack.c.b16 %v8428, %v8420
    %v8725 = vpack.c.b16 %v8429, %v8421
    %v8726 = vpack.c.b16 %v8430, %v8422
    %v8727 = vpack.c.b16 %v8431, %v8423
    %v8728 = vpack.c.b16 %v8440, %v8432
    %v8729 = vpack.c.b16 %v8441, %v8433
    %v8730 = vpack.c.b16 %v8442, %v8434
    %v8731 = vpack.c.b16 %v8443, %v8435
    %v8732 = vpack.c.b16 %v8444, %v8436
    %v8733 = vpack.c.b16 %v8445, %v8437
    %v8734 = vpack.c.b16 %v8446, %v8438
    %v8735 = vpack.c.b16 %v8447, %v8439
    %v8736 = vpack.c.b16 %v8456, %v8448
    %v8737 = vpack.c.b16 %v8457, %v8449
    %v8738 = vpack.c.b16 %v8458, %v8450
    %v8739 = vpack.c.b16 %v8459, %v8451
    %v8740 = vpack.c.b16 %v8460, %v8452
    %v8741 = vpack.c.b16 %v8461, %v8453
    %v8742 = vpack.c.b16 %v8462, %v8454
    %v8743 = vpack.c.b16 %v8463, %v8455
    %v8744 = vpack.c.b16 %v8472, %v8464
    %v8745 = vpack.c.b16 %v8473, %v8465
    %v8746 = vpack.c.b16 %v8474, %v8466
    %v8747 = vpack.c.b16 %v8475, %v8467
    %v8748 = vpack.c.b16 %v8476, %v8468
    %v8749 = vpack.c.b16 %v8477, %v8469
    %v8750 = vpack.c.b16 %v8478, %v8470
    %v8751 = vpack.c.b16 %v8479, %v8471
    %v8752 = vpack.c.b16 %v8488, %v8480
    %v8753 = vpack.c.b16 %v8489, %v8481
    %v8754 = vpack.c.b16 %v8490, %v8482
    %v8755 = vpack.c.b16 %v8491, %v8483
    %v8756 = vpack.c.b16 %v8492, %v8484
    %v8757 = vpack.c.b16 %v8493, %v8485
    %v8758 = vpack.c.b16 %v8494, %v8486
    %v8759 = vpack.c.b16 %v8495, %v8487
    %v8760 = vpack.c.b16 %v8504, %v8496
    %v8761 = vpack.c.b16 %v8505, %v8497
    %v8762 = vpack.c.b16 %v8506, %v8498
    %v8763 = vpack.c.b16 %v8507, %v8499
    %v8764 = vpack.c.b16 %v8508, %v8500
    %v8765 = vpack.c.b16 %v8509, %v8501
    %v8766 = vpack.c.b16 %v8510, %v8502
    %v8767 = vpack.c.b16 %v8511, %v8503
    %9024 = vmatpush.bf16.msra.mxu0 %v8568
    %9025 = vmatpush.bf16.msra.mxu0 %v8560
    %9026 = vmatpush.bf16.msra.mxu0 %v8552
    %9027 = vmatpush.bf16.msra.mxu0 %v8544
    %9028 = vmatpush.bf16.msra.mxu0 %v8536
    %9029 = vmatpush.bf16.msra.mxu0 %v8528
    %9030 = vmatpush.bf16.msra.mxu0 %v8520
    %9031 = vmatpush.bf16.msra.mxu0 %v8512
    %9032 = vmatmul.bf16.gmra.mxu0 %v5496
    %v9033 = vpop.f32.mrf.mxu0
    %v9034 = vadd.f32 %v7348, %v9033
    %v9035 = vpop.f32.mrf.mxu0
    %v9036 = vadd.f32 %v7350, %v9035
    %9037 = vdwg.mxu0
    %9038 = vmatpush.bf16.msra.mxu0 %v8632
    %9039 = vmatpush.bf16.msra.mxu0 %v8624
    %9040 = vmatpush.bf16.msra.mxu0 %v8616
    %9041 = vmatpush.bf16.msra.mxu0 %v8608
    %9042 = vmatpush.bf16.msra.mxu0 %v8600
    %9043 = vmatpush.bf16.msra.mxu0 %v8592
    %9044 = vmatpush.bf16.msra.mxu0 %v8584
    %9045 = vmatpush.bf16.msra.mxu0 %v8576
    %9046 = vmatmul.bf16.gmra.mxu0 %v5497
    %v9047 = vpop.f32.mrf.mxu0
    %v9048 = vadd.f32 %v9034, %v9047
    %v9049 = vpop.f32.mrf.mxu0
    %v9050 = vadd.f32 %v9036, %v9049
    %9051 = vdwg.mxu0
    %9052 = vmatpush.bf16.msra.mxu0 %v8696
    %9053 = vmatpush.bf16.msra.mxu0 %v8688
    %9054 = vmatpush.bf16.msra.mxu0 %v8680
    %9055 = vmatpush.bf16.msra.mxu0 %v8672
    %9056 = vmatpush.bf16.msra.mxu0 %v8664
    %9057 = vmatpush.bf16.msra.mxu0 %v8656
    %9058 = vmatpush.bf16.msra.mxu0 %v8648
    %9059 = vmatpush.bf16.msra.mxu0 %v8640
    %9060 = vmatmul.bf16.gmra.mxu0 %v5498
    %v9061 = vpop.f32.mrf.mxu0
    %v9062 = vadd.f32 %v9048, %v9061
    %v9063 = vpop.f32.mrf.mxu0
    %v9064 = vadd.f32 %v9050, %v9063
    %9065 = vdwg.mxu0
    %9066 = vmatpush.bf16.msra.mxu0 %v8760
    %9067 = vmatpush.bf16.msra.mxu0 %v8752
    %9068 = vmatpush.bf16.msra.mxu0 %v8744
    %9069 = vmatpush.bf16.msra.mxu0 %v8736
    %9070 = vmatpush.bf16.msra.mxu0 %v8728
    %9071 = vmatpush.bf16.msra.mxu0 %v8720
    %9072 = vmatpush.bf16.msra.mxu0 %v8712
    %9073 = vmatpush.bf16.msra.mxu0 %v8704
    %9074 = vmatmul.bf16.gmra.mxu0 %v5499
    %v9075 = vpop.f32.mrf.mxu0
    %v9076 = vadd.f32 %v9062, %v9075
    %v9077 = vpop.f32.mrf.mxu0
    %v9078 = vadd.f32 %v9064, %v9077
    %9079 = vdwg.mxu0
    %9080 = vmatpush.bf16.msra.mxu0 %v8569
    %9081 = vmatpush.bf16.msra.mxu0 %v8561
    %9082 = vmatpush.bf16.msra.mxu0 %v8553
    %9083 = vmatpush.bf16.msra.mxu0 %v8545
    %9084 = vmatpush.bf16.msra.mxu0 %v8537
    %9085 = vmatpush.bf16.msra.mxu0 %v8529
    %9086 = vmatpush.bf16.msra.mxu0 %v8521
    %9087 = vmatpush.bf16.msra.mxu0 %v8513
    %9088 = vmatmul.bf16.gmra.mxu0 %v5496
    %v9089 = vpop.f32.mrf.mxu0
    %v9090 = vadd.f32 %v7404, %v9089
    %v9091 = vpop.f32.mrf.mxu0
    %v9092 = vadd.f32 %v7406, %v9091
    %9093 = vdwg.mxu0
    %9094 = vmatpush.bf16.msra.mxu0 %v8633
    %9095 = vmatpush.bf16.msra.mxu0 %v8625
    %9096 = vmatpush.bf16.msra.mxu0 %v8617
    %9097 = vmatpush.bf16.msra.mxu0 %v8609
    %9098 = vmatpush.bf16.msra.mxu0 %v8601
    %9099 = vmatpush.bf16.msra.mxu0 %v8593
    %9100 = vmatpush.bf16.msra.mxu0 %v8585
    %9101 = vmatpush.bf16.msra.mxu0 %v8577
    %9102 = vmatmul.bf16.gmra.mxu0 %v5497
    %v9103 = vpop.f32.mrf.mxu0
    %v9104 = vadd.f32 %v9090, %v9103
    %v9105 = vpop.f32.mrf.mxu0
    %v9106 = vadd.f32 %v9092, %v9105
    %9107 = vdwg.mxu0
    %9108 = vmatpush.bf16.msra.mxu0 %v8697
    %9109 = vmatpush.bf16.msra.mxu0 %v8689
    %9110 = vmatpush.bf16.msra.mxu0 %v8681
    %9111 = vmatpush.bf16.msra.mxu0 %v8673
    %9112 = vmatpush.bf16.msra.mxu0 %v8665
    %9113 = vmatpush.bf16.msra.mxu0 %v8657
    %9114 = vmatpush.bf16.msra.mxu0 %v8649
    %9115 = vmatpush.bf16.msra.mxu0 %v8641
    %9116 = vmatmul.bf16.gmra.mxu0 %v5498
    %v9117 = vpop.f32.mrf.mxu0
    %v9118 = vadd.f32 %v9104, %v9117
    %v9119 = vpop.f32.mrf.mxu0
    %v9120 = vadd.f32 %v9106, %v9119
    %9121 = vdwg.mxu0
    %9122 = vmatpush.bf16.msra.mxu0 %v8761
    %9123 = vmatpush.bf16.msra.mxu0 %v8753
    %9124 = vmatpush.bf16.msra.mxu0 %v8745
    %9125 = vmatpush.bf16.msra.mxu0 %v8737
    %9126 = vmatpush.bf16.msra.mxu0 %v8729
    %9127 = vmatpush.bf16.msra.mxu0 %v8721
    %9128 = vmatpush.bf16.msra.mxu0 %v8713
    %9129 = vmatpush.bf16.msra.mxu0 %v8705
    %9130 = vmatmul.bf16.gmra.mxu0 %v5499
    %v9131 = vpop.f32.mrf.mxu0
    %v9132 = vadd.f32 %v9118, %v9131
    %v9133 = vpop.f32.mrf.mxu0
    %v9134 = vadd.f32 %v9120, %v9133
    %9135 = vdwg.mxu0
    %9136 = vmatpush.bf16.msra.mxu0 %v8570
    %9137 = vmatpush.bf16.msra.mxu0 %v8562
    %9138 = vmatpush.bf16.msra.mxu0 %v8554
    %9139 = vmatpush.bf16.msra.mxu0 %v8546
    %9140 = vmatpush.bf16.msra.mxu0 %v8538
    %9141 = vmatpush.bf16.msra.mxu0 %v8530
    %9142 = vmatpush.bf16.msra.mxu0 %v8522
    %9143 = vmatpush.bf16.msra.mxu0 %v8514
    %9144 = vmatmul.bf16.gmra.mxu0 %v5496
    %v9145 = vpop.f32.mrf.mxu0
    %v9146 = vadd.f32 %v7460, %v9145
    %v9147 = vpop.f32.mrf.mxu0
    %v9148 = vadd.f32 %v7462, %v9147
    %9149 = vdwg.mxu0
    %9150 = vmatpush.bf16.msra.mxu0 %v8634
    %9151 = vmatpush.bf16.msra.mxu0 %v8626
    %9152 = vmatpush.bf16.msra.mxu0 %v8618
    %9153 = vmatpush.bf16.msra.mxu0 %v8610
    %9154 = vmatpush.bf16.msra.mxu0 %v8602
    %9155 = vmatpush.bf16.msra.mxu0 %v8594
    %9156 = vmatpush.bf16.msra.mxu0 %v8586
    %9157 = vmatpush.bf16.msra.mxu0 %v8578
    %9158 = vmatmul.bf16.gmra.mxu0 %v5497
    %v9159 = vpop.f32.mrf.mxu0
    %v9160 = vadd.f32 %v9146, %v9159
    %v9161 = vpop.f32.mrf.mxu0
    %v9162 = vadd.f32 %v9148, %v9161
    %9163 = vdwg.mxu0
    %9164 = vmatpush.bf16.msra.mxu0 %v8698
    %9165 = vmatpush.bf16.msra.mxu0 %v8690
    %9166 = vmatpush.bf16.msra.mxu0 %v8682
    %9167 = vmatpush.bf16.msra.mxu0 %v8674
    %9168 = vmatpush.bf16.msra.mxu0 %v8666
    %9169 = vmatpush.bf16.msra.mxu0 %v8658
    %9170 = vmatpush.bf16.msra.mxu0 %v8650
    %9171 = vmatpush.bf16.msra.mxu0 %v8642
    %9172 = vmatmul.bf16.gmra.mxu0 %v5498
    %v9173 = vpop.f32.mrf.mxu0
    %v9174 = vadd.f32 %v9160, %v9173
    %v9175 = vpop.f32.mrf.mxu0
    %v9176 = vadd.f32 %v9162, %v9175
    %9177 = vdwg.mxu0
    %9178 = vmatpush.bf16.msra.mxu0 %v8762
    %9179 = vmatpush.bf16.msra.mxu0 %v8754
    %9180 = vmatpush.bf16.msra.mxu0 %v8746
    %9181 = vmatpush.bf16.msra.mxu0 %v8738
    %9182 = vmatpush.bf16.msra.mxu0 %v8730
    %9183 = vmatpush.bf16.msra.mxu0 %v8722
    %9184 = vmatpush.bf16.msra.mxu0 %v8714
    %9185 = vmatpush.bf16.msra.mxu0 %v8706
    %9186 = vmatmul.bf16.gmra.mxu0 %v5499
    %v9187 = vpop.f32.mrf.mxu0
    %v9188 = vadd.f32 %v9174, %v9187
    %v9189 = vpop.f32.mrf.mxu0
    %v9190 = vadd.f32 %v9176, %v9189
    %9191 = vdwg.mxu0
    %9192 = vmatpush.bf16.msra.mxu0 %v8571
    %9193 = vmatpush.bf16.msra.mxu0 %v8563
    %9194 = vmatpush.bf16.msra.mxu0 %v8555
    %9195 = vmatpush.bf16.msra.mxu0 %v8547
    %9196 = vmatpush.bf16.msra.mxu0 %v8539
    %9197 = vmatpush.bf16.msra.mxu0 %v8531
    %9198 = vmatpush.bf16.msra.mxu0 %v8523
    %9199 = vmatpush.bf16.msra.mxu0 %v8515
    %9200 = vmatmul.bf16.gmra.mxu0 %v5496
    %v9201 = vpop.f32.mrf.mxu0
    %v9202 = vadd.f32 %v7516, %v9201
    %v9203 = vpop.f32.mrf.mxu0
    %v9204 = vadd.f32 %v7518, %v9203
    %9205 = vdwg.mxu0
    %9206 = vmatpush.bf16.msra.mxu0 %v8635
    %9207 = vmatpush.bf16.msra.mxu0 %v8627
    %9208 = vmatpush.bf16.msra.mxu0 %v8619
    %9209 = vmatpush.bf16.msra.mxu0 %v8611
    %9210 = vmatpush.bf16.msra.mxu0 %v8603
    %9211 = vmatpush.bf16.msra.mxu0 %v8595
    %9212 = vmatpush.bf16.msra.mxu0 %v8587
    %9213 = vmatpush.bf16.msra.mxu0 %v8579
    %9214 = vmatmul.bf16.gmra.mxu0 %v5497
    %v9215 = vpop.f32.mrf.mxu0
    %v9216 = vadd.f32 %v9202, %v9215
    %v9217 = vpop.f32.mrf.mxu0
    %v9218 = vadd.f32 %v9204, %v9217
    %9219 = vdwg.mxu0
    %9220 = vmatpush.bf16.msra.mxu0 %v8699
    %9221 = vmatpush.bf16.msra.mxu0 %v8691
    %9222 = vmatpush.bf16.msra.mxu0 %v8683
    %9223 = vmatpush.bf16.msra.mxu0 %v8675
    %9224 = vmatpush.bf16.msra.mxu0 %v8667
    %9225 = vmatpush.bf16.msra.mxu0 %v8659
    %9226 = vmatpush.bf16.msra.mxu0 %v8651
    %9227 = vmatpush.bf16.msra.mxu0 %v8643
    %9228 = vmatmul.bf16.gmra.mxu0 %v5498
    %v9229 = vpop.f32.mrf.mxu0
    %v9230 = vadd.f32 %v9216, %v9229
    %v9231 = vpop.f32.mrf.mxu0
    %v9232 = vadd.f32 %v9218, %v9231
    %9233 = vdwg.mxu0
    %9234 = vmatpush.bf16.msra.mxu0 %v8763
    %9235 = vmatpush.bf16.msra.mxu0 %v8755
    %9236 = vmatpush.bf16.msra.mxu0 %v8747
    %9237 = vmatpush.bf16.msra.mxu0 %v8739
    %9238 = vmatpush.bf16.msra.mxu0 %v8731
    %9239 = vmatpush.bf16.msra.mxu0 %v8723
    %9240 = vmatpush.bf16.msra.mxu0 %v8715
    %9241 = vmatpush.bf16.msra.mxu0 %v8707
    %9242 = vmatmul.bf16.gmra.mxu0 %v5499
    %v9243 = vpop.f32.mrf.mxu0
    %v9244 = vadd.f32 %v9230, %v9243
    %v9245 = vpop.f32.mrf.mxu0
    %v9246 = vadd.f32 %v9232, %v9245
    %9247 = vdwg.mxu0
    %9248 = vmatpush.bf16.msra.mxu0 %v8572
    %9249 = vmatpush.bf16.msra.mxu0 %v8564
    %9250 = vmatpush.bf16.msra.mxu0 %v8556
    %9251 = vmatpush.bf16.msra.mxu0 %v8548
    %9252 = vmatpush.bf16.msra.mxu0 %v8540
    %9253 = vmatpush.bf16.msra.mxu0 %v8532
    %9254 = vmatpush.bf16.msra.mxu0 %v8524
    %9255 = vmatpush.bf16.msra.mxu0 %v8516
    %9256 = vmatmul.bf16.gmra.mxu0 %v5496
    %v9257 = vpop.f32.mrf.mxu0
    %v9258 = vadd.f32 %v7572, %v9257
    %v9259 = vpop.f32.mrf.mxu0
    %v9260 = vadd.f32 %v7574, %v9259
    %9261 = vdwg.mxu0
    %9262 = vmatpush.bf16.msra.mxu0 %v8636
    %9263 = vmatpush.bf16.msra.mxu0 %v8628
    %9264 = vmatpush.bf16.msra.mxu0 %v8620
    %9265 = vmatpush.bf16.msra.mxu0 %v8612
    %9266 = vmatpush.bf16.msra.mxu0 %v8604
    %9267 = vmatpush.bf16.msra.mxu0 %v8596
    %9268 = vmatpush.bf16.msra.mxu0 %v8588
    %9269 = vmatpush.bf16.msra.mxu0 %v8580
    %9270 = vmatmul.bf16.gmra.mxu0 %v5497
    %v9271 = vpop.f32.mrf.mxu0
    %v9272 = vadd.f32 %v9258, %v9271
    %v9273 = vpop.f32.mrf.mxu0
    %v9274 = vadd.f32 %v9260, %v9273
    %9275 = vdwg.mxu0
    %9276 = vmatpush.bf16.msra.mxu0 %v8700
    %9277 = vmatpush.bf16.msra.mxu0 %v8692
    %9278 = vmatpush.bf16.msra.mxu0 %v8684
    %9279 = vmatpush.bf16.msra.mxu0 %v8676
    %9280 = vmatpush.bf16.msra.mxu0 %v8668
    %9281 = vmatpush.bf16.msra.mxu0 %v8660
    %9282 = vmatpush.bf16.msra.mxu0 %v8652
    %9283 = vmatpush.bf16.msra.mxu0 %v8644
    %9284 = vmatmul.bf16.gmra.mxu0 %v5498
    %v9285 = vpop.f32.mrf.mxu0
    %v9286 = vadd.f32 %v9272, %v9285
    %v9287 = vpop.f32.mrf.mxu0
    %v9288 = vadd.f32 %v9274, %v9287
    %9289 = vdwg.mxu0
    %9290 = vmatpush.bf16.msra.mxu0 %v8764
    %9291 = vmatpush.bf16.msra.mxu0 %v8756
    %9292 = vmatpush.bf16.msra.mxu0 %v8748
    %9293 = vmatpush.bf16.msra.mxu0 %v8740
    %9294 = vmatpush.bf16.msra.mxu0 %v8732
    %9295 = vmatpush.bf16.msra.mxu0 %v8724
    %9296 = vmatpush.bf16.msra.mxu0 %v8716
    %9297 = vmatpush.bf16.msra.mxu0 %v8708
    %9298 = vmatmul.bf16.gmra.mxu0 %v5499
    %v9299 = vpop.f32.mrf.mxu0
    %v9300 = vadd.f32 %v9286, %v9299
    %v9301 = vpop.f32.mrf.mxu0
    %v9302 = vadd.f32 %v9288, %v9301
    %9303 = vdwg.mxu0
    %9304 = vmatpush.bf16.msra.mxu0 %v8573
    %9305 = vmatpush.bf16.msra.mxu0 %v8565
    %9306 = vmatpush.bf16.msra.mxu0 %v8557
    %9307 = vmatpush.bf16.msra.mxu0 %v8549
    %9308 = vmatpush.bf16.msra.mxu0 %v8541
    %9309 = vmatpush.bf16.msra.mxu0 %v8533
    %9310 = vmatpush.bf16.msra.mxu0 %v8525
    %9311 = vmatpush.bf16.msra.mxu0 %v8517
    %9312 = vmatmul.bf16.gmra.mxu0 %v5496
    %v9313 = vpop.f32.mrf.mxu0
    %v9314 = vadd.f32 %v7628, %v9313
    %v9315 = vpop.f32.mrf.mxu0
    %v9316 = vadd.f32 %v7630, %v9315
    %9317 = vdwg.mxu0
    %9318 = vmatpush.bf16.msra.mxu0 %v8637
    %9319 = vmatpush.bf16.msra.mxu0 %v8629
    %9320 = vmatpush.bf16.msra.mxu0 %v8621
    %9321 = vmatpush.bf16.msra.mxu0 %v8613
    %9322 = vmatpush.bf16.msra.mxu0 %v8605
    %9323 = vmatpush.bf16.msra.mxu0 %v8597
    %9324 = vmatpush.bf16.msra.mxu0 %v8589
    %9325 = vmatpush.bf16.msra.mxu0 %v8581
    %9326 = vmatmul.bf16.gmra.mxu0 %v5497
    %v9327 = vpop.f32.mrf.mxu0
    %v9328 = vadd.f32 %v9314, %v9327
    %v9329 = vpop.f32.mrf.mxu0
    %v9330 = vadd.f32 %v9316, %v9329
    %9331 = vdwg.mxu0
    %9332 = vmatpush.bf16.msra.mxu0 %v8701
    %9333 = vmatpush.bf16.msra.mxu0 %v8693
    %9334 = vmatpush.bf16.msra.mxu0 %v8685
    %9335 = vmatpush.bf16.msra.mxu0 %v8677
    %9336 = vmatpush.bf16.msra.mxu0 %v8669
    %9337 = vmatpush.bf16.msra.mxu0 %v8661
    %9338 = vmatpush.bf16.msra.mxu0 %v8653
    %9339 = vmatpush.bf16.msra.mxu0 %v8645
    %9340 = vmatmul.bf16.gmra.mxu0 %v5498
    %v9341 = vpop.f32.mrf.mxu0
    %v9342 = vadd.f32 %v9328, %v9341
    %v9343 = vpop.f32.mrf.mxu0
    %v9344 = vadd.f32 %v9330, %v9343
    %9345 = vdwg.mxu0
    %9346 = vmatpush.bf16.msra.mxu0 %v8765
    %9347 = vmatpush.bf16.msra.mxu0 %v8757
    %9348 = vmatpush.bf16.msra.mxu0 %v8749
    %9349 = vmatpush.bf16.msra.mxu0 %v8741
    %9350 = vmatpush.bf16.msra.mxu0 %v8733
    %9351 = vmatpush.bf16.msra.mxu0 %v8725
    %9352 = vmatpush.bf16.msra.mxu0 %v8717
    %9353 = vmatpush.bf16.msra.mxu0 %v8709
    %9354 = vmatmul.bf16.gmra.mxu0 %v5499
    %v9355 = vpop.f32.mrf.mxu0
    %v9356 = vadd.f32 %v9342, %v9355
    %v9357 = vpop.f32.mrf.mxu0
    %v9358 = vadd.f32 %v9344, %v9357
    %9359 = vdwg.mxu0
    %9360 = vmatpush.bf16.msra.mxu0 %v8574
    %9361 = vmatpush.bf16.msra.mxu0 %v8566
    %9362 = vmatpush.bf16.msra.mxu0 %v8558
    %9363 = vmatpush.bf16.msra.mxu0 %v8550
    %9364 = vmatpush.bf16.msra.mxu0 %v8542
    %9365 = vmatpush.bf16.msra.mxu0 %v8534
    %9366 = vmatpush.bf16.msra.mxu0 %v8526
    %9367 = vmatpush.bf16.msra.mxu0 %v8518
    %9368 = vmatmul.bf16.gmra.mxu0 %v5496
    %v9369 = vpop.f32.mrf.mxu0
    %v9370 = vadd.f32 %v7684, %v9369
    %v9371 = vpop.f32.mrf.mxu0
    %v9372 = vadd.f32 %v7686, %v9371
    %9373 = vdwg.mxu0
    %9374 = vmatpush.bf16.msra.mxu0 %v8638
    %9375 = vmatpush.bf16.msra.mxu0 %v8630
    %9376 = vmatpush.bf16.msra.mxu0 %v8622
    %9377 = vmatpush.bf16.msra.mxu0 %v8614
    %9378 = vmatpush.bf16.msra.mxu0 %v8606
    %9379 = vmatpush.bf16.msra.mxu0 %v8598
    %9380 = vmatpush.bf16.msra.mxu0 %v8590
    %9381 = vmatpush.bf16.msra.mxu0 %v8582
    %9382 = vmatmul.bf16.gmra.mxu0 %v5497
    %v9383 = vpop.f32.mrf.mxu0
    %v9384 = vadd.f32 %v9370, %v9383
    %v9385 = vpop.f32.mrf.mxu0
    %v9386 = vadd.f32 %v9372, %v9385
    %9387 = vdwg.mxu0
    %9388 = vmatpush.bf16.msra.mxu0 %v8702
    %9389 = vmatpush.bf16.msra.mxu0 %v8694
    %9390 = vmatpush.bf16.msra.mxu0 %v8686
    %9391 = vmatpush.bf16.msra.mxu0 %v8678
    %9392 = vmatpush.bf16.msra.mxu0 %v8670
    %9393 = vmatpush.bf16.msra.mxu0 %v8662
    %9394 = vmatpush.bf16.msra.mxu0 %v8654
    %9395 = vmatpush.bf16.msra.mxu0 %v8646
    %9396 = vmatmul.bf16.gmra.mxu0 %v5498
    %v9397 = vpop.f32.mrf.mxu0
    %v9398 = vadd.f32 %v9384, %v9397
    %v9399 = vpop.f32.mrf.mxu0
    %v9400 = vadd.f32 %v9386, %v9399
    %9401 = vdwg.mxu0
    %9402 = vmatpush.bf16.msra.mxu0 %v8766
    %9403 = vmatpush.bf16.msra.mxu0 %v8758
    %9404 = vmatpush.bf16.msra.mxu0 %v8750
    %9405 = vmatpush.bf16.msra.mxu0 %v8742
    %9406 = vmatpush.bf16.msra.mxu0 %v8734
    %9407 = vmatpush.bf16.msra.mxu0 %v8726
    %9408 = vmatpush.bf16.msra.mxu0 %v8718
    %9409 = vmatpush.bf16.msra.mxu0 %v8710
    %9410 = vmatmul.bf16.gmra.mxu0 %v5499
    %v9411 = vpop.f32.mrf.mxu0
    %v9412 = vadd.f32 %v9398, %v9411
    %v9413 = vpop.f32.mrf.mxu0
    %v9414 = vadd.f32 %v9400, %v9413
    %9415 = vdwg.mxu0
    %9416 = vmatpush.bf16.msra.mxu0 %v8575
    %9417 = vmatpush.bf16.msra.mxu0 %v8567
    %9418 = vmatpush.bf16.msra.mxu0 %v8559
    %9419 = vmatpush.bf16.msra.mxu0 %v8551
    %9420 = vmatpush.bf16.msra.mxu0 %v8543
    %9421 = vmatpush.bf16.msra.mxu0 %v8535
    %9422 = vmatpush.bf16.msra.mxu0 %v8527
    %9423 = vmatpush.bf16.msra.mxu0 %v8519
    %9424 = vmatmul.bf16.gmra.mxu0 %v5496
    %v9425 = vpop.f32.mrf.mxu0
    %v9426 = vadd.f32 %v7740, %v9425
    %v9427 = vpop.f32.mrf.mxu0
    %v9428 = vadd.f32 %v7742, %v9427
    %9429 = vdwg.mxu0
    %9430 = vmatpush.bf16.msra.mxu0 %v8639
    %9431 = vmatpush.bf16.msra.mxu0 %v8631
    %9432 = vmatpush.bf16.msra.mxu0 %v8623
    %9433 = vmatpush.bf16.msra.mxu0 %v8615
    %9434 = vmatpush.bf16.msra.mxu0 %v8607
    %9435 = vmatpush.bf16.msra.mxu0 %v8599
    %9436 = vmatpush.bf16.msra.mxu0 %v8591
    %9437 = vmatpush.bf16.msra.mxu0 %v8583
    %9438 = vmatmul.bf16.gmra.mxu0 %v5497
    %v9439 = vpop.f32.mrf.mxu0
    %v9440 = vadd.f32 %v9426, %v9439
    %v9441 = vpop.f32.mrf.mxu0
    %v9442 = vadd.f32 %v9428, %v9441
    %9443 = vdwg.mxu0
    %9444 = vmatpush.bf16.msra.mxu0 %v8703
    %9445 = vmatpush.bf16.msra.mxu0 %v8695
    %9446 = vmatpush.bf16.msra.mxu0 %v8687
    %9447 = vmatpush.bf16.msra.mxu0 %v8679
    %9448 = vmatpush.bf16.msra.mxu0 %v8671
    %9449 = vmatpush.bf16.msra.mxu0 %v8663
    %9450 = vmatpush.bf16.msra.mxu0 %v8655
    %9451 = vmatpush.bf16.msra.mxu0 %v8647
    %9452 = vmatmul.bf16.gmra.mxu0 %v5498
    %v9453 = vpop.f32.mrf.mxu0
    %v9454 = vadd.f32 %v9440, %v9453
    %v9455 = vpop.f32.mrf.mxu0
    %v9456 = vadd.f32 %v9442, %v9455
    %9457 = vdwg.mxu0
    %9458 = vmatpush.bf16.msra.mxu0 %v8767
    %9459 = vmatpush.bf16.msra.mxu0 %v8759
    %9460 = vmatpush.bf16.msra.mxu0 %v8751
    %9461 = vmatpush.bf16.msra.mxu0 %v8743
    %9462 = vmatpush.bf16.msra.mxu0 %v8735
    %9463 = vmatpush.bf16.msra.mxu0 %v8727
    %9464 = vmatpush.bf16.msra.mxu0 %v8719
    %9465 = vmatpush.bf16.msra.mxu0 %v8711
    %9466 = vmatmul.bf16.gmra.mxu0 %v5499
    %v9467 = vpop.f32.mrf.mxu0
    %v9468 = vadd.f32 %v9454, %v9467
    %v9469 = vpop.f32.mrf.mxu0
    %v9470 = vadd.f32 %v9456, %v9469
    %9471 = vdwg.mxu0
    %v9472 = vld [vmem:[%s11] sm:$0xff]
    %v9474 = vperm.slane %v9472, 0
    %v9475 = vperm.slane %v9472, 1
    %v9476 = vperm.slane %v9472, 2
    %v9477 = vperm.slane %v9472, 3
    %v9478 = vperm.slane %v9472, 4
    %v9479 = vperm.slane %v9472, 5
    %v9480 = vperm.slane %v9472, 6
    %v9481 = vperm.slane %v9472, 7
    %v9490 = vadd.f32 %v9076, %v9474
    %v9491 = vadd.f32 %v9132, %v9475
    %v9492 = vadd.f32 %v9188, %v9476
    %v9493 = vadd.f32 %v9244, %v9477
    %v9494 = vadd.f32 %v9300, %v9478
    %v9495 = vadd.f32 %v9356, %v9479
    %v9496 = vadd.f32 %v9412, %v9480
    %v9497 = vadd.f32 %v9468, %v9481
    %v9498 = vadd.f32 %v9078, %v9474
    %v9499 = vadd.f32 %v9134, %v9475
    %v9500 = vadd.f32 %v9190, %v9476
    %v9501 = vadd.f32 %v9246, %v9477
    %v9502 = vadd.f32 %v9302, %v9478
    %v9503 = vadd.f32 %v9358, %v9479
    %v9504 = vadd.f32 %v9414, %v9480
    %v9505 = vadd.f32 %v9470, %v9481
    %v9506 = vmax.f32 %v9490, 0.0
    %v9507 = vmax.f32 %v9491, 0.0
    %v9508 = vmax.f32 %v9492, 0.0
    %v9509 = vmax.f32 %v9493, 0.0
    %v9510 = vmax.f32 %v9494, 0.0
    %v9511 = vmax.f32 %v9495, 0.0
    %v9512 = vmax.f32 %v9496, 0.0
    %v9513 = vmax.f32 %v9497, 0.0
    %v9514 = vmax.f32 %v9498, 0.0
    %v9515 = vmax.f32 %v9499, 0.0
    %v9516 = vmax.f32 %v9500, 0.0
    %v9517 = vmax.f32 %v9501, 0.0
    %v9518 = vmax.f32 %v9502, 0.0
    %v9519 = vmax.f32 %v9503, 0.0
    %v9520 = vmax.f32 %v9504, 0.0
    %v9521 = vmax.f32 %v9505, 0.0
    %v9522 = vpack.c.bf16 %v9514, %v9506
    %v9523 = vpack.c.bf16 %v9515, %v9507
    %v9524 = vpack.c.bf16 %v9516, %v9508
    %v9525 = vpack.c.bf16 %v9517, %v9509
    %v9526 = vpack.c.bf16 %v9518, %v9510
    %v9527 = vpack.c.bf16 %v9519, %v9511
    %v9528 = vpack.c.bf16 %v9520, %v9512
    %v9529 = vpack.c.bf16 %v9521, %v9513
    %v9530 = vld [vmem:[#allocation20] sm:$0xff]
    %v9531 = vld [vmem:[#allocation20 + $0x8] sm:$0xff]
    %v9532 = vld [vmem:[#allocation20 + $0x10] sm:$0xff]
    %v9533 = vld [vmem:[#allocation20 + $0x18] sm:$0xff]
    %v9534 = vld [vmem:[#allocation20 + $0x20] sm:$0xff]
    %v9535 = vld [vmem:[#allocation20 + $0x28] sm:$0xff]
    %v9536 = vld [vmem:[#allocation20 + $0x30] sm:$0xff]
    %v9537 = vld [vmem:[#allocation20 + $0x38] sm:$0xff]
    %v9538 = vld [vmem:[#allocation20 + $0x40] sm:$0xff]
    %v9539 = vld [vmem:[#allocation20 + $0x48] sm:$0xff]
    %v9540 = vld [vmem:[#allocation20 + $0x50] sm:$0xff]
    %v9541 = vld [vmem:[#allocation20 + $0x58] sm:$0xff]
    %v9542 = vld [vmem:[#allocation20 + $0x60] sm:$0xff]
    %v9543 = vld [vmem:[#allocation20 + $0x68] sm:$0xff]
    %v9544 = vld [vmem:[#allocation20 + $0x70] sm:$0xff]
    %v9545 = vld [vmem:[#allocation20 + $0x78] sm:$0xff]
    %v9546 = vld [vmem:[#allocation20 + $0x80] sm:$0xff]
    %v9547 = vld [vmem:[#allocation20 + $0x88] sm:$0xff]
    %v9548 = vld [vmem:[#allocation20 + $0x90] sm:$0xff]
    %v9549 = vld [vmem:[#allocation20 + $0x98] sm:$0xff]
    %v9550 = vld [vmem:[#allocation20 + $0xa0] sm:$0xff]
    %v9551 = vld [vmem:[#allocation20 + $0xa8] sm:$0xff]
    %v9552 = vld [vmem:[#allocation20 + $0xb0] sm:$0xff]
    %v9553 = vld [vmem:[#allocation20 + $0xb8] sm:$0xff]
    %v9554 = vld [vmem:[#allocation20 + $0xc0] sm:$0xff]
    %v9555 = vld [vmem:[#allocation20 + $0xc8] sm:$0xff]
    %v9556 = vld [vmem:[#allocation20 + $0xd0] sm:$0xff]
    %v9557 = vld [vmem:[#allocation20 + $0xd8] sm:$0xff]
    %v9558 = vld [vmem:[#allocation20 + $0xe0] sm:$0xff]
    %v9559 = vld [vmem:[#allocation20 + $0xe8] sm:$0xff]
    %v9560 = vld [vmem:[#allocation20 + $0xf0] sm:$0xff]
    %v9561 = vld [vmem:[#allocation20 + $0xf8] sm:$0xff]
    %v9562 = vld [vmem:[#allocation20 + $0x100] sm:$0xff]
    %v9563 = vld [vmem:[#allocation20 + $0x108] sm:$0xff]
    %v9564 = vld [vmem:[#allocation20 + $0x110] sm:$0xff]
    %v9565 = vld [vmem:[#allocation20 + $0x118] sm:$0xff]
    %v9566 = vld [vmem:[#allocation20 + $0x120] sm:$0xff]
    %v9567 = vld [vmem:[#allocation20 + $0x128] sm:$0xff]
    %v9568 = vld [vmem:[#allocation20 + $0x130] sm:$0xff]
    %v9569 = vld [vmem:[#allocation20 + $0x138] sm:$0xff]
    %v9570 = vld [vmem:[#allocation20 + $0x140] sm:$0xff]
    %v9571 = vld [vmem:[#allocation20 + $0x148] sm:$0xff]
    %v9572 = vld [vmem:[#allocation20 + $0x150] sm:$0xff]
    %v9573 = vld [vmem:[#allocation20 + $0x158] sm:$0xff]
    %v9574 = vld [vmem:[#allocation20 + $0x160] sm:$0xff]
    %v9575 = vld [vmem:[#allocation20 + $0x168] sm:$0xff]
    %v9576 = vld [vmem:[#allocation20 + $0x170] sm:$0xff]
    %v9577 = vld [vmem:[#allocation20 + $0x178] sm:$0xff]
    %v9578 = vld [vmem:[#allocation20 + $0x180] sm:$0xff]
    %v9579 = vld [vmem:[#allocation20 + $0x188] sm:$0xff]
    %v9580 = vld [vmem:[#allocation20 + $0x190] sm:$0xff]
    %v9581 = vld [vmem:[#allocation20 + $0x198] sm:$0xff]
    %v9582 = vld [vmem:[#allocation20 + $0x1a0] sm:$0xff]
    %v9583 = vld [vmem:[#allocation20 + $0x1a8] sm:$0xff]
    %v9584 = vld [vmem:[#allocation20 + $0x1b0] sm:$0xff]
    %v9585 = vld [vmem:[#allocation20 + $0x1b8] sm:$0xff]
    %v9586 = vld [vmem:[#allocation20 + $0x1c0] sm:$0xff]
    %v9587 = vld [vmem:[#allocation20 + $0x1c8] sm:$0xff]
    %v9588 = vld [vmem:[#allocation20 + $0x1d0] sm:$0xff]
    %v9589 = vld [vmem:[#allocation20 + $0x1d8] sm:$0xff]
    %v9590 = vld [vmem:[#allocation20 + $0x1e0] sm:$0xff]
    %v9591 = vld [vmem:[#allocation20 + $0x1e8] sm:$0xff]
    %v9592 = vld [vmem:[#allocation20 + $0x1f0] sm:$0xff]
    %v9593 = vld [vmem:[#allocation20 + $0x1f8] sm:$0xff]
    %v9594 = vld [vmem:[#allocation20 + $0x200] sm:$0xff]
    %v9595 = vld [vmem:[#allocation20 + $0x208] sm:$0xff]
    %v9596 = vld [vmem:[#allocation20 + $0x210] sm:$0xff]
    %v9597 = vld [vmem:[#allocation20 + $0x218] sm:$0xff]
    %v9598 = vld [vmem:[#allocation20 + $0x220] sm:$0xff]
    %v9599 = vld [vmem:[#allocation20 + $0x228] sm:$0xff]
    %v9600 = vld [vmem:[#allocation20 + $0x230] sm:$0xff]
    %v9601 = vld [vmem:[#allocation20 + $0x238] sm:$0xff]
    %v9602 = vld [vmem:[#allocation20 + $0x240] sm:$0xff]
    %v9603 = vld [vmem:[#allocation20 + $0x248] sm:$0xff]
    %v9604 = vld [vmem:[#allocation20 + $0x250] sm:$0xff]
    %v9605 = vld [vmem:[#allocation20 + $0x258] sm:$0xff]
    %v9606 = vld [vmem:[#allocation20 + $0x260] sm:$0xff]
    %v9607 = vld [vmem:[#allocation20 + $0x268] sm:$0xff]
    %v9608 = vld [vmem:[#allocation20 + $0x270] sm:$0xff]
    %v9609 = vld [vmem:[#allocation20 + $0x278] sm:$0xff]
    %v9610 = vld [vmem:[#allocation20 + $0x280] sm:$0xff]
    %v9611 = vld [vmem:[#allocation20 + $0x288] sm:$0xff]
    %v9612 = vld [vmem:[#allocation20 + $0x290] sm:$0xff]
    %v9613 = vld [vmem:[#allocation20 + $0x298] sm:$0xff]
    %v9614 = vld [vmem:[#allocation20 + $0x2a0] sm:$0xff]
    %v9615 = vld [vmem:[#allocation20 + $0x2a8] sm:$0xff]
    %v9616 = vld [vmem:[#allocation20 + $0x2b0] sm:$0xff]
    %v9617 = vld [vmem:[#allocation20 + $0x2b8] sm:$0xff]
    %v9618 = vld [vmem:[#allocation20 + $0x2c0] sm:$0xff]
    %v9619 = vld [vmem:[#allocation20 + $0x2c8] sm:$0xff]
    %v9620 = vld [vmem:[#allocation20 + $0x2d0] sm:$0xff]
    %v9621 = vld [vmem:[#allocation20 + $0x2d8] sm:$0xff]
    %v9622 = vld [vmem:[#allocation20 + $0x2e0] sm:$0xff]
    %v9623 = vld [vmem:[#allocation20 + $0x2e8] sm:$0xff]
    %v9624 = vld [vmem:[#allocation20 + $0x2f0] sm:$0xff]
    %v9625 = vld [vmem:[#allocation20 + $0x2f8] sm:$0xff]
    %v9626 = vld [vmem:[#allocation20 + $0x300] sm:$0xff]
    %v9627 = vld [vmem:[#allocation20 + $0x308] sm:$0xff]
    %v9628 = vld [vmem:[#allocation20 + $0x310] sm:$0xff]
    %v9629 = vld [vmem:[#allocation20 + $0x318] sm:$0xff]
    %v9630 = vld [vmem:[#allocation20 + $0x320] sm:$0xff]
    %v9631 = vld [vmem:[#allocation20 + $0x328] sm:$0xff]
    %v9632 = vld [vmem:[#allocation20 + $0x330] sm:$0xff]
    %v9633 = vld [vmem:[#allocation20 + $0x338] sm:$0xff]
    %v9634 = vld [vmem:[#allocation20 + $0x340] sm:$0xff]
    %v9635 = vld [vmem:[#allocation20 + $0x348] sm:$0xff]
    %v9636 = vld [vmem:[#allocation20 + $0x350] sm:$0xff]
    %v9637 = vld [vmem:[#allocation20 + $0x358] sm:$0xff]
    %v9638 = vld [vmem:[#allocation20 + $0x360] sm:$0xff]
    %v9639 = vld [vmem:[#allocation20 + $0x368] sm:$0xff]
    %v9640 = vld [vmem:[#allocation20 + $0x370] sm:$0xff]
    %v9641 = vld [vmem:[#allocation20 + $0x378] sm:$0xff]
    %v9642 = vld [vmem:[#allocation20 + $0x380] sm:$0xff]
    %v9643 = vld [vmem:[#allocation20 + $0x388] sm:$0xff]
    %v9644 = vld [vmem:[#allocation20 + $0x390] sm:$0xff]
    %v9645 = vld [vmem:[#allocation20 + $0x398] sm:$0xff]
    %v9646 = vld [vmem:[#allocation20 + $0x3a0] sm:$0xff]
    %v9647 = vld [vmem:[#allocation20 + $0x3a8] sm:$0xff]
    %v9648 = vld [vmem:[#allocation20 + $0x3b0] sm:$0xff]
    %v9649 = vld [vmem:[#allocation20 + $0x3b8] sm:$0xff]
    %v9650 = vld [vmem:[#allocation20 + $0x3c0] sm:$0xff]
    %v9651 = vld [vmem:[#allocation20 + $0x3c8] sm:$0xff]
    %v9652 = vld [vmem:[#allocation20 + $0x3d0] sm:$0xff]
    %v9653 = vld [vmem:[#allocation20 + $0x3d8] sm:$0xff]
    %v9654 = vld [vmem:[#allocation20 + $0x3e0] sm:$0xff]
    %v9655 = vld [vmem:[#allocation20 + $0x3e8] sm:$0xff]
    %v9656 = vld [vmem:[#allocation20 + $0x3f0] sm:$0xff]
    %v9657 = vld [vmem:[#allocation20 + $0x3f8] sm:$0xff]
    %v9658 = vld [vmem:[#allocation20 + $0x400] sm:$0xff]
    %v9659 = vld [vmem:[#allocation20 + $0x408] sm:$0xff]
    %v9660 = vld [vmem:[#allocation20 + $0x410] sm:$0xff]
    %v9661 = vld [vmem:[#allocation20 + $0x418] sm:$0xff]
    %v9662 = vld [vmem:[#allocation20 + $0x420] sm:$0xff]
    %v9663 = vld [vmem:[#allocation20 + $0x428] sm:$0xff]
    %v9664 = vld [vmem:[#allocation20 + $0x430] sm:$0xff]
    %v9665 = vld [vmem:[#allocation20 + $0x438] sm:$0xff]
    %v9666 = vld [vmem:[#allocation20 + $0x440] sm:$0xff]
    %v9667 = vld [vmem:[#allocation20 + $0x448] sm:$0xff]
    %v9668 = vld [vmem:[#allocation20 + $0x450] sm:$0xff]
    %v9669 = vld [vmem:[#allocation20 + $0x458] sm:$0xff]
    %v9670 = vld [vmem:[#allocation20 + $0x460] sm:$0xff]
    %v9671 = vld [vmem:[#allocation20 + $0x468] sm:$0xff]
    %v9672 = vld [vmem:[#allocation20 + $0x470] sm:$0xff]
    %v9673 = vld [vmem:[#allocation20 + $0x478] sm:$0xff]
    %v9674 = vld [vmem:[#allocation20 + $0x480] sm:$0xff]
    %v9675 = vld [vmem:[#allocation20 + $0x488] sm:$0xff]
    %v9676 = vld [vmem:[#allocation20 + $0x490] sm:$0xff]
    %v9677 = vld [vmem:[#allocation20 + $0x498] sm:$0xff]
    %v9678 = vld [vmem:[#allocation20 + $0x4a0] sm:$0xff]
    %v9679 = vld [vmem:[#allocation20 + $0x4a8] sm:$0xff]
    %v9680 = vld [vmem:[#allocation20 + $0x4b0] sm:$0xff]
    %v9681 = vld [vmem:[#allocation20 + $0x4b8] sm:$0xff]
    %v9682 = vld [vmem:[#allocation20 + $0x4c0] sm:$0xff]
    %v9683 = vld [vmem:[#allocation20 + $0x4c8] sm:$0xff]
    %v9684 = vld [vmem:[#allocation20 + $0x4d0] sm:$0xff]
    %v9685 = vld [vmem:[#allocation20 + $0x4d8] sm:$0xff]
    %v9686 = vld [vmem:[#allocation20 + $0x4e0] sm:$0xff]
    %v9687 = vld [vmem:[#allocation20 + $0x4e8] sm:$0xff]
    %v9688 = vld [vmem:[#allocation20 + $0x4f0] sm:$0xff]
    %v9689 = vld [vmem:[#allocation20 + $0x4f8] sm:$0xff]
    %v9690 = vld [vmem:[#allocation20 + $0x500] sm:$0xff]
    %v9691 = vld [vmem:[#allocation20 + $0x508] sm:$0xff]
    %v9692 = vld [vmem:[#allocation20 + $0x510] sm:$0xff]
    %v9693 = vld [vmem:[#allocation20 + $0x518] sm:$0xff]
    %v9694 = vld [vmem:[#allocation20 + $0x520] sm:$0xff]
    %v9695 = vld [vmem:[#allocation20 + $0x528] sm:$0xff]
    %v9696 = vld [vmem:[#allocation20 + $0x530] sm:$0xff]
    %v9697 = vld [vmem:[#allocation20 + $0x538] sm:$0xff]
    %v9698 = vld [vmem:[#allocation20 + $0x540] sm:$0xff]
    %v9699 = vld [vmem:[#allocation20 + $0x548] sm:$0xff]
    %v9700 = vld [vmem:[#allocation20 + $0x550] sm:$0xff]
    %v9701 = vld [vmem:[#allocation20 + $0x558] sm:$0xff]
    %v9702 = vld [vmem:[#allocation20 + $0x560] sm:$0xff]
    %v9703 = vld [vmem:[#allocation20 + $0x568] sm:$0xff]
    %v9704 = vld [vmem:[#allocation20 + $0x570] sm:$0xff]
    %v9705 = vld [vmem:[#allocation20 + $0x578] sm:$0xff]
    %v9706 = vld [vmem:[#allocation20 + $0x580] sm:$0xff]
    %v9707 = vld [vmem:[#allocation20 + $0x588] sm:$0xff]
    %v9708 = vld [vmem:[#allocation20 + $0x590] sm:$0xff]
    %v9709 = vld [vmem:[#allocation20 + $0x598] sm:$0xff]
    %v9710 = vld [vmem:[#allocation20 + $0x5a0] sm:$0xff]
    %v9711 = vld [vmem:[#allocation20 + $0x5a8] sm:$0xff]
    %v9712 = vld [vmem:[#allocation20 + $0x5b0] sm:$0xff]
    %v9713 = vld [vmem:[#allocation20 + $0x5b8] sm:$0xff]
    %v9714 = vld [vmem:[#allocation20 + $0x5c0] sm:$0xff]
    %v9715 = vld [vmem:[#allocation20 + $0x5c8] sm:$0xff]
    %v9716 = vld [vmem:[#allocation20 + $0x5d0] sm:$0xff]
    %v9717 = vld [vmem:[#allocation20 + $0x5d8] sm:$0xff]
    %v9718 = vld [vmem:[#allocation20 + $0x5e0] sm:$0xff]
    %v9719 = vld [vmem:[#allocation20 + $0x5e8] sm:$0xff]
    %v9720 = vld [vmem:[#allocation20 + $0x5f0] sm:$0xff]
    %v9721 = vld [vmem:[#allocation20 + $0x5f8] sm:$0xff]
    %v9722 = vld [vmem:[#allocation20 + $0x600] sm:$0xff]
    %v9723 = vld [vmem:[#allocation20 + $0x608] sm:$0xff]
    %v9724 = vld [vmem:[#allocation20 + $0x610] sm:$0xff]
    %v9725 = vld [vmem:[#allocation20 + $0x618] sm:$0xff]
    %v9726 = vld [vmem:[#allocation20 + $0x620] sm:$0xff]
    %v9727 = vld [vmem:[#allocation20 + $0x628] sm:$0xff]
    %v9728 = vld [vmem:[#allocation20 + $0x630] sm:$0xff]
    %v9729 = vld [vmem:[#allocation20 + $0x638] sm:$0xff]
    %v9730 = vld [vmem:[#allocation20 + $0x640] sm:$0xff]
    %v9731 = vld [vmem:[#allocation20 + $0x648] sm:$0xff]
    %v9732 = vld [vmem:[#allocation20 + $0x650] sm:$0xff]
    %v9733 = vld [vmem:[#allocation20 + $0x658] sm:$0xff]
    %v9734 = vld [vmem:[#allocation20 + $0x660] sm:$0xff]
    %v9735 = vld [vmem:[#allocation20 + $0x668] sm:$0xff]
    %v9736 = vld [vmem:[#allocation20 + $0x670] sm:$0xff]
    %v9737 = vld [vmem:[#allocation20 + $0x678] sm:$0xff]
    %v9738 = vld [vmem:[#allocation20 + $0x680] sm:$0xff]
    %v9739 = vld [vmem:[#allocation20 + $0x688] sm:$0xff]
    %v9740 = vld [vmem:[#allocation20 + $0x690] sm:$0xff]
    %v9741 = vld [vmem:[#allocation20 + $0x698] sm:$0xff]
    %v9742 = vld [vmem:[#allocation20 + $0x6a0] sm:$0xff]
    %v9743 = vld [vmem:[#allocation20 + $0x6a8] sm:$0xff]
    %v9744 = vld [vmem:[#allocation20 + $0x6b0] sm:$0xff]
    %v9745 = vld [vmem:[#allocation20 + $0x6b8] sm:$0xff]
    %v9746 = vld [vmem:[#allocation20 + $0x6c0] sm:$0xff]
    %v9747 = vld [vmem:[#allocation20 + $0x6c8] sm:$0xff]
    %v9748 = vld [vmem:[#allocation20 + $0x6d0] sm:$0xff]
    %v9749 = vld [vmem:[#allocation20 + $0x6d8] sm:$0xff]
    %v9750 = vld [vmem:[#allocation20 + $0x6e0] sm:$0xff]
    %v9751 = vld [vmem:[#allocation20 + $0x6e8] sm:$0xff]
    %v9752 = vld [vmem:[#allocation20 + $0x6f0] sm:$0xff]
    %v9753 = vld [vmem:[#allocation20 + $0x6f8] sm:$0xff]
    %v9754 = vld [vmem:[#allocation20 + $0x700] sm:$0xff]
    %v9755 = vld [vmem:[#allocation20 + $0x708] sm:$0xff]
    %v9756 = vld [vmem:[#allocation20 + $0x710] sm:$0xff]
    %v9757 = vld [vmem:[#allocation20 + $0x718] sm:$0xff]
    %v9758 = vld [vmem:[#allocation20 + $0x720] sm:$0xff]
    %v9759 = vld [vmem:[#allocation20 + $0x728] sm:$0xff]
    %v9760 = vld [vmem:[#allocation20 + $0x730] sm:$0xff]
    %v9761 = vld [vmem:[#allocation20 + $0x738] sm:$0xff]
    %v9762 = vld [vmem:[#allocation20 + $0x740] sm:$0xff]
    %v9763 = vld [vmem:[#allocation20 + $0x748] sm:$0xff]
    %v9764 = vld [vmem:[#allocation20 + $0x750] sm:$0xff]
    %v9765 = vld [vmem:[#allocation20 + $0x758] sm:$0xff]
    %v9766 = vld [vmem:[#allocation20 + $0x760] sm:$0xff]
    %v9767 = vld [vmem:[#allocation20 + $0x768] sm:$0xff]
    %v9768 = vld [vmem:[#allocation20 + $0x770] sm:$0xff]
    %v9769 = vld [vmem:[#allocation20 + $0x778] sm:$0xff]
    %v9770 = vld [vmem:[#allocation20 + $0x780] sm:$0xff]
    %v9771 = vld [vmem:[#allocation20 + $0x788] sm:$0xff]
    %v9772 = vld [vmem:[#allocation20 + $0x790] sm:$0xff]
    %v9773 = vld [vmem:[#allocation20 + $0x798] sm:$0xff]
    %v9774 = vld [vmem:[#allocation20 + $0x7a0] sm:$0xff]
    %v9775 = vld [vmem:[#allocation20 + $0x7a8] sm:$0xff]
    %v9776 = vld [vmem:[#allocation20 + $0x7b0] sm:$0xff]
    %v9777 = vld [vmem:[#allocation20 + $0x7b8] sm:$0xff]
    %v9778 = vld [vmem:[#allocation20 + $0x7c0] sm:$0xff]
    %v9779 = vld [vmem:[#allocation20 + $0x7c8] sm:$0xff]
    %v9780 = vld [vmem:[#allocation20 + $0x7d0] sm:$0xff]
    %v9781 = vld [vmem:[#allocation20 + $0x7d8] sm:$0xff]
    %v9782 = vld [vmem:[#allocation20 + $0x7e0] sm:$0xff]
    %v9783 = vld [vmem:[#allocation20 + $0x7e8] sm:$0xff]
    %v9784 = vld [vmem:[#allocation20 + $0x7f0] sm:$0xff]
    %v9785 = vld [vmem:[#allocation20 + $0x7f8] sm:$0xff]
    %v9786 = vld [vmem:[%s13] sm:$0xf]
    %v9788 = vperm.slane %v9786, 0
    %v9789 = vperm.slane %v9786, 1
    %v9790 = vperm.slane %v9786, 2
    %v9791 = vperm.slane %v9786, 3
    %v10052 = vunpack.c.l.b16 %v9530
    %v10053 = vunpack.c.h.b16 %v9530
    %v10054 = vunpack.c.l.b16 %v9531
    %v10055 = vunpack.c.h.b16 %v9531
    %v10056 = vunpack.c.l.b16 %v9532
    %v10057 = vunpack.c.h.b16 %v9532
    %v10058 = vunpack.c.l.b16 %v9533
    %v10059 = vunpack.c.h.b16 %v9533
    %v10060 = vunpack.c.l.b16 %v9534
    %v10061 = vunpack.c.h.b16 %v9534
    %v10062 = vunpack.c.l.b16 %v9535
    %v10063 = vunpack.c.h.b16 %v9535
    %v10064 = vunpack.c.l.b16 %v9536
    %v10065 = vunpack.c.h.b16 %v9536
    %v10066 = vunpack.c.l.b16 %v9537
    %v10067 = vunpack.c.h.b16 %v9537
    %v10068 = vunpack.c.l.b16 %v9538
    %v10069 = vunpack.c.h.b16 %v9538
    %v10070 = vunpack.c.l.b16 %v9539
    %v10071 = vunpack.c.h.b16 %v9539
    %v10072 = vunpack.c.l.b16 %v9540
    %v10073 = vunpack.c.h.b16 %v9540
    %v10074 = vunpack.c.l.b16 %v9541
    %v10075 = vunpack.c.h.b16 %v9541
    %v10076 = vunpack.c.l.b16 %v9542
    %v10077 = vunpack.c.h.b16 %v9542
    %v10078 = vunpack.c.l.b16 %v9543
    %v10079 = vunpack.c.h.b16 %v9543
    %v10080 = vunpack.c.l.b16 %v9544
    %v10081 = vunpack.c.h.b16 %v9544
    %v10082 = vunpack.c.l.b16 %v9545
    %v10083 = vunpack.c.h.b16 %v9545
    %v10084 = vunpack.c.l.b16 %v9546
    %v10085 = vunpack.c.h.b16 %v9546
    %v10086 = vunpack.c.l.b16 %v9547
    %v10087 = vunpack.c.h.b16 %v9547
    %v10088 = vunpack.c.l.b16 %v9548
    %v10089 = vunpack.c.h.b16 %v9548
    %v10090 = vunpack.c.l.b16 %v9549
    %v10091 = vunpack.c.h.b16 %v9549
    %v10092 = vunpack.c.l.b16 %v9550
    %v10093 = vunpack.c.h.b16 %v9550
    %v10094 = vunpack.c.l.b16 %v9551
    %v10095 = vunpack.c.h.b16 %v9551
    %v10096 = vunpack.c.l.b16 %v9552
    %v10097 = vunpack.c.h.b16 %v9552
    %v10098 = vunpack.c.l.b16 %v9553
    %v10099 = vunpack.c.h.b16 %v9553
    %v10100 = vunpack.c.l.b16 %v9554
    %v10101 = vunpack.c.h.b16 %v9554
    %v10102 = vunpack.c.l.b16 %v9555
    %v10103 = vunpack.c.h.b16 %v9555
    %v10104 = vunpack.c.l.b16 %v9556
    %v10105 = vunpack.c.h.b16 %v9556
    %v10106 = vunpack.c.l.b16 %v9557
    %v10107 = vunpack.c.h.b16 %v9557
    %v10108 = vunpack.c.l.b16 %v9558
    %v10109 = vunpack.c.h.b16 %v9558
    %v10110 = vunpack.c.l.b16 %v9559
    %v10111 = vunpack.c.h.b16 %v9559
    %v10112 = vunpack.c.l.b16 %v9560
    %v10113 = vunpack.c.h.b16 %v9560
    %v10114 = vunpack.c.l.b16 %v9561
    %v10115 = vunpack.c.h.b16 %v9561
    %v10116 = vunpack.c.l.b16 %v9562
    %v10117 = vunpack.c.h.b16 %v9562
    %v10118 = vunpack.c.l.b16 %v9563
    %v10119 = vunpack.c.h.b16 %v9563
    %v10120 = vunpack.c.l.b16 %v9564
    %v10121 = vunpack.c.h.b16 %v9564
    %v10122 = vunpack.c.l.b16 %v9565
    %v10123 = vunpack.c.h.b16 %v9565
    %v10124 = vunpack.c.l.b16 %v9566
    %v10125 = vunpack.c.h.b16 %v9566
    %v10126 = vunpack.c.l.b16 %v9567
    %v10127 = vunpack.c.h.b16 %v9567
    %v10128 = vunpack.c.l.b16 %v9568
    %v10129 = vunpack.c.h.b16 %v9568
    %v10130 = vunpack.c.l.b16 %v9569
    %v10131 = vunpack.c.h.b16 %v9569
    %v10132 = vunpack.c.l.b16 %v9570
    %v10133 = vunpack.c.h.b16 %v9570
    %v10134 = vunpack.c.l.b16 %v9571
    %v10135 = vunpack.c.h.b16 %v9571
    %v10136 = vunpack.c.l.b16 %v9572
    %v10137 = vunpack.c.h.b16 %v9572
    %v10138 = vunpack.c.l.b16 %v9573
    %v10139 = vunpack.c.h.b16 %v9573
    %v10140 = vunpack.c.l.b16 %v9574
    %v10141 = vunpack.c.h.b16 %v9574
    %v10142 = vunpack.c.l.b16 %v9575
    %v10143 = vunpack.c.h.b16 %v9575
    %v10144 = vunpack.c.l.b16 %v9576
    %v10145 = vunpack.c.h.b16 %v9576
    %v10146 = vunpack.c.l.b16 %v9577
    %v10147 = vunpack.c.h.b16 %v9577
    %v10148 = vunpack.c.l.b16 %v9578
    %v10149 = vunpack.c.h.b16 %v9578
    %v10150 = vunpack.c.l.b16 %v9579
    %v10151 = vunpack.c.h.b16 %v9579
    %v10152 = vunpack.c.l.b16 %v9580
    %v10153 = vunpack.c.h.b16 %v9580
    %v10154 = vunpack.c.l.b16 %v9581
    %v10155 = vunpack.c.h.b16 %v9581
    %v10156 = vunpack.c.l.b16 %v9582
    %v10157 = vunpack.c.h.b16 %v9582
    %v10158 = vunpack.c.l.b16 %v9583
    %v10159 = vunpack.c.h.b16 %v9583
    %v10160 = vunpack.c.l.b16 %v9584
    %v10161 = vunpack.c.h.b16 %v9584
    %v10162 = vunpack.c.l.b16 %v9585
    %v10163 = vunpack.c.h.b16 %v9585
    %v10164 = vunpack.c.l.b16 %v9586
    %v10165 = vunpack.c.h.b16 %v9586
    %v10166 = vunpack.c.l.b16 %v9587
    %v10167 = vunpack.c.h.b16 %v9587
    %v10168 = vunpack.c.l.b16 %v9588
    %v10169 = vunpack.c.h.b16 %v9588
    %v10170 = vunpack.c.l.b16 %v9589
    %v10171 = vunpack.c.h.b16 %v9589
    %v10172 = vunpack.c.l.b16 %v9590
    %v10173 = vunpack.c.h.b16 %v9590
    %v10174 = vunpack.c.l.b16 %v9591
    %v10175 = vunpack.c.h.b16 %v9591
    %v10176 = vunpack.c.l.b16 %v9592
    %v10177 = vunpack.c.h.b16 %v9592
    %v10178 = vunpack.c.l.b16 %v9593
    %v10179 = vunpack.c.h.b16 %v9593
    %v10180 = vunpack.c.l.b16 %v9594
    %v10181 = vunpack.c.h.b16 %v9594
    %v10182 = vunpack.c.l.b16 %v9595
    %v10183 = vunpack.c.h.b16 %v9595
    %v10184 = vunpack.c.l.b16 %v9596
    %v10185 = vunpack.c.h.b16 %v9596
    %v10186 = vunpack.c.l.b16 %v9597
    %v10187 = vunpack.c.h.b16 %v9597
    %v10188 = vunpack.c.l.b16 %v9598
    %v10189 = vunpack.c.h.b16 %v9598
    %v10190 = vunpack.c.l.b16 %v9599
    %v10191 = vunpack.c.h.b16 %v9599
    %v10192 = vunpack.c.l.b16 %v9600
    %v10193 = vunpack.c.h.b16 %v9600
    %v10194 = vunpack.c.l.b16 %v9601
    %v10195 = vunpack.c.h.b16 %v9601
    %v10196 = vunpack.c.l.b16 %v9602
    %v10197 = vunpack.c.h.b16 %v9602
    %v10198 = vunpack.c.l.b16 %v9603
    %v10199 = vunpack.c.h.b16 %v9603
    %v10200 = vunpack.c.l.b16 %v9604
    %v10201 = vunpack.c.h.b16 %v9604
    %v10202 = vunpack.c.l.b16 %v9605
    %v10203 = vunpack.c.h.b16 %v9605
    %v10204 = vunpack.c.l.b16 %v9606
    %v10205 = vunpack.c.h.b16 %v9606
    %v10206 = vunpack.c.l.b16 %v9607
    %v10207 = vunpack.c.h.b16 %v9607
    %v10208 = vunpack.c.l.b16 %v9608
    %v10209 = vunpack.c.h.b16 %v9608
    %v10210 = vunpack.c.l.b16 %v9609
    %v10211 = vunpack.c.h.b16 %v9609
    %v10212 = vunpack.c.l.b16 %v9610
    %v10213 = vunpack.c.h.b16 %v9610
    %v10214 = vunpack.c.l.b16 %v9611
    %v10215 = vunpack.c.h.b16 %v9611
    %v10216 = vunpack.c.l.b16 %v9612
    %v10217 = vunpack.c.h.b16 %v9612
    %v10218 = vunpack.c.l.b16 %v9613
    %v10219 = vunpack.c.h.b16 %v9613
    %v10220 = vunpack.c.l.b16 %v9614
    %v10221 = vunpack.c.h.b16 %v9614
    %v10222 = vunpack.c.l.b16 %v9615
    %v10223 = vunpack.c.h.b16 %v9615
    %v10224 = vunpack.c.l.b16 %v9616
    %v10225 = vunpack.c.h.b16 %v9616
    %v10226 = vunpack.c.l.b16 %v9617
    %v10227 = vunpack.c.h.b16 %v9617
    %v10228 = vunpack.c.l.b16 %v9618
    %v10229 = vunpack.c.h.b16 %v9618
    %v10230 = vunpack.c.l.b16 %v9619
    %v10231 = vunpack.c.h.b16 %v9619
    %v10232 = vunpack.c.l.b16 %v9620
    %v10233 = vunpack.c.h.b16 %v9620
    %v10234 = vunpack.c.l.b16 %v9621
    %v10235 = vunpack.c.h.b16 %v9621
    %v10236 = vunpack.c.l.b16 %v9622
    %v10237 = vunpack.c.h.b16 %v9622
    %v10238 = vunpack.c.l.b16 %v9623
    %v10239 = vunpack.c.h.b16 %v9623
    %v10240 = vunpack.c.l.b16 %v9624
    %v10241 = vunpack.c.h.b16 %v9624
    %v10242 = vunpack.c.l.b16 %v9625
    %v10243 = vunpack.c.h.b16 %v9625
    %v10244 = vunpack.c.l.b16 %v9626
    %v10245 = vunpack.c.h.b16 %v9626
    %v10246 = vunpack.c.l.b16 %v9627
    %v10247 = vunpack.c.h.b16 %v9627
    %v10248 = vunpack.c.l.b16 %v9628
    %v10249 = vunpack.c.h.b16 %v9628
    %v10250 = vunpack.c.l.b16 %v9629
    %v10251 = vunpack.c.h.b16 %v9629
    %v10252 = vunpack.c.l.b16 %v9630
    %v10253 = vunpack.c.h.b16 %v9630
    %v10254 = vunpack.c.l.b16 %v9631
    %v10255 = vunpack.c.h.b16 %v9631
    %v10256 = vunpack.c.l.b16 %v9632
    %v10257 = vunpack.c.h.b16 %v9632
    %v10258 = vunpack.c.l.b16 %v9633
    %v10259 = vunpack.c.h.b16 %v9633
    %v10260 = vunpack.c.l.b16 %v9634
    %v10261 = vunpack.c.h.b16 %v9634
    %v10262 = vunpack.c.l.b16 %v9635
    %v10263 = vunpack.c.h.b16 %v9635
    %v10264 = vunpack.c.l.b16 %v9636
    %v10265 = vunpack.c.h.b16 %v9636
    %v10266 = vunpack.c.l.b16 %v9637
    %v10267 = vunpack.c.h.b16 %v9637
    %v10268 = vunpack.c.l.b16 %v9638
    %v10269 = vunpack.c.h.b16 %v9638
    %v10270 = vunpack.c.l.b16 %v9639
    %v10271 = vunpack.c.h.b16 %v9639
    %v10272 = vunpack.c.l.b16 %v9640
    %v10273 = vunpack.c.h.b16 %v9640
    %v10274 = vunpack.c.l.b16 %v9641
    %v10275 = vunpack.c.h.b16 %v9641
    %v10276 = vunpack.c.l.b16 %v9642
    %v10277 = vunpack.c.h.b16 %v9642
    %v10278 = vunpack.c.l.b16 %v9643
    %v10279 = vunpack.c.h.b16 %v9643
    %v10280 = vunpack.c.l.b16 %v9644
    %v10281 = vunpack.c.h.b16 %v9644
    %v10282 = vunpack.c.l.b16 %v9645
    %v10283 = vunpack.c.h.b16 %v9645
    %v10284 = vunpack.c.l.b16 %v9646
    %v10285 = vunpack.c.h.b16 %v9646
    %v10286 = vunpack.c.l.b16 %v9647
    %v10287 = vunpack.c.h.b16 %v9647
    %v10288 = vunpack.c.l.b16 %v9648
    %v10289 = vunpack.c.h.b16 %v9648
    %v10290 = vunpack.c.l.b16 %v9649
    %v10291 = vunpack.c.h.b16 %v9649
    %v10292 = vunpack.c.l.b16 %v9650
    %v10293 = vunpack.c.h.b16 %v9650
    %v10294 = vunpack.c.l.b16 %v9651
    %v10295 = vunpack.c.h.b16 %v9651
    %v10296 = vunpack.c.l.b16 %v9652
    %v10297 = vunpack.c.h.b16 %v9652
    %v10298 = vunpack.c.l.b16 %v9653
    %v10299 = vunpack.c.h.b16 %v9653
    %v10300 = vunpack.c.l.b16 %v9654
    %v10301 = vunpack.c.h.b16 %v9654
    %v10302 = vunpack.c.l.b16 %v9655
    %v10303 = vunpack.c.h.b16 %v9655
    %v10304 = vunpack.c.l.b16 %v9656
    %v10305 = vunpack.c.h.b16 %v9656
    %v10306 = vunpack.c.l.b16 %v9657
    %v10307 = vunpack.c.h.b16 %v9657
    %v10308 = vunpack.c.l.b16 %v9658
    %v10309 = vunpack.c.h.b16 %v9658
    %v10310 = vunpack.c.l.b16 %v9659
    %v10311 = vunpack.c.h.b16 %v9659
    %v10312 = vunpack.c.l.b16 %v9660
    %v10313 = vunpack.c.h.b16 %v9660
    %v10314 = vunpack.c.l.b16 %v9661
    %v10315 = vunpack.c.h.b16 %v9661
    %v10316 = vunpack.c.l.b16 %v9662
    %v10317 = vunpack.c.h.b16 %v9662
    %v10318 = vunpack.c.l.b16 %v9663
    %v10319 = vunpack.c.h.b16 %v9663
    %v10320 = vunpack.c.l.b16 %v9664
    %v10321 = vunpack.c.h.b16 %v9664
    %v10322 = vunpack.c.l.b16 %v9665
    %v10323 = vunpack.c.h.b16 %v9665
    %v10324 = vunpack.c.l.b16 %v9666
    %v10325 = vunpack.c.h.b16 %v9666
    %v10326 = vunpack.c.l.b16 %v9667
    %v10327 = vunpack.c.h.b16 %v9667
    %v10328 = vunpack.c.l.b16 %v9668
    %v10329 = vunpack.c.h.b16 %v9668
    %v10330 = vunpack.c.l.b16 %v9669
    %v10331 = vunpack.c.h.b16 %v9669
    %v10332 = vunpack.c.l.b16 %v9670
    %v10333 = vunpack.c.h.b16 %v9670
    %v10334 = vunpack.c.l.b16 %v9671
    %v10335 = vunpack.c.h.b16 %v9671
    %v10336 = vunpack.c.l.b16 %v9672
    %v10337 = vunpack.c.h.b16 %v9672
    %v10338 = vunpack.c.l.b16 %v9673
    %v10339 = vunpack.c.h.b16 %v9673
    %v10340 = vunpack.c.l.b16 %v9674
    %v10341 = vunpack.c.h.b16 %v9674
    %v10342 = vunpack.c.l.b16 %v9675
    %v10343 = vunpack.c.h.b16 %v9675
    %v10344 = vunpack.c.l.b16 %v9676
    %v10345 = vunpack.c.h.b16 %v9676
    %v10346 = vunpack.c.l.b16 %v9677
    %v10347 = vunpack.c.h.b16 %v9677
    %v10348 = vunpack.c.l.b16 %v9678
    %v10349 = vunpack.c.h.b16 %v9678
    %v10350 = vunpack.c.l.b16 %v9679
    %v10351 = vunpack.c.h.b16 %v9679
    %v10352 = vunpack.c.l.b16 %v9680
    %v10353 = vunpack.c.h.b16 %v9680
    %v10354 = vunpack.c.l.b16 %v9681
    %v10355 = vunpack.c.h.b16 %v9681
    %v10356 = vunpack.c.l.b16 %v9682
    %v10357 = vunpack.c.h.b16 %v9682
    %v10358 = vunpack.c.l.b16 %v9683
    %v10359 = vunpack.c.h.b16 %v9683
    %v10360 = vunpack.c.l.b16 %v9684
    %v10361 = vunpack.c.h.b16 %v9684
    %v10362 = vunpack.c.l.b16 %v9685
    %v10363 = vunpack.c.h.b16 %v9685
    %v10364 = vunpack.c.l.b16 %v9686
    %v10365 = vunpack.c.h.b16 %v9686
    %v10366 = vunpack.c.l.b16 %v9687
    %v10367 = vunpack.c.h.b16 %v9687
    %v10368 = vunpack.c.l.b16 %v9688
    %v10369 = vunpack.c.h.b16 %v9688
    %v10370 = vunpack.c.l.b16 %v9689
    %v10371 = vunpack.c.h.b16 %v9689
    %v10372 = vunpack.c.l.b16 %v9690
    %v10373 = vunpack.c.h.b16 %v9690
    %v10374 = vunpack.c.l.b16 %v9691
    %v10375 = vunpack.c.h.b16 %v9691
    %v10376 = vunpack.c.l.b16 %v9692
    %v10377 = vunpack.c.h.b16 %v9692
    %v10378 = vunpack.c.l.b16 %v9693
    %v10379 = vunpack.c.h.b16 %v9693
    %v10380 = vunpack.c.l.b16 %v9694
    %v10381 = vunpack.c.h.b16 %v9694
    %v10382 = vunpack.c.l.b16 %v9695
    %v10383 = vunpack.c.h.b16 %v9695
    %v10384 = vunpack.c.l.b16 %v9696
    %v10385 = vunpack.c.h.b16 %v9696
    %v10386 = vunpack.c.l.b16 %v9697
    %v10387 = vunpack.c.h.b16 %v9697
    %v10388 = vunpack.c.l.b16 %v9698
    %v10389 = vunpack.c.h.b16 %v9698
    %v10390 = vunpack.c.l.b16 %v9699
    %v10391 = vunpack.c.h.b16 %v9699
    %v10392 = vunpack.c.l.b16 %v9700
    %v10393 = vunpack.c.h.b16 %v9700
    %v10394 = vunpack.c.l.b16 %v9701
    %v10395 = vunpack.c.h.b16 %v9701
    %v10396 = vunpack.c.l.b16 %v9702
    %v10397 = vunpack.c.h.b16 %v9702
    %v10398 = vunpack.c.l.b16 %v9703
    %v10399 = vunpack.c.h.b16 %v9703
    %v10400 = vunpack.c.l.b16 %v9704
    %v10401 = vunpack.c.h.b16 %v9704
    %v10402 = vunpack.c.l.b16 %v9705
    %v10403 = vunpack.c.h.b16 %v9705
    %v10404 = vunpack.c.l.b16 %v9706
    %v10405 = vunpack.c.h.b16 %v9706
    %v10406 = vunpack.c.l.b16 %v9707
    %v10407 = vunpack.c.h.b16 %v9707
    %v10408 = vunpack.c.l.b16 %v9708
    %v10409 = vunpack.c.h.b16 %v9708
    %v10410 = vunpack.c.l.b16 %v9709
    %v10411 = vunpack.c.h.b16 %v9709
    %v10412 = vunpack.c.l.b16 %v9710
    %v10413 = vunpack.c.h.b16 %v9710
    %v10414 = vunpack.c.l.b16 %v9711
    %v10415 = vunpack.c.h.b16 %v9711
    %v10416 = vunpack.c.l.b16 %v9712
    %v10417 = vunpack.c.h.b16 %v9712
    %v10418 = vunpack.c.l.b16 %v9713
    %v10419 = vunpack.c.h.b16 %v9713
    %v10420 = vunpack.c.l.b16 %v9714
    %v10421 = vunpack.c.h.b16 %v9714
    %v10422 = vunpack.c.l.b16 %v9715
    %v10423 = vunpack.c.h.b16 %v9715
    %v10424 = vunpack.c.l.b16 %v9716
    %v10425 = vunpack.c.h.b16 %v9716
    %v10426 = vunpack.c.l.b16 %v9717
    %v10427 = vunpack.c.h.b16 %v9717
    %v10428 = vunpack.c.l.b16 %v9718
    %v10429 = vunpack.c.h.b16 %v9718
    %v10430 = vunpack.c.l.b16 %v9719
    %v10431 = vunpack.c.h.b16 %v9719
    %v10432 = vunpack.c.l.b16 %v9720
    %v10433 = vunpack.c.h.b16 %v9720
    %v10434 = vunpack.c.l.b16 %v9721
    %v10435 = vunpack.c.h.b16 %v9721
    %v10436 = vunpack.c.l.b16 %v9722
    %v10437 = vunpack.c.h.b16 %v9722
    %v10438 = vunpack.c.l.b16 %v9723
    %v10439 = vunpack.c.h.b16 %v9723
    %v10440 = vunpack.c.l.b16 %v9724
    %v10441 = vunpack.c.h.b16 %v9724
    %v10442 = vunpack.c.l.b16 %v9725
    %v10443 = vunpack.c.h.b16 %v9725
    %v10444 = vunpack.c.l.b16 %v9726
    %v10445 = vunpack.c.h.b16 %v9726
    %v10446 = vunpack.c.l.b16 %v9727
    %v10447 = vunpack.c.h.b16 %v9727
    %v10448 = vunpack.c.l.b16 %v9728
    %v10449 = vunpack.c.h.b16 %v9728
    %v10450 = vunpack.c.l.b16 %v9729
    %v10451 = vunpack.c.h.b16 %v9729
    %v10452 = vunpack.c.l.b16 %v9730
    %v10453 = vunpack.c.h.b16 %v9730
    %v10454 = vunpack.c.l.b16 %v9731
    %v10455 = vunpack.c.h.b16 %v9731
    %v10456 = vunpack.c.l.b16 %v9732
    %v10457 = vunpack.c.h.b16 %v9732
    %v10458 = vunpack.c.l.b16 %v9733
    %v10459 = vunpack.c.h.b16 %v9733
    %v10460 = vunpack.c.l.b16 %v9734
    %v10461 = vunpack.c.h.b16 %v9734
    %v10462 = vunpack.c.l.b16 %v9735
    %v10463 = vunpack.c.h.b16 %v9735
    %v10464 = vunpack.c.l.b16 %v9736
    %v10465 = vunpack.c.h.b16 %v9736
    %v10466 = vunpack.c.l.b16 %v9737
    %v10467 = vunpack.c.h.b16 %v9737
    %v10468 = vunpack.c.l.b16 %v9738
    %v10469 = vunpack.c.h.b16 %v9738
    %v10470 = vunpack.c.l.b16 %v9739
    %v10471 = vunpack.c.h.b16 %v9739
    %v10472 = vunpack.c.l.b16 %v9740
    %v10473 = vunpack.c.h.b16 %v9740
    %v10474 = vunpack.c.l.b16 %v9741
    %v10475 = vunpack.c.h.b16 %v9741
    %v10476 = vunpack.c.l.b16 %v9742
    %v10477 = vunpack.c.h.b16 %v9742
    %v10478 = vunpack.c.l.b16 %v9743
    %v10479 = vunpack.c.h.b16 %v9743
    %v10480 = vunpack.c.l.b16 %v9744
    %v10481 = vunpack.c.h.b16 %v9744
    %v10482 = vunpack.c.l.b16 %v9745
    %v10483 = vunpack.c.h.b16 %v9745
    %v10484 = vunpack.c.l.b16 %v9746
    %v10485 = vunpack.c.h.b16 %v9746
    %v10486 = vunpack.c.l.b16 %v9747
    %v10487 = vunpack.c.h.b16 %v9747
    %v10488 = vunpack.c.l.b16 %v9748
    %v10489 = vunpack.c.h.b16 %v9748
    %v10490 = vunpack.c.l.b16 %v9749
    %v10491 = vunpack.c.h.b16 %v9749
    %v10492 = vunpack.c.l.b16 %v9750
    %v10493 = vunpack.c.h.b16 %v9750
    %v10494 = vunpack.c.l.b16 %v9751
    %v10495 = vunpack.c.h.b16 %v9751
    %v10496 = vunpack.c.l.b16 %v9752
    %v10497 = vunpack.c.h.b16 %v9752
    %v10498 = vunpack.c.l.b16 %v9753
    %v10499 = vunpack.c.h.b16 %v9753
    %v10500 = vunpack.c.l.b16 %v9754
    %v10501 = vunpack.c.h.b16 %v9754
    %v10502 = vunpack.c.l.b16 %v9755
    %v10503 = vunpack.c.h.b16 %v9755
    %v10504 = vunpack.c.l.b16 %v9756
    %v10505 = vunpack.c.h.b16 %v9756
    %v10506 = vunpack.c.l.b16 %v9757
    %v10507 = vunpack.c.h.b16 %v9757
    %v10508 = vunpack.c.l.b16 %v9758
    %v10509 = vunpack.c.h.b16 %v9758
    %v10510 = vunpack.c.l.b16 %v9759
    %v10511 = vunpack.c.h.b16 %v9759
    %v10512 = vunpack.c.l.b16 %v9760
    %v10513 = vunpack.c.h.b16 %v9760
    %v10514 = vunpack.c.l.b16 %v9761
    %v10515 = vunpack.c.h.b16 %v9761
    %v10516 = vunpack.c.l.b16 %v9762
    %v10517 = vunpack.c.h.b16 %v9762
    %v10518 = vunpack.c.l.b16 %v9763
    %v10519 = vunpack.c.h.b16 %v9763
    %v10520 = vunpack.c.l.b16 %v9764
    %v10521 = vunpack.c.h.b16 %v9764
    %v10522 = vunpack.c.l.b16 %v9765
    %v10523 = vunpack.c.h.b16 %v9765
    %v10524 = vunpack.c.l.b16 %v9766
    %v10525 = vunpack.c.h.b16 %v9766
    %v10526 = vunpack.c.l.b16 %v9767
    %v10527 = vunpack.c.h.b16 %v9767
    %v10528 = vunpack.c.l.b16 %v9768
    %v10529 = vunpack.c.h.b16 %v9768
    %v10530 = vunpack.c.l.b16 %v9769
    %v10531 = vunpack.c.h.b16 %v9769
    %v10532 = vunpack.c.l.b16 %v9770
    %v10533 = vunpack.c.h.b16 %v9770
    %v10534 = vunpack.c.l.b16 %v9771
    %v10535 = vunpack.c.h.b16 %v9771
    %v10536 = vunpack.c.l.b16 %v9772
    %v10537 = vunpack.c.h.b16 %v9772
    %v10538 = vunpack.c.l.b16 %v9773
    %v10539 = vunpack.c.h.b16 %v9773
    %v10540 = vunpack.c.l.b16 %v9774
    %v10541 = vunpack.c.h.b16 %v9774
    %v10542 = vunpack.c.l.b16 %v9775
    %v10543 = vunpack.c.h.b16 %v9775
    %v10544 = vunpack.c.l.b16 %v9776
    %v10545 = vunpack.c.h.b16 %v9776
    %v10546 = vunpack.c.l.b16 %v9777
    %v10547 = vunpack.c.h.b16 %v9777
    %v10548 = vunpack.c.l.b16 %v9778
    %v10549 = vunpack.c.h.b16 %v9778
    %v10550 = vunpack.c.l.b16 %v9779
    %v10551 = vunpack.c.h.b16 %v9779
    %v10552 = vunpack.c.l.b16 %v9780
    %v10553 = vunpack.c.h.b16 %v9780
    %v10554 = vunpack.c.l.b16 %v9781
    %v10555 = vunpack.c.h.b16 %v9781
    %v10556 = vunpack.c.l.b16 %v9782
    %v10557 = vunpack.c.h.b16 %v9782
    %v10558 = vunpack.c.l.b16 %v9783
    %v10559 = vunpack.c.h.b16 %v9783
    %v10560 = vunpack.c.l.b16 %v9784
    %v10561 = vunpack.c.h.b16 %v9784
    %v10562 = vunpack.c.l.b16 %v9785
    %v10563 = vunpack.c.h.b16 %v9785
    %v10564 = vpack.c.b16 %v10056, %v10052
    %v10565 = vpack.c.b16 %v10057, %v10053
    %v10566 = vpack.c.b16 %v10058, %v10054
    %v10567 = vpack.c.b16 %v10059, %v10055
    %v10568 = vpack.c.b16 %v10064, %v10060
    %v10569 = vpack.c.b16 %v10065, %v10061
    %v10570 = vpack.c.b16 %v10066, %v10062
    %v10571 = vpack.c.b16 %v10067, %v10063
    %v10572 = vpack.c.b16 %v10072, %v10068
    %v10573 = vpack.c.b16 %v10073, %v10069
    %v10574 = vpack.c.b16 %v10074, %v10070
    %v10575 = vpack.c.b16 %v10075, %v10071
    %v10576 = vpack.c.b16 %v10080, %v10076
    %v10577 = vpack.c.b16 %v10081, %v10077
    %v10578 = vpack.c.b16 %v10082, %v10078
    %v10579 = vpack.c.b16 %v10083, %v10079
    %v10580 = vpack.c.b16 %v10088, %v10084
    %v10581 = vpack.c.b16 %v10089, %v10085
    %v10582 = vpack.c.b16 %v10090, %v10086
    %v10583 = vpack.c.b16 %v10091, %v10087
    %v10584 = vpack.c.b16 %v10096, %v10092
    %v10585 = vpack.c.b16 %v10097, %v10093
    %v10586 = vpack.c.b16 %v10098, %v10094
    %v10587 = vpack.c.b16 %v10099, %v10095
    %v10588 = vpack.c.b16 %v10104, %v10100
    %v10589 = vpack.c.b16 %v10105, %v10101
    %v10590 = vpack.c.b16 %v10106, %v10102
    %v10591 = vpack.c.b16 %v10107, %v10103
    %v10592 = vpack.c.b16 %v10112, %v10108
    %v10593 = vpack.c.b16 %v10113, %v10109
    %v10594 = vpack.c.b16 %v10114, %v10110
    %v10595 = vpack.c.b16 %v10115, %v10111
    %v10596 = vpack.c.b16 %v10120, %v10116
    %v10597 = vpack.c.b16 %v10121, %v10117
    %v10598 = vpack.c.b16 %v10122, %v10118
    %v10599 = vpack.c.b16 %v10123, %v10119
    %v10600 = vpack.c.b16 %v10128, %v10124
    %v10601 = vpack.c.b16 %v10129, %v10125
    %v10602 = vpack.c.b16 %v10130, %v10126
    %v10603 = vpack.c.b16 %v10131, %v10127
    %v10604 = vpack.c.b16 %v10136, %v10132
    %v10605 = vpack.c.b16 %v10137, %v10133
    %v10606 = vpack.c.b16 %v10138, %v10134
    %v10607 = vpack.c.b16 %v10139, %v10135
    %v10608 = vpack.c.b16 %v10144, %v10140
    %v10609 = vpack.c.b16 %v10145, %v10141
    %v10610 = vpack.c.b16 %v10146, %v10142
    %v10611 = vpack.c.b16 %v10147, %v10143
    %v10612 = vpack.c.b16 %v10152, %v10148
    %v10613 = vpack.c.b16 %v10153, %v10149
    %v10614 = vpack.c.b16 %v10154, %v10150
    %v10615 = vpack.c.b16 %v10155, %v10151
    %v10616 = vpack.c.b16 %v10160, %v10156
    %v10617 = vpack.c.b16 %v10161, %v10157
    %v10618 = vpack.c.b16 %v10162, %v10158
    %v10619 = vpack.c.b16 %v10163, %v10159
    %v10620 = vpack.c.b16 %v10168, %v10164
    %v10621 = vpack.c.b16 %v10169, %v10165
    %v10622 = vpack.c.b16 %v10170, %v10166
    %v10623 = vpack.c.b16 %v10171, %v10167
    %v10624 = vpack.c.b16 %v10176, %v10172
    %v10625 = vpack.c.b16 %v10177, %v10173
    %v10626 = vpack.c.b16 %v10178, %v10174
    %v10627 = vpack.c.b16 %v10179, %v10175
    %v10628 = vpack.c.b16 %v10184, %v10180
    %v10629 = vpack.c.b16 %v10185, %v10181
    %v10630 = vpack.c.b16 %v10186, %v10182
    %v10631 = vpack.c.b16 %v10187, %v10183
    %v10632 = vpack.c.b16 %v10192, %v10188
    %v10633 = vpack.c.b16 %v10193, %v10189
    %v10634 = vpack.c.b16 %v10194, %v10190
    %v10635 = vpack.c.b16 %v10195, %v10191
    %v10636 = vpack.c.b16 %v10200, %v10196
    %v10637 = vpack.c.b16 %v10201, %v10197
    %v10638 = vpack.c.b16 %v10202, %v10198
    %v10639 = vpack.c.b16 %v10203, %v10199
    %v10640 = vpack.c.b16 %v10208, %v10204
    %v10641 = vpack.c.b16 %v10209, %v10205
    %v10642 = vpack.c.b16 %v10210, %v10206
    %v10643 = vpack.c.b16 %v10211, %v10207
    %v10644 = vpack.c.b16 %v10216, %v10212
    %v10645 = vpack.c.b16 %v10217, %v10213
    %v10646 = vpack.c.b16 %v10218, %v10214
    %v10647 = vpack.c.b16 %v10219, %v10215
    %v10648 = vpack.c.b16 %v10224, %v10220
    %v10649 = vpack.c.b16 %v10225, %v10221
    %v10650 = vpack.c.b16 %v10226, %v10222
    %v10651 = vpack.c.b16 %v10227, %v10223
    %v10652 = vpack.c.b16 %v10232, %v10228
    %v10653 = vpack.c.b16 %v10233, %v10229
    %v10654 = vpack.c.b16 %v10234, %v10230
    %v10655 = vpack.c.b16 %v10235, %v10231
    %v10656 = vpack.c.b16 %v10240, %v10236
    %v10657 = vpack.c.b16 %v10241, %v10237
    %v10658 = vpack.c.b16 %v10242, %v10238
    %v10659 = vpack.c.b16 %v10243, %v10239
    %v10660 = vpack.c.b16 %v10248, %v10244
    %v10661 = vpack.c.b16 %v10249, %v10245
    %v10662 = vpack.c.b16 %v10250, %v10246
    %v10663 = vpack.c.b16 %v10251, %v10247
    %v10664 = vpack.c.b16 %v10256, %v10252
    %v10665 = vpack.c.b16 %v10257, %v10253
    %v10666 = vpack.c.b16 %v10258, %v10254
    %v10667 = vpack.c.b16 %v10259, %v10255
    %v10668 = vpack.c.b16 %v10264, %v10260
    %v10669 = vpack.c.b16 %v10265, %v10261
    %v10670 = vpack.c.b16 %v10266, %v10262
    %v10671 = vpack.c.b16 %v10267, %v10263
    %v10672 = vpack.c.b16 %v10272, %v10268
    %v10673 = vpack.c.b16 %v10273, %v10269
    %v10674 = vpack.c.b16 %v10274, %v10270
    %v10675 = vpack.c.b16 %v10275, %v10271
    %v10676 = vpack.c.b16 %v10280, %v10276
    %v10677 = vpack.c.b16 %v10281, %v10277
    %v10678 = vpack.c.b16 %v10282, %v10278
    %v10679 = vpack.c.b16 %v10283, %v10279
    %v10680 = vpack.c.b16 %v10288, %v10284
    %v10681 = vpack.c.b16 %v10289, %v10285
    %v10682 = vpack.c.b16 %v10290, %v10286
    %v10683 = vpack.c.b16 %v10291, %v10287
    %v10684 = vpack.c.b16 %v10296, %v10292
    %v10685 = vpack.c.b16 %v10297, %v10293
    %v10686 = vpack.c.b16 %v10298, %v10294
    %v10687 = vpack.c.b16 %v10299, %v10295
    %v10688 = vpack.c.b16 %v10304, %v10300
    %v10689 = vpack.c.b16 %v10305, %v10301
    %v10690 = vpack.c.b16 %v10306, %v10302
    %v10691 = vpack.c.b16 %v10307, %v10303
    %v10692 = vpack.c.b16 %v10312, %v10308
    %v10693 = vpack.c.b16 %v10313, %v10309
    %v10694 = vpack.c.b16 %v10314, %v10310
    %v10695 = vpack.c.b16 %v10315, %v10311
    %v10696 = vpack.c.b16 %v10320, %v10316
    %v10697 = vpack.c.b16 %v10321, %v10317
    %v10698 = vpack.c.b16 %v10322, %v10318
    %v10699 = vpack.c.b16 %v10323, %v10319
    %v10700 = vpack.c.b16 %v10328, %v10324
    %v10701 = vpack.c.b16 %v10329, %v10325
    %v10702 = vpack.c.b16 %v10330, %v10326
    %v10703 = vpack.c.b16 %v10331, %v10327
    %v10704 = vpack.c.b16 %v10336, %v10332
    %v10705 = vpack.c.b16 %v10337, %v10333
    %v10706 = vpack.c.b16 %v10338, %v10334
    %v10707 = vpack.c.b16 %v10339, %v10335
    %v10708 = vpack.c.b16 %v10344, %v10340
    %v10709 = vpack.c.b16 %v10345, %v10341
    %v10710 = vpack.c.b16 %v10346, %v10342
    %v10711 = vpack.c.b16 %v10347, %v10343
    %v10712 = vpack.c.b16 %v10352, %v10348
    %v10713 = vpack.c.b16 %v10353, %v10349
    %v10714 = vpack.c.b16 %v10354, %v10350
    %v10715 = vpack.c.b16 %v10355, %v10351
    %v10716 = vpack.c.b16 %v10360, %v10356
    %v10717 = vpack.c.b16 %v10361, %v10357
    %v10718 = vpack.c.b16 %v10362, %v10358
    %v10719 = vpack.c.b16 %v10363, %v10359
    %v10720 = vpack.c.b16 %v10368, %v10364
    %v10721 = vpack.c.b16 %v10369, %v10365
    %v10722 = vpack.c.b16 %v10370, %v10366
    %v10723 = vpack.c.b16 %v10371, %v10367
    %v10724 = vpack.c.b16 %v10376, %v10372
    %v10725 = vpack.c.b16 %v10377, %v10373
    %v10726 = vpack.c.b16 %v10378, %v10374
    %v10727 = vpack.c.b16 %v10379, %v10375
    %v10728 = vpack.c.b16 %v10384, %v10380
    %v10729 = vpack.c.b16 %v10385, %v10381
    %v10730 = vpack.c.b16 %v10386, %v10382
    %v10731 = vpack.c.b16 %v10387, %v10383
    %v10732 = vpack.c.b16 %v10392, %v10388
    %v10733 = vpack.c.b16 %v10393, %v10389
    %v10734 = vpack.c.b16 %v10394, %v10390
    %v10735 = vpack.c.b16 %v10395, %v10391
    %v10736 = vpack.c.b16 %v10400, %v10396
    %v10737 = vpack.c.b16 %v10401, %v10397
    %v10738 = vpack.c.b16 %v10402, %v10398
    %v10739 = vpack.c.b16 %v10403, %v10399
    %v10740 = vpack.c.b16 %v10408, %v10404
    %v10741 = vpack.c.b16 %v10409, %v10405
    %v10742 = vpack.c.b16 %v10410, %v10406
    %v10743 = vpack.c.b16 %v10411, %v10407
    %v10744 = vpack.c.b16 %v10416, %v10412
    %v10745 = vpack.c.b16 %v10417, %v10413
    %v10746 = vpack.c.b16 %v10418, %v10414
    %v10747 = vpack.c.b16 %v10419, %v10415
    %v10748 = vpack.c.b16 %v10424, %v10420
    %v10749 = vpack.c.b16 %v10425, %v10421
    %v10750 = vpack.c.b16 %v10426, %v10422
    %v10751 = vpack.c.b16 %v10427, %v10423
    %v10752 = vpack.c.b16 %v10432, %v10428
    %v10753 = vpack.c.b16 %v10433, %v10429
    %v10754 = vpack.c.b16 %v10434, %v10430
    %v10755 = vpack.c.b16 %v10435, %v10431
    %v10756 = vpack.c.b16 %v10440, %v10436
    %v10757 = vpack.c.b16 %v10441, %v10437
    %v10758 = vpack.c.b16 %v10442, %v10438
    %v10759 = vpack.c.b16 %v10443, %v10439
    %v10760 = vpack.c.b16 %v10448, %v10444
    %v10761 = vpack.c.b16 %v10449, %v10445
    %v10762 = vpack.c.b16 %v10450, %v10446
    %v10763 = vpack.c.b16 %v10451, %v10447
    %v10764 = vpack.c.b16 %v10456, %v10452
    %v10765 = vpack.c.b16 %v10457, %v10453
    %v10766 = vpack.c.b16 %v10458, %v10454
    %v10767 = vpack.c.b16 %v10459, %v10455
    %v10768 = vpack.c.b16 %v10464, %v10460
    %v10769 = vpack.c.b16 %v10465, %v10461
    %v10770 = vpack.c.b16 %v10466, %v10462
    %v10771 = vpack.c.b16 %v10467, %v10463
    %v10772 = vpack.c.b16 %v10472, %v10468
    %v10773 = vpack.c.b16 %v10473, %v10469
    %v10774 = vpack.c.b16 %v10474, %v10470
    %v10775 = vpack.c.b16 %v10475, %v10471
    %v10776 = vpack.c.b16 %v10480, %v10476
    %v10777 = vpack.c.b16 %v10481, %v10477
    %v10778 = vpack.c.b16 %v10482, %v10478
    %v10779 = vpack.c.b16 %v10483, %v10479
    %v10780 = vpack.c.b16 %v10488, %v10484
    %v10781 = vpack.c.b16 %v10489, %v10485
    %v10782 = vpack.c.b16 %v10490, %v10486
    %v10783 = vpack.c.b16 %v10491, %v10487
    %v10784 = vpack.c.b16 %v10496, %v10492
    %v10785 = vpack.c.b16 %v10497, %v10493
    %v10786 = vpack.c.b16 %v10498, %v10494
    %v10787 = vpack.c.b16 %v10499, %v10495
    %v10788 = vpack.c.b16 %v10504, %v10500
    %v10789 = vpack.c.b16 %v10505, %v10501
    %v10790 = vpack.c.b16 %v10506, %v10502
    %v10791 = vpack.c.b16 %v10507, %v10503
    %v10792 = vpack.c.b16 %v10512, %v10508
    %v10793 = vpack.c.b16 %v10513, %v10509
    %v10794 = vpack.c.b16 %v10514, %v10510
    %v10795 = vpack.c.b16 %v10515, %v10511
    %v10796 = vpack.c.b16 %v10520, %v10516
    %v10797 = vpack.c.b16 %v10521, %v10517
    %v10798 = vpack.c.b16 %v10522, %v10518
    %v10799 = vpack.c.b16 %v10523, %v10519
    %v10800 = vpack.c.b16 %v10528, %v10524
    %v10801 = vpack.c.b16 %v10529, %v10525
    %v10802 = vpack.c.b16 %v10530, %v10526
    %v10803 = vpack.c.b16 %v10531, %v10527
    %v10804 = vpack.c.b16 %v10536, %v10532
    %v10805 = vpack.c.b16 %v10537, %v10533
    %v10806 = vpack.c.b16 %v10538, %v10534
    %v10807 = vpack.c.b16 %v10539, %v10535
    %v10808 = vpack.c.b16 %v10544, %v10540
    %v10809 = vpack.c.b16 %v10545, %v10541
    %v10810 = vpack.c.b16 %v10546, %v10542
    %v10811 = vpack.c.b16 %v10547, %v10543
    %v10812 = vpack.c.b16 %v10552, %v10548
    %v10813 = vpack.c.b16 %v10553, %v10549
    %v10814 = vpack.c.b16 %v10554, %v10550
    %v10815 = vpack.c.b16 %v10555, %v10551
    %v10816 = vpack.c.b16 %v10560, %v10556
    %v10817 = vpack.c.b16 %v10561, %v10557
    %v10818 = vpack.c.b16 %v10562, %v10558
    %v10819 = vpack.c.b16 %v10563, %v10559
    %11076 = vmatpush.bf16.msra.mxu0 %v10592
    %11077 = vmatpush.bf16.msra.mxu0 %v10588
    %11078 = vmatpush.bf16.msra.mxu0 %v10584
    %11079 = vmatpush.bf16.msra.mxu0 %v10580
    %11080 = vmatpush.bf16.msra.mxu0 %v10576
    %11081 = vmatpush.bf16.msra.mxu0 %v10572
    %11082 = vmatpush.bf16.msra.mxu0 %v10568
    %11083 = vmatpush.bf16.msra.mxu0 %v10564
    %11084 = vmatmul.bf16.gmra.mxu0 %v9522
    %v11085 = vpop.f32.mrf.mxu0
    %v11086 = vadd.f32 %v9788, %v11085
    %v11087 = vpop.f32.mrf.mxu0
    %v11088 = vadd.f32 %v9788, %v11087
    %11089 = vdwg.mxu0
    %11090 = vmatpush.bf16.msra.mxu0 %v10624
    %11091 = vmatpush.bf16.msra.mxu0 %v10620
    %11092 = vmatpush.bf16.msra.mxu0 %v10616
    %11093 = vmatpush.bf16.msra.mxu0 %v10612
    %11094 = vmatpush.bf16.msra.mxu0 %v10608
    %11095 = vmatpush.bf16.msra.mxu0 %v10604
    %11096 = vmatpush.bf16.msra.mxu0 %v10600
    %11097 = vmatpush.bf16.msra.mxu0 %v10596
    %11098 = vmatmul.bf16.gmra.mxu0 %v9523
    %v11099 = vpop.f32.mrf.mxu0
    %v11100 = vadd.f32 %v11086, %v11099
    %v11101 = vpop.f32.mrf.mxu0
    %v11102 = vadd.f32 %v11088, %v11101
    %11103 = vdwg.mxu0
    %11104 = vmatpush.bf16.msra.mxu0 %v10656
    %11105 = vmatpush.bf16.msra.mxu0 %v10652
    %11106 = vmatpush.bf16.msra.mxu0 %v10648
    %11107 = vmatpush.bf16.msra.mxu0 %v10644
    %11108 = vmatpush.bf16.msra.mxu0 %v10640
    %11109 = vmatpush.bf16.msra.mxu0 %v10636
    %11110 = vmatpush.bf16.msra.mxu0 %v10632
    %11111 = vmatpush.bf16.msra.mxu0 %v10628
    %11112 = vmatmul.bf16.gmra.mxu0 %v9524
    %v11113 = vpop.f32.mrf.mxu0
    %v11114 = vadd.f32 %v11100, %v11113
    %v11115 = vpop.f32.mrf.mxu0
    %v11116 = vadd.f32 %v11102, %v11115
    %11117 = vdwg.mxu0
    %11118 = vmatpush.bf16.msra.mxu0 %v10688
    %11119 = vmatpush.bf16.msra.mxu0 %v10684
    %11120 = vmatpush.bf16.msra.mxu0 %v10680
    %11121 = vmatpush.bf16.msra.mxu0 %v10676
    %11122 = vmatpush.bf16.msra.mxu0 %v10672
    %11123 = vmatpush.bf16.msra.mxu0 %v10668
    %11124 = vmatpush.bf16.msra.mxu0 %v10664
    %11125 = vmatpush.bf16.msra.mxu0 %v10660
    %11126 = vmatmul.bf16.gmra.mxu0 %v9525
    %v11127 = vpop.f32.mrf.mxu0
    %v11128 = vadd.f32 %v11114, %v11127
    %v11129 = vpop.f32.mrf.mxu0
    %v11130 = vadd.f32 %v11116, %v11129
    %11131 = vdwg.mxu0
    %11132 = vmatpush.bf16.msra.mxu0 %v10720
    %11133 = vmatpush.bf16.msra.mxu0 %v10716
    %11134 = vmatpush.bf16.msra.mxu0 %v10712
    %11135 = vmatpush.bf16.msra.mxu0 %v10708
    %11136 = vmatpush.bf16.msra.mxu0 %v10704
    %11137 = vmatpush.bf16.msra.mxu0 %v10700
    %11138 = vmatpush.bf16.msra.mxu0 %v10696
    %11139 = vmatpush.bf16.msra.mxu0 %v10692
    %11140 = vmatmul.bf16.gmra.mxu0 %v9526
    %v11141 = vpop.f32.mrf.mxu0
    %v11142 = vadd.f32 %v11128, %v11141
    %v11143 = vpop.f32.mrf.mxu0
    %v11144 = vadd.f32 %v11130, %v11143
    %11145 = vdwg.mxu0
    %11146 = vmatpush.bf16.msra.mxu0 %v10752
    %11147 = vmatpush.bf16.msra.mxu0 %v10748
    %11148 = vmatpush.bf16.msra.mxu0 %v10744
    %11149 = vmatpush.bf16.msra.mxu0 %v10740
    %11150 = vmatpush.bf16.msra.mxu0 %v10736
    %11151 = vmatpush.bf16.msra.mxu0 %v10732
    %11152 = vmatpush.bf16.msra.mxu0 %v10728
    %11153 = vmatpush.bf16.msra.mxu0 %v10724
    %11154 = vmatmul.bf16.gmra.mxu0 %v9527
    %v11155 = vpop.f32.mrf.mxu0
    %v11156 = vadd.f32 %v11142, %v11155
    %v11157 = vpop.f32.mrf.mxu0
    %v11158 = vadd.f32 %v11144, %v11157
    %11159 = vdwg.mxu0
    %11160 = vmatpush.bf16.msra.mxu0 %v10784
    %11161 = vmatpush.bf16.msra.mxu0 %v10780
    %11162 = vmatpush.bf16.msra.mxu0 %v10776
    %11163 = vmatpush.bf16.msra.mxu0 %v10772
    %11164 = vmatpush.bf16.msra.mxu0 %v10768
    %11165 = vmatpush.bf16.msra.mxu0 %v10764
    %11166 = vmatpush.bf16.msra.mxu0 %v10760
    %11167 = vmatpush.bf16.msra.mxu0 %v10756
    %11168 = vmatmul.bf16.gmra.mxu0 %v9528
    %v11169 = vpop.f32.mrf.mxu0
    %v11170 = vadd.f32 %v11156, %v11169
    %v11171 = vpop.f32.mrf.mxu0
    %v11172 = vadd.f32 %v11158, %v11171
    %11173 = vdwg.mxu0
    %11174 = vmatpush.bf16.msra.mxu0 %v10816
    %11175 = vmatpush.bf16.msra.mxu0 %v10812
    %11176 = vmatpush.bf16.msra.mxu0 %v10808
    %11177 = vmatpush.bf16.msra.mxu0 %v10804
    %11178 = vmatpush.bf16.msra.mxu0 %v10800
    %11179 = vmatpush.bf16.msra.mxu0 %v10796
    %11180 = vmatpush.bf16.msra.mxu0 %v10792
    %11181 = vmatpush.bf16.msra.mxu0 %v10788
    %11182 = vmatmul.bf16.gmra.mxu0 %v9529
    %v11183 = vpop.f32.mrf.mxu0
    %v11184 = vadd.f32 %v11170, %v11183
    %v11185 = vpop.f32.mrf.mxu0
    %v11186 = vadd.f32 %v11172, %v11185
    %11187 = vdwg.mxu0
    %11188 = vmatpush.bf16.msra.mxu0 %v10593
    %11189 = vmatpush.bf16.msra.mxu0 %v10589
    %11190 = vmatpush.bf16.msra.mxu0 %v10585
    %11191 = vmatpush.bf16.msra.mxu0 %v10581
    %11192 = vmatpush.bf16.msra.mxu0 %v10577
    %11193 = vmatpush.bf16.msra.mxu0 %v10573
    %11194 = vmatpush.bf16.msra.mxu0 %v10569
    %11195 = vmatpush.bf16.msra.mxu0 %v10565
    %11196 = vmatmul.bf16.gmra.mxu0 %v9522
    %v11197 = vpop.f32.mrf.mxu0
    %v11198 = vadd.f32 %v9789, %v11197
    %v11199 = vpop.f32.mrf.mxu0
    %v11200 = vadd.f32 %v9789, %v11199
    %11201 = vdwg.mxu0
    %11202 = vmatpush.bf16.msra.mxu0 %v10625
    %11203 = vmatpush.bf16.msra.mxu0 %v10621
    %11204 = vmatpush.bf16.msra.mxu0 %v10617
    %11205 = vmatpush.bf16.msra.mxu0 %v10613
    %11206 = vmatpush.bf16.msra.mxu0 %v10609
    %11207 = vmatpush.bf16.msra.mxu0 %v10605
    %11208 = vmatpush.bf16.msra.mxu0 %v10601
    %11209 = vmatpush.bf16.msra.mxu0 %v10597
    %11210 = vmatmul.bf16.gmra.mxu0 %v9523
    %v11211 = vpop.f32.mrf.mxu0
    %v11212 = vadd.f32 %v11198, %v11211
    %v11213 = vpop.f32.mrf.mxu0
    %v11214 = vadd.f32 %v11200, %v11213
    %11215 = vdwg.mxu0
    %11216 = vmatpush.bf16.msra.mxu0 %v10657
    %11217 = vmatpush.bf16.msra.mxu0 %v10653
    %11218 = vmatpush.bf16.msra.mxu0 %v10649
    %11219 = vmatpush.bf16.msra.mxu0 %v10645
    %11220 = vmatpush.bf16.msra.mxu0 %v10641
    %11221 = vmatpush.bf16.msra.mxu0 %v10637
    %11222 = vmatpush.bf16.msra.mxu0 %v10633
    %11223 = vmatpush.bf16.msra.mxu0 %v10629
    %11224 = vmatmul.bf16.gmra.mxu0 %v9524
    %v11225 = vpop.f32.mrf.mxu0
    %v11226 = vadd.f32 %v11212, %v11225
    %v11227 = vpop.f32.mrf.mxu0
    %v11228 = vadd.f32 %v11214, %v11227
    %11229 = vdwg.mxu0
    %11230 = vmatpush.bf16.msra.mxu0 %v10689
    %11231 = vmatpush.bf16.msra.mxu0 %v10685
    %11232 = vmatpush.bf16.msra.mxu0 %v10681
    %11233 = vmatpush.bf16.msra.mxu0 %v10677
    %11234 = vmatpush.bf16.msra.mxu0 %v10673
    %11235 = vmatpush.bf16.msra.mxu0 %v10669
    %11236 = vmatpush.bf16.msra.mxu0 %v10665
    %11237 = vmatpush.bf16.msra.mxu0 %v10661
    %11238 = vmatmul.bf16.gmra.mxu0 %v9525
    %v11239 = vpop.f32.mrf.mxu0
    %v11240 = vadd.f32 %v11226, %v11239
    %v11241 = vpop.f32.mrf.mxu0
    %v11242 = vadd.f32 %v11228, %v11241
    %11243 = vdwg.mxu0
    %11244 = vmatpush.bf16.msra.mxu0 %v10721
    %11245 = vmatpush.bf16.msra.mxu0 %v10717
    %11246 = vmatpush.bf16.msra.mxu0 %v10713
    %11247 = vmatpush.bf16.msra.mxu0 %v10709
    %11248 = vmatpush.bf16.msra.mxu0 %v10705
    %11249 = vmatpush.bf16.msra.mxu0 %v10701
    %11250 = vmatpush.bf16.msra.mxu0 %v10697
    %11251 = vmatpush.bf16.msra.mxu0 %v10693
    %11252 = vmatmul.bf16.gmra.mxu0 %v9526
    %v11253 = vpop.f32.mrf.mxu0
    %v11254 = vadd.f32 %v11240, %v11253
    %v11255 = vpop.f32.mrf.mxu0
    %v11256 = vadd.f32 %v11242, %v11255
    %11257 = vdwg.mxu0
    %11258 = vmatpush.bf16.msra.mxu0 %v10753
    %11259 = vmatpush.bf16.msra.mxu0 %v10749
    %11260 = vmatpush.bf16.msra.mxu0 %v10745
    %11261 = vmatpush.bf16.msra.mxu0 %v10741
    %11262 = vmatpush.bf16.msra.mxu0 %v10737
    %11263 = vmatpush.bf16.msra.mxu0 %v10733
    %11264 = vmatpush.bf16.msra.mxu0 %v10729
    %11265 = vmatpush.bf16.msra.mxu0 %v10725
    %11266 = vmatmul.bf16.gmra.mxu0 %v9527
    %v11267 = vpop.f32.mrf.mxu0
    %v11268 = vadd.f32 %v11254, %v11267
    %v11269 = vpop.f32.mrf.mxu0
    %v11270 = vadd.f32 %v11256, %v11269
    %11271 = vdwg.mxu0
    %11272 = vmatpush.bf16.msra.mxu0 %v10785
    %11273 = vmatpush.bf16.msra.mxu0 %v10781
    %11274 = vmatpush.bf16.msra.mxu0 %v10777
    %11275 = vmatpush.bf16.msra.mxu0 %v10773
    %11276 = vmatpush.bf16.msra.mxu0 %v10769
    %11277 = vmatpush.bf16.msra.mxu0 %v10765
    %11278 = vmatpush.bf16.msra.mxu0 %v10761
    %11279 = vmatpush.bf16.msra.mxu0 %v10757
    %11280 = vmatmul.bf16.gmra.mxu0 %v9528
    %v11281 = vpop.f32.mrf.mxu0
    %v11282 = vadd.f32 %v11268, %v11281
    %v11283 = vpop.f32.mrf.mxu0
    %v11284 = vadd.f32 %v11270, %v11283
    %11285 = vdwg.mxu0
    %11286 = vmatpush.bf16.msra.mxu0 %v10817
    %11287 = vmatpush.bf16.msra.mxu0 %v10813
    %11288 = vmatpush.bf16.msra.mxu0 %v10809
    %11289 = vmatpush.bf16.msra.mxu0 %v10805
    %11290 = vmatpush.bf16.msra.mxu0 %v10801
    %11291 = vmatpush.bf16.msra.mxu0 %v10797
    %11292 = vmatpush.bf16.msra.mxu0 %v10793
    %11293 = vmatpush.bf16.msra.mxu0 %v10789
    %11294 = vmatmul.bf16.gmra.mxu0 %v9529
    %v11295 = vpop.f32.mrf.mxu0
    %v11296 = vadd.f32 %v11282, %v11295
    %v11297 = vpop.f32.mrf.mxu0
    %v11298 = vadd.f32 %v11284, %v11297
    %11299 = vdwg.mxu0
    %11300 = vmatpush.bf16.msra.mxu0 %v10594
    %11301 = vmatpush.bf16.msra.mxu0 %v10590
    %11302 = vmatpush.bf16.msra.mxu0 %v10586
    %11303 = vmatpush.bf16.msra.mxu0 %v10582
    %11304 = vmatpush.bf16.msra.mxu0 %v10578
    %11305 = vmatpush.bf16.msra.mxu0 %v10574
    %11306 = vmatpush.bf16.msra.mxu0 %v10570
    %11307 = vmatpush.bf16.msra.mxu0 %v10566
    %11308 = vmatmul.bf16.gmra.mxu0 %v9522
    %v11309 = vpop.f32.mrf.mxu0
    %v11310 = vadd.f32 %v9790, %v11309
    %v11311 = vpop.f32.mrf.mxu0
    %v11312 = vadd.f32 %v9790, %v11311
    %11313 = vdwg.mxu0
    %11314 = vmatpush.bf16.msra.mxu0 %v10626
    %11315 = vmatpush.bf16.msra.mxu0 %v10622
    %11316 = vmatpush.bf16.msra.mxu0 %v10618
    %11317 = vmatpush.bf16.msra.mxu0 %v10614
    %11318 = vmatpush.bf16.msra.mxu0 %v10610
    %11319 = vmatpush.bf16.msra.mxu0 %v10606
    %11320 = vmatpush.bf16.msra.mxu0 %v10602
    %11321 = vmatpush.bf16.msra.mxu0 %v10598
    %11322 = vmatmul.bf16.gmra.mxu0 %v9523
    %v11323 = vpop.f32.mrf.mxu0
    %v11324 = vadd.f32 %v11310, %v11323
    %v11325 = vpop.f32.mrf.mxu0
    %v11326 = vadd.f32 %v11312, %v11325
    %11327 = vdwg.mxu0
    %11328 = vmatpush.bf16.msra.mxu0 %v10658
    %11329 = vmatpush.bf16.msra.mxu0 %v10654
    %11330 = vmatpush.bf16.msra.mxu0 %v10650
    %11331 = vmatpush.bf16.msra.mxu0 %v10646
    %11332 = vmatpush.bf16.msra.mxu0 %v10642
    %11333 = vmatpush.bf16.msra.mxu0 %v10638
    %11334 = vmatpush.bf16.msra.mxu0 %v10634
    %11335 = vmatpush.bf16.msra.mxu0 %v10630
    %11336 = vmatmul.bf16.gmra.mxu0 %v9524
    %v11337 = vpop.f32.mrf.mxu0
    %v11338 = vadd.f32 %v11324, %v11337
    %v11339 = vpop.f32.mrf.mxu0
    %v11340 = vadd.f32 %v11326, %v11339
    %11341 = vdwg.mxu0
    %11342 = vmatpush.bf16.msra.mxu0 %v10690
    %11343 = vmatpush.bf16.msra.mxu0 %v10686
    %11344 = vmatpush.bf16.msra.mxu0 %v10682
    %11345 = vmatpush.bf16.msra.mxu0 %v10678
    %11346 = vmatpush.bf16.msra.mxu0 %v10674
    %11347 = vmatpush.bf16.msra.mxu0 %v10670
    %11348 = vmatpush.bf16.msra.mxu0 %v10666
    %11349 = vmatpush.bf16.msra.mxu0 %v10662
    %11350 = vmatmul.bf16.gmra.mxu0 %v9525
    %v11351 = vpop.f32.mrf.mxu0
    %v11352 = vadd.f32 %v11338, %v11351
    %v11353 = vpop.f32.mrf.mxu0
    %v11354 = vadd.f32 %v11340, %v11353
    %11355 = vdwg.mxu0
    %11356 = vmatpush.bf16.msra.mxu0 %v10722
    %11357 = vmatpush.bf16.msra.mxu0 %v10718
    %11358 = vmatpush.bf16.msra.mxu0 %v10714
    %11359 = vmatpush.bf16.msra.mxu0 %v10710
    %11360 = vmatpush.bf16.msra.mxu0 %v10706
    %11361 = vmatpush.bf16.msra.mxu0 %v10702
    %11362 = vmatpush.bf16.msra.mxu0 %v10698
    %11363 = vmatpush.bf16.msra.mxu0 %v10694
    %11364 = vmatmul.bf16.gmra.mxu0 %v9526
    %v11365 = vpop.f32.mrf.mxu0
    %v11366 = vadd.f32 %v11352, %v11365
    %v11367 = vpop.f32.mrf.mxu0
    %v11368 = vadd.f32 %v11354, %v11367
    %11369 = vdwg.mxu0
    %11370 = vmatpush.bf16.msra.mxu0 %v10754
    %11371 = vmatpush.bf16.msra.mxu0 %v10750
    %11372 = vmatpush.bf16.msra.mxu0 %v10746
    %11373 = vmatpush.bf16.msra.mxu0 %v10742
    %11374 = vmatpush.bf16.msra.mxu0 %v10738
    %11375 = vmatpush.bf16.msra.mxu0 %v10734
    %11376 = vmatpush.bf16.msra.mxu0 %v10730
    %11377 = vmatpush.bf16.msra.mxu0 %v10726
    %11378 = vmatmul.bf16.gmra.mxu0 %v9527
    %v11379 = vpop.f32.mrf.mxu0
    %v11380 = vadd.f32 %v11366, %v11379
    %v11381 = vpop.f32.mrf.mxu0
    %v11382 = vadd.f32 %v11368, %v11381
    %11383 = vdwg.mxu0
    %11384 = vmatpush.bf16.msra.mxu0 %v10786
    %11385 = vmatpush.bf16.msra.mxu0 %v10782
    %11386 = vmatpush.bf16.msra.mxu0 %v10778
    %11387 = vmatpush.bf16.msra.mxu0 %v10774
    %11388 = vmatpush.bf16.msra.mxu0 %v10770
    %11389 = vmatpush.bf16.msra.mxu0 %v10766
    %11390 = vmatpush.bf16.msra.mxu0 %v10762
    %11391 = vmatpush.bf16.msra.mxu0 %v10758
    %11392 = vmatmul.bf16.gmra.mxu0 %v9528
    %v11393 = vpop.f32.mrf.mxu0
    %v11394 = vadd.f32 %v11380, %v11393
    %v11395 = vpop.f32.mrf.mxu0
    %v11396 = vadd.f32 %v11382, %v11395
    %11397 = vdwg.mxu0
    %11398 = vmatpush.bf16.msra.mxu0 %v10818
    %11399 = vmatpush.bf16.msra.mxu0 %v10814
    %11400 = vmatpush.bf16.msra.mxu0 %v10810
    %11401 = vmatpush.bf16.msra.mxu0 %v10806
    %11402 = vmatpush.bf16.msra.mxu0 %v10802
    %11403 = vmatpush.bf16.msra.mxu0 %v10798
    %11404 = vmatpush.bf16.msra.mxu0 %v10794
    %11405 = vmatpush.bf16.msra.mxu0 %v10790
    %11406 = vmatmul.bf16.gmra.mxu0 %v9529
    %v11407 = vpop.f32.mrf.mxu0
    %v11408 = vadd.f32 %v11394, %v11407
    %v11409 = vpop.f32.mrf.mxu0
    %v11410 = vadd.f32 %v11396, %v11409
    %11411 = vdwg.mxu0
    %11412 = vmatpush.bf16.msra.mxu0 %v10595
    %11413 = vmatpush.bf16.msra.mxu0 %v10591
    %11414 = vmatpush.bf16.msra.mxu0 %v10587
    %11415 = vmatpush.bf16.msra.mxu0 %v10583
    %11416 = vmatpush.bf16.msra.mxu0 %v10579
    %11417 = vmatpush.bf16.msra.mxu0 %v10575
    %11418 = vmatpush.bf16.msra.mxu0 %v10571
    %11419 = vmatpush.bf16.msra.mxu0 %v10567
    %11420 = vmatmul.bf16.gmra.mxu0 %v9522
    %v11421 = vpop.f32.mrf.mxu0
    %v11422 = vadd.f32 %v9791, %v11421
    %v11423 = vpop.f32.mrf.mxu0
    %v11424 = vadd.f32 %v9791, %v11423
    %11425 = vdwg.mxu0
    %11426 = vmatpush.bf16.msra.mxu0 %v10627
    %11427 = vmatpush.bf16.msra.mxu0 %v10623
    %11428 = vmatpush.bf16.msra.mxu0 %v10619
    %11429 = vmatpush.bf16.msra.mxu0 %v10615
    %11430 = vmatpush.bf16.msra.mxu0 %v10611
    %11431 = vmatpush.bf16.msra.mxu0 %v10607
    %11432 = vmatpush.bf16.msra.mxu0 %v10603
    %11433 = vmatpush.bf16.msra.mxu0 %v10599
    %11434 = vmatmul.bf16.gmra.mxu0 %v9523
    %v11435 = vpop.f32.mrf.mxu0
    %v11436 = vadd.f32 %v11422, %v11435
    %v11437 = vpop.f32.mrf.mxu0
    %v11438 = vadd.f32 %v11424, %v11437
    %11439 = vdwg.mxu0
    %11440 = vmatpush.bf16.msra.mxu0 %v10659
    %11441 = vmatpush.bf16.msra.mxu0 %v10655
    %11442 = vmatpush.bf16.msra.mxu0 %v10651
    %11443 = vmatpush.bf16.msra.mxu0 %v10647
    %11444 = vmatpush.bf16.msra.mxu0 %v10643
    %11445 = vmatpush.bf16.msra.mxu0 %v10639
    %11446 = vmatpush.bf16.msra.mxu0 %v10635
    %11447 = vmatpush.bf16.msra.mxu0 %v10631
    %11448 = vmatmul.bf16.gmra.mxu0 %v9524
    %v11449 = vpop.f32.mrf.mxu0
    %v11450 = vadd.f32 %v11436, %v11449
    %v11451 = vpop.f32.mrf.mxu0
    %v11452 = vadd.f32 %v11438, %v11451
    %11453 = vdwg.mxu0
    %11454 = vmatpush.bf16.msra.mxu0 %v10691
    %11455 = vmatpush.bf16.msra.mxu0 %v10687
    %11456 = vmatpush.bf16.msra.mxu0 %v10683
    %11457 = vmatpush.bf16.msra.mxu0 %v10679
    %11458 = vmatpush.bf16.msra.mxu0 %v10675
    %11459 = vmatpush.bf16.msra.mxu0 %v10671
    %11460 = vmatpush.bf16.msra.mxu0 %v10667
    %11461 = vmatpush.bf16.msra.mxu0 %v10663
    %11462 = vmatmul.bf16.gmra.mxu0 %v9525
    %v11463 = vpop.f32.mrf.mxu0
    %v11464 = vadd.f32 %v11450, %v11463
    %v11465 = vpop.f32.mrf.mxu0
    %v11466 = vadd.f32 %v11452, %v11465
    %11467 = vdwg.mxu0
    %11468 = vmatpush.bf16.msra.mxu0 %v10723
    %11469 = vmatpush.bf16.msra.mxu0 %v10719
    %11470 = vmatpush.bf16.msra.mxu0 %v10715
    %11471 = vmatpush.bf16.msra.mxu0 %v10711
    %11472 = vmatpush.bf16.msra.mxu0 %v10707
    %11473 = vmatpush.bf16.msra.mxu0 %v10703
    %11474 = vmatpush.bf16.msra.mxu0 %v10699
    %11475 = vmatpush.bf16.msra.mxu0 %v10695
    %11476 = vmatmul.bf16.gmra.mxu0 %v9526
    %v11477 = vpop.f32.mrf.mxu0
    %v11478 = vadd.f32 %v11464, %v11477
    %v11479 = vpop.f32.mrf.mxu0
    %v11480 = vadd.f32 %v11466, %v11479
    %11481 = vdwg.mxu0
    %11482 = vmatpush.bf16.msra.mxu0 %v10755
    %11483 = vmatpush.bf16.msra.mxu0 %v10751
    %11484 = vmatpush.bf16.msra.mxu0 %v10747
    %11485 = vmatpush.bf16.msra.mxu0 %v10743
    %11486 = vmatpush.bf16.msra.mxu0 %v10739
    %11487 = vmatpush.bf16.msra.mxu0 %v10735
    %11488 = vmatpush.bf16.msra.mxu0 %v10731
    %11489 = vmatpush.bf16.msra.mxu0 %v10727
    %11490 = vmatmul.bf16.gmra.mxu0 %v9527
    %v11491 = vpop.f32.mrf.mxu0
    %v11492 = vadd.f32 %v11478, %v11491
    %v11493 = vpop.f32.mrf.mxu0
    %v11494 = vadd.f32 %v11480, %v11493
    %11495 = vdwg.mxu0
    %11496 = vmatpush.bf16.msra.mxu0 %v10787
    %11497 = vmatpush.bf16.msra.mxu0 %v10783
    %11498 = vmatpush.bf16.msra.mxu0 %v10779
    %11499 = vmatpush.bf16.msra.mxu0 %v10775
    %11500 = vmatpush.bf16.msra.mxu0 %v10771
    %11501 = vmatpush.bf16.msra.mxu0 %v10767
    %11502 = vmatpush.bf16.msra.mxu0 %v10763
    %11503 = vmatpush.bf16.msra.mxu0 %v10759
    %11504 = vmatmul.bf16.gmra.mxu0 %v9528
    %v11505 = vpop.f32.mrf.mxu0
    %v11506 = vadd.f32 %v11492, %v11505
    %v11507 = vpop.f32.mrf.mxu0
    %v11508 = vadd.f32 %v11494, %v11507
    %11509 = vdwg.mxu0
    %11510 = vmatpush.bf16.msra.mxu0 %v10819
    %11511 = vmatpush.bf16.msra.mxu0 %v10815
    %11512 = vmatpush.bf16.msra.mxu0 %v10811
    %11513 = vmatpush.bf16.msra.mxu0 %v10807
    %11514 = vmatpush.bf16.msra.mxu0 %v10803
    %11515 = vmatpush.bf16.msra.mxu0 %v10799
    %11516 = vmatpush.bf16.msra.mxu0 %v10795
    %11517 = vmatpush.bf16.msra.mxu0 %v10791
    %11518 = vmatmul.bf16.gmra.mxu0 %v9529
    %v11519 = vpop.f32.mrf.mxu0
    %v11520 = vadd.f32 %v11506, %v11519
    %v11521 = vpop.f32.mrf.mxu0
    %v11522 = vadd.f32 %v11508, %v11521
    %11523 = vdwg.mxu0
    %11524 = vst [vmem:[#allocation22] sm:$0xff] %v11184
    %11525 = vst [vmem:[#allocation22 + $0x8] sm:$0xff] %v11296
    %11526 = vst [vmem:[#allocation22 + $0x10] sm:$0xff] %v11408
    %11527 = vst [vmem:[#allocation22 + $0x18] sm:$0xff] %v11520
    %11528 = vst [vmem:[#allocation22 + $0x20] sm:$0xff] %v11186
    %11529 = vst [vmem:[#allocation22 + $0x28] sm:$0xff] %v11298
    %11530 = vst [vmem:[#allocation22 + $0x30] sm:$0xff] %v11410
    %11531 = vst [vmem:[#allocation22 + $0x38] sm:$0xff] %v11522
    // Predicated region
    $region106: #{tpu_custom_call.1} parent=1 // pred_check
      _
    $region107: #{tpu_custom_call.1} parent=1 // pred_check_branch
      %11533 = sbr.rel (0) target = $region109
    $region108: #{tpu_custom_call.1} parent=1 // pred_region
      %11535 = vsyncadd [#allocation4], 0
      %s11536 = sshll.u32 [#allocation22], 4
      %s11537 = int_to_ptr.vmem [resolvable:$true] %s11536
      %s11538 = sshll.u32 %s14, 4
      %s11539 = int_to_ptr.hbm [resolvable:$true] %s11538
      %11544 = dma.vmem_to_hbm [thread:$0]  %s11537, 1024, %s11539, [#allocation4], 512, 512, 32
    $region109: #{tpu_custom_call.1} parent=1 // pred_fallthru
      _
    // Predicated region
    $region110: #{tpu_custom_call.1} parent=1 // pred_check
      _
    $region111: #{tpu_custom_call.1} parent=1 // pred_check_branch
      %11546 = sbr.rel (0) target = $region113
    $region112: #{tpu_custom_call.1} parent=1 // pred_region
      %11548 = dma.done [#allocation4], 1024
    $region113: #{tpu_custom_call.1} parent=1 // pred_fallthru
      _
    %11549 = vsyncpa [#allocation3], 1
    %11550 = vsyncpa [#allocation6], 1
    %11551 = vsyncpa [#allocation9], 1
    %11552 = vsyncpa [#allocation12], 1
    %11553 = vsyncpa [#allocation15], 1
    %11554 = vsyncpa [#allocation18], 1
    %11555 = vsyncpa [#allocation21], 1
    %11556 = vsyncpa [#allocation4], 1

</llo_original>
